<compile_context>
chip_gen: v5e
topology: v5e:2x2
jax: 0.10.0
libtpu: 0.0.40
codegen_flags: <defaults>
</compile_context>

<pallas_src>
import functools

import jax
import jax.numpy as jnp
from jax.experimental import pallas as pl
from jax.experimental.pallas import tpu as pltpu

# ----------------------------- config / args --------------------------------
HIDDEN = 768                 # config.hidden_size (fixed by reshapes in torch code)
FILTER_SIZE = 3              # args.filter_size  -> filter sizes [1, 2, 3]
FILTER_SIZES = [i + 1 for i in range(FILTER_SIZE)]
N_FILTERS = 8                # args.cnn_size (TextCNN n_filters)
D_SIZE = 16                  # args.d_size
SEQ_LEN = FILTER_SIZE        # required: L * 768 == filter_size * 768
NUM_CLASSES = 2


# ------------------------------ fused kernel --------------------------------
def _fused_model_kernel(
    x_ref, onehot_ref,
    w1_ref, b1_ref, w2_ref, b2_ref, w3_ref, b3_ref,
    fcw_ref, fcb_ref, linw_ref, linb_ref,
    dw_ref, db_ref, cw_ref, cb_ref, ow_ref, ob_ref,
    prob_ref, loss_ref,
    *, B, L, H, NF, D,
):
    f32 = jnp.float32
    bf16 = jnp.bfloat16
    B2 = 2 * B

    # Activations resident in vregs; bf16 copy feeds the MXU.
    xb = x_ref[...].astype(bf16)                            # (L, 2B, H)

    conv_w = (w1_ref, w2_ref, w3_ref)
    conv_b = (b1_ref, b2_ref, b3_ref)

    # ---- TextCNN: conv1d(fs) + relu + max-pool over time, fs = 1..L --------
    pooled = []
    for fs in range(1, L + 1):
        T = L - fs + 1
        w_ref = conv_w[fs - 1]
        bias = conv_b[fs - 1][...]                          # (1, NF) f32
        pool = None
        for t in range(T):                                  # small static loops
            acc = bias
            for k in range(fs):
                acc = acc + jnp.dot(xb[t + k], w_ref[k * H:(k + 1) * H, :],
                                    preferred_element_type=f32)
            y = jnp.maximum(acc, 0.0)                       # relu, (2B, NF)
            pool = y if pool is None else jnp.maximum(pool, y)
        pooled.append(pool)                                 # (2B, NF)

    # ---- TextCNN.fc on cat(pooled): split fc_w by row blocks (no lane-cat).
    cnn_out = fcb_ref[...]                                  # (1, D) f32
    for i in range(len(pooled)):
        cnn_out = cnn_out + jnp.dot(pooled[i], fcw_ref[i * NF:(i + 1) * NF, :],
                                    preferred_element_type=f32)   # (2B, D)

    # ---- CNNFuse.linear on flattened features: split lin_w per timestep.
    feat = linb_ref[...]                                    # (1, D) f32
    for t in range(L):
        feat = feat + jnp.dot(xb[t], linw_ref[t * H:(t + 1) * H, :],
                              preferred_element_type=f32)   # (2B, D)

    # ---- CNNFuse.dense on cat([cnn_out, feat]): split dense_w by rows.
    branch = (db_ref[...]
              + jnp.dot(cnn_out.astype(bf16), dw_ref[0:D, :],
                        preferred_element_type=f32)
              + jnp.dot(feat.astype(bf16), dw_ref[D:2 * D, :],
                        preferred_element_type=f32))        # (2B, H)

    # ---- RobertaClassificationHead on cat([anchor, positive], dim=1).
    an = branch[0:B, :]                                     # (B, H)
    co = branch[B:B2, :]                                    # (B, H)
    h = (cb_ref[...]
         + jnp.dot(an.astype(bf16), cw_ref[0:H, :], preferred_element_type=f32)
         + jnp.dot(co.astype(bf16), cw_ref[H:2 * H, :], preferred_element_type=f32))
    h = jnp.tanh(h)                                         # (B, H)
    logits = jnp.dot(h, ow_ref[...], preferred_element_type=f32) + ob_ref[...]

    # ---- softmax(dim=1) + mean cross-entropy (logits never leave VMEM) -----
    m = jnp.max(logits, axis=1, keepdims=True)
    e = jnp.exp(logits - m)
    s = jnp.sum(e, axis=1, keepdims=True)
    prob_ref[...] = (e / s).astype(prob_ref.dtype)
    logz = jnp.log(s) + m                                   # (B, 1)
    tgt = jnp.sum(logits * onehot_ref[...], axis=1, keepdims=True)
    loss_ref[...] = jnp.mean(logz - tgt).reshape(1, 1)


# ------------------------------ parameter init ------------------------------
def _default_linear_init(key, fan_in, fan_out, w_dtype=jnp.float32):
    # nn.Linear default: U(-1/sqrt(fan_in), 1/sqrt(fan_in))
    bound = 1.0 / (fan_in ** 0.5)
    kw, kb = jax.random.split(key)
    w = jax.random.uniform(kw, (fan_in, fan_out), jnp.float32, -bound, bound)
    b = jax.random.uniform(kb, (1, fan_out), jnp.float32, -bound, bound)
    return w.astype(w_dtype), b


def init_params(key):
    keys = jax.random.split(key, 8)
    params = {}

    # TextCNN convs: xavier_uniform weights (stored bf16), bias = 0.1
    conv = []
    for idx, fs in enumerate(FILTER_SIZES):
        fan_in, fan_out = fs * HIDDEN, N_FILTERS
        bound = (6.0 / (fan_in + fan_out)) ** 0.5
        w = jax.random.uniform(
            jax.random.fold_in(keys[0], idx), (fan_in, fan_out), jnp.float32,
            -bound, bound)
        conv.append((w.astype(jnp.bfloat16),
                     jnp.full((1, fan_out), 0.1, jnp.float32)))
    params["conv"] = conv

    # TextCNN.fc: kaiming_normal weight, bias = 0 (tiny -> keep f32)
    fc_in = len(FILTER_SIZES) * N_FILTERS
    params["fc_w"] = (
        jax.random.normal(keys[1], (fc_in, D_SIZE), jnp.float32) * (2.0 / fc_in) ** 0.5
    )
    params["fc_b"] = jnp.zeros((1, D_SIZE), jnp.float32)

    # CNNFuse.linear : (filter_size * hidden) -> d_size   (bf16 weights)
    params["lin_w"], params["lin_b"] = _default_linear_init(
        keys[2], SEQ_LEN * HIDDEN, D_SIZE, jnp.bfloat16)
    # CNNFuse.dense  : (2 * d_size) -> hidden              (bf16 weights)
    params["dense_w"], params["dense_b"] = _default_linear_init(
        keys[3], 2 * D_SIZE, HIDDEN, jnp.bfloat16)
    # RobertaClassificationHead.dense : 1536 -> 768        (bf16 weights)
    params["cls_dense_w"], params["cls_dense_b"] = _default_linear_init(
        keys[4], 2 * HIDDEN, HIDDEN, jnp.bfloat16)
    # RobertaClassificationHead.out_proj : 768 -> 2        (tiny -> f32)
    params["out_w"], params["out_b"] = _default_linear_init(
        keys[5], HIDDEN, NUM_CLASSES)
    return params


# ------------------------------ model forward -------------------------------
def model_forward(anchor, positive, labels, params):
    B, L, H = anchor.shape
    assert L == SEQ_LEN and H == HIDDEN

    # Batch the two branches together: weights hit VMEM once, matmul M doubles.
    x = jnp.concatenate([anchor, positive], axis=0)         # (2B, L, H)
    x = jnp.transpose(x, (1, 0, 2))                         # (L, 2B, H) -> ref[t]
    onehot = jax.nn.one_hot(labels, NUM_CLASSES, dtype=jnp.float32)

    c = params["conv"]
    inputs = (
        x, onehot,
        c[0][0], c[0][1], c[1][0], c[1][1], c[2][0], c[2][1],
        params["fc_w"], params["fc_b"],
        params["lin_w"], params["lin_b"],
        params["dense_w"], params["dense_b"],
        params["cls_dense_w"], params["cls_dense_b"],
        params["out_w"], params["out_b"],
    )

    def full_block(a):
        nd = a.ndim
        return pl.BlockSpec(a.shape, lambda i, _nd=nd: (0,) * _nd)

    prob, loss = pl.pallas_call(
        functools.partial(_fused_model_kernel, B=B, L=L, H=H,
                          NF=N_FILTERS, D=D_SIZE),
        grid=(1,),
        in_specs=[full_block(a) for a in inputs],
        out_specs=[
            pl.BlockSpec((B, NUM_CLASSES), lambda i: (0, 0)),
            pl.BlockSpec((1, 1), lambda i: (0, 0)),
        ],
        out_shape=(
            jax.ShapeDtypeStruct((B, NUM_CLASSES), jnp.float32),
            jax.ShapeDtypeStruct((1, 1), jnp.float32),
        ),
        compiler_params=pltpu.CompilerParams(
            dimension_semantics=("arbitrary",)),
    )(*inputs)
    return loss[0, 0], prob


# ---------------------------------- main -------------------------------------
if __name__ == "__main__":
    key = jax.random.PRNGKey(0)
    k_anchor, k_pos, k_params = jax.random.split(key, 3)

    B = 2
    anchor = jax.random.normal(k_anchor, (B, SEQ_LEN, HIDDEN), jnp.float32)
    positive = jax.random.normal(k_pos, (B, SEQ_LEN, HIDDEN), jnp.float32)
    labels = jnp.array([0, 1], dtype=jnp.int32)

    params = init_params(k_params)

    fwd = jax.jit(model_forward)
    loss, prob = fwd(anchor, positive, labels, params)
    jax.block_until_ready((loss, prob))

    assert prob.shape == (B, NUM_CLASSES)
    assert loss.shape == ()
    print("KERNEL_OK")
</pallas_src>

<mosaic_0001>
module attributes {stable_mosaic.version = 11 : i64} {
  func.func @_fused_model_kernel(%arg0: i32, %arg1: memref<3x4x768xf32, #tpu.memory_space<vmem>>, %arg2: memref<2x2xf32, #tpu.memory_space<vmem>>, %arg3: memref<768x8xbf16, #tpu.memory_space<vmem>>, %arg4: memref<1x8xf32, #tpu.memory_space<vmem>>, %arg5: memref<1536x8xbf16, #tpu.memory_space<vmem>>, %arg6: memref<1x8xf32, #tpu.memory_space<vmem>>, %arg7: memref<2304x8xbf16, #tpu.memory_space<vmem>>, %arg8: memref<1x8xf32, #tpu.memory_space<vmem>>, %arg9: memref<24x16xf32, #tpu.memory_space<vmem>>, %arg10: memref<1x16xf32, #tpu.memory_space<vmem>>, %arg11: memref<2304x16xbf16, #tpu.memory_space<vmem>>, %arg12: memref<1x16xf32, #tpu.memory_space<vmem>>, %arg13: memref<32x768xbf16, #tpu.memory_space<vmem>>, %arg14: memref<1x768xf32, #tpu.memory_space<vmem>>, %arg15: memref<1536x768xbf16, #tpu.memory_space<vmem>>, %arg16: memref<1x768xf32, #tpu.memory_space<vmem>>, %arg17: memref<768x2xf32, #tpu.memory_space<vmem>>, %arg18: memref<1x2xf32, #tpu.memory_space<vmem>>, %arg19: memref<2x2xf32, #tpu.memory_space<vmem>>, %arg20: memref<1x1xf32, #tpu.memory_space<vmem>>) attributes {dimension_semantics = [#tpu.dimension_semantics<arbitrary>], iteration_bounds = array<i64: 1>, scalar_prefetch = 0 : i64, scratch_operands = 0 : i64, tpu.core_type = #tpu.core_type<tc>, window_params = [{pipeline_mode = #tpu.pipeline_mode<synchronous>, transform_indices = @transform_0, window_bounds = array<i64: 3, 4, 768>}, {pipeline_mode = #tpu.pipeline_mode<synchronous>, transform_indices = @transform_1, window_bounds = array<i64: 2, 2>}, {pipeline_mode = #tpu.pipeline_mode<synchronous>, transform_indices = @transform_2, window_bounds = array<i64: 768, 8>}, {pipeline_mode = #tpu.pipeline_mode<synchronous>, transform_indices = @transform_3, window_bounds = array<i64: 1, 8>}, {pipeline_mode = #tpu.pipeline_mode<synchronous>, transform_indices = @transform_4, window_bounds = array<i64: 1536, 8>}, {pipeline_mode = #tpu.pipeline_mode<synchronous>, transform_indices = @transform_5, window_bounds = array<i64: 1, 8>}, {pipeline_mode = #tpu.pipeline_mode<synchronous>, transform_indices = @transform_6, window_bounds = array<i64: 2304, 8>}, {pipeline_mode = #tpu.pipeline_mode<synchronous>, transform_indices = @transform_7, window_bounds = array<i64: 1, 8>}, {pipeline_mode = #tpu.pipeline_mode<synchronous>, transform_indices = @transform_8, window_bounds = array<i64: 24, 16>}, {pipeline_mode = #tpu.pipeline_mode<synchronous>, transform_indices = @transform_9, window_bounds = array<i64: 1, 16>}, {pipeline_mode = #tpu.pipeline_mode<synchronous>, transform_indices = @transform_10, window_bounds = array<i64: 2304, 16>}, {pipeline_mode = #tpu.pipeline_mode<synchronous>, transform_indices = @transform_11, window_bounds = array<i64: 1, 16>}, {pipeline_mode = #tpu.pipeline_mode<synchronous>, transform_indices = @transform_12, window_bounds = array<i64: 32, 768>}, {pipeline_mode = #tpu.pipeline_mode<synchronous>, transform_indices = @transform_13, window_bounds = array<i64: 1, 768>}, {pipeline_mode = #tpu.pipeline_mode<synchronous>, transform_indices = @transform_14, window_bounds = array<i64: 1536, 768>}, {pipeline_mode = #tpu.pipeline_mode<synchronous>, transform_indices = @transform_15, window_bounds = array<i64: 1, 768>}, {pipeline_mode = #tpu.pipeline_mode<synchronous>, transform_indices = @transform_16, window_bounds = array<i64: 768, 2>}, {pipeline_mode = #tpu.pipeline_mode<synchronous>, transform_indices = @transform_17, window_bounds = array<i64: 1, 2>}, {pipeline_mode = #tpu.pipeline_mode<synchronous>, transform_indices = @transform_18, window_bounds = array<i64: 2, 2>}, {pipeline_mode = #tpu.pipeline_mode<synchronous>, transform_indices = @transform_19, window_bounds = array<i64: 1, 1>}]} {
    %c0 = arith.constant 0 : index
    %c0_0 = arith.constant 0 : index
    %c0_1 = arith.constant 0 : index
    %0 = vector.load %arg1[%c0, %c0_0, %c0_1] : memref<3x4x768xf32, #tpu.memory_space<vmem>>, vector<3x4x768xf32>
    %1 = arith.truncf %0 : vector<3x4x768xf32> to vector<3x4x768xbf16>
    %c0_2 = arith.constant 0 : index
    %c0_3 = arith.constant 0 : index
    %2 = vector.load %arg4[%c0_2, %c0_3] : memref<1x8xf32, #tpu.memory_space<vmem>>, vector<1x8xf32>
    %3 = vector.extract_strided_slice %1 {offsets = [0, 0, 0], sizes = [1, 4, 768], strides = [1, 1, 1]} : vector<3x4x768xbf16> to vector<1x4x768xbf16>
    %4 = vector.shape_cast %3 : vector<1x4x768xbf16> to vector<4x768xbf16>
    %c0_4 = arith.constant 0 : index
    %c0_5 = arith.constant 0 : index
    %5 = vector.load %arg3[%c0_4, %c0_5] : memref<768x8xbf16, #tpu.memory_space<vmem>>, vector<768x8xbf16>
    %cst = arith.constant dense<0.000000e+00> : vector<4x8xf32>
    %6 = tpu.matmul %4, %5, %cst {dimension_numbers = #tpu.dot_dimension_numbers<[1], [0], [0], [1], [0, 0, 1, 1], [], []>} : vector<4x768xbf16>, vector<768x8xbf16>, vector<4x8xf32> -> vector<4x8xf32>
    %7 = vector.broadcast %2 : vector<1x8xf32> to vector<4x8xf32>
    %8 = arith.addf %7, %6 : vector<4x8xf32>
    %cst_6 = arith.constant 0.000000e+00 : f32
    %9 = vector.broadcast %cst_6 : f32 to vector<4x8xf32>
    %10 = arith.maximumf %8, %9 : vector<4x8xf32>
    %11 = vector.extract_strided_slice %1 {offsets = [1, 0, 0], sizes = [1, 4, 768], strides = [1, 1, 1]} : vector<3x4x768xbf16> to vector<1x4x768xbf16>
    %12 = vector.shape_cast %11 : vector<1x4x768xbf16> to vector<4x768xbf16>
    %c0_7 = arith.constant 0 : index
    %c0_8 = arith.constant 0 : index
    %13 = vector.load %arg3[%c0_7, %c0_8] : memref<768x8xbf16, #tpu.memory_space<vmem>>, vector<768x8xbf16>
    %cst_9 = arith.constant dense<0.000000e+00> : vector<4x8xf32>
    %14 = tpu.matmul %12, %13, %cst_9 {dimension_numbers = #tpu.dot_dimension_numbers<[1], [0], [0], [1], [0, 0, 1, 1], [], []>} : vector<4x768xbf16>, vector<768x8xbf16>, vector<4x8xf32> -> vector<4x8xf32>
    %15 = vector.broadcast %2 : vector<1x8xf32> to vector<4x8xf32>
    %16 = arith.addf %15, %14 : vector<4x8xf32>
    %cst_10 = arith.constant 0.000000e+00 : f32
    %17 = vector.broadcast %cst_10 : f32 to vector<4x8xf32>
    %18 = arith.maximumf %16, %17 : vector<4x8xf32>
    %19 = arith.maximumf %10, %18 : vector<4x8xf32>
    %20 = vector.extract_strided_slice %1 {offsets = [2, 0, 0], sizes = [1, 4, 768], strides = [1, 1, 1]} : vector<3x4x768xbf16> to vector<1x4x768xbf16>
    %21 = vector.shape_cast %20 : vector<1x4x768xbf16> to vector<4x768xbf16>
    %c0_11 = arith.constant 0 : index
    %c0_12 = arith.constant 0 : index
    %22 = vector.load %arg3[%c0_11, %c0_12] : memref<768x8xbf16, #tpu.memory_space<vmem>>, vector<768x8xbf16>
    %cst_13 = arith.constant dense<0.000000e+00> : vector<4x8xf32>
    %23 = tpu.matmul %21, %22, %cst_13 {dimension_numbers = #tpu.dot_dimension_numbers<[1], [0], [0], [1], [0, 0, 1, 1], [], []>} : vector<4x768xbf16>, vector<768x8xbf16>, vector<4x8xf32> -> vector<4x8xf32>
    %24 = vector.broadcast %2 : vector<1x8xf32> to vector<4x8xf32>
    %25 = arith.addf %24, %23 : vector<4x8xf32>
    %cst_14 = arith.constant 0.000000e+00 : f32
    %26 = vector.broadcast %cst_14 : f32 to vector<4x8xf32>
    %27 = arith.maximumf %25, %26 : vector<4x8xf32>
    %28 = arith.maximumf %19, %27 : vector<4x8xf32>
    %c0_15 = arith.constant 0 : index
    %c0_16 = arith.constant 0 : index
    %29 = vector.load %arg6[%c0_15, %c0_16] : memref<1x8xf32, #tpu.memory_space<vmem>>, vector<1x8xf32>
    %30 = vector.extract_strided_slice %1 {offsets = [0, 0, 0], sizes = [1, 4, 768], strides = [1, 1, 1]} : vector<3x4x768xbf16> to vector<1x4x768xbf16>
    %31 = vector.shape_cast %30 : vector<1x4x768xbf16> to vector<4x768xbf16>
    %c0_17 = arith.constant 0 : index
    %c0_18 = arith.constant 0 : index
    %32 = vector.load %arg5[%c0_17, %c0_18] : memref<1536x8xbf16, #tpu.memory_space<vmem>>, vector<768x8xbf16>
    %cst_19 = arith.constant dense<0.000000e+00> : vector<4x8xf32>
    %33 = tpu.matmul %31, %32, %cst_19 {dimension_numbers = #tpu.dot_dimension_numbers<[1], [0], [0], [1], [0, 0, 1, 1], [], []>} : vector<4x768xbf16>, vector<768x8xbf16>, vector<4x8xf32> -> vector<4x8xf32>
    %34 = vector.broadcast %29 : vector<1x8xf32> to vector<4x8xf32>
    %35 = arith.addf %34, %33 : vector<4x8xf32>
    %36 = vector.extract_strided_slice %1 {offsets = [1, 0, 0], sizes = [1, 4, 768], strides = [1, 1, 1]} : vector<3x4x768xbf16> to vector<1x4x768xbf16>
    %37 = vector.shape_cast %36 : vector<1x4x768xbf16> to vector<4x768xbf16>
    %c768 = arith.constant 768 : index
    %c0_20 = arith.constant 0 : index
    %38 = vector.load %arg5[%c768, %c0_20] : memref<1536x8xbf16, #tpu.memory_space<vmem>>, vector<768x8xbf16>
    %cst_21 = arith.constant dense<0.000000e+00> : vector<4x8xf32>
    %39 = tpu.matmul %37, %38, %cst_21 {dimension_numbers = #tpu.dot_dimension_numbers<[1], [0], [0], [1], [0, 0, 1, 1], [], []>} : vector<4x768xbf16>, vector<768x8xbf16>, vector<4x8xf32> -> vector<4x8xf32>
    %40 = arith.addf %35, %39 : vector<4x8xf32>
    %cst_22 = arith.constant 0.000000e+00 : f32
    %41 = vector.broadcast %cst_22 : f32 to vector<4x8xf32>
    %42 = arith.maximumf %40, %41 : vector<4x8xf32>
    %43 = vector.extract_strided_slice %1 {offsets = [1, 0, 0], sizes = [1, 4, 768], strides = [1, 1, 1]} : vector<3x4x768xbf16> to vector<1x4x768xbf16>
    %44 = vector.shape_cast %43 : vector<1x4x768xbf16> to vector<4x768xbf16>
    %c0_23 = arith.constant 0 : index
    %c0_24 = arith.constant 0 : index
    %45 = vector.load %arg5[%c0_23, %c0_24] : memref<1536x8xbf16, #tpu.memory_space<vmem>>, vector<768x8xbf16>
    %cst_25 = arith.constant dense<0.000000e+00> : vector<4x8xf32>
    %46 = tpu.matmul %44, %45, %cst_25 {dimension_numbers = #tpu.dot_dimension_numbers<[1], [0], [0], [1], [0, 0, 1, 1], [], []>} : vector<4x768xbf16>, vector<768x8xbf16>, vector<4x8xf32> -> vector<4x8xf32>
    %47 = vector.broadcast %29 : vector<1x8xf32> to vector<4x8xf32>
    %48 = arith.addf %47, %46 : vector<4x8xf32>
    %49 = vector.extract_strided_slice %1 {offsets = [2, 0, 0], sizes = [1, 4, 768], strides = [1, 1, 1]} : vector<3x4x768xbf16> to vector<1x4x768xbf16>
    %50 = vector.shape_cast %49 : vector<1x4x768xbf16> to vector<4x768xbf16>
    %c768_26 = arith.constant 768 : index
    %c0_27 = arith.constant 0 : index
    %51 = vector.load %arg5[%c768_26, %c0_27] : memref<1536x8xbf16, #tpu.memory_space<vmem>>, vector<768x8xbf16>
    %cst_28 = arith.constant dense<0.000000e+00> : vector<4x8xf32>
    %52 = tpu.matmul %50, %51, %cst_28 {dimension_numbers = #tpu.dot_dimension_numbers<[1], [0], [0], [1], [0, 0, 1, 1], [], []>} : vector<4x768xbf16>, vector<768x8xbf16>, vector<4x8xf32> -> vector<4x8xf32>
    %53 = arith.addf %48, %52 : vector<4x8xf32>
    %cst_29 = arith.constant 0.000000e+00 : f32
    %54 = vector.broadcast %cst_29 : f32 to vector<4x8xf32>
    %55 = arith.maximumf %53, %54 : vector<4x8xf32>
    %56 = arith.maximumf %42, %55 : vector<4x8xf32>
    %c0_30 = arith.constant 0 : index
    %c0_31 = arith.constant 0 : index
    %57 = vector.load %arg8[%c0_30, %c0_31] : memref<1x8xf32, #tpu.memory_space<vmem>>, vector<1x8xf32>
    %58 = vector.extract_strided_slice %1 {offsets = [0, 0, 0], sizes = [1, 4, 768], strides = [1, 1, 1]} : vector<3x4x768xbf16> to vector<1x4x768xbf16>
    %59 = vector.shape_cast %58 : vector<1x4x768xbf16> to vector<4x768xbf16>
    %c0_32 = arith.constant 0 : index
    %c0_33 = arith.constant 0 : index
    %60 = vector.load %arg7[%c0_32, %c0_33] : memref<2304x8xbf16, #tpu.memory_space<vmem>>, vector<768x8xbf16>
    %cst_34 = arith.constant dense<0.000000e+00> : vector<4x8xf32>
    %61 = tpu.matmul %59, %60, %cst_34 {dimension_numbers = #tpu.dot_dimension_numbers<[1], [0], [0], [1], [0, 0, 1, 1], [], []>} : vector<4x768xbf16>, vector<768x8xbf16>, vector<4x8xf32> -> vector<4x8xf32>
    %62 = vector.broadcast %57 : vector<1x8xf32> to vector<4x8xf32>
    %63 = arith.addf %62, %61 : vector<4x8xf32>
    %64 = vector.extract_strided_slice %1 {offsets = [1, 0, 0], sizes = [1, 4, 768], strides = [1, 1, 1]} : vector<3x4x768xbf16> to vector<1x4x768xbf16>
    %65 = vector.shape_cast %64 : vector<1x4x768xbf16> to vector<4x768xbf16>
    %c768_35 = arith.constant 768 : index
    %c0_36 = arith.constant 0 : index
    %66 = vector.load %arg7[%c768_35, %c0_36] : memref<2304x8xbf16, #tpu.memory_space<vmem>>, vector<768x8xbf16>
    %cst_37 = arith.constant dense<0.000000e+00> : vector<4x8xf32>
    %67 = tpu.matmul %65, %66, %cst_37 {dimension_numbers = #tpu.dot_dimension_numbers<[1], [0], [0], [1], [0, 0, 1, 1], [], []>} : vector<4x768xbf16>, vector<768x8xbf16>, vector<4x8xf32> -> vector<4x8xf32>
    %68 = arith.addf %63, %67 : vector<4x8xf32>
    %69 = vector.extract_strided_slice %1 {offsets = [2, 0, 0], sizes = [1, 4, 768], strides = [1, 1, 1]} : vector<3x4x768xbf16> to vector<1x4x768xbf16>
    %70 = vector.shape_cast %69 : vector<1x4x768xbf16> to vector<4x768xbf16>
    %c1536 = arith.constant 1536 : index
    %c0_38 = arith.constant 0 : index
    %71 = vector.load %arg7[%c1536, %c0_38] : memref<2304x8xbf16, #tpu.memory_space<vmem>>, vector<768x8xbf16>
    %cst_39 = arith.constant dense<0.000000e+00> : vector<4x8xf32>
    %72 = tpu.matmul %70, %71, %cst_39 {dimension_numbers = #tpu.dot_dimension_numbers<[1], [0], [0], [1], [0, 0, 1, 1], [], []>} : vector<4x768xbf16>, vector<768x8xbf16>, vector<4x8xf32> -> vector<4x8xf32>
    %73 = arith.addf %68, %72 : vector<4x8xf32>
    %cst_40 = arith.constant 0.000000e+00 : f32
    %74 = vector.broadcast %cst_40 : f32 to vector<4x8xf32>
    %75 = arith.maximumf %73, %74 : vector<4x8xf32>
    %c0_41 = arith.constant 0 : index
    %c0_42 = arith.constant 0 : index
    %76 = vector.load %arg10[%c0_41, %c0_42] : memref<1x16xf32, #tpu.memory_space<vmem>>, vector<1x16xf32>
    %c0_43 = arith.constant 0 : index
    %c0_44 = arith.constant 0 : index
    %77 = vector.load %arg9[%c0_43, %c0_44] : memref<24x16xf32, #tpu.memory_space<vmem>>, vector<8x16xf32>
    %cst_45 = arith.constant dense<0.000000e+00> : vector<4x16xf32>
    %78 = tpu.matmul %28, %77, %cst_45 {dimension_numbers = #tpu.dot_dimension_numbers<[1], [0], [0], [1], [0, 0, 1, 1], [], []>} : vector<4x8xf32>, vector<8x16xf32>, vector<4x16xf32> -> vector<4x16xf32>
    %79 = vector.broadcast %76 : vector<1x16xf32> to vector<4x16xf32>
    %80 = arith.addf %79, %78 : vector<4x16xf32>
    %c8 = arith.constant 8 : index
    %c0_46 = arith.constant 0 : index
    %81 = vector.load %arg9[%c8, %c0_46] : memref<24x16xf32, #tpu.memory_space<vmem>>, vector<8x16xf32>
    %cst_47 = arith.constant dense<0.000000e+00> : vector<4x16xf32>
    %82 = tpu.matmul %56, %81, %cst_47 {dimension_numbers = #tpu.dot_dimension_numbers<[1], [0], [0], [1], [0, 0, 1, 1], [], []>} : vector<4x8xf32>, vector<8x16xf32>, vector<4x16xf32> -> vector<4x16xf32>
    %83 = arith.addf %80, %82 : vector<4x16xf32>
    %c16 = arith.constant 16 : index
    %c0_48 = arith.constant 0 : index
    %84 = vector.load %arg9[%c16, %c0_48] : memref<24x16xf32, #tpu.memory_space<vmem>>, vector<8x16xf32>
    %cst_49 = arith.constant dense<0.000000e+00> : vector<4x16xf32>
    %85 = tpu.matmul %75, %84, %cst_49 {dimension_numbers = #tpu.dot_dimension_numbers<[1], [0], [0], [1], [0, 0, 1, 1], [], []>} : vector<4x8xf32>, vector<8x16xf32>, vector<4x16xf32> -> vector<4x16xf32>
    %86 = arith.addf %83, %85 : vector<4x16xf32>
    %c0_50 = arith.constant 0 : index
    %c0_51 = arith.constant 0 : index
    %87 = vector.load %arg12[%c0_50, %c0_51] : memref<1x16xf32, #tpu.memory_space<vmem>>, vector<1x16xf32>
    %88 = vector.extract_strided_slice %1 {offsets = [0, 0, 0], sizes = [1, 4, 768], strides = [1, 1, 1]} : vector<3x4x768xbf16> to vector<1x4x768xbf16>
    %89 = vector.shape_cast %88 : vector<1x4x768xbf16> to vector<4x768xbf16>
    %c0_52 = arith.constant 0 : index
    %c0_53 = arith.constant 0 : index
    %90 = vector.load %arg11[%c0_52, %c0_53] : memref<2304x16xbf16, #tpu.memory_space<vmem>>, vector<768x16xbf16>
    %cst_54 = arith.constant dense<0.000000e+00> : vector<4x16xf32>
    %91 = tpu.matmul %89, %90, %cst_54 {dimension_numbers = #tpu.dot_dimension_numbers<[1], [0], [0], [1], [0, 0, 1, 1], [], []>} : vector<4x768xbf16>, vector<768x16xbf16>, vector<4x16xf32> -> vector<4x16xf32>
    %92 = vector.broadcast %87 : vector<1x16xf32> to vector<4x16xf32>
    %93 = arith.addf %92, %91 : vector<4x16xf32>
    %94 = vector.extract_strided_slice %1 {offsets = [1, 0, 0], sizes = [1, 4, 768], strides = [1, 1, 1]} : vector<3x4x768xbf16> to vector<1x4x768xbf16>
    %95 = vector.shape_cast %94 : vector<1x4x768xbf16> to vector<4x768xbf16>
    %c768_55 = arith.constant 768 : index
    %c0_56 = arith.constant 0 : index
    %96 = vector.load %arg11[%c768_55, %c0_56] : memref<2304x16xbf16, #tpu.memory_space<vmem>>, vector<768x16xbf16>
    %cst_57 = arith.constant dense<0.000000e+00> : vector<4x16xf32>
    %97 = tpu.matmul %95, %96, %cst_57 {dimension_numbers = #tpu.dot_dimension_numbers<[1], [0], [0], [1], [0, 0, 1, 1], [], []>} : vector<4x768xbf16>, vector<768x16xbf16>, vector<4x16xf32> -> vector<4x16xf32>
    %98 = arith.addf %93, %97 : vector<4x16xf32>
    %99 = vector.extract_strided_slice %1 {offsets = [2, 0, 0], sizes = [1, 4, 768], strides = [1, 1, 1]} : vector<3x4x768xbf16> to vector<1x4x768xbf16>
    %100 = vector.shape_cast %99 : vector<1x4x768xbf16> to vector<4x768xbf16>
    %c1536_58 = arith.constant 1536 : index
    %c0_59 = arith.constant 0 : index
    %101 = vector.load %arg11[%c1536_58, %c0_59] : memref<2304x16xbf16, #tpu.memory_space<vmem>>, vector<768x16xbf16>
    %cst_60 = arith.constant dense<0.000000e+00> : vector<4x16xf32>
    %102 = tpu.matmul %100, %101, %cst_60 {dimension_numbers = #tpu.dot_dimension_numbers<[1], [0], [0], [1], [0, 0, 1, 1], [], []>} : vector<4x768xbf16>, vector<768x16xbf16>, vector<4x16xf32> -> vector<4x16xf32>
    %103 = arith.addf %98, %102 : vector<4x16xf32>
    %c0_61 = arith.constant 0 : index
    %c0_62 = arith.constant 0 : index
    %104 = vector.load %arg14[%c0_61, %c0_62] : memref<1x768xf32, #tpu.memory_space<vmem>>, vector<1x768xf32>
    %105 = arith.truncf %86 : vector<4x16xf32> to vector<4x16xbf16>
    %c0_63 = arith.constant 0 : index
    %c0_64 = arith.constant 0 : index
    %106 = vector.load %arg13[%c0_63, %c0_64] : memref<32x768xbf16, #tpu.memory_space<vmem>>, vector<16x768xbf16>
    %cst_65 = arith.constant dense<0.000000e+00> : vector<4x768xf32>
    %107 = tpu.matmul %105, %106, %cst_65 {dimension_numbers = #tpu.dot_dimension_numbers<[1], [0], [0], [1], [0, 0, 1, 1], [], []>} : vector<4x16xbf16>, vector<16x768xbf16>, vector<4x768xf32> -> vector<4x768xf32>
    %108 = vector.broadcast %104 : vector<1x768xf32> to vector<4x768xf32>
    %109 = arith.addf %108, %107 : vector<4x768xf32>
    %110 = arith.truncf %103 : vector<4x16xf32> to vector<4x16xbf16>
    %c16_66 = arith.constant 16 : index
    %c0_67 = arith.constant 0 : index
    %111 = vector.load %arg13[%c16_66, %c0_67] : memref<32x768xbf16, #tpu.memory_space<vmem>>, vector<16x768xbf16>
    %cst_68 = arith.constant dense<0.000000e+00> : vector<4x768xf32>
    %112 = tpu.matmul %110, %111, %cst_68 {dimension_numbers = #tpu.dot_dimension_numbers<[1], [0], [0], [1], [0, 0, 1, 1], [], []>} : vector<4x16xbf16>, vector<16x768xbf16>, vector<4x768xf32> -> vector<4x768xf32>
    %113 = arith.addf %109, %112 : vector<4x768xf32>
    %114 = vector.extract_strided_slice %113 {offsets = [0, 0], sizes = [2, 768], strides = [1, 1]} : vector<4x768xf32> to vector<2x768xf32>
    %115 = vector.extract_strided_slice %113 {offsets = [2, 0], sizes = [2, 768], strides = [1, 1]} : vector<4x768xf32> to vector<2x768xf32>
    %c0_69 = arith.constant 0 : index
    %c0_70 = arith.constant 0 : index
    %116 = vector.load %arg16[%c0_69, %c0_70] : memref<1x768xf32, #tpu.memory_space<vmem>>, vector<1x768xf32>
    %117 = arith.truncf %114 : vector<2x768xf32> to vector<2x768xbf16>
    %c0_71 = arith.constant 0 : index
    %c0_72 = arith.constant 0 : index
    %118 = vector.load %arg15[%c0_71, %c0_72] : memref<1536x768xbf16, #tpu.memory_space<vmem>>, vector<768x768xbf16>
    %cst_73 = arith.constant dense<0.000000e+00> : vector<2x768xf32>
    %119 = tpu.matmul %117, %118, %cst_73 {dimension_numbers = #tpu.dot_dimension_numbers<[1], [0], [0], [1], [0, 0, 1, 1], [], []>} : vector<2x768xbf16>, vector<768x768xbf16>, vector<2x768xf32> -> vector<2x768xf32>
    %120 = vector.broadcast %116 : vector<1x768xf32> to vector<2x768xf32>
    %121 = arith.addf %120, %119 : vector<2x768xf32>
    %122 = arith.truncf %115 : vector<2x768xf32> to vector<2x768xbf16>
    %c768_74 = arith.constant 768 : index
    %c0_75 = arith.constant 0 : index
    %123 = vector.load %arg15[%c768_74, %c0_75] : memref<1536x768xbf16, #tpu.memory_space<vmem>>, vector<768x768xbf16>
    %cst_76 = arith.constant dense<0.000000e+00> : vector<2x768xf32>
    %124 = tpu.matmul %122, %123, %cst_76 {dimension_numbers = #tpu.dot_dimension_numbers<[1], [0], [0], [1], [0, 0, 1, 1], [], []>} : vector<2x768xbf16>, vector<768x768xbf16>, vector<2x768xf32> -> vector<2x768xf32>
    %125 = arith.addf %121, %124 : vector<2x768xf32>
    %126 = math.tanh %125 : vector<2x768xf32>
    %c0_77 = arith.constant 0 : index
    %c0_78 = arith.constant 0 : index
    %127 = vector.load %arg17[%c0_77, %c0_78] : memref<768x2xf32, #tpu.memory_space<vmem>>, vector<768x2xf32>
    %cst_79 = arith.constant dense<0.000000e+00> : vector<2x2xf32>
    %128 = tpu.matmul %126, %127, %cst_79 {dimension_numbers = #tpu.dot_dimension_numbers<[1], [0], [0], [1], [0, 0, 1, 1], [], []>} : vector<2x768xf32>, vector<768x2xf32>, vector<2x2xf32> -> vector<2x2xf32>
    %c0_80 = arith.constant 0 : index
    %c0_81 = arith.constant 0 : index
    %129 = vector.load %arg18[%c0_80, %c0_81] : memref<1x2xf32, #tpu.memory_space<vmem>>, vector<1x2xf32>
    %130 = vector.broadcast %129 : vector<1x2xf32> to vector<2x2xf32>
    %131 = arith.addf %128, %130 : vector<2x2xf32>
    %cst_82 = arith.constant dense<0xFF800000> : vector<2xf32>
    %132 = vector.multi_reduction <maximumf>, %131, %cst_82 [1] : vector<2x2xf32> to vector<2xf32>
    %133 = vector.shape_cast %132 : vector<2xf32> to vector<2x1xf32>
    %134 = vector.broadcast %133 : vector<2x1xf32> to vector<2x2xf32>
    %135 = arith.subf %131, %134 : vector<2x2xf32>
    %136 = math.exp %135 : vector<2x2xf32>
    %cst_83 = arith.constant dense<0.000000e+00> : vector<2xf32>
    %137 = vector.multi_reduction <add>, %136, %cst_83 [1] : vector<2x2xf32> to vector<2xf32>
    %138 = vector.shape_cast %137 : vector<2xf32> to vector<2x1xf32>
    %139 = vector.broadcast %138 : vector<2x1xf32> to vector<2x2xf32>
    %140 = arith.divf %136, %139 : vector<2x2xf32>
    %c0_84 = arith.constant 0 : index
    %c0_85 = arith.constant 0 : index
    %141 = vector.load %arg19[%c0_84, %c0_85] : memref<2x2xf32, #tpu.memory_space<vmem>>, vector<2x2xf32>
    tpu.vector_store %arg19[%c0_84, %c0_85], %140 {strides = array<i32>} : memref<2x2xf32, #tpu.memory_space<vmem>>, vector<2x2xf32>,
    %142 = math.log %138 : vector<2x1xf32>
    %143 = arith.addf %142, %133 : vector<2x1xf32>
    %c0_86 = arith.constant 0 : index
    %c0_87 = arith.constant 0 : index
    %144 = vector.load %arg2[%c0_86, %c0_87] : memref<2x2xf32, #tpu.memory_space<vmem>>, vector<2x2xf32>
    %145 = arith.mulf %131, %144 : vector<2x2xf32>
    %cst_88 = arith.constant dense<0.000000e+00> : vector<2xf32>
    %146 = vector.multi_reduction <add>, %145, %cst_88 [1] : vector<2x2xf32> to vector<2xf32>
    %147 = vector.shape_cast %146 : vector<2xf32> to vector<2x1xf32>
    %148 = arith.subf %143, %147 : vector<2x1xf32>
    %149 = vector.shape_cast %148 : vector<2x1xf32> to vector<1x2x1xf32>
    %cst_89 = arith.constant dense<0.000000e+00> : vector<1xf32>
    %150 = vector.multi_reduction <add>, %149, %cst_89 [1, 2] : vector<1x2x1xf32> to vector<1xf32>
    %151 = vector.shape_cast %150 : vector<1xf32> to vector<1x1x1xf32>
    %152 = vector.extract %151[0, 0, 0] : f32 from vector<1x1x1xf32>
    %cst_90 = arith.constant 2.000000e+00 : f32
    %153 = arith.divf %152, %cst_90 : f32
    %154 = vector.broadcast %153 : f32 to vector<1x1xf32>
    %c0_91 = arith.constant 0 : index
    %c0_92 = arith.constant 0 : index
    %155 = vector.load %arg20[%c0_91, %c0_92] : memref<1x1xf32, #tpu.memory_space<vmem>>, vector<1x1xf32>
    tpu.vector_store %arg20[%c0_91, %c0_92], %154 {strides = array<i32>} : memref<1x1xf32, #tpu.memory_space<vmem>>, vector<1x1xf32>,
    return
  }
  func.func @transform_0(%arg0: i32) -> (i32, i32, i32) {
    %c0_i32 = arith.constant 0 : i32
    %c0_i32_0 = arith.constant 0 : i32
    %c0_i32_1 = arith.constant 0 : i32
    %c0_i32_2 = arith.constant 0 : i32
    return %c0_i32, %c0_i32_0, %c0_i32_1 : i32, i32, i32
  }
  func.func @transform_1(%arg0: i32) -> (i32, i32) {
    %c0_i32 = arith.constant 0 : i32
    %c0_i32_0 = arith.constant 0 : i32
    %c0_i32_1 = arith.constant 0 : i32
    return %c0_i32, %c0_i32_0 : i32, i32
  }
  func.func @transform_2(%arg0: i32) -> (i32, i32) {
    %c0_i32 = arith.constant 0 : i32
    %c0_i32_0 = arith.constant 0 : i32
    %c0_i32_1 = arith.constant 0 : i32
    return %c0_i32, %c0_i32_0 : i32, i32
  }
  func.func @transform_3(%arg0: i32) -> (i32, i32) {
    %c0_i32 = arith.constant 0 : i32
    %c0_i32_0 = arith.constant 0 : i32
    %c0_i32_1 = arith.constant 0 : i32
    return %c0_i32, %c0_i32_0 : i32, i32
  }
  func.func @transform_4(%arg0: i32) -> (i32, i32) {
    %c0_i32 = arith.constant 0 : i32
    %c0_i32_0 = arith.constant 0 : i32
    %c0_i32_1 = arith.constant 0 : i32
    return %c0_i32, %c0_i32_0 : i32, i32
  }
  func.func @transform_5(%arg0: i32) -> (i32, i32) {
    %c0_i32 = arith.constant 0 : i32
    %c0_i32_0 = arith.constant 0 : i32
    %c0_i32_1 = arith.constant 0 : i32
    return %c0_i32, %c0_i32_0 : i32, i32
  }
  func.func @transform_6(%arg0: i32) -> (i32, i32) {
    %c0_i32 = arith.constant 0 : i32
    %c0_i32_0 = arith.constant 0 : i32
    %c0_i32_1 = arith.constant 0 : i32
    return %c0_i32, %c0_i32_0 : i32, i32
  }
  func.func @transform_7(%arg0: i32) -> (i32, i32) {
    %c0_i32 = arith.constant 0 : i32
    %c0_i32_0 = arith.constant 0 : i32
    %c0_i32_1 = arith.constant 0 : i32
    return %c0_i32, %c0_i32_0 : i32, i32
  }
  func.func @transform_8(%arg0: i32) -> (i32, i32) {
    %c0_i32 = arith.constant 0 : i32
    %c0_i32_0 = arith.constant 0 : i32
    %c0_i32_1 = arith.constant 0 : i32
    return %c0_i32, %c0_i32_0 : i32, i32
  }
  func.func @transform_9(%arg0: i32) -> (i32, i32) {
    %c0_i32 = arith.constant 0 : i32
    %c0_i32_0 = arith.constant 0 : i32
    %c0_i32_1 = arith.constant 0 : i32
    return %c0_i32, %c0_i32_0 : i32, i32
  }
  func.func @transform_10(%arg0: i32) -> (i32, i32) {
    %c0_i32 = arith.constant 0 : i32
    %c0_i32_0 = arith.constant 0 : i32
    %c0_i32_1 = arith.constant 0 : i32
    return %c0_i32, %c0_i32_0 : i32, i32
  }
  func.func @transform_11(%arg0: i32) -> (i32, i32) {
    %c0_i32 = arith.constant 0 : i32
    %c0_i32_0 = arith.constant 0 : i32
    %c0_i32_1 = arith.constant 0 : i32
    return %c0_i32, %c0_i32_0 : i32, i32
  }
  func.func @transform_12(%arg0: i32) -> (i32, i32) {
    %c0_i32 = arith.constant 0 : i32
    %c0_i32_0 = arith.constant 0 : i32
    %c0_i32_1 = arith.constant 0 : i32
    return %c0_i32, %c0_i32_0 : i32, i32
  }
  func.func @transform_13(%arg0: i32) -> (i32, i32) {
    %c0_i32 = arith.constant 0 : i32
    %c0_i32_0 = arith.constant 0 : i32
    %c0_i32_1 = arith.constant 0 : i32
    return %c0_i32, %c0_i32_0 : i32, i32
  }
  func.func @transform_14(%arg0: i32) -> (i32, i32) {
    %c0_i32 = arith.constant 0 : i32
    %c0_i32_0 = arith.constant 0 : i32
    %c0_i32_1 = arith.constant 0 : i32
    return %c0_i32, %c0_i32_0 : i32, i32
  }
  func.func @transform_15(%arg0: i32) -> (i32, i32) {
    %c0_i32 = arith.constant 0 : i32
    %c0_i32_0 = arith.constant 0 : i32
    %c0_i32_1 = arith.constant 0 : i32
    return %c0_i32, %c0_i32_0 : i32, i32
  }
  func.func @transform_16(%arg0: i32) -> (i32, i32) {
    %c0_i32 = arith.constant 0 : i32
    %c0_i32_0 = arith.constant 0 : i32
    %c0_i32_1 = arith.constant 0 : i32
    return %c0_i32, %c0_i32_0 : i32, i32
  }
  func.func @transform_17(%arg0: i32) -> (i32, i32) {
    %c0_i32 = arith.constant 0 : i32
    %c0_i32_0 = arith.constant 0 : i32
    %c0_i32_1 = arith.constant 0 : i32
    return %c0_i32, %c0_i32_0 : i32, i32
  }
  func.func @transform_18(%arg0: i32) -> (i32, i32) {
    %c0_i32 = arith.constant 0 : i32
    %c0_i32_0 = arith.constant 0 : i32
    %c0_i32_1 = arith.constant 0 : i32
    return %c0_i32, %c0_i32_0 : i32, i32
  }
  func.func @transform_19(%arg0: i32) -> (i32, i32) {
    %c0_i32 = arith.constant 0 : i32
    %c0_i32_0 = arith.constant 0 : i32
    %c0_i32_1 = arith.constant 0 : i32
    return %c0_i32, %c0_i32_0 : i32, i32
  }
}

</mosaic_0001>

<llo_original>
// kernel: model_forward.1
$region0: #{model_forward.1}
  #allocation0 [shape = 'u32[]', space=smem, size = 0x4, offset = 0x4, fixed_abs, tag = 'smem constant byte address 0x4 - core index']
  #allocation1 [shape = 'u32[72,128]{1,0:T(1,128)}', space=vmem, size = 0x9000, scoped, tag = 'internal scratch']
  %s0 = inlined_call_operand.vmem [shape: f32[3,4,768], index: 0, kind: input, shape index: {}]
  %s1 = inlined_call_operand.vmem [shape: f32[2,2], index: 1, kind: input, shape index: {}]
  %s2 = inlined_call_operand.vmem [shape: bf16[768,8], index: 2, kind: input, shape index: {}]
  %s3 = inlined_call_operand.vmem [shape: f32[1,8], index: 3, kind: input, shape index: {}]
  %s4 = inlined_call_operand.vmem [shape: bf16[1536,8], index: 4, kind: input, shape index: {}]
  %s5 = inlined_call_operand.vmem [shape: f32[1,8], index: 5, kind: input, shape index: {}]
  %s6 = inlined_call_operand.vmem [shape: bf16[2304,8], index: 6, kind: input, shape index: {}]
  %s7 = inlined_call_operand.vmem [shape: f32[1,8], index: 7, kind: input, shape index: {}]
  %s8 = inlined_call_operand.vmem [shape: f32[24,16], index: 8, kind: input, shape index: {}]
  %s9 = inlined_call_operand.vmem [shape: f32[1,16], index: 9, kind: input, shape index: {}]
  %s10 = inlined_call_operand.vmem [shape: bf16[2304,16], index: 10, kind: input, shape index: {}]
  %s11 = inlined_call_operand.vmem [shape: f32[1,16], index: 11, kind: input, shape index: {}]
  %s12 = inlined_call_operand.vmem [shape: bf16[32,768], index: 12, kind: input, shape index: {}]
  %s13 = inlined_call_operand.vmem [shape: f32[1,768], index: 13, kind: input, shape index: {}]
  %s14 = inlined_call_operand.vmem [shape: bf16[1536,768], index: 14, kind: input, shape index: {}]
  %s15 = inlined_call_operand.vmem [shape: f32[1,768], index: 15, kind: input, shape index: {}]
  %s16 = inlined_call_operand.vmem [shape: f32[768,2], index: 16, kind: input, shape index: {}]
  %s17 = inlined_call_operand.vmem [shape: f32[1,2], index: 17, kind: input, shape index: {}]
  %s18 = inlined_call_operand.hbm [shape: f32[2,2], index: 18, kind: output, shape index: {0}]
  %s19 = inlined_call_operand.hbm [shape: f32[1,1], index: 19, kind: output, shape index: {1}]
  %20 = xla_tuple %s18, %s19
  %s21 = sld [smem:[#allocation0]]
  $region90: #{model_forward.1} parent=0
    _
  %s23 = ssub.s32 1, %s21
  %s24 = scalar_select 0, %s23, %s21
  $region1: #{model_forward.1} parent=0
    #allocation2 [shape = 'u8[1024]{0}', space=vmem, size = 0x400, scoped, tag = 'output window, operand 0, single buffered']
    #allocation3 [shape = 's32[1]{0}', space=sflag, size = 0x4, scoped, tag = 'scoped memory for model_forward.1']
    #allocation4 [shape = 'u8[512]{0}', space=vmem, size = 0x400, scoped, tag = 'output window, operand 1, single buffered']
    #allocation5 [shape = 's32[1]{0}', space=sflag, size = 0x4, scoped, tag = 'scoped memory for model_forward.1']
    %25 = vsyncpa [#allocation3], 0
    %26 = vsyncpa [#allocation5], 0
    // Predicated region
    $region2: #{model_forward.1} parent=1 // pred_check
      _
    $region3: #{model_forward.1} parent=1 // pred_check_branch
      %28 = sbr.rel (0) target = $region5
    $region4: #{model_forward.1} parent=1 // pred_region
      _
    $region5: #{model_forward.1} parent=1 // pred_fallthru
      _
    // Predicated region
    $region6: #{model_forward.1} parent=1 // pred_check
      _
    $region7: #{model_forward.1} parent=1 // pred_check_branch
      %30 = sbr.rel (0) target = $region9
    $region8: #{model_forward.1} parent=1 // pred_region
      _
    $region9: #{model_forward.1} parent=1 // pred_fallthru
      _
    // Predicated region
    $region10: #{model_forward.1} parent=1 // pred_check
      _
    $region11: #{model_forward.1} parent=1 // pred_check_branch
      %32 = sbr.rel (0) target = $region13
    $region12: #{model_forward.1} parent=1 // pred_region
      _
    $region13: #{model_forward.1} parent=1 // pred_fallthru
      _
    // Predicated region
    $region14: #{model_forward.1} parent=1 // pred_check
      _
    $region15: #{model_forward.1} parent=1 // pred_check_branch
      %34 = sbr.rel (0) target = $region17
    $region16: #{model_forward.1} parent=1 // pred_region
      _
    $region17: #{model_forward.1} parent=1 // pred_fallthru
      _
    // Predicated region
    $region18: #{model_forward.1} parent=1 // pred_check
      _
    $region19: #{model_forward.1} parent=1 // pred_check_branch
      %36 = sbr.rel (0) target = $region21
    $region20: #{model_forward.1} parent=1 // pred_region
      _
    $region21: #{model_forward.1} parent=1 // pred_fallthru
      _
    // Predicated region
    $region22: #{model_forward.1} parent=1 // pred_check
      _
    $region23: #{model_forward.1} parent=1 // pred_check_branch
      %38 = sbr.rel (0) target = $region25
    $region24: #{model_forward.1} parent=1 // pred_region
      _
    $region25: #{model_forward.1} parent=1 // pred_fallthru
      _
    // Predicated region
    $region26: #{model_forward.1} parent=1 // pred_check
      _
    $region27: #{model_forward.1} parent=1 // pred_check_branch
      %40 = sbr.rel (0) target = $region29
    $region28: #{model_forward.1} parent=1 // pred_region
      _
    $region29: #{model_forward.1} parent=1 // pred_fallthru
      _
    // Predicated region
    $region30: #{model_forward.1} parent=1 // pred_check
      _
    $region31: #{model_forward.1} parent=1 // pred_check_branch
      %42 = sbr.rel (0) target = $region33
    $region32: #{model_forward.1} parent=1 // pred_region
      _
    $region33: #{model_forward.1} parent=1 // pred_fallthru
      _
    // Predicated region
    $region34: #{model_forward.1} parent=1 // pred_check
      _
    $region35: #{model_forward.1} parent=1 // pred_check_branch
      %44 = sbr.rel (0) target = $region37
    $region36: #{model_forward.1} parent=1 // pred_region
      _
    $region37: #{model_forward.1} parent=1 // pred_fallthru
      _
    // Predicated region
    $region38: #{model_forward.1} parent=1 // pred_check
      _
    $region39: #{model_forward.1} parent=1 // pred_check_branch
      %46 = sbr.rel (0) target = $region41
    $region40: #{model_forward.1} parent=1 // pred_region
      _
    $region41: #{model_forward.1} parent=1 // pred_fallthru
      _
    // Predicated region
    $region42: #{model_forward.1} parent=1 // pred_check
      _
    $region43: #{model_forward.1} parent=1 // pred_check_branch
      %48 = sbr.rel (0) target = $region45
    $region44: #{model_forward.1} parent=1 // pred_region
      _
    $region45: #{model_forward.1} parent=1 // pred_fallthru
      _
    // Predicated region
    $region46: #{model_forward.1} parent=1 // pred_check
      _
    $region47: #{model_forward.1} parent=1 // pred_check_branch
      %50 = sbr.rel (0) target = $region49
    $region48: #{model_forward.1} parent=1 // pred_region
      _
    $region49: #{model_forward.1} parent=1 // pred_fallthru
      _
    // Predicated region
    $region50: #{model_forward.1} parent=1 // pred_check
      _
    $region51: #{model_forward.1} parent=1 // pred_check_branch
      %52 = sbr.rel (0) target = $region53
    $region52: #{model_forward.1} parent=1 // pred_region
      _
    $region53: #{model_forward.1} parent=1 // pred_fallthru
      _
    // Predicated region
    $region54: #{model_forward.1} parent=1 // pred_check
      _
    $region55: #{model_forward.1} parent=1 // pred_check_branch
      %54 = sbr.rel (0) target = $region57
    $region56: #{model_forward.1} parent=1 // pred_region
      _
    $region57: #{model_forward.1} parent=1 // pred_fallthru
      _
    // Predicated region
    $region58: #{model_forward.1} parent=1 // pred_check
      _
    $region59: #{model_forward.1} parent=1 // pred_check_branch
      %56 = sbr.rel (0) target = $region61
    $region60: #{model_forward.1} parent=1 // pred_region
      _
    $region61: #{model_forward.1} parent=1 // pred_fallthru
      _
    // Predicated region
    $region62: #{model_forward.1} parent=1 // pred_check
      _
    $region63: #{model_forward.1} parent=1 // pred_check_branch
      %58 = sbr.rel (0) target = $region65
    $region64: #{model_forward.1} parent=1 // pred_region
      _
    $region65: #{model_forward.1} parent=1 // pred_fallthru
      _
    // Predicated region
    $region66: #{model_forward.1} parent=1 // pred_check
      _
    $region67: #{model_forward.1} parent=1 // pred_check_branch
      %60 = sbr.rel (0) target = $region69
    $region68: #{model_forward.1} parent=1 // pred_region
      _
    $region69: #{model_forward.1} parent=1 // pred_fallthru
      _
    // Predicated region
    $region70: #{model_forward.1} parent=1 // pred_check
      _
    $region71: #{model_forward.1} parent=1 // pred_check_branch
      %62 = sbr.rel (0) target = $region73
    $region72: #{model_forward.1} parent=1 // pred_region
      _
    $region73: #{model_forward.1} parent=1 // pred_fallthru
      _
    %v64 = vld [vmem:[%s0] sm:$0xff]
    %v65 = vld [vmem:[%s0 + $0x8] sm:$0xff]
    %v66 = vld [vmem:[%s0 + $0x10] sm:$0xff]
    %v67 = vld [vmem:[%s0 + $0x18] sm:$0xff]
    %v68 = vld [vmem:[%s0 + $0x20] sm:$0xff]
    %v69 = vld [vmem:[%s0 + $0x28] sm:$0xff]
    %v70 = vld [vmem:[%s0 + $0x30] sm:$0xff]
    %v71 = vld [vmem:[%s0 + $0x38] sm:$0xff]
    %v72 = vld [vmem:[%s0 + $0x40] sm:$0xff]
    %82 = vst [vmem:[#allocation1] ss:$2 sm:$0xff] %v64
    %s83 = scalar_lea.vmem [#allocation1], 16
    %84 = vst [vmem:[%s83] ss:$2 sm:$0xff] %v65
    %s85 = scalar_lea.vmem [#allocation1], 32
    %86 = vst [vmem:[%s85] ss:$2 sm:$0xff] %v66
    %v87 = vld.sshfl [vmem:[#allocation1] sm:$0xff pattern:$0x75316420]
    %v88 = vld.sshfl [vmem:[#allocation1 + $0x8] sm:$0xff pattern:$0x75316420]
    %v89 = vld.sshfl [vmem:[#allocation1 + $0x10] sm:$0xff pattern:$0x75316420]
    %v90 = vld.sshfl [vmem:[#allocation1 + $0x18] sm:$0xff pattern:$0x75316420]
    %v91 = vld.sshfl [vmem:[#allocation1 + $0x20] sm:$0xff pattern:$0x75316420]
    %v92 = vld.sshfl [vmem:[#allocation1 + $0x28] sm:$0xff pattern:$0x75316420]
    %s93 = scalar_lea.vmem [#allocation1], 48
    %94 = vst [vmem:[%s93] ss:$2 sm:$0xff] %v67
    %v95 = vld.sshfl [vmem:[#allocation1 + $0x30] sm:$0xff pattern:$0x75316420]
    %v96 = vld.sshfl [vmem:[#allocation1 + $0x38] sm:$0xff pattern:$0x75316420]
    %97 = vst [vmem:[#allocation1] ss:$2 sm:$0xff] %v68
    %98 = vst [vmem:[%s83] ss:$2 sm:$0xff] %v69
    %v99 = vld.sshfl [vmem:[#allocation1] sm:$0xff pattern:$0x75316420]
    %v100 = vld.sshfl [vmem:[#allocation1 + $0x8] sm:$0xff pattern:$0x75316420]
    %v101 = vld.sshfl [vmem:[#allocation1 + $0x10] sm:$0xff pattern:$0x75316420]
    %v102 = vld.sshfl [vmem:[#allocation1 + $0x18] sm:$0xff pattern:$0x75316420]
    %103 = vst [vmem:[%s85] ss:$2 sm:$0xff] %v70
    %104 = vst [vmem:[%s93] ss:$2 sm:$0xff] %v71
    %v105 = vld.sshfl [vmem:[#allocation1 + $0x20] sm:$0xff pattern:$0x75316420]
    %v106 = vld.sshfl [vmem:[#allocation1 + $0x28] sm:$0xff pattern:$0x75316420]
    %v107 = vld.sshfl [vmem:[#allocation1 + $0x30] sm:$0xff pattern:$0x75316420]
    %v108 = vld.sshfl [vmem:[#allocation1 + $0x38] sm:$0xff pattern:$0x75316420]
    %109 = vst [vmem:[#allocation1] ss:$2 sm:$0xff] %v72
    %v110 = vld.sshfl [vmem:[#allocation1] sm:$0xff pattern:$0x75316420]
    %v111 = vld.sshfl [vmem:[#allocation1 + $0x8] sm:$0xff pattern:$0x75316420]
    %v130 = vpack.c.bf16 %v88, %v87
    %v131 = vpack.c.bf16 %v90, %v89
    %v132 = vpack.c.bf16 %v92, %v91
    %v133 = vpack.c.bf16 %v96, %v95
    %v134 = vpack.c.bf16 %v100, %v99
    %v135 = vpack.c.bf16 %v102, %v101
    %v136 = vpack.c.bf16 %v106, %v105
    %v137 = vpack.c.bf16 %v108, %v107
    %v138 = vpack.c.bf16 %v111, %v110
    %v139 = vld [vmem:[%s3] sm:$0x1]
    %v140 = vld [vmem:[%s2] sm:$0xf]
    %v141 = vld [vmem:[%s2 + $0x4] sm:$0xf]
    %v142 = vld [vmem:[%s2 + $0x8] sm:$0xf]
    %v143 = vld [vmem:[%s2 + $0xc] sm:$0xf]
    %v144 = vld [vmem:[%s2 + $0x10] sm:$0xf]
    %v145 = vld [vmem:[%s2 + $0x14] sm:$0xf]
    %v146 = vld [vmem:[%s2 + $0x18] sm:$0xf]
    %v147 = vld [vmem:[%s2 + $0x1c] sm:$0xf]
    %v148 = vld [vmem:[%s2 + $0x20] sm:$0xf]
    %v149 = vld [vmem:[%s2 + $0x24] sm:$0xf]
    %v150 = vld [vmem:[%s2 + $0x28] sm:$0xf]
    %v151 = vld [vmem:[%s2 + $0x2c] sm:$0xf]
    %v152 = vld [vmem:[%s2 + $0x30] sm:$0xf]
    %v153 = vld [vmem:[%s2 + $0x34] sm:$0xf]
    %v154 = vld [vmem:[%s2 + $0x38] sm:$0xf]
    %v155 = vld [vmem:[%s2 + $0x3c] sm:$0xf]
    %v156 = vld [vmem:[%s2 + $0x40] sm:$0xf]
    %v157 = vld [vmem:[%s2 + $0x44] sm:$0xf]
    %v158 = vld [vmem:[%s2 + $0x48] sm:$0xf]
    %v159 = vld [vmem:[%s2 + $0x4c] sm:$0xf]
    %v160 = vld [vmem:[%s2 + $0x50] sm:$0xf]
    %v161 = vld [vmem:[%s2 + $0x54] sm:$0xf]
    %v162 = vld [vmem:[%s2 + $0x58] sm:$0xf]
    %v163 = vld [vmem:[%s2 + $0x5c] sm:$0xf]
    %v164 = vld [vmem:[%s2 + $0x60] sm:$0xf]
    %v165 = vld [vmem:[%s2 + $0x64] sm:$0xf]
    %v166 = vld [vmem:[%s2 + $0x68] sm:$0xf]
    %v167 = vld [vmem:[%s2 + $0x6c] sm:$0xf]
    %v168 = vld [vmem:[%s2 + $0x70] sm:$0xf]
    %v169 = vld [vmem:[%s2 + $0x74] sm:$0xf]
    %v170 = vld [vmem:[%s2 + $0x78] sm:$0xf]
    %v171 = vld [vmem:[%s2 + $0x7c] sm:$0xf]
    %v172 = vld [vmem:[%s2 + $0x80] sm:$0xf]
    %v173 = vld [vmem:[%s2 + $0x84] sm:$0xf]
    %v174 = vld [vmem:[%s2 + $0x88] sm:$0xf]
    %v175 = vld [vmem:[%s2 + $0x8c] sm:$0xf]
    %v176 = vld [vmem:[%s2 + $0x90] sm:$0xf]
    %v177 = vld [vmem:[%s2 + $0x94] sm:$0xf]
    %v178 = vld [vmem:[%s2 + $0x98] sm:$0xf]
    %v179 = vld [vmem:[%s2 + $0x9c] sm:$0xf]
    %v180 = vld [vmem:[%s2 + $0xa0] sm:$0xf]
    %v181 = vld [vmem:[%s2 + $0xa4] sm:$0xf]
    %v182 = vld [vmem:[%s2 + $0xa8] sm:$0xf]
    %v183 = vld [vmem:[%s2 + $0xac] sm:$0xf]
    %v184 = vld [vmem:[%s2 + $0xb0] sm:$0xf]
    %v185 = vld [vmem:[%s2 + $0xb4] sm:$0xf]
    %v186 = vld [vmem:[%s2 + $0xb8] sm:$0xf]
    %v187 = vld [vmem:[%s2 + $0xbc] sm:$0xf]
    %v188 = vld [vmem:[%s2 + $0xc0] sm:$0xf]
    %v189 = vld [vmem:[%s2 + $0xc4] sm:$0xf]
    %v190 = vld [vmem:[%s2 + $0xc8] sm:$0xf]
    %v191 = vld [vmem:[%s2 + $0xcc] sm:$0xf]
    %v192 = vld [vmem:[%s2 + $0xd0] sm:$0xf]
    %v193 = vld [vmem:[%s2 + $0xd4] sm:$0xf]
    %v194 = vld [vmem:[%s2 + $0xd8] sm:$0xf]
    %v195 = vld [vmem:[%s2 + $0xdc] sm:$0xf]
    %v196 = vld [vmem:[%s2 + $0xe0] sm:$0xf]
    %v197 = vld [vmem:[%s2 + $0xe4] sm:$0xf]
    %v198 = vld [vmem:[%s2 + $0xe8] sm:$0xf]
    %v199 = vld [vmem:[%s2 + $0xec] sm:$0xf]
    %v200 = vld [vmem:[%s2 + $0xf0] sm:$0xf]
    %v201 = vld [vmem:[%s2 + $0xf4] sm:$0xf]
    %v202 = vld [vmem:[%s2 + $0xf8] sm:$0xf]
    %v203 = vld [vmem:[%s2 + $0xfc] sm:$0xf]
    %v204 = vld [vmem:[%s2 + $0x100] sm:$0xf]
    %v205 = vld [vmem:[%s2 + $0x104] sm:$0xf]
    %v206 = vld [vmem:[%s2 + $0x108] sm:$0xf]
    %v207 = vld [vmem:[%s2 + $0x10c] sm:$0xf]
    %v208 = vld [vmem:[%s2 + $0x110] sm:$0xf]
    %v209 = vld [vmem:[%s2 + $0x114] sm:$0xf]
    %v210 = vld [vmem:[%s2 + $0x118] sm:$0xf]
    %v211 = vld [vmem:[%s2 + $0x11c] sm:$0xf]
    %v212 = vld [vmem:[%s2 + $0x120] sm:$0xf]
    %v213 = vld [vmem:[%s2 + $0x124] sm:$0xf]
    %v214 = vld [vmem:[%s2 + $0x128] sm:$0xf]
    %v215 = vld [vmem:[%s2 + $0x12c] sm:$0xf]
    %v216 = vld [vmem:[%s2 + $0x130] sm:$0xf]
    %v217 = vld [vmem:[%s2 + $0x134] sm:$0xf]
    %v218 = vld [vmem:[%s2 + $0x138] sm:$0xf]
    %v219 = vld [vmem:[%s2 + $0x13c] sm:$0xf]
    %v220 = vld [vmem:[%s2 + $0x140] sm:$0xf]
    %v221 = vld [vmem:[%s2 + $0x144] sm:$0xf]
    %v222 = vld [vmem:[%s2 + $0x148] sm:$0xf]
    %v223 = vld [vmem:[%s2 + $0x14c] sm:$0xf]
    %v224 = vld [vmem:[%s2 + $0x150] sm:$0xf]
    %v225 = vld [vmem:[%s2 + $0x154] sm:$0xf]
    %v226 = vld [vmem:[%s2 + $0x158] sm:$0xf]
    %v227 = vld [vmem:[%s2 + $0x15c] sm:$0xf]
    %v228 = vld [vmem:[%s2 + $0x160] sm:$0xf]
    %v229 = vld [vmem:[%s2 + $0x164] sm:$0xf]
    %v230 = vld [vmem:[%s2 + $0x168] sm:$0xf]
    %v231 = vld [vmem:[%s2 + $0x16c] sm:$0xf]
    %v232 = vld [vmem:[%s2 + $0x170] sm:$0xf]
    %v233 = vld [vmem:[%s2 + $0x174] sm:$0xf]
    %v234 = vld [vmem:[%s2 + $0x178] sm:$0xf]
    %v235 = vld [vmem:[%s2 + $0x17c] sm:$0xf]
    %v239 = vunpack.c.l.b16 %v130
    %v240 = vunpack.c.h.b16 %v130
    %v241 = vunpack.c.l.b16 %v131
    %v242 = vunpack.c.h.b16 %v131
    %v243 = vunpack.c.l.b16 %v132
    %v244 = vunpack.c.h.b16 %v132
    %v245 = vpack.c.b16 %v239, %v239
    %v246 = vpack.c.b16 %v240, %v240
    %v247 = vpack.c.b16 %v241, %v241
    %v248 = vpack.c.b16 %v242, %v242
    %v249 = vpack.c.b16 %v243, %v243
    %v250 = vpack.c.b16 %v244, %v244
    %v353 = vunpack.c.l.b16 %v140
    %v354 = vunpack.c.l.b16 %v141
    %v355 = vunpack.c.l.b16 %v142
    %v356 = vunpack.c.l.b16 %v143
    %v357 = vunpack.c.l.b16 %v144
    %v358 = vunpack.c.l.b16 %v145
    %v359 = vunpack.c.l.b16 %v146
    %v360 = vunpack.c.l.b16 %v147
    %v361 = vunpack.c.l.b16 %v148
    %v362 = vunpack.c.l.b16 %v149
    %v363 = vunpack.c.l.b16 %v150
    %v364 = vunpack.c.l.b16 %v151
    %v365 = vunpack.c.l.b16 %v152
    %v366 = vunpack.c.l.b16 %v153
    %v367 = vunpack.c.l.b16 %v154
    %v368 = vunpack.c.l.b16 %v155
    %v369 = vunpack.c.l.b16 %v156
    %v370 = vunpack.c.l.b16 %v157
    %v371 = vunpack.c.l.b16 %v158
    %v372 = vunpack.c.l.b16 %v159
    %v373 = vunpack.c.l.b16 %v160
    %v374 = vunpack.c.l.b16 %v161
    %v375 = vunpack.c.l.b16 %v162
    %v376 = vunpack.c.l.b16 %v163
    %v377 = vunpack.c.l.b16 %v164
    %v378 = vunpack.c.l.b16 %v165
    %v379 = vunpack.c.l.b16 %v166
    %v380 = vunpack.c.l.b16 %v167
    %v381 = vunpack.c.l.b16 %v168
    %v382 = vunpack.c.l.b16 %v169
    %v383 = vunpack.c.l.b16 %v170
    %v384 = vunpack.c.l.b16 %v171
    %v385 = vunpack.c.l.b16 %v172
    %v386 = vunpack.c.l.b16 %v173
    %v387 = vunpack.c.l.b16 %v174
    %v388 = vunpack.c.l.b16 %v175
    %v389 = vunpack.c.l.b16 %v176
    %v390 = vunpack.c.l.b16 %v177
    %v391 = vunpack.c.l.b16 %v178
    %v392 = vunpack.c.l.b16 %v179
    %v393 = vunpack.c.l.b16 %v180
    %v394 = vunpack.c.l.b16 %v181
    %v395 = vunpack.c.l.b16 %v182
    %v396 = vunpack.c.l.b16 %v183
    %v397 = vunpack.c.l.b16 %v184
    %v398 = vunpack.c.l.b16 %v185
    %v399 = vunpack.c.l.b16 %v186
    %v400 = vunpack.c.l.b16 %v187
    %v401 = vunpack.c.l.b16 %v188
    %v402 = vunpack.c.l.b16 %v189
    %v403 = vunpack.c.l.b16 %v190
    %v404 = vunpack.c.l.b16 %v191
    %v405 = vunpack.c.l.b16 %v192
    %v406 = vunpack.c.l.b16 %v193
    %v407 = vunpack.c.l.b16 %v194
    %v408 = vunpack.c.l.b16 %v195
    %v409 = vunpack.c.l.b16 %v196
    %v410 = vunpack.c.l.b16 %v197
    %v411 = vunpack.c.l.b16 %v198
    %v412 = vunpack.c.l.b16 %v199
    %v413 = vunpack.c.l.b16 %v200
    %v414 = vunpack.c.l.b16 %v201
    %v415 = vunpack.c.l.b16 %v202
    %v416 = vunpack.c.l.b16 %v203
    %v417 = vunpack.c.l.b16 %v204
    %v418 = vunpack.c.l.b16 %v205
    %v419 = vunpack.c.l.b16 %v206
    %v420 = vunpack.c.l.b16 %v207
    %v421 = vunpack.c.l.b16 %v208
    %v422 = vunpack.c.l.b16 %v209
    %v423 = vunpack.c.l.b16 %v210
    %v424 = vunpack.c.l.b16 %v211
    %v425 = vunpack.c.l.b16 %v212
    %v426 = vunpack.c.l.b16 %v213
    %v427 = vunpack.c.l.b16 %v214
    %v428 = vunpack.c.l.b16 %v215
    %v429 = vunpack.c.l.b16 %v216
    %v430 = vunpack.c.l.b16 %v217
    %v431 = vunpack.c.l.b16 %v218
    %v432 = vunpack.c.l.b16 %v219
    %v433 = vunpack.c.l.b16 %v220
    %v434 = vunpack.c.l.b16 %v221
    %v435 = vunpack.c.l.b16 %v222
    %v436 = vunpack.c.l.b16 %v223
    %v437 = vunpack.c.l.b16 %v224
    %v438 = vunpack.c.l.b16 %v225
    %v439 = vunpack.c.l.b16 %v226
    %v440 = vunpack.c.l.b16 %v227
    %v441 = vunpack.c.l.b16 %v228
    %v442 = vunpack.c.l.b16 %v229
    %v443 = vunpack.c.l.b16 %v230
    %v444 = vunpack.c.l.b16 %v231
    %v445 = vunpack.c.l.b16 %v232
    %v446 = vunpack.c.l.b16 %v233
    %v447 = vunpack.c.l.b16 %v234
    %v448 = vunpack.c.l.b16 %v235
    %v449 = vpack.c.b16 %v354, %v353
    %v450 = vpack.c.b16 %v356, %v355
    %v451 = vpack.c.b16 %v358, %v357
    %v452 = vpack.c.b16 %v360, %v359
    %v453 = vpack.c.b16 %v362, %v361
    %v454 = vpack.c.b16 %v364, %v363
    %v455 = vpack.c.b16 %v366, %v365
    %v456 = vpack.c.b16 %v368, %v367
    %v457 = vpack.c.b16 %v370, %v369
    %v458 = vpack.c.b16 %v372, %v371
    %v459 = vpack.c.b16 %v374, %v373
    %v460 = vpack.c.b16 %v376, %v375
    %v461 = vpack.c.b16 %v378, %v377
    %v462 = vpack.c.b16 %v380, %v379
    %v463 = vpack.c.b16 %v382, %v381
    %v464 = vpack.c.b16 %v384, %v383
    %v465 = vpack.c.b16 %v386, %v385
    %v466 = vpack.c.b16 %v388, %v387
    %v467 = vpack.c.b16 %v390, %v389
    %v468 = vpack.c.b16 %v392, %v391
    %v469 = vpack.c.b16 %v394, %v393
    %v470 = vpack.c.b16 %v396, %v395
    %v471 = vpack.c.b16 %v398, %v397
    %v472 = vpack.c.b16 %v400, %v399
    %v473 = vpack.c.b16 %v402, %v401
    %v474 = vpack.c.b16 %v404, %v403
    %v475 = vpack.c.b16 %v406, %v405
    %v476 = vpack.c.b16 %v408, %v407
    %v477 = vpack.c.b16 %v410, %v409
    %v478 = vpack.c.b16 %v412, %v411
    %v479 = vpack.c.b16 %v414, %v413
    %v480 = vpack.c.b16 %v416, %v415
    %v481 = vpack.c.b16 %v418, %v417
    %v482 = vpack.c.b16 %v420, %v419
    %v483 = vpack.c.b16 %v422, %v421
    %v484 = vpack.c.b16 %v424, %v423
    %v485 = vpack.c.b16 %v426, %v425
    %v486 = vpack.c.b16 %v428, %v427
    %v487 = vpack.c.b16 %v430, %v429
    %v488 = vpack.c.b16 %v432, %v431
    %v489 = vpack.c.b16 %v434, %v433
    %v490 = vpack.c.b16 %v436, %v435
    %v491 = vpack.c.b16 %v438, %v437
    %v492 = vpack.c.b16 %v440, %v439
    %v493 = vpack.c.b16 %v442, %v441
    %v494 = vpack.c.b16 %v444, %v443
    %v495 = vpack.c.b16 %v446, %v445
    %v496 = vpack.c.b16 %v448, %v447
    %545 = vmatpush.bf16.msra.mxu0 %v456
    %546 = vmatpush.bf16.msra.mxu0 %v455
    %547 = vmatpush.bf16.msra.mxu0 %v454
    %548 = vmatpush.bf16.msra.mxu0 %v453
    %549 = vmatpush.bf16.msra.mxu0 %v452
    %550 = vmatpush.bf16.msra.mxu0 %v451
    %551 = vmatpush.bf16.msra.mxu0 %v450
    %552 = vmatpush.bf16.msra.mxu0 %v449
    %553 = vmatmul.bf16.gmra.mxu0 %v245
    %v554 = vpop.f32.mrf.mxu0
    %v555 = vadd.f32 0.0, %v554
    %v556 = vpop.f32.mrf.mxu0
    %557 = vdwg.mxu0
    %558 = vmatpush.bf16.msra.mxu0 %v464
    %559 = vmatpush.bf16.msra.mxu0 %v463
    %560 = vmatpush.bf16.msra.mxu0 %v462
    %561 = vmatpush.bf16.msra.mxu0 %v461
    %562 = vmatpush.bf16.msra.mxu0 %v460
    %563 = vmatpush.bf16.msra.mxu0 %v459
    %564 = vmatpush.bf16.msra.mxu0 %v458
    %565 = vmatpush.bf16.msra.mxu0 %v457
    %566 = vmatmul.bf16.gmra.mxu0 %v246
    %v567 = vpop.f32.mrf.mxu0
    %v568 = vadd.f32 %v555, %v567
    %v569 = vpop.f32.mrf.mxu0
    %570 = vdwg.mxu0
    %571 = vmatpush.bf16.msra.mxu0 %v472
    %572 = vmatpush.bf16.msra.mxu0 %v471
    %573 = vmatpush.bf16.msra.mxu0 %v470
    %574 = vmatpush.bf16.msra.mxu0 %v469
    %575 = vmatpush.bf16.msra.mxu0 %v468
    %576 = vmatpush.bf16.msra.mxu0 %v467
    %577 = vmatpush.bf16.msra.mxu0 %v466
    %578 = vmatpush.bf16.msra.mxu0 %v465
    %579 = vmatmul.bf16.gmra.mxu0 %v247
    %v580 = vpop.f32.mrf.mxu0
    %v581 = vadd.f32 %v568, %v580
    %v582 = vpop.f32.mrf.mxu0
    %583 = vdwg.mxu0
    %584 = vmatpush.bf16.msra.mxu0 %v480
    %585 = vmatpush.bf16.msra.mxu0 %v479
    %586 = vmatpush.bf16.msra.mxu0 %v478
    %587 = vmatpush.bf16.msra.mxu0 %v477
    %588 = vmatpush.bf16.msra.mxu0 %v476
    %589 = vmatpush.bf16.msra.mxu0 %v475
    %590 = vmatpush.bf16.msra.mxu0 %v474
    %591 = vmatpush.bf16.msra.mxu0 %v473
    %592 = vmatmul.bf16.gmra.mxu0 %v248
    %v593 = vpop.f32.mrf.mxu0
    %v594 = vadd.f32 %v581, %v593
    %v595 = vpop.f32.mrf.mxu0
    %596 = vdwg.mxu0
    %597 = vmatpush.bf16.msra.mxu0 %v488
    %598 = vmatpush.bf16.msra.mxu0 %v487
    %599 = vmatpush.bf16.msra.mxu0 %v486
    %600 = vmatpush.bf16.msra.mxu0 %v485
    %601 = vmatpush.bf16.msra.mxu0 %v484
    %602 = vmatpush.bf16.msra.mxu0 %v483
    %603 = vmatpush.bf16.msra.mxu0 %v482
    %604 = vmatpush.bf16.msra.mxu0 %v481
    %605 = vmatmul.bf16.gmra.mxu0 %v249
    %v606 = vpop.f32.mrf.mxu0
    %v607 = vadd.f32 %v594, %v606
    %v608 = vpop.f32.mrf.mxu0
    %609 = vdwg.mxu0
    %610 = vmatpush.bf16.msra.mxu0 %v496
    %611 = vmatpush.bf16.msra.mxu0 %v495
    %612 = vmatpush.bf16.msra.mxu0 %v494
    %613 = vmatpush.bf16.msra.mxu0 %v493
    %614 = vmatpush.bf16.msra.mxu0 %v492
    %615 = vmatpush.bf16.msra.mxu0 %v491
    %616 = vmatpush.bf16.msra.mxu0 %v490
    %617 = vmatpush.bf16.msra.mxu0 %v489
    %618 = vmatmul.bf16.gmra.mxu0 %v250
    %v619 = vpop.f32.mrf.mxu0
    %v620 = vadd.f32 %v607, %v619
    %v621 = vpop.f32.mrf.mxu0
    %622 = vdwg.mxu0
    %v624 = vperm.slane %v139, 0
    %v626 = vadd.f32 %v624, %v620
    %v627 = vmax.f32 %v626, 0.0
    %v631 = vunpack.c.l.b16 %v133
    %v632 = vunpack.c.h.b16 %v133
    %v633 = vunpack.c.l.b16 %v134
    %v634 = vunpack.c.h.b16 %v134
    %v635 = vunpack.c.l.b16 %v135
    %v636 = vunpack.c.h.b16 %v135
    %v637 = vpack.c.b16 %v631, %v631
    %v638 = vpack.c.b16 %v632, %v632
    %v639 = vpack.c.b16 %v633, %v633
    %v640 = vpack.c.b16 %v634, %v634
    %v641 = vpack.c.b16 %v635, %v635
    %v642 = vpack.c.b16 %v636, %v636
    %649 = vmatpush.bf16.msra.mxu0 %v456
    %650 = vmatpush.bf16.msra.mxu0 %v455
    %651 = vmatpush.bf16.msra.mxu0 %v454
    %652 = vmatpush.bf16.msra.mxu0 %v453
    %653 = vmatpush.bf16.msra.mxu0 %v452
    %654 = vmatpush.bf16.msra.mxu0 %v451
    %655 = vmatpush.bf16.msra.mxu0 %v450
    %656 = vmatpush.bf16.msra.mxu0 %v449
    %657 = vmatmul.bf16.gmra.mxu0 %v637
    %v658 = vpop.f32.mrf.mxu0
    %v659 = vadd.f32 0.0, %v658
    %v660 = vpop.f32.mrf.mxu0
    %661 = vdwg.mxu0
    %662 = vmatpush.bf16.msra.mxu0 %v464
    %663 = vmatpush.bf16.msra.mxu0 %v463
    %664 = vmatpush.bf16.msra.mxu0 %v462
    %665 = vmatpush.bf16.msra.mxu0 %v461
    %666 = vmatpush.bf16.msra.mxu0 %v460
    %667 = vmatpush.bf16.msra.mxu0 %v459
    %668 = vmatpush.bf16.msra.mxu0 %v458
    %669 = vmatpush.bf16.msra.mxu0 %v457
    %670 = vmatmul.bf16.gmra.mxu0 %v638
    %v671 = vpop.f32.mrf.mxu0
    %v672 = vadd.f32 %v659, %v671
    %v673 = vpop.f32.mrf.mxu0
    %674 = vdwg.mxu0
    %675 = vmatpush.bf16.msra.mxu0 %v472
    %676 = vmatpush.bf16.msra.mxu0 %v471
    %677 = vmatpush.bf16.msra.mxu0 %v470
    %678 = vmatpush.bf16.msra.mxu0 %v469
    %679 = vmatpush.bf16.msra.mxu0 %v468
    %680 = vmatpush.bf16.msra.mxu0 %v467
    %681 = vmatpush.bf16.msra.mxu0 %v466
    %682 = vmatpush.bf16.msra.mxu0 %v465
    %683 = vmatmul.bf16.gmra.mxu0 %v639
    %v684 = vpop.f32.mrf.mxu0
    %v685 = vadd.f32 %v672, %v684
    %v686 = vpop.f32.mrf.mxu0
    %687 = vdwg.mxu0
    %688 = vmatpush.bf16.msra.mxu0 %v480
    %689 = vmatpush.bf16.msra.mxu0 %v479
    %690 = vmatpush.bf16.msra.mxu0 %v478
    %691 = vmatpush.bf16.msra.mxu0 %v477
    %692 = vmatpush.bf16.msra.mxu0 %v476
    %693 = vmatpush.bf16.msra.mxu0 %v475
    %694 = vmatpush.bf16.msra.mxu0 %v474
    %695 = vmatpush.bf16.msra.mxu0 %v473
    %696 = vmatmul.bf16.gmra.mxu0 %v640
    %v697 = vpop.f32.mrf.mxu0
    %v698 = vadd.f32 %v685, %v697
    %v699 = vpop.f32.mrf.mxu0
    %700 = vdwg.mxu0
    %701 = vmatpush.bf16.msra.mxu0 %v488
    %702 = vmatpush.bf16.msra.mxu0 %v487
    %703 = vmatpush.bf16.msra.mxu0 %v486
    %704 = vmatpush.bf16.msra.mxu0 %v485
    %705 = vmatpush.bf16.msra.mxu0 %v484
    %706 = vmatpush.bf16.msra.mxu0 %v483
    %707 = vmatpush.bf16.msra.mxu0 %v482
    %708 = vmatpush.bf16.msra.mxu0 %v481
    %709 = vmatmul.bf16.gmra.mxu0 %v641
    %v710 = vpop.f32.mrf.mxu0
    %v711 = vadd.f32 %v698, %v710
    %v712 = vpop.f32.mrf.mxu0
    %713 = vdwg.mxu0
    %714 = vmatpush.bf16.msra.mxu0 %v496
    %715 = vmatpush.bf16.msra.mxu0 %v495
    %716 = vmatpush.bf16.msra.mxu0 %v494
    %717 = vmatpush.bf16.msra.mxu0 %v493
    %718 = vmatpush.bf16.msra.mxu0 %v492
    %719 = vmatpush.bf16.msra.mxu0 %v491
    %720 = vmatpush.bf16.msra.mxu0 %v490
    %721 = vmatpush.bf16.msra.mxu0 %v489
    %722 = vmatmul.bf16.gmra.mxu0 %v642
    %v723 = vpop.f32.mrf.mxu0
    %v724 = vadd.f32 %v711, %v723
    %v725 = vpop.f32.mrf.mxu0
    %726 = vdwg.mxu0
    %v727 = vadd.f32 %v624, %v724
    %v728 = vmax.f32 %v727, 0.0
    %v729 = vmax.f32 %v627, %v728
    %v733 = vunpack.c.l.b16 %v136
    %v734 = vunpack.c.h.b16 %v136
    %v735 = vunpack.c.l.b16 %v137
    %v736 = vunpack.c.h.b16 %v137
    %v737 = vunpack.c.l.b16 %v138
    %v738 = vunpack.c.h.b16 %v138
    %v739 = vpack.c.b16 %v733, %v733
    %v740 = vpack.c.b16 %v734, %v734
    %v741 = vpack.c.b16 %v735, %v735
    %v742 = vpack.c.b16 %v736, %v736
    %v743 = vpack.c.b16 %v737, %v737
    %v744 = vpack.c.b16 %v738, %v738
    %751 = vmatpush.bf16.msra.mxu0 %v456
    %752 = vmatpush.bf16.msra.mxu0 %v455
    %753 = vmatpush.bf16.msra.mxu0 %v454
    %754 = vmatpush.bf16.msra.mxu0 %v453
    %755 = vmatpush.bf16.msra.mxu0 %v452
    %756 = vmatpush.bf16.msra.mxu0 %v451
    %757 = vmatpush.bf16.msra.mxu0 %v450
    %758 = vmatpush.bf16.msra.mxu0 %v449
    %759 = vmatmul.bf16.gmra.mxu0 %v739
    %v760 = vpop.f32.mrf.mxu0
    %v761 = vadd.f32 0.0, %v760
    %v762 = vpop.f32.mrf.mxu0
    %763 = vdwg.mxu0
    %764 = vmatpush.bf16.msra.mxu0 %v464
    %765 = vmatpush.bf16.msra.mxu0 %v463
    %766 = vmatpush.bf16.msra.mxu0 %v462
    %767 = vmatpush.bf16.msra.mxu0 %v461
    %768 = vmatpush.bf16.msra.mxu0 %v460
    %769 = vmatpush.bf16.msra.mxu0 %v459
    %770 = vmatpush.bf16.msra.mxu0 %v458
    %771 = vmatpush.bf16.msra.mxu0 %v457
    %772 = vmatmul.bf16.gmra.mxu0 %v740
    %v773 = vpop.f32.mrf.mxu0
    %v774 = vadd.f32 %v761, %v773
    %v775 = vpop.f32.mrf.mxu0
    %776 = vdwg.mxu0
    %777 = vmatpush.bf16.msra.mxu0 %v472
    %778 = vmatpush.bf16.msra.mxu0 %v471
    %779 = vmatpush.bf16.msra.mxu0 %v470
    %780 = vmatpush.bf16.msra.mxu0 %v469
    %781 = vmatpush.bf16.msra.mxu0 %v468
    %782 = vmatpush.bf16.msra.mxu0 %v467
    %783 = vmatpush.bf16.msra.mxu0 %v466
    %784 = vmatpush.bf16.msra.mxu0 %v465
    %785 = vmatmul.bf16.gmra.mxu0 %v741
    %v786 = vpop.f32.mrf.mxu0
    %v787 = vadd.f32 %v774, %v786
    %v788 = vpop.f32.mrf.mxu0
    %789 = vdwg.mxu0
    %790 = vmatpush.bf16.msra.mxu0 %v480
    %791 = vmatpush.bf16.msra.mxu0 %v479
    %792 = vmatpush.bf16.msra.mxu0 %v478
    %793 = vmatpush.bf16.msra.mxu0 %v477
    %794 = vmatpush.bf16.msra.mxu0 %v476
    %795 = vmatpush.bf16.msra.mxu0 %v475
    %796 = vmatpush.bf16.msra.mxu0 %v474
    %797 = vmatpush.bf16.msra.mxu0 %v473
    %798 = vmatmul.bf16.gmra.mxu0 %v742
    %v799 = vpop.f32.mrf.mxu0
    %v800 = vadd.f32 %v787, %v799
    %v801 = vpop.f32.mrf.mxu0
    %802 = vdwg.mxu0
    %803 = vmatpush.bf16.msra.mxu0 %v488
    %804 = vmatpush.bf16.msra.mxu0 %v487
    %805 = vmatpush.bf16.msra.mxu0 %v486
    %806 = vmatpush.bf16.msra.mxu0 %v485
    %807 = vmatpush.bf16.msra.mxu0 %v484
    %808 = vmatpush.bf16.msra.mxu0 %v483
    %809 = vmatpush.bf16.msra.mxu0 %v482
    %810 = vmatpush.bf16.msra.mxu0 %v481
    %811 = vmatmul.bf16.gmra.mxu0 %v743
    %v812 = vpop.f32.mrf.mxu0
    %v813 = vadd.f32 %v800, %v812
    %v814 = vpop.f32.mrf.mxu0
    %815 = vdwg.mxu0
    %816 = vmatpush.bf16.msra.mxu0 %v496
    %817 = vmatpush.bf16.msra.mxu0 %v495
    %818 = vmatpush.bf16.msra.mxu0 %v494
    %819 = vmatpush.bf16.msra.mxu0 %v493
    %820 = vmatpush.bf16.msra.mxu0 %v492
    %821 = vmatpush.bf16.msra.mxu0 %v491
    %822 = vmatpush.bf16.msra.mxu0 %v490
    %823 = vmatpush.bf16.msra.mxu0 %v489
    %824 = vmatmul.bf16.gmra.mxu0 %v744
    %v825 = vpop.f32.mrf.mxu0
    %v826 = vadd.f32 %v813, %v825
    %v827 = vpop.f32.mrf.mxu0
    %828 = vdwg.mxu0
    %v829 = vadd.f32 %v624, %v826
    %v830 = vmax.f32 %v829, 0.0
    %v831 = vmax.f32 %v729, %v830
    %v832 = vld [vmem:[%s5] sm:$0x1]
    %v833 = vld [vmem:[%s4] sm:$0xf]
    %v834 = vld [vmem:[%s4 + $0x4] sm:$0xf]
    %v835 = vld [vmem:[%s4 + $0x8] sm:$0xf]
    %v836 = vld [vmem:[%s4 + $0xc] sm:$0xf]
    %v837 = vld [vmem:[%s4 + $0x10] sm:$0xf]
    %v838 = vld [vmem:[%s4 + $0x14] sm:$0xf]
    %v839 = vld [vmem:[%s4 + $0x18] sm:$0xf]
    %v840 = vld [vmem:[%s4 + $0x1c] sm:$0xf]
    %v841 = vld [vmem:[%s4 + $0x20] sm:$0xf]
    %v842 = vld [vmem:[%s4 + $0x24] sm:$0xf]
    %v843 = vld [vmem:[%s4 + $0x28] sm:$0xf]
    %v844 = vld [vmem:[%s4 + $0x2c] sm:$0xf]
    %v845 = vld [vmem:[%s4 + $0x30] sm:$0xf]
    %v846 = vld [vmem:[%s4 + $0x34] sm:$0xf]
    %v847 = vld [vmem:[%s4 + $0x38] sm:$0xf]
    %v848 = vld [vmem:[%s4 + $0x3c] sm:$0xf]
    %v849 = vld [vmem:[%s4 + $0x40] sm:$0xf]
    %v850 = vld [vmem:[%s4 + $0x44] sm:$0xf]
    %v851 = vld [vmem:[%s4 + $0x48] sm:$0xf]
    %v852 = vld [vmem:[%s4 + $0x4c] sm:$0xf]
    %v853 = vld [vmem:[%s4 + $0x50] sm:$0xf]
    %v854 = vld [vmem:[%s4 + $0x54] sm:$0xf]
    %v855 = vld [vmem:[%s4 + $0x58] sm:$0xf]
    %v856 = vld [vmem:[%s4 + $0x5c] sm:$0xf]
    %v857 = vld [vmem:[%s4 + $0x60] sm:$0xf]
    %v858 = vld [vmem:[%s4 + $0x64] sm:$0xf]
    %v859 = vld [vmem:[%s4 + $0x68] sm:$0xf]
    %v860 = vld [vmem:[%s4 + $0x6c] sm:$0xf]
    %v861 = vld [vmem:[%s4 + $0x70] sm:$0xf]
    %v862 = vld [vmem:[%s4 + $0x74] sm:$0xf]
    %v863 = vld [vmem:[%s4 + $0x78] sm:$0xf]
    %v864 = vld [vmem:[%s4 + $0x7c] sm:$0xf]
    %v865 = vld [vmem:[%s4 + $0x80] sm:$0xf]
    %v866 = vld [vmem:[%s4 + $0x84] sm:$0xf]
    %v867 = vld [vmem:[%s4 + $0x88] sm:$0xf]
    %v868 = vld [vmem:[%s4 + $0x8c] sm:$0xf]
    %v869 = vld [vmem:[%s4 + $0x90] sm:$0xf]
    %v870 = vld [vmem:[%s4 + $0x94] sm:$0xf]
    %v871 = vld [vmem:[%s4 + $0x98] sm:$0xf]
    %v872 = vld [vmem:[%s4 + $0x9c] sm:$0xf]
    %v873 = vld [vmem:[%s4 + $0xa0] sm:$0xf]
    %v874 = vld [vmem:[%s4 + $0xa4] sm:$0xf]
    %v875 = vld [vmem:[%s4 + $0xa8] sm:$0xf]
    %v876 = vld [vmem:[%s4 + $0xac] sm:$0xf]
    %v877 = vld [vmem:[%s4 + $0xb0] sm:$0xf]
    %v878 = vld [vmem:[%s4 + $0xb4] sm:$0xf]
    %v879 = vld [vmem:[%s4 + $0xb8] sm:$0xf]
    %v880 = vld [vmem:[%s4 + $0xbc] sm:$0xf]
    %v881 = vld [vmem:[%s4 + $0xc0] sm:$0xf]
    %v882 = vld [vmem:[%s4 + $0xc4] sm:$0xf]
    %v883 = vld [vmem:[%s4 + $0xc8] sm:$0xf]
    %v884 = vld [vmem:[%s4 + $0xcc] sm:$0xf]
    %v885 = vld [vmem:[%s4 + $0xd0] sm:$0xf]
    %v886 = vld [vmem:[%s4 + $0xd4] sm:$0xf]
    %v887 = vld [vmem:[%s4 + $0xd8] sm:$0xf]
    %v888 = vld [vmem:[%s4 + $0xdc] sm:$0xf]
    %v889 = vld [vmem:[%s4 + $0xe0] sm:$0xf]
    %v890 = vld [vmem:[%s4 + $0xe4] sm:$0xf]
    %v891 = vld [vmem:[%s4 + $0xe8] sm:$0xf]
    %v892 = vld [vmem:[%s4 + $0xec] sm:$0xf]
    %v893 = vld [vmem:[%s4 + $0xf0] sm:$0xf]
    %v894 = vld [vmem:[%s4 + $0xf4] sm:$0xf]
    %v895 = vld [vmem:[%s4 + $0xf8] sm:$0xf]
    %v896 = vld [vmem:[%s4 + $0xfc] sm:$0xf]
    %v897 = vld [vmem:[%s4 + $0x100] sm:$0xf]
    %v898 = vld [vmem:[%s4 + $0x104] sm:$0xf]
    %v899 = vld [vmem:[%s4 + $0x108] sm:$0xf]
    %v900 = vld [vmem:[%s4 + $0x10c] sm:$0xf]
    %v901 = vld [vmem:[%s4 + $0x110] sm:$0xf]
    %v902 = vld [vmem:[%s4 + $0x114] sm:$0xf]
    %v903 = vld [vmem:[%s4 + $0x118] sm:$0xf]
    %v904 = vld [vmem:[%s4 + $0x11c] sm:$0xf]
    %v905 = vld [vmem:[%s4 + $0x120] sm:$0xf]
    %v906 = vld [vmem:[%s4 + $0x124] sm:$0xf]
    %v907 = vld [vmem:[%s4 + $0x128] sm:$0xf]
    %v908 = vld [vmem:[%s4 + $0x12c] sm:$0xf]
    %v909 = vld [vmem:[%s4 + $0x130] sm:$0xf]
    %v910 = vld [vmem:[%s4 + $0x134] sm:$0xf]
    %v911 = vld [vmem:[%s4 + $0x138] sm:$0xf]
    %v912 = vld [vmem:[%s4 + $0x13c] sm:$0xf]
    %v913 = vld [vmem:[%s4 + $0x140] sm:$0xf]
    %v914 = vld [vmem:[%s4 + $0x144] sm:$0xf]
    %v915 = vld [vmem:[%s4 + $0x148] sm:$0xf]
    %v916 = vld [vmem:[%s4 + $0x14c] sm:$0xf]
    %v917 = vld [vmem:[%s4 + $0x150] sm:$0xf]
    %v918 = vld [vmem:[%s4 + $0x154] sm:$0xf]
    %v919 = vld [vmem:[%s4 + $0x158] sm:$0xf]
    %v920 = vld [vmem:[%s4 + $0x15c] sm:$0xf]
    %v921 = vld [vmem:[%s4 + $0x160] sm:$0xf]
    %v922 = vld [vmem:[%s4 + $0x164] sm:$0xf]
    %v923 = vld [vmem:[%s4 + $0x168] sm:$0xf]
    %v924 = vld [vmem:[%s4 + $0x16c] sm:$0xf]
    %v925 = vld [vmem:[%s4 + $0x170] sm:$0xf]
    %v926 = vld [vmem:[%s4 + $0x174] sm:$0xf]
    %v927 = vld [vmem:[%s4 + $0x178] sm:$0xf]
    %v928 = vld [vmem:[%s4 + $0x17c] sm:$0xf]
    %v1025 = vunpack.c.l.b16 %v833
    %v1026 = vunpack.c.l.b16 %v834
    %v1027 = vunpack.c.l.b16 %v835
    %v1028 = vunpack.c.l.b16 %v836
    %v1029 = vunpack.c.l.b16 %v837
    %v1030 = vunpack.c.l.b16 %v838
    %v1031 = vunpack.c.l.b16 %v839
    %v1032 = vunpack.c.l.b16 %v840
    %v1033 = vunpack.c.l.b16 %v841
    %v1034 = vunpack.c.l.b16 %v842
    %v1035 = vunpack.c.l.b16 %v843
    %v1036 = vunpack.c.l.b16 %v844
    %v1037 = vunpack.c.l.b16 %v845
    %v1038 = vunpack.c.l.b16 %v846
    %v1039 = vunpack.c.l.b16 %v847
    %v1040 = vunpack.c.l.b16 %v848
    %v1041 = vunpack.c.l.b16 %v849
    %v1042 = vunpack.c.l.b16 %v850
    %v1043 = vunpack.c.l.b16 %v851
    %v1044 = vunpack.c.l.b16 %v852
    %v1045 = vunpack.c.l.b16 %v853
    %v1046 = vunpack.c.l.b16 %v854
    %v1047 = vunpack.c.l.b16 %v855
    %v1048 = vunpack.c.l.b16 %v856
    %v1049 = vunpack.c.l.b16 %v857
    %v1050 = vunpack.c.l.b16 %v858
    %v1051 = vunpack.c.l.b16 %v859
    %v1052 = vunpack.c.l.b16 %v860
    %v1053 = vunpack.c.l.b16 %v861
    %v1054 = vunpack.c.l.b16 %v862
    %v1055 = vunpack.c.l.b16 %v863
    %v1056 = vunpack.c.l.b16 %v864
    %v1057 = vunpack.c.l.b16 %v865
    %v1058 = vunpack.c.l.b16 %v866
    %v1059 = vunpack.c.l.b16 %v867
    %v1060 = vunpack.c.l.b16 %v868
    %v1061 = vunpack.c.l.b16 %v869
    %v1062 = vunpack.c.l.b16 %v870
    %v1063 = vunpack.c.l.b16 %v871
    %v1064 = vunpack.c.l.b16 %v872
    %v1065 = vunpack.c.l.b16 %v873
    %v1066 = vunpack.c.l.b16 %v874
    %v1067 = vunpack.c.l.b16 %v875
    %v1068 = vunpack.c.l.b16 %v876
    %v1069 = vunpack.c.l.b16 %v877
    %v1070 = vunpack.c.l.b16 %v878
    %v1071 = vunpack.c.l.b16 %v879
    %v1072 = vunpack.c.l.b16 %v880
    %v1073 = vunpack.c.l.b16 %v881
    %v1074 = vunpack.c.l.b16 %v882
    %v1075 = vunpack.c.l.b16 %v883
    %v1076 = vunpack.c.l.b16 %v884
    %v1077 = vunpack.c.l.b16 %v885
    %v1078 = vunpack.c.l.b16 %v886
    %v1079 = vunpack.c.l.b16 %v887
    %v1080 = vunpack.c.l.b16 %v888
    %v1081 = vunpack.c.l.b16 %v889
    %v1082 = vunpack.c.l.b16 %v890
    %v1083 = vunpack.c.l.b16 %v891
    %v1084 = vunpack.c.l.b16 %v892
    %v1085 = vunpack.c.l.b16 %v893
    %v1086 = vunpack.c.l.b16 %v894
    %v1087 = vunpack.c.l.b16 %v895
    %v1088 = vunpack.c.l.b16 %v896
    %v1089 = vunpack.c.l.b16 %v897
    %v1090 = vunpack.c.l.b16 %v898
    %v1091 = vunpack.c.l.b16 %v899
    %v1092 = vunpack.c.l.b16 %v900
    %v1093 = vunpack.c.l.b16 %v901
    %v1094 = vunpack.c.l.b16 %v902
    %v1095 = vunpack.c.l.b16 %v903
    %v1096 = vunpack.c.l.b16 %v904
    %v1097 = vunpack.c.l.b16 %v905
    %v1098 = vunpack.c.l.b16 %v906
    %v1099 = vunpack.c.l.b16 %v907
    %v1100 = vunpack.c.l.b16 %v908
    %v1101 = vunpack.c.l.b16 %v909
    %v1102 = vunpack.c.l.b16 %v910
    %v1103 = vunpack.c.l.b16 %v911
    %v1104 = vunpack.c.l.b16 %v912
    %v1105 = vunpack.c.l.b16 %v913
    %v1106 = vunpack.c.l.b16 %v914
    %v1107 = vunpack.c.l.b16 %v915
    %v1108 = vunpack.c.l.b16 %v916
    %v1109 = vunpack.c.l.b16 %v917
    %v1110 = vunpack.c.l.b16 %v918
    %v1111 = vunpack.c.l.b16 %v919
    %v1112 = vunpack.c.l.b16 %v920
    %v1113 = vunpack.c.l.b16 %v921
    %v1114 = vunpack.c.l.b16 %v922
    %v1115 = vunpack.c.l.b16 %v923
    %v1116 = vunpack.c.l.b16 %v924
    %v1117 = vunpack.c.l.b16 %v925
    %v1118 = vunpack.c.l.b16 %v926
    %v1119 = vunpack.c.l.b16 %v927
    %v1120 = vunpack.c.l.b16 %v928
    %v1121 = vpack.c.b16 %v1026, %v1025
    %v1122 = vpack.c.b16 %v1028, %v1027
    %v1123 = vpack.c.b16 %v1030, %v1029
    %v1124 = vpack.c.b16 %v1032, %v1031
    %v1125 = vpack.c.b16 %v1034, %v1033
    %v1126 = vpack.c.b16 %v1036, %v1035
    %v1127 = vpack.c.b16 %v1038, %v1037
    %v1128 = vpack.c.b16 %v1040, %v1039
    %v1129 = vpack.c.b16 %v1042, %v1041
    %v1130 = vpack.c.b16 %v1044, %v1043
    %v1131 = vpack.c.b16 %v1046, %v1045
    %v1132 = vpack.c.b16 %v1048, %v1047
    %v1133 = vpack.c.b16 %v1050, %v1049
    %v1134 = vpack.c.b16 %v1052, %v1051
    %v1135 = vpack.c.b16 %v1054, %v1053
    %v1136 = vpack.c.b16 %v1056, %v1055
    %v1137 = vpack.c.b16 %v1058, %v1057
    %v1138 = vpack.c.b16 %v1060, %v1059
    %v1139 = vpack.c.b16 %v1062, %v1061
    %v1140 = vpack.c.b16 %v1064, %v1063
    %v1141 = vpack.c.b16 %v1066, %v1065
    %v1142 = vpack.c.b16 %v1068, %v1067
    %v1143 = vpack.c.b16 %v1070, %v1069
    %v1144 = vpack.c.b16 %v1072, %v1071
    %v1145 = vpack.c.b16 %v1074, %v1073
    %v1146 = vpack.c.b16 %v1076, %v1075
    %v1147 = vpack.c.b16 %v1078, %v1077
    %v1148 = vpack.c.b16 %v1080, %v1079
    %v1149 = vpack.c.b16 %v1082, %v1081
    %v1150 = vpack.c.b16 %v1084, %v1083
    %v1151 = vpack.c.b16 %v1086, %v1085
    %v1152 = vpack.c.b16 %v1088, %v1087
    %v1153 = vpack.c.b16 %v1090, %v1089
    %v1154 = vpack.c.b16 %v1092, %v1091
    %v1155 = vpack.c.b16 %v1094, %v1093
    %v1156 = vpack.c.b16 %v1096, %v1095
    %v1157 = vpack.c.b16 %v1098, %v1097
    %v1158 = vpack.c.b16 %v1100, %v1099
    %v1159 = vpack.c.b16 %v1102, %v1101
    %v1160 = vpack.c.b16 %v1104, %v1103
    %v1161 = vpack.c.b16 %v1106, %v1105
    %v1162 = vpack.c.b16 %v1108, %v1107
    %v1163 = vpack.c.b16 %v1110, %v1109
    %v1164 = vpack.c.b16 %v1112, %v1111
    %v1165 = vpack.c.b16 %v1114, %v1113
    %v1166 = vpack.c.b16 %v1116, %v1115
    %v1167 = vpack.c.b16 %v1118, %v1117
    %v1168 = vpack.c.b16 %v1120, %v1119
    %1217 = vmatpush.bf16.msra.mxu0 %v1128
    %1218 = vmatpush.bf16.msra.mxu0 %v1127
    %1219 = vmatpush.bf16.msra.mxu0 %v1126
    %1220 = vmatpush.bf16.msra.mxu0 %v1125
    %1221 = vmatpush.bf16.msra.mxu0 %v1124
    %1222 = vmatpush.bf16.msra.mxu0 %v1123
    %1223 = vmatpush.bf16.msra.mxu0 %v1122
    %1224 = vmatpush.bf16.msra.mxu0 %v1121
    %1225 = vmatmul.bf16.gmra.mxu0 %v245
    %v1226 = vpop.f32.mrf.mxu0
    %v1227 = vadd.f32 0.0, %v1226
    %v1228 = vpop.f32.mrf.mxu0
    %1229 = vdwg.mxu0
    %1230 = vmatpush.bf16.msra.mxu0 %v1136
    %1231 = vmatpush.bf16.msra.mxu0 %v1135
    %1232 = vmatpush.bf16.msra.mxu0 %v1134
    %1233 = vmatpush.bf16.msra.mxu0 %v1133
    %1234 = vmatpush.bf16.msra.mxu0 %v1132
    %1235 = vmatpush.bf16.msra.mxu0 %v1131
    %1236 = vmatpush.bf16.msra.mxu0 %v1130
    %1237 = vmatpush.bf16.msra.mxu0 %v1129
    %1238 = vmatmul.bf16.gmra.mxu0 %v246
    %v1239 = vpop.f32.mrf.mxu0
    %v1240 = vadd.f32 %v1227, %v1239
    %v1241 = vpop.f32.mrf.mxu0
    %1242 = vdwg.mxu0
    %1243 = vmatpush.bf16.msra.mxu0 %v1144
    %1244 = vmatpush.bf16.msra.mxu0 %v1143
    %1245 = vmatpush.bf16.msra.mxu0 %v1142
    %1246 = vmatpush.bf16.msra.mxu0 %v1141
    %1247 = vmatpush.bf16.msra.mxu0 %v1140
    %1248 = vmatpush.bf16.msra.mxu0 %v1139
    %1249 = vmatpush.bf16.msra.mxu0 %v1138
    %1250 = vmatpush.bf16.msra.mxu0 %v1137
    %1251 = vmatmul.bf16.gmra.mxu0 %v247
    %v1252 = vpop.f32.mrf.mxu0
    %v1253 = vadd.f32 %v1240, %v1252
    %v1254 = vpop.f32.mrf.mxu0
    %1255 = vdwg.mxu0
    %1256 = vmatpush.bf16.msra.mxu0 %v1152
    %1257 = vmatpush.bf16.msra.mxu0 %v1151
    %1258 = vmatpush.bf16.msra.mxu0 %v1150
    %1259 = vmatpush.bf16.msra.mxu0 %v1149
    %1260 = vmatpush.bf16.msra.mxu0 %v1148
    %1261 = vmatpush.bf16.msra.mxu0 %v1147
    %1262 = vmatpush.bf16.msra.mxu0 %v1146
    %1263 = vmatpush.bf16.msra.mxu0 %v1145
    %1264 = vmatmul.bf16.gmra.mxu0 %v248
    %v1265 = vpop.f32.mrf.mxu0
    %v1266 = vadd.f32 %v1253, %v1265
    %v1267 = vpop.f32.mrf.mxu0
    %1268 = vdwg.mxu0
    %1269 = vmatpush.bf16.msra.mxu0 %v1160
    %1270 = vmatpush.bf16.msra.mxu0 %v1159
    %1271 = vmatpush.bf16.msra.mxu0 %v1158
    %1272 = vmatpush.bf16.msra.mxu0 %v1157
    %1273 = vmatpush.bf16.msra.mxu0 %v1156
    %1274 = vmatpush.bf16.msra.mxu0 %v1155
    %1275 = vmatpush.bf16.msra.mxu0 %v1154
    %1276 = vmatpush.bf16.msra.mxu0 %v1153
    %1277 = vmatmul.bf16.gmra.mxu0 %v249
    %v1278 = vpop.f32.mrf.mxu0
    %v1279 = vadd.f32 %v1266, %v1278
    %v1280 = vpop.f32.mrf.mxu0
    %1281 = vdwg.mxu0
    %1282 = vmatpush.bf16.msra.mxu0 %v1168
    %1283 = vmatpush.bf16.msra.mxu0 %v1167
    %1284 = vmatpush.bf16.msra.mxu0 %v1166
    %1285 = vmatpush.bf16.msra.mxu0 %v1165
    %1286 = vmatpush.bf16.msra.mxu0 %v1164
    %1287 = vmatpush.bf16.msra.mxu0 %v1163
    %1288 = vmatpush.bf16.msra.mxu0 %v1162
    %1289 = vmatpush.bf16.msra.mxu0 %v1161
    %1290 = vmatmul.bf16.gmra.mxu0 %v250
    %v1291 = vpop.f32.mrf.mxu0
    %v1292 = vadd.f32 %v1279, %v1291
    %v1293 = vpop.f32.mrf.mxu0
    %1294 = vdwg.mxu0
    %v1296 = vperm.slane %v832, 0
    %v1298 = vadd.f32 %v1296, %v1292
    %v1299 = vld [vmem:[%s4 + $0x180] sm:$0xf]
    %v1300 = vld [vmem:[%s4 + $0x184] sm:$0xf]
    %v1301 = vld [vmem:[%s4 + $0x188] sm:$0xf]
    %v1302 = vld [vmem:[%s4 + $0x18c] sm:$0xf]
    %v1303 = vld [vmem:[%s4 + $0x190] sm:$0xf]
    %v1304 = vld [vmem:[%s4 + $0x194] sm:$0xf]
    %v1305 = vld [vmem:[%s4 + $0x198] sm:$0xf]
    %v1306 = vld [vmem:[%s4 + $0x19c] sm:$0xf]
    %v1307 = vld [vmem:[%s4 + $0x1a0] sm:$0xf]
    %v1308 = vld [vmem:[%s4 + $0x1a4] sm:$0xf]
    %v1309 = vld [vmem:[%s4 + $0x1a8] sm:$0xf]
    %v1310 = vld [vmem:[%s4 + $0x1ac] sm:$0xf]
    %v1311 = vld [vmem:[%s4 + $0x1b0] sm:$0xf]
    %v1312 = vld [vmem:[%s4 + $0x1b4] sm:$0xf]
    %v1313 = vld [vmem:[%s4 + $0x1b8] sm:$0xf]
    %v1314 = vld [vmem:[%s4 + $0x1bc] sm:$0xf]
    %v1315 = vld [vmem:[%s4 + $0x1c0] sm:$0xf]
    %v1316 = vld [vmem:[%s4 + $0x1c4] sm:$0xf]
    %v1317 = vld [vmem:[%s4 + $0x1c8] sm:$0xf]
    %v1318 = vld [vmem:[%s4 + $0x1cc] sm:$0xf]
    %v1319 = vld [vmem:[%s4 + $0x1d0] sm:$0xf]
    %v1320 = vld [vmem:[%s4 + $0x1d4] sm:$0xf]
    %v1321 = vld [vmem:[%s4 + $0x1d8] sm:$0xf]
    %v1322 = vld [vmem:[%s4 + $0x1dc] sm:$0xf]
    %v1323 = vld [vmem:[%s4 + $0x1e0] sm:$0xf]
    %v1324 = vld [vmem:[%s4 + $0x1e4] sm:$0xf]
    %v1325 = vld [vmem:[%s4 + $0x1e8] sm:$0xf]
    %v1326 = vld [vmem:[%s4 + $0x1ec] sm:$0xf]
    %v1327 = vld [vmem:[%s4 + $0x1f0] sm:$0xf]
    %v1328 = vld [vmem:[%s4 + $0x1f4] sm:$0xf]
    %v1329 = vld [vmem:[%s4 + $0x1f8] sm:$0xf]
    %v1330 = vld [vmem:[%s4 + $0x1fc] sm:$0xf]
    %v1331 = vld [vmem:[%s4 + $0x200] sm:$0xf]
    %v1332 = vld [vmem:[%s4 + $0x204] sm:$0xf]
    %v1333 = vld [vmem:[%s4 + $0x208] sm:$0xf]
    %v1334 = vld [vmem:[%s4 + $0x20c] sm:$0xf]
    %v1335 = vld [vmem:[%s4 + $0x210] sm:$0xf]
    %v1336 = vld [vmem:[%s4 + $0x214] sm:$0xf]
    %v1337 = vld [vmem:[%s4 + $0x218] sm:$0xf]
    %v1338 = vld [vmem:[%s4 + $0x21c] sm:$0xf]
    %v1339 = vld [vmem:[%s4 + $0x220] sm:$0xf]
    %v1340 = vld [vmem:[%s4 + $0x224] sm:$0xf]
    %v1341 = vld [vmem:[%s4 + $0x228] sm:$0xf]
    %v1342 = vld [vmem:[%s4 + $0x22c] sm:$0xf]
    %v1343 = vld [vmem:[%s4 + $0x230] sm:$0xf]
    %v1344 = vld [vmem:[%s4 + $0x234] sm:$0xf]
    %v1345 = vld [vmem:[%s4 + $0x238] sm:$0xf]
    %v1346 = vld [vmem:[%s4 + $0x23c] sm:$0xf]
    %v1347 = vld [vmem:[%s4 + $0x240] sm:$0xf]
    %v1348 = vld [vmem:[%s4 + $0x244] sm:$0xf]
    %v1349 = vld [vmem:[%s4 + $0x248] sm:$0xf]
    %v1350 = vld [vmem:[%s4 + $0x24c] sm:$0xf]
    %v1351 = vld [vmem:[%s4 + $0x250] sm:$0xf]
    %v1352 = vld [vmem:[%s4 + $0x254] sm:$0xf]
    %v1353 = vld [vmem:[%s4 + $0x258] sm:$0xf]
    %v1354 = vld [vmem:[%s4 + $0x25c] sm:$0xf]
    %v1355 = vld [vmem:[%s4 + $0x260] sm:$0xf]
    %v1356 = vld [vmem:[%s4 + $0x264] sm:$0xf]
    %v1357 = vld [vmem:[%s4 + $0x268] sm:$0xf]
    %v1358 = vld [vmem:[%s4 + $0x26c] sm:$0xf]
    %v1359 = vld [vmem:[%s4 + $0x270] sm:$0xf]
    %v1360 = vld [vmem:[%s4 + $0x274] sm:$0xf]
    %v1361 = vld [vmem:[%s4 + $0x278] sm:$0xf]
    %v1362 = vld [vmem:[%s4 + $0x27c] sm:$0xf]
    %v1363 = vld [vmem:[%s4 + $0x280] sm:$0xf]
    %v1364 = vld [vmem:[%s4 + $0x284] sm:$0xf]
    %v1365 = vld [vmem:[%s4 + $0x288] sm:$0xf]
    %v1366 = vld [vmem:[%s4 + $0x28c] sm:$0xf]
    %v1367 = vld [vmem:[%s4 + $0x290] sm:$0xf]
    %v1368 = vld [vmem:[%s4 + $0x294] sm:$0xf]
    %v1369 = vld [vmem:[%s4 + $0x298] sm:$0xf]
    %v1370 = vld [vmem:[%s4 + $0x29c] sm:$0xf]
    %v1371 = vld [vmem:[%s4 + $0x2a0] sm:$0xf]
    %v1372 = vld [vmem:[%s4 + $0x2a4] sm:$0xf]
    %v1373 = vld [vmem:[%s4 + $0x2a8] sm:$0xf]
    %v1374 = vld [vmem:[%s4 + $0x2ac] sm:$0xf]
    %v1375 = vld [vmem:[%s4 + $0x2b0] sm:$0xf]
    %v1376 = vld [vmem:[%s4 + $0x2b4] sm:$0xf]
    %v1377 = vld [vmem:[%s4 + $0x2b8] sm:$0xf]
    %v1378 = vld [vmem:[%s4 + $0x2bc] sm:$0xf]
    %v1379 = vld [vmem:[%s4 + $0x2c0] sm:$0xf]
    %v1380 = vld [vmem:[%s4 + $0x2c4] sm:$0xf]
    %v1381 = vld [vmem:[%s4 + $0x2c8] sm:$0xf]
    %v1382 = vld [vmem:[%s4 + $0x2cc] sm:$0xf]
    %v1383 = vld [vmem:[%s4 + $0x2d0] sm:$0xf]
    %v1384 = vld [vmem:[%s4 + $0x2d4] sm:$0xf]
    %v1385 = vld [vmem:[%s4 + $0x2d8] sm:$0xf]
    %v1386 = vld [vmem:[%s4 + $0x2dc] sm:$0xf]
    %v1387 = vld [vmem:[%s4 + $0x2e0] sm:$0xf]
    %v1388 = vld [vmem:[%s4 + $0x2e4] sm:$0xf]
    %v1389 = vld [vmem:[%s4 + $0x2e8] sm:$0xf]
    %v1390 = vld [vmem:[%s4 + $0x2ec] sm:$0xf]
    %v1391 = vld [vmem:[%s4 + $0x2f0] sm:$0xf]
    %v1392 = vld [vmem:[%s4 + $0x2f4] sm:$0xf]
    %v1393 = vld [vmem:[%s4 + $0x2f8] sm:$0xf]
    %v1394 = vld [vmem:[%s4 + $0x2fc] sm:$0xf]
    %v1491 = vunpack.c.l.b16 %v1299
    %v1492 = vunpack.c.l.b16 %v1300
    %v1493 = vunpack.c.l.b16 %v1301
    %v1494 = vunpack.c.l.b16 %v1302
    %v1495 = vunpack.c.l.b16 %v1303
    %v1496 = vunpack.c.l.b16 %v1304
    %v1497 = vunpack.c.l.b16 %v1305
    %v1498 = vunpack.c.l.b16 %v1306
    %v1499 = vunpack.c.l.b16 %v1307
    %v1500 = vunpack.c.l.b16 %v1308
    %v1501 = vunpack.c.l.b16 %v1309
    %v1502 = vunpack.c.l.b16 %v1310
    %v1503 = vunpack.c.l.b16 %v1311
    %v1504 = vunpack.c.l.b16 %v1312
    %v1505 = vunpack.c.l.b16 %v1313
    %v1506 = vunpack.c.l.b16 %v1314
    %v1507 = vunpack.c.l.b16 %v1315
    %v1508 = vunpack.c.l.b16 %v1316
    %v1509 = vunpack.c.l.b16 %v1317
    %v1510 = vunpack.c.l.b16 %v1318
    %v1511 = vunpack.c.l.b16 %v1319
    %v1512 = vunpack.c.l.b16 %v1320
    %v1513 = vunpack.c.l.b16 %v1321
    %v1514 = vunpack.c.l.b16 %v1322
    %v1515 = vunpack.c.l.b16 %v1323
    %v1516 = vunpack.c.l.b16 %v1324
    %v1517 = vunpack.c.l.b16 %v1325
    %v1518 = vunpack.c.l.b16 %v1326
    %v1519 = vunpack.c.l.b16 %v1327
    %v1520 = vunpack.c.l.b16 %v1328
    %v1521 = vunpack.c.l.b16 %v1329
    %v1522 = vunpack.c.l.b16 %v1330
    %v1523 = vunpack.c.l.b16 %v1331
    %v1524 = vunpack.c.l.b16 %v1332
    %v1525 = vunpack.c.l.b16 %v1333
    %v1526 = vunpack.c.l.b16 %v1334
    %v1527 = vunpack.c.l.b16 %v1335
    %v1528 = vunpack.c.l.b16 %v1336
    %v1529 = vunpack.c.l.b16 %v1337
    %v1530 = vunpack.c.l.b16 %v1338
    %v1531 = vunpack.c.l.b16 %v1339
    %v1532 = vunpack.c.l.b16 %v1340
    %v1533 = vunpack.c.l.b16 %v1341
    %v1534 = vunpack.c.l.b16 %v1342
    %v1535 = vunpack.c.l.b16 %v1343
    %v1536 = vunpack.c.l.b16 %v1344
    %v1537 = vunpack.c.l.b16 %v1345
    %v1538 = vunpack.c.l.b16 %v1346
    %v1539 = vunpack.c.l.b16 %v1347
    %v1540 = vunpack.c.l.b16 %v1348
    %v1541 = vunpack.c.l.b16 %v1349
    %v1542 = vunpack.c.l.b16 %v1350
    %v1543 = vunpack.c.l.b16 %v1351
    %v1544 = vunpack.c.l.b16 %v1352
    %v1545 = vunpack.c.l.b16 %v1353
    %v1546 = vunpack.c.l.b16 %v1354
    %v1547 = vunpack.c.l.b16 %v1355
    %v1548 = vunpack.c.l.b16 %v1356
    %v1549 = vunpack.c.l.b16 %v1357
    %v1550 = vunpack.c.l.b16 %v1358
    %v1551 = vunpack.c.l.b16 %v1359
    %v1552 = vunpack.c.l.b16 %v1360
    %v1553 = vunpack.c.l.b16 %v1361
    %v1554 = vunpack.c.l.b16 %v1362
    %v1555 = vunpack.c.l.b16 %v1363
    %v1556 = vunpack.c.l.b16 %v1364
    %v1557 = vunpack.c.l.b16 %v1365
    %v1558 = vunpack.c.l.b16 %v1366
    %v1559 = vunpack.c.l.b16 %v1367
    %v1560 = vunpack.c.l.b16 %v1368
    %v1561 = vunpack.c.l.b16 %v1369
    %v1562 = vunpack.c.l.b16 %v1370
    %v1563 = vunpack.c.l.b16 %v1371
    %v1564 = vunpack.c.l.b16 %v1372
    %v1565 = vunpack.c.l.b16 %v1373
    %v1566 = vunpack.c.l.b16 %v1374
    %v1567 = vunpack.c.l.b16 %v1375
    %v1568 = vunpack.c.l.b16 %v1376
    %v1569 = vunpack.c.l.b16 %v1377
    %v1570 = vunpack.c.l.b16 %v1378
    %v1571 = vunpack.c.l.b16 %v1379
    %v1572 = vunpack.c.l.b16 %v1380
    %v1573 = vunpack.c.l.b16 %v1381
    %v1574 = vunpack.c.l.b16 %v1382
    %v1575 = vunpack.c.l.b16 %v1383
    %v1576 = vunpack.c.l.b16 %v1384
    %v1577 = vunpack.c.l.b16 %v1385
    %v1578 = vunpack.c.l.b16 %v1386
    %v1579 = vunpack.c.l.b16 %v1387
    %v1580 = vunpack.c.l.b16 %v1388
    %v1581 = vunpack.c.l.b16 %v1389
    %v1582 = vunpack.c.l.b16 %v1390
    %v1583 = vunpack.c.l.b16 %v1391
    %v1584 = vunpack.c.l.b16 %v1392
    %v1585 = vunpack.c.l.b16 %v1393
    %v1586 = vunpack.c.l.b16 %v1394
    %v1587 = vpack.c.b16 %v1492, %v1491
    %v1588 = vpack.c.b16 %v1494, %v1493
    %v1589 = vpack.c.b16 %v1496, %v1495
    %v1590 = vpack.c.b16 %v1498, %v1497
    %v1591 = vpack.c.b16 %v1500, %v1499
    %v1592 = vpack.c.b16 %v1502, %v1501
    %v1593 = vpack.c.b16 %v1504, %v1503
    %v1594 = vpack.c.b16 %v1506, %v1505
    %v1595 = vpack.c.b16 %v1508, %v1507
    %v1596 = vpack.c.b16 %v1510, %v1509
    %v1597 = vpack.c.b16 %v1512, %v1511
    %v1598 = vpack.c.b16 %v1514, %v1513
    %v1599 = vpack.c.b16 %v1516, %v1515
    %v1600 = vpack.c.b16 %v1518, %v1517
    %v1601 = vpack.c.b16 %v1520, %v1519
    %v1602 = vpack.c.b16 %v1522, %v1521
    %v1603 = vpack.c.b16 %v1524, %v1523
    %v1604 = vpack.c.b16 %v1526, %v1525
    %v1605 = vpack.c.b16 %v1528, %v1527
    %v1606 = vpack.c.b16 %v1530, %v1529
    %v1607 = vpack.c.b16 %v1532, %v1531
    %v1608 = vpack.c.b16 %v1534, %v1533
    %v1609 = vpack.c.b16 %v1536, %v1535
    %v1610 = vpack.c.b16 %v1538, %v1537
    %v1611 = vpack.c.b16 %v1540, %v1539
    %v1612 = vpack.c.b16 %v1542, %v1541
    %v1613 = vpack.c.b16 %v1544, %v1543
    %v1614 = vpack.c.b16 %v1546, %v1545
    %v1615 = vpack.c.b16 %v1548, %v1547
    %v1616 = vpack.c.b16 %v1550, %v1549
    %v1617 = vpack.c.b16 %v1552, %v1551
    %v1618 = vpack.c.b16 %v1554, %v1553
    %v1619 = vpack.c.b16 %v1556, %v1555
    %v1620 = vpack.c.b16 %v1558, %v1557
    %v1621 = vpack.c.b16 %v1560, %v1559
    %v1622 = vpack.c.b16 %v1562, %v1561
    %v1623 = vpack.c.b16 %v1564, %v1563
    %v1624 = vpack.c.b16 %v1566, %v1565
    %v1625 = vpack.c.b16 %v1568, %v1567
    %v1626 = vpack.c.b16 %v1570, %v1569
    %v1627 = vpack.c.b16 %v1572, %v1571
    %v1628 = vpack.c.b16 %v1574, %v1573
    %v1629 = vpack.c.b16 %v1576, %v1575
    %v1630 = vpack.c.b16 %v1578, %v1577
    %v1631 = vpack.c.b16 %v1580, %v1579
    %v1632 = vpack.c.b16 %v1582, %v1581
    %v1633 = vpack.c.b16 %v1584, %v1583
    %v1634 = vpack.c.b16 %v1586, %v1585
    %1683 = vmatpush.bf16.msra.mxu0 %v1594
    %1684 = vmatpush.bf16.msra.mxu0 %v1593
    %1685 = vmatpush.bf16.msra.mxu0 %v1592
    %1686 = vmatpush.bf16.msra.mxu0 %v1591
    %1687 = vmatpush.bf16.msra.mxu0 %v1590
    %1688 = vmatpush.bf16.msra.mxu0 %v1589
    %1689 = vmatpush.bf16.msra.mxu0 %v1588
    %1690 = vmatpush.bf16.msra.mxu0 %v1587
    %1691 = vmatmul.bf16.gmra.mxu0 %v637
    %v1692 = vpop.f32.mrf.mxu0
    %v1693 = vadd.f32 0.0, %v1692
    %v1694 = vpop.f32.mrf.mxu0
    %1695 = vdwg.mxu0
    %1696 = vmatpush.bf16.msra.mxu0 %v1602
    %1697 = vmatpush.bf16.msra.mxu0 %v1601
    %1698 = vmatpush.bf16.msra.mxu0 %v1600
    %1699 = vmatpush.bf16.msra.mxu0 %v1599
    %1700 = vmatpush.bf16.msra.mxu0 %v1598
    %1701 = vmatpush.bf16.msra.mxu0 %v1597
    %1702 = vmatpush.bf16.msra.mxu0 %v1596
    %1703 = vmatpush.bf16.msra.mxu0 %v1595
    %1704 = vmatmul.bf16.gmra.mxu0 %v638
    %v1705 = vpop.f32.mrf.mxu0
    %v1706 = vadd.f32 %v1693, %v1705
    %v1707 = vpop.f32.mrf.mxu0
    %1708 = vdwg.mxu0
    %1709 = vmatpush.bf16.msra.mxu0 %v1610
    %1710 = vmatpush.bf16.msra.mxu0 %v1609
    %1711 = vmatpush.bf16.msra.mxu0 %v1608
    %1712 = vmatpush.bf16.msra.mxu0 %v1607
    %1713 = vmatpush.bf16.msra.mxu0 %v1606
    %1714 = vmatpush.bf16.msra.mxu0 %v1605
    %1715 = vmatpush.bf16.msra.mxu0 %v1604
    %1716 = vmatpush.bf16.msra.mxu0 %v1603
    %1717 = vmatmul.bf16.gmra.mxu0 %v639
    %v1718 = vpop.f32.mrf.mxu0
    %v1719 = vadd.f32 %v1706, %v1718
    %v1720 = vpop.f32.mrf.mxu0
    %1721 = vdwg.mxu0
    %1722 = vmatpush.bf16.msra.mxu0 %v1618
    %1723 = vmatpush.bf16.msra.mxu0 %v1617
    %1724 = vmatpush.bf16.msra.mxu0 %v1616
    %1725 = vmatpush.bf16.msra.mxu0 %v1615
    %1726 = vmatpush.bf16.msra.mxu0 %v1614
    %1727 = vmatpush.bf16.msra.mxu0 %v1613
    %1728 = vmatpush.bf16.msra.mxu0 %v1612
    %1729 = vmatpush.bf16.msra.mxu0 %v1611
    %1730 = vmatmul.bf16.gmra.mxu0 %v640
    %v1731 = vpop.f32.mrf.mxu0
    %v1732 = vadd.f32 %v1719, %v1731
    %v1733 = vpop.f32.mrf.mxu0
    %1734 = vdwg.mxu0
    %1735 = vmatpush.bf16.msra.mxu0 %v1626
    %1736 = vmatpush.bf16.msra.mxu0 %v1625
    %1737 = vmatpush.bf16.msra.mxu0 %v1624
    %1738 = vmatpush.bf16.msra.mxu0 %v1623
    %1739 = vmatpush.bf16.msra.mxu0 %v1622
    %1740 = vmatpush.bf16.msra.mxu0 %v1621
    %1741 = vmatpush.bf16.msra.mxu0 %v1620
    %1742 = vmatpush.bf16.msra.mxu0 %v1619
    %1743 = vmatmul.bf16.gmra.mxu0 %v641
    %v1744 = vpop.f32.mrf.mxu0
    %v1745 = vadd.f32 %v1732, %v1744
    %v1746 = vpop.f32.mrf.mxu0
    %1747 = vdwg.mxu0
    %1748 = vmatpush.bf16.msra.mxu0 %v1634
    %1749 = vmatpush.bf16.msra.mxu0 %v1633
    %1750 = vmatpush.bf16.msra.mxu0 %v1632
    %1751 = vmatpush.bf16.msra.mxu0 %v1631
    %1752 = vmatpush.bf16.msra.mxu0 %v1630
    %1753 = vmatpush.bf16.msra.mxu0 %v1629
    %1754 = vmatpush.bf16.msra.mxu0 %v1628
    %1755 = vmatpush.bf16.msra.mxu0 %v1627
    %1756 = vmatmul.bf16.gmra.mxu0 %v642
    %v1757 = vpop.f32.mrf.mxu0
    %v1758 = vadd.f32 %v1745, %v1757
    %v1759 = vpop.f32.mrf.mxu0
    %1760 = vdwg.mxu0
    %v1761 = vadd.f32 %v1298, %v1758
    %v1762 = vmax.f32 %v1761, 0.0
    %1763 = vmatpush.bf16.msra.mxu0 %v1128
    %1764 = vmatpush.bf16.msra.mxu0 %v1127
    %1765 = vmatpush.bf16.msra.mxu0 %v1126
    %1766 = vmatpush.bf16.msra.mxu0 %v1125
    %1767 = vmatpush.bf16.msra.mxu0 %v1124
    %1768 = vmatpush.bf16.msra.mxu0 %v1123
    %1769 = vmatpush.bf16.msra.mxu0 %v1122
    %1770 = vmatpush.bf16.msra.mxu0 %v1121
    %1771 = vmatmul.bf16.gmra.mxu0 %v637
    %v1772 = vpop.f32.mrf.mxu0
    %v1773 = vadd.f32 0.0, %v1772
    %v1774 = vpop.f32.mrf.mxu0
    %1775 = vdwg.mxu0
    %1776 = vmatpush.bf16.msra.mxu0 %v1136
    %1777 = vmatpush.bf16.msra.mxu0 %v1135
    %1778 = vmatpush.bf16.msra.mxu0 %v1134
    %1779 = vmatpush.bf16.msra.mxu0 %v1133
    %1780 = vmatpush.bf16.msra.mxu0 %v1132
    %1781 = vmatpush.bf16.msra.mxu0 %v1131
    %1782 = vmatpush.bf16.msra.mxu0 %v1130
    %1783 = vmatpush.bf16.msra.mxu0 %v1129
    %1784 = vmatmul.bf16.gmra.mxu0 %v638
    %v1785 = vpop.f32.mrf.mxu0
    %v1786 = vadd.f32 %v1773, %v1785
    %v1787 = vpop.f32.mrf.mxu0
    %1788 = vdwg.mxu0
    %1789 = vmatpush.bf16.msra.mxu0 %v1144
    %1790 = vmatpush.bf16.msra.mxu0 %v1143
    %1791 = vmatpush.bf16.msra.mxu0 %v1142
    %1792 = vmatpush.bf16.msra.mxu0 %v1141
    %1793 = vmatpush.bf16.msra.mxu0 %v1140
    %1794 = vmatpush.bf16.msra.mxu0 %v1139
    %1795 = vmatpush.bf16.msra.mxu0 %v1138
    %1796 = vmatpush.bf16.msra.mxu0 %v1137
    %1797 = vmatmul.bf16.gmra.mxu0 %v639
    %v1798 = vpop.f32.mrf.mxu0
    %v1799 = vadd.f32 %v1786, %v1798
    %v1800 = vpop.f32.mrf.mxu0
    %1801 = vdwg.mxu0
    %1802 = vmatpush.bf16.msra.mxu0 %v1152
    %1803 = vmatpush.bf16.msra.mxu0 %v1151
    %1804 = vmatpush.bf16.msra.mxu0 %v1150
    %1805 = vmatpush.bf16.msra.mxu0 %v1149
    %1806 = vmatpush.bf16.msra.mxu0 %v1148
    %1807 = vmatpush.bf16.msra.mxu0 %v1147
    %1808 = vmatpush.bf16.msra.mxu0 %v1146
    %1809 = vmatpush.bf16.msra.mxu0 %v1145
    %1810 = vmatmul.bf16.gmra.mxu0 %v640
    %v1811 = vpop.f32.mrf.mxu0
    %v1812 = vadd.f32 %v1799, %v1811
    %v1813 = vpop.f32.mrf.mxu0
    %1814 = vdwg.mxu0
    %1815 = vmatpush.bf16.msra.mxu0 %v1160
    %1816 = vmatpush.bf16.msra.mxu0 %v1159
    %1817 = vmatpush.bf16.msra.mxu0 %v1158
    %1818 = vmatpush.bf16.msra.mxu0 %v1157
    %1819 = vmatpush.bf16.msra.mxu0 %v1156
    %1820 = vmatpush.bf16.msra.mxu0 %v1155
    %1821 = vmatpush.bf16.msra.mxu0 %v1154
    %1822 = vmatpush.bf16.msra.mxu0 %v1153
    %1823 = vmatmul.bf16.gmra.mxu0 %v641
    %v1824 = vpop.f32.mrf.mxu0
    %v1825 = vadd.f32 %v1812, %v1824
    %v1826 = vpop.f32.mrf.mxu0
    %1827 = vdwg.mxu0
    %1828 = vmatpush.bf16.msra.mxu0 %v1168
    %1829 = vmatpush.bf16.msra.mxu0 %v1167
    %1830 = vmatpush.bf16.msra.mxu0 %v1166
    %1831 = vmatpush.bf16.msra.mxu0 %v1165
    %1832 = vmatpush.bf16.msra.mxu0 %v1164
    %1833 = vmatpush.bf16.msra.mxu0 %v1163
    %1834 = vmatpush.bf16.msra.mxu0 %v1162
    %1835 = vmatpush.bf16.msra.mxu0 %v1161
    %1836 = vmatmul.bf16.gmra.mxu0 %v642
    %v1837 = vpop.f32.mrf.mxu0
    %v1838 = vadd.f32 %v1825, %v1837
    %v1839 = vpop.f32.mrf.mxu0
    %1840 = vdwg.mxu0
    %v1841 = vadd.f32 %v1296, %v1838
    %1842 = vmatpush.bf16.msra.mxu0 %v1594
    %1843 = vmatpush.bf16.msra.mxu0 %v1593
    %1844 = vmatpush.bf16.msra.mxu0 %v1592
    %1845 = vmatpush.bf16.msra.mxu0 %v1591
    %1846 = vmatpush.bf16.msra.mxu0 %v1590
    %1847 = vmatpush.bf16.msra.mxu0 %v1589
    %1848 = vmatpush.bf16.msra.mxu0 %v1588
    %1849 = vmatpush.bf16.msra.mxu0 %v1587
    %1850 = vmatmul.bf16.gmra.mxu0 %v739
    %v1851 = vpop.f32.mrf.mxu0
    %v1852 = vadd.f32 0.0, %v1851
    %v1853 = vpop.f32.mrf.mxu0
    %1854 = vdwg.mxu0
    %1855 = vmatpush.bf16.msra.mxu0 %v1602
    %1856 = vmatpush.bf16.msra.mxu0 %v1601
    %1857 = vmatpush.bf16.msra.mxu0 %v1600
    %1858 = vmatpush.bf16.msra.mxu0 %v1599
    %1859 = vmatpush.bf16.msra.mxu0 %v1598
    %1860 = vmatpush.bf16.msra.mxu0 %v1597
    %1861 = vmatpush.bf16.msra.mxu0 %v1596
    %1862 = vmatpush.bf16.msra.mxu0 %v1595
    %1863 = vmatmul.bf16.gmra.mxu0 %v740
    %v1864 = vpop.f32.mrf.mxu0
    %v1865 = vadd.f32 %v1852, %v1864
    %v1866 = vpop.f32.mrf.mxu0
    %1867 = vdwg.mxu0
    %1868 = vmatpush.bf16.msra.mxu0 %v1610
    %1869 = vmatpush.bf16.msra.mxu0 %v1609
    %1870 = vmatpush.bf16.msra.mxu0 %v1608
    %1871 = vmatpush.bf16.msra.mxu0 %v1607
    %1872 = vmatpush.bf16.msra.mxu0 %v1606
    %1873 = vmatpush.bf16.msra.mxu0 %v1605
    %1874 = vmatpush.bf16.msra.mxu0 %v1604
    %1875 = vmatpush.bf16.msra.mxu0 %v1603
    %1876 = vmatmul.bf16.gmra.mxu0 %v741
    %v1877 = vpop.f32.mrf.mxu0
    %v1878 = vadd.f32 %v1865, %v1877
    %v1879 = vpop.f32.mrf.mxu0
    %1880 = vdwg.mxu0
    %1881 = vmatpush.bf16.msra.mxu0 %v1618
    %1882 = vmatpush.bf16.msra.mxu0 %v1617
    %1883 = vmatpush.bf16.msra.mxu0 %v1616
    %1884 = vmatpush.bf16.msra.mxu0 %v1615
    %1885 = vmatpush.bf16.msra.mxu0 %v1614
    %1886 = vmatpush.bf16.msra.mxu0 %v1613
    %1887 = vmatpush.bf16.msra.mxu0 %v1612
    %1888 = vmatpush.bf16.msra.mxu0 %v1611
    %1889 = vmatmul.bf16.gmra.mxu0 %v742
    %v1890 = vpop.f32.mrf.mxu0
    %v1891 = vadd.f32 %v1878, %v1890
    %v1892 = vpop.f32.mrf.mxu0
    %1893 = vdwg.mxu0
    %1894 = vmatpush.bf16.msra.mxu0 %v1626
    %1895 = vmatpush.bf16.msra.mxu0 %v1625
    %1896 = vmatpush.bf16.msra.mxu0 %v1624
    %1897 = vmatpush.bf16.msra.mxu0 %v1623
    %1898 = vmatpush.bf16.msra.mxu0 %v1622
    %1899 = vmatpush.bf16.msra.mxu0 %v1621
    %1900 = vmatpush.bf16.msra.mxu0 %v1620
    %1901 = vmatpush.bf16.msra.mxu0 %v1619
    %1902 = vmatmul.bf16.gmra.mxu0 %v743
    %v1903 = vpop.f32.mrf.mxu0
    %v1904 = vadd.f32 %v1891, %v1903
    %v1905 = vpop.f32.mrf.mxu0
    %1906 = vdwg.mxu0
    %1907 = vmatpush.bf16.msra.mxu0 %v1634
    %1908 = vmatpush.bf16.msra.mxu0 %v1633
    %1909 = vmatpush.bf16.msra.mxu0 %v1632
    %1910 = vmatpush.bf16.msra.mxu0 %v1631
    %1911 = vmatpush.bf16.msra.mxu0 %v1630
    %1912 = vmatpush.bf16.msra.mxu0 %v1629
    %1913 = vmatpush.bf16.msra.mxu0 %v1628
    %1914 = vmatpush.bf16.msra.mxu0 %v1627
    %1915 = vmatmul.bf16.gmra.mxu0 %v744
    %v1916 = vpop.f32.mrf.mxu0
    %v1917 = vadd.f32 %v1904, %v1916
    %v1918 = vpop.f32.mrf.mxu0
    %1919 = vdwg.mxu0
    %v1920 = vadd.f32 %v1841, %v1917
    %v1921 = vmax.f32 %v1920, 0.0
    %v1922 = vmax.f32 %v1762, %v1921
    %v1923 = vld [vmem:[%s7] sm:$0x1]
    %v1924 = vld [vmem:[%s6] sm:$0xf]
    %v1925 = vld [vmem:[%s6 + $0x4] sm:$0xf]
    %v1926 = vld [vmem:[%s6 + $0x8] sm:$0xf]
    %v1927 = vld [vmem:[%s6 + $0xc] sm:$0xf]
    %v1928 = vld [vmem:[%s6 + $0x10] sm:$0xf]
    %v1929 = vld [vmem:[%s6 + $0x14] sm:$0xf]
    %v1930 = vld [vmem:[%s6 + $0x18] sm:$0xf]
    %v1931 = vld [vmem:[%s6 + $0x1c] sm:$0xf]
    %v1932 = vld [vmem:[%s6 + $0x20] sm:$0xf]
    %v1933 = vld [vmem:[%s6 + $0x24] sm:$0xf]
    %v1934 = vld [vmem:[%s6 + $0x28] sm:$0xf]
    %v1935 = vld [vmem:[%s6 + $0x2c] sm:$0xf]
    %v1936 = vld [vmem:[%s6 + $0x30] sm:$0xf]
    %v1937 = vld [vmem:[%s6 + $0x34] sm:$0xf]
    %v1938 = vld [vmem:[%s6 + $0x38] sm:$0xf]
    %v1939 = vld [vmem:[%s6 + $0x3c] sm:$0xf]
    %v1940 = vld [vmem:[%s6 + $0x40] sm:$0xf]
    %v1941 = vld [vmem:[%s6 + $0x44] sm:$0xf]
    %v1942 = vld [vmem:[%s6 + $0x48] sm:$0xf]
    %v1943 = vld [vmem:[%s6 + $0x4c] sm:$0xf]
    %v1944 = vld [vmem:[%s6 + $0x50] sm:$0xf]
    %v1945 = vld [vmem:[%s6 + $0x54] sm:$0xf]
    %v1946 = vld [vmem:[%s6 + $0x58] sm:$0xf]
    %v1947 = vld [vmem:[%s6 + $0x5c] sm:$0xf]
    %v1948 = vld [vmem:[%s6 + $0x60] sm:$0xf]
    %v1949 = vld [vmem:[%s6 + $0x64] sm:$0xf]
    %v1950 = vld [vmem:[%s6 + $0x68] sm:$0xf]
    %v1951 = vld [vmem:[%s6 + $0x6c] sm:$0xf]
    %v1952 = vld [vmem:[%s6 + $0x70] sm:$0xf]
    %v1953 = vld [vmem:[%s6 + $0x74] sm:$0xf]
    %v1954 = vld [vmem:[%s6 + $0x78] sm:$0xf]
    %v1955 = vld [vmem:[%s6 + $0x7c] sm:$0xf]
    %v1956 = vld [vmem:[%s6 + $0x80] sm:$0xf]
    %v1957 = vld [vmem:[%s6 + $0x84] sm:$0xf]
    %v1958 = vld [vmem:[%s6 + $0x88] sm:$0xf]
    %v1959 = vld [vmem:[%s6 + $0x8c] sm:$0xf]
    %v1960 = vld [vmem:[%s6 + $0x90] sm:$0xf]
    %v1961 = vld [vmem:[%s6 + $0x94] sm:$0xf]
    %v1962 = vld [vmem:[%s6 + $0x98] sm:$0xf]
    %v1963 = vld [vmem:[%s6 + $0x9c] sm:$0xf]
    %v1964 = vld [vmem:[%s6 + $0xa0] sm:$0xf]
    %v1965 = vld [vmem:[%s6 + $0xa4] sm:$0xf]
    %v1966 = vld [vmem:[%s6 + $0xa8] sm:$0xf]
    %v1967 = vld [vmem:[%s6 + $0xac] sm:$0xf]
    %v1968 = vld [vmem:[%s6 + $0xb0] sm:$0xf]
    %v1969 = vld [vmem:[%s6 + $0xb4] sm:$0xf]
    %v1970 = vld [vmem:[%s6 + $0xb8] sm:$0xf]
    %v1971 = vld [vmem:[%s6 + $0xbc] sm:$0xf]
    %v1972 = vld [vmem:[%s6 + $0xc0] sm:$0xf]
    %v1973 = vld [vmem:[%s6 + $0xc4] sm:$0xf]
    %v1974 = vld [vmem:[%s6 + $0xc8] sm:$0xf]
    %v1975 = vld [vmem:[%s6 + $0xcc] sm:$0xf]
    %v1976 = vld [vmem:[%s6 + $0xd0] sm:$0xf]
    %v1977 = vld [vmem:[%s6 + $0xd4] sm:$0xf]
    %v1978 = vld [vmem:[%s6 + $0xd8] sm:$0xf]
    %v1979 = vld [vmem:[%s6 + $0xdc] sm:$0xf]
    %v1980 = vld [vmem:[%s6 + $0xe0] sm:$0xf]
    %v1981 = vld [vmem:[%s6 + $0xe4] sm:$0xf]
    %v1982 = vld [vmem:[%s6 + $0xe8] sm:$0xf]
    %v1983 = vld [vmem:[%s6 + $0xec] sm:$0xf]
    %v1984 = vld [vmem:[%s6 + $0xf0] sm:$0xf]
    %v1985 = vld [vmem:[%s6 + $0xf4] sm:$0xf]
    %v1986 = vld [vmem:[%s6 + $0xf8] sm:$0xf]
    %v1987 = vld [vmem:[%s6 + $0xfc] sm:$0xf]
    %v1988 = vld [vmem:[%s6 + $0x100] sm:$0xf]
    %v1989 = vld [vmem:[%s6 + $0x104] sm:$0xf]
    %v1990 = vld [vmem:[%s6 + $0x108] sm:$0xf]
    %v1991 = vld [vmem:[%s6 + $0x10c] sm:$0xf]
    %v1992 = vld [vmem:[%s6 + $0x110] sm:$0xf]
    %v1993 = vld [vmem:[%s6 + $0x114] sm:$0xf]
    %v1994 = vld [vmem:[%s6 + $0x118] sm:$0xf]
    %v1995 = vld [vmem:[%s6 + $0x11c] sm:$0xf]
    %v1996 = vld [vmem:[%s6 + $0x120] sm:$0xf]
    %v1997 = vld [vmem:[%s6 + $0x124] sm:$0xf]
    %v1998 = vld [vmem:[%s6 + $0x128] sm:$0xf]
    %v1999 = vld [vmem:[%s6 + $0x12c] sm:$0xf]
    %v2000 = vld [vmem:[%s6 + $0x130] sm:$0xf]
    %v2001 = vld [vmem:[%s6 + $0x134] sm:$0xf]
    %v2002 = vld [vmem:[%s6 + $0x138] sm:$0xf]
    %v2003 = vld [vmem:[%s6 + $0x13c] sm:$0xf]
    %v2004 = vld [vmem:[%s6 + $0x140] sm:$0xf]
    %v2005 = vld [vmem:[%s6 + $0x144] sm:$0xf]
    %v2006 = vld [vmem:[%s6 + $0x148] sm:$0xf]
    %v2007 = vld [vmem:[%s6 + $0x14c] sm:$0xf]
    %v2008 = vld [vmem:[%s6 + $0x150] sm:$0xf]
    %v2009 = vld [vmem:[%s6 + $0x154] sm:$0xf]
    %v2010 = vld [vmem:[%s6 + $0x158] sm:$0xf]
    %v2011 = vld [vmem:[%s6 + $0x15c] sm:$0xf]
    %v2012 = vld [vmem:[%s6 + $0x160] sm:$0xf]
    %v2013 = vld [vmem:[%s6 + $0x164] sm:$0xf]
    %v2014 = vld [vmem:[%s6 + $0x168] sm:$0xf]
    %v2015 = vld [vmem:[%s6 + $0x16c] sm:$0xf]
    %v2016 = vld [vmem:[%s6 + $0x170] sm:$0xf]
    %v2017 = vld [vmem:[%s6 + $0x174] sm:$0xf]
    %v2018 = vld [vmem:[%s6 + $0x178] sm:$0xf]
    %v2019 = vld [vmem:[%s6 + $0x17c] sm:$0xf]
    %v2116 = vunpack.c.l.b16 %v1924
    %v2117 = vunpack.c.l.b16 %v1925
    %v2118 = vunpack.c.l.b16 %v1926
    %v2119 = vunpack.c.l.b16 %v1927
    %v2120 = vunpack.c.l.b16 %v1928
    %v2121 = vunpack.c.l.b16 %v1929
    %v2122 = vunpack.c.l.b16 %v1930
    %v2123 = vunpack.c.l.b16 %v1931
    %v2124 = vunpack.c.l.b16 %v1932
    %v2125 = vunpack.c.l.b16 %v1933
    %v2126 = vunpack.c.l.b16 %v1934
    %v2127 = vunpack.c.l.b16 %v1935
    %v2128 = vunpack.c.l.b16 %v1936
    %v2129 = vunpack.c.l.b16 %v1937
    %v2130 = vunpack.c.l.b16 %v1938
    %v2131 = vunpack.c.l.b16 %v1939
    %v2132 = vunpack.c.l.b16 %v1940
    %v2133 = vunpack.c.l.b16 %v1941
    %v2134 = vunpack.c.l.b16 %v1942
    %v2135 = vunpack.c.l.b16 %v1943
    %v2136 = vunpack.c.l.b16 %v1944
    %v2137 = vunpack.c.l.b16 %v1945
    %v2138 = vunpack.c.l.b16 %v1946
    %v2139 = vunpack.c.l.b16 %v1947
    %v2140 = vunpack.c.l.b16 %v1948
    %v2141 = vunpack.c.l.b16 %v1949
    %v2142 = vunpack.c.l.b16 %v1950
    %v2143 = vunpack.c.l.b16 %v1951
    %v2144 = vunpack.c.l.b16 %v1952
    %v2145 = vunpack.c.l.b16 %v1953
    %v2146 = vunpack.c.l.b16 %v1954
    %v2147 = vunpack.c.l.b16 %v1955
    %v2148 = vunpack.c.l.b16 %v1956
    %v2149 = vunpack.c.l.b16 %v1957
    %v2150 = vunpack.c.l.b16 %v1958
    %v2151 = vunpack.c.l.b16 %v1959
    %v2152 = vunpack.c.l.b16 %v1960
    %v2153 = vunpack.c.l.b16 %v1961
    %v2154 = vunpack.c.l.b16 %v1962
    %v2155 = vunpack.c.l.b16 %v1963
    %v2156 = vunpack.c.l.b16 %v1964
    %v2157 = vunpack.c.l.b16 %v1965
    %v2158 = vunpack.c.l.b16 %v1966
    %v2159 = vunpack.c.l.b16 %v1967
    %v2160 = vunpack.c.l.b16 %v1968
    %v2161 = vunpack.c.l.b16 %v1969
    %v2162 = vunpack.c.l.b16 %v1970
    %v2163 = vunpack.c.l.b16 %v1971
    %v2164 = vunpack.c.l.b16 %v1972
    %v2165 = vunpack.c.l.b16 %v1973
    %v2166 = vunpack.c.l.b16 %v1974
    %v2167 = vunpack.c.l.b16 %v1975
    %v2168 = vunpack.c.l.b16 %v1976
    %v2169 = vunpack.c.l.b16 %v1977
    %v2170 = vunpack.c.l.b16 %v1978
    %v2171 = vunpack.c.l.b16 %v1979
    %v2172 = vunpack.c.l.b16 %v1980
    %v2173 = vunpack.c.l.b16 %v1981
    %v2174 = vunpack.c.l.b16 %v1982
    %v2175 = vunpack.c.l.b16 %v1983
    %v2176 = vunpack.c.l.b16 %v1984
    %v2177 = vunpack.c.l.b16 %v1985
    %v2178 = vunpack.c.l.b16 %v1986
    %v2179 = vunpack.c.l.b16 %v1987
    %v2180 = vunpack.c.l.b16 %v1988
    %v2181 = vunpack.c.l.b16 %v1989
    %v2182 = vunpack.c.l.b16 %v1990
    %v2183 = vunpack.c.l.b16 %v1991
    %v2184 = vunpack.c.l.b16 %v1992
    %v2185 = vunpack.c.l.b16 %v1993
    %v2186 = vunpack.c.l.b16 %v1994
    %v2187 = vunpack.c.l.b16 %v1995
    %v2188 = vunpack.c.l.b16 %v1996
    %v2189 = vunpack.c.l.b16 %v1997
    %v2190 = vunpack.c.l.b16 %v1998
    %v2191 = vunpack.c.l.b16 %v1999
    %v2192 = vunpack.c.l.b16 %v2000
    %v2193 = vunpack.c.l.b16 %v2001
    %v2194 = vunpack.c.l.b16 %v2002
    %v2195 = vunpack.c.l.b16 %v2003
    %v2196 = vunpack.c.l.b16 %v2004
    %v2197 = vunpack.c.l.b16 %v2005
    %v2198 = vunpack.c.l.b16 %v2006
    %v2199 = vunpack.c.l.b16 %v2007
    %v2200 = vunpack.c.l.b16 %v2008
    %v2201 = vunpack.c.l.b16 %v2009
    %v2202 = vunpack.c.l.b16 %v2010
    %v2203 = vunpack.c.l.b16 %v2011
    %v2204 = vunpack.c.l.b16 %v2012
    %v2205 = vunpack.c.l.b16 %v2013
    %v2206 = vunpack.c.l.b16 %v2014
    %v2207 = vunpack.c.l.b16 %v2015
    %v2208 = vunpack.c.l.b16 %v2016
    %v2209 = vunpack.c.l.b16 %v2017
    %v2210 = vunpack.c.l.b16 %v2018
    %v2211 = vunpack.c.l.b16 %v2019
    %v2212 = vpack.c.b16 %v2117, %v2116
    %v2213 = vpack.c.b16 %v2119, %v2118
    %v2214 = vpack.c.b16 %v2121, %v2120
    %v2215 = vpack.c.b16 %v2123, %v2122
    %v2216 = vpack.c.b16 %v2125, %v2124
    %v2217 = vpack.c.b16 %v2127, %v2126
    %v2218 = vpack.c.b16 %v2129, %v2128
    %v2219 = vpack.c.b16 %v2131, %v2130
    %v2220 = vpack.c.b16 %v2133, %v2132
    %v2221 = vpack.c.b16 %v2135, %v2134
    %v2222 = vpack.c.b16 %v2137, %v2136
    %v2223 = vpack.c.b16 %v2139, %v2138
    %v2224 = vpack.c.b16 %v2141, %v2140
    %v2225 = vpack.c.b16 %v2143, %v2142
    %v2226 = vpack.c.b16 %v2145, %v2144
    %v2227 = vpack.c.b16 %v2147, %v2146
    %v2228 = vpack.c.b16 %v2149, %v2148
    %v2229 = vpack.c.b16 %v2151, %v2150
    %v2230 = vpack.c.b16 %v2153, %v2152
    %v2231 = vpack.c.b16 %v2155, %v2154
    %v2232 = vpack.c.b16 %v2157, %v2156
    %v2233 = vpack.c.b16 %v2159, %v2158
    %v2234 = vpack.c.b16 %v2161, %v2160
    %v2235 = vpack.c.b16 %v2163, %v2162
    %v2236 = vpack.c.b16 %v2165, %v2164
    %v2237 = vpack.c.b16 %v2167, %v2166
    %v2238 = vpack.c.b16 %v2169, %v2168
    %v2239 = vpack.c.b16 %v2171, %v2170
    %v2240 = vpack.c.b16 %v2173, %v2172
    %v2241 = vpack.c.b16 %v2175, %v2174
    %v2242 = vpack.c.b16 %v2177, %v2176
    %v2243 = vpack.c.b16 %v2179, %v2178
    %v2244 = vpack.c.b16 %v2181, %v2180
    %v2245 = vpack.c.b16 %v2183, %v2182
    %v2246 = vpack.c.b16 %v2185, %v2184
    %v2247 = vpack.c.b16 %v2187, %v2186
    %v2248 = vpack.c.b16 %v2189, %v2188
    %v2249 = vpack.c.b16 %v2191, %v2190
    %v2250 = vpack.c.b16 %v2193, %v2192
    %v2251 = vpack.c.b16 %v2195, %v2194
    %v2252 = vpack.c.b16 %v2197, %v2196
    %v2253 = vpack.c.b16 %v2199, %v2198
    %v2254 = vpack.c.b16 %v2201, %v2200
    %v2255 = vpack.c.b16 %v2203, %v2202
    %v2256 = vpack.c.b16 %v2205, %v2204
    %v2257 = vpack.c.b16 %v2207, %v2206
    %v2258 = vpack.c.b16 %v2209, %v2208
    %v2259 = vpack.c.b16 %v2211, %v2210
    %2308 = vmatpush.bf16.msra.mxu0 %v2219
    %2309 = vmatpush.bf16.msra.mxu0 %v2218
    %2310 = vmatpush.bf16.msra.mxu0 %v2217
    %2311 = vmatpush.bf16.msra.mxu0 %v2216
    %2312 = vmatpush.bf16.msra.mxu0 %v2215
    %2313 = vmatpush.bf16.msra.mxu0 %v2214
    %2314 = vmatpush.bf16.msra.mxu0 %v2213
    %2315 = vmatpush.bf16.msra.mxu0 %v2212
    %2316 = vmatmul.bf16.gmra.mxu0 %v245
    %v2317 = vpop.f32.mrf.mxu0
    %v2318 = vadd.f32 0.0, %v2317
    %v2319 = vpop.f32.mrf.mxu0
    %2320 = vdwg.mxu0
    %2321 = vmatpush.bf16.msra.mxu0 %v2227
    %2322 = vmatpush.bf16.msra.mxu0 %v2226
    %2323 = vmatpush.bf16.msra.mxu0 %v2225
    %2324 = vmatpush.bf16.msra.mxu0 %v2224
    %2325 = vmatpush.bf16.msra.mxu0 %v2223
    %2326 = vmatpush.bf16.msra.mxu0 %v2222
    %2327 = vmatpush.bf16.msra.mxu0 %v2221
    %2328 = vmatpush.bf16.msra.mxu0 %v2220
    %2329 = vmatmul.bf16.gmra.mxu0 %v246
    %v2330 = vpop.f32.mrf.mxu0
    %v2331 = vadd.f32 %v2318, %v2330
    %v2332 = vpop.f32.mrf.mxu0
    %2333 = vdwg.mxu0
    %2334 = vmatpush.bf16.msra.mxu0 %v2235
    %2335 = vmatpush.bf16.msra.mxu0 %v2234
    %2336 = vmatpush.bf16.msra.mxu0 %v2233
    %2337 = vmatpush.bf16.msra.mxu0 %v2232
    %2338 = vmatpush.bf16.msra.mxu0 %v2231
    %2339 = vmatpush.bf16.msra.mxu0 %v2230
    %2340 = vmatpush.bf16.msra.mxu0 %v2229
    %2341 = vmatpush.bf16.msra.mxu0 %v2228
    %2342 = vmatmul.bf16.gmra.mxu0 %v247
    %v2343 = vpop.f32.mrf.mxu0
    %v2344 = vadd.f32 %v2331, %v2343
    %v2345 = vpop.f32.mrf.mxu0
    %2346 = vdwg.mxu0
    %2347 = vmatpush.bf16.msra.mxu0 %v2243
    %2348 = vmatpush.bf16.msra.mxu0 %v2242
    %2349 = vmatpush.bf16.msra.mxu0 %v2241
    %2350 = vmatpush.bf16.msra.mxu0 %v2240
    %2351 = vmatpush.bf16.msra.mxu0 %v2239
    %2352 = vmatpush.bf16.msra.mxu0 %v2238
    %2353 = vmatpush.bf16.msra.mxu0 %v2237
    %2354 = vmatpush.bf16.msra.mxu0 %v2236
    %2355 = vmatmul.bf16.gmra.mxu0 %v248
    %v2356 = vpop.f32.mrf.mxu0
    %v2357 = vadd.f32 %v2344, %v2356
    %v2358 = vpop.f32.mrf.mxu0
    %2359 = vdwg.mxu0
    %2360 = vmatpush.bf16.msra.mxu0 %v2251
    %2361 = vmatpush.bf16.msra.mxu0 %v2250
    %2362 = vmatpush.bf16.msra.mxu0 %v2249
    %2363 = vmatpush.bf16.msra.mxu0 %v2248
    %2364 = vmatpush.bf16.msra.mxu0 %v2247
    %2365 = vmatpush.bf16.msra.mxu0 %v2246
    %2366 = vmatpush.bf16.msra.mxu0 %v2245
    %2367 = vmatpush.bf16.msra.mxu0 %v2244
    %2368 = vmatmul.bf16.gmra.mxu0 %v249
    %v2369 = vpop.f32.mrf.mxu0
    %v2370 = vadd.f32 %v2357, %v2369
    %v2371 = vpop.f32.mrf.mxu0
    %2372 = vdwg.mxu0
    %2373 = vmatpush.bf16.msra.mxu0 %v2259
    %2374 = vmatpush.bf16.msra.mxu0 %v2258
    %2375 = vmatpush.bf16.msra.mxu0 %v2257
    %2376 = vmatpush.bf16.msra.mxu0 %v2256
    %2377 = vmatpush.bf16.msra.mxu0 %v2255
    %2378 = vmatpush.bf16.msra.mxu0 %v2254
    %2379 = vmatpush.bf16.msra.mxu0 %v2253
    %2380 = vmatpush.bf16.msra.mxu0 %v2252
    %2381 = vmatmul.bf16.gmra.mxu0 %v250
    %v2382 = vpop.f32.mrf.mxu0
    %v2383 = vadd.f32 %v2370, %v2382
    %v2384 = vpop.f32.mrf.mxu0
    %2385 = vdwg.mxu0
    %v2387 = vperm.slane %v1923, 0
    %v2389 = vadd.f32 %v2387, %v2383
    %v2390 = vld [vmem:[%s6 + $0x180] sm:$0xf]
    %v2391 = vld [vmem:[%s6 + $0x184] sm:$0xf]
    %v2392 = vld [vmem:[%s6 + $0x188] sm:$0xf]
    %v2393 = vld [vmem:[%s6 + $0x18c] sm:$0xf]
    %v2394 = vld [vmem:[%s6 + $0x190] sm:$0xf]
    %v2395 = vld [vmem:[%s6 + $0x194] sm:$0xf]
    %v2396 = vld [vmem:[%s6 + $0x198] sm:$0xf]
    %v2397 = vld [vmem:[%s6 + $0x19c] sm:$0xf]
    %v2398 = vld [vmem:[%s6 + $0x1a0] sm:$0xf]
    %v2399 = vld [vmem:[%s6 + $0x1a4] sm:$0xf]
    %v2400 = vld [vmem:[%s6 + $0x1a8] sm:$0xf]
    %v2401 = vld [vmem:[%s6 + $0x1ac] sm:$0xf]
    %v2402 = vld [vmem:[%s6 + $0x1b0] sm:$0xf]
    %v2403 = vld [vmem:[%s6 + $0x1b4] sm:$0xf]
    %v2404 = vld [vmem:[%s6 + $0x1b8] sm:$0xf]
    %v2405 = vld [vmem:[%s6 + $0x1bc] sm:$0xf]
    %v2406 = vld [vmem:[%s6 + $0x1c0] sm:$0xf]
    %v2407 = vld [vmem:[%s6 + $0x1c4] sm:$0xf]
    %v2408 = vld [vmem:[%s6 + $0x1c8] sm:$0xf]
    %v2409 = vld [vmem:[%s6 + $0x1cc] sm:$0xf]
    %v2410 = vld [vmem:[%s6 + $0x1d0] sm:$0xf]
    %v2411 = vld [vmem:[%s6 + $0x1d4] sm:$0xf]
    %v2412 = vld [vmem:[%s6 + $0x1d8] sm:$0xf]
    %v2413 = vld [vmem:[%s6 + $0x1dc] sm:$0xf]
    %v2414 = vld [vmem:[%s6 + $0x1e0] sm:$0xf]
    %v2415 = vld [vmem:[%s6 + $0x1e4] sm:$0xf]
    %v2416 = vld [vmem:[%s6 + $0x1e8] sm:$0xf]
    %v2417 = vld [vmem:[%s6 + $0x1ec] sm:$0xf]
    %v2418 = vld [vmem:[%s6 + $0x1f0] sm:$0xf]
    %v2419 = vld [vmem:[%s6 + $0x1f4] sm:$0xf]
    %v2420 = vld [vmem:[%s6 + $0x1f8] sm:$0xf]
    %v2421 = vld [vmem:[%s6 + $0x1fc] sm:$0xf]
    %v2422 = vld [vmem:[%s6 + $0x200] sm:$0xf]
    %v2423 = vld [vmem:[%s6 + $0x204] sm:$0xf]
    %v2424 = vld [vmem:[%s6 + $0x208] sm:$0xf]
    %v2425 = vld [vmem:[%s6 + $0x20c] sm:$0xf]
    %v2426 = vld [vmem:[%s6 + $0x210] sm:$0xf]
    %v2427 = vld [vmem:[%s6 + $0x214] sm:$0xf]
    %v2428 = vld [vmem:[%s6 + $0x218] sm:$0xf]
    %v2429 = vld [vmem:[%s6 + $0x21c] sm:$0xf]
    %v2430 = vld [vmem:[%s6 + $0x220] sm:$0xf]
    %v2431 = vld [vmem:[%s6 + $0x224] sm:$0xf]
    %v2432 = vld [vmem:[%s6 + $0x228] sm:$0xf]
    %v2433 = vld [vmem:[%s6 + $0x22c] sm:$0xf]
    %v2434 = vld [vmem:[%s6 + $0x230] sm:$0xf]
    %v2435 = vld [vmem:[%s6 + $0x234] sm:$0xf]
    %v2436 = vld [vmem:[%s6 + $0x238] sm:$0xf]
    %v2437 = vld [vmem:[%s6 + $0x23c] sm:$0xf]
    %v2438 = vld [vmem:[%s6 + $0x240] sm:$0xf]
    %v2439 = vld [vmem:[%s6 + $0x244] sm:$0xf]
    %v2440 = vld [vmem:[%s6 + $0x248] sm:$0xf]
    %v2441 = vld [vmem:[%s6 + $0x24c] sm:$0xf]
    %v2442 = vld [vmem:[%s6 + $0x250] sm:$0xf]
    %v2443 = vld [vmem:[%s6 + $0x254] sm:$0xf]
    %v2444 = vld [vmem:[%s6 + $0x258] sm:$0xf]
    %v2445 = vld [vmem:[%s6 + $0x25c] sm:$0xf]
    %v2446 = vld [vmem:[%s6 + $0x260] sm:$0xf]
    %v2447 = vld [vmem:[%s6 + $0x264] sm:$0xf]
    %v2448 = vld [vmem:[%s6 + $0x268] sm:$0xf]
    %v2449 = vld [vmem:[%s6 + $0x26c] sm:$0xf]
    %v2450 = vld [vmem:[%s6 + $0x270] sm:$0xf]
    %v2451 = vld [vmem:[%s6 + $0x274] sm:$0xf]
    %v2452 = vld [vmem:[%s6 + $0x278] sm:$0xf]
    %v2453 = vld [vmem:[%s6 + $0x27c] sm:$0xf]
    %v2454 = vld [vmem:[%s6 + $0x280] sm:$0xf]
    %v2455 = vld [vmem:[%s6 + $0x284] sm:$0xf]
    %v2456 = vld [vmem:[%s6 + $0x288] sm:$0xf]
    %v2457 = vld [vmem:[%s6 + $0x28c] sm:$0xf]
    %v2458 = vld [vmem:[%s6 + $0x290] sm:$0xf]
    %v2459 = vld [vmem:[%s6 + $0x294] sm:$0xf]
    %v2460 = vld [vmem:[%s6 + $0x298] sm:$0xf]
    %v2461 = vld [vmem:[%s6 + $0x29c] sm:$0xf]
    %v2462 = vld [vmem:[%s6 + $0x2a0] sm:$0xf]
    %v2463 = vld [vmem:[%s6 + $0x2a4] sm:$0xf]
    %v2464 = vld [vmem:[%s6 + $0x2a8] sm:$0xf]
    %v2465 = vld [vmem:[%s6 + $0x2ac] sm:$0xf]
    %v2466 = vld [vmem:[%s6 + $0x2b0] sm:$0xf]
    %v2467 = vld [vmem:[%s6 + $0x2b4] sm:$0xf]
    %v2468 = vld [vmem:[%s6 + $0x2b8] sm:$0xf]
    %v2469 = vld [vmem:[%s6 + $0x2bc] sm:$0xf]
    %v2470 = vld [vmem:[%s6 + $0x2c0] sm:$0xf]
    %v2471 = vld [vmem:[%s6 + $0x2c4] sm:$0xf]
    %v2472 = vld [vmem:[%s6 + $0x2c8] sm:$0xf]
    %v2473 = vld [vmem:[%s6 + $0x2cc] sm:$0xf]
    %v2474 = vld [vmem:[%s6 + $0x2d0] sm:$0xf]
    %v2475 = vld [vmem:[%s6 + $0x2d4] sm:$0xf]
    %v2476 = vld [vmem:[%s6 + $0x2d8] sm:$0xf]
    %v2477 = vld [vmem:[%s6 + $0x2dc] sm:$0xf]
    %v2478 = vld [vmem:[%s6 + $0x2e0] sm:$0xf]
    %v2479 = vld [vmem:[%s6 + $0x2e4] sm:$0xf]
    %v2480 = vld [vmem:[%s6 + $0x2e8] sm:$0xf]
    %v2481 = vld [vmem:[%s6 + $0x2ec] sm:$0xf]
    %v2482 = vld [vmem:[%s6 + $0x2f0] sm:$0xf]
    %v2483 = vld [vmem:[%s6 + $0x2f4] sm:$0xf]
    %v2484 = vld [vmem:[%s6 + $0x2f8] sm:$0xf]
    %v2485 = vld [vmem:[%s6 + $0x2fc] sm:$0xf]
    %v2582 = vunpack.c.l.b16 %v2390
    %v2583 = vunpack.c.l.b16 %v2391
    %v2584 = vunpack.c.l.b16 %v2392
    %v2585 = vunpack.c.l.b16 %v2393
    %v2586 = vunpack.c.l.b16 %v2394
    %v2587 = vunpack.c.l.b16 %v2395
    %v2588 = vunpack.c.l.b16 %v2396
    %v2589 = vunpack.c.l.b16 %v2397
    %v2590 = vunpack.c.l.b16 %v2398
    %v2591 = vunpack.c.l.b16 %v2399
    %v2592 = vunpack.c.l.b16 %v2400
    %v2593 = vunpack.c.l.b16 %v2401
    %v2594 = vunpack.c.l.b16 %v2402
    %v2595 = vunpack.c.l.b16 %v2403
    %v2596 = vunpack.c.l.b16 %v2404
    %v2597 = vunpack.c.l.b16 %v2405
    %v2598 = vunpack.c.l.b16 %v2406
    %v2599 = vunpack.c.l.b16 %v2407
    %v2600 = vunpack.c.l.b16 %v2408
    %v2601 = vunpack.c.l.b16 %v2409
    %v2602 = vunpack.c.l.b16 %v2410
    %v2603 = vunpack.c.l.b16 %v2411
    %v2604 = vunpack.c.l.b16 %v2412
    %v2605 = vunpack.c.l.b16 %v2413
    %v2606 = vunpack.c.l.b16 %v2414
    %v2607 = vunpack.c.l.b16 %v2415
    %v2608 = vunpack.c.l.b16 %v2416
    %v2609 = vunpack.c.l.b16 %v2417
    %v2610 = vunpack.c.l.b16 %v2418
    %v2611 = vunpack.c.l.b16 %v2419
    %v2612 = vunpack.c.l.b16 %v2420
    %v2613 = vunpack.c.l.b16 %v2421
    %v2614 = vunpack.c.l.b16 %v2422
    %v2615 = vunpack.c.l.b16 %v2423
    %v2616 = vunpack.c.l.b16 %v2424
    %v2617 = vunpack.c.l.b16 %v2425
    %v2618 = vunpack.c.l.b16 %v2426
    %v2619 = vunpack.c.l.b16 %v2427
    %v2620 = vunpack.c.l.b16 %v2428
    %v2621 = vunpack.c.l.b16 %v2429
    %v2622 = vunpack.c.l.b16 %v2430
    %v2623 = vunpack.c.l.b16 %v2431
    %v2624 = vunpack.c.l.b16 %v2432
    %v2625 = vunpack.c.l.b16 %v2433
    %v2626 = vunpack.c.l.b16 %v2434
    %v2627 = vunpack.c.l.b16 %v2435
    %v2628 = vunpack.c.l.b16 %v2436
    %v2629 = vunpack.c.l.b16 %v2437
    %v2630 = vunpack.c.l.b16 %v2438
    %v2631 = vunpack.c.l.b16 %v2439
    %v2632 = vunpack.c.l.b16 %v2440
    %v2633 = vunpack.c.l.b16 %v2441
    %v2634 = vunpack.c.l.b16 %v2442
    %v2635 = vunpack.c.l.b16 %v2443
    %v2636 = vunpack.c.l.b16 %v2444
    %v2637 = vunpack.c.l.b16 %v2445
    %v2638 = vunpack.c.l.b16 %v2446
    %v2639 = vunpack.c.l.b16 %v2447
    %v2640 = vunpack.c.l.b16 %v2448
    %v2641 = vunpack.c.l.b16 %v2449
    %v2642 = vunpack.c.l.b16 %v2450
    %v2643 = vunpack.c.l.b16 %v2451
    %v2644 = vunpack.c.l.b16 %v2452
    %v2645 = vunpack.c.l.b16 %v2453
    %v2646 = vunpack.c.l.b16 %v2454
    %v2647 = vunpack.c.l.b16 %v2455
    %v2648 = vunpack.c.l.b16 %v2456
    %v2649 = vunpack.c.l.b16 %v2457
    %v2650 = vunpack.c.l.b16 %v2458
    %v2651 = vunpack.c.l.b16 %v2459
    %v2652 = vunpack.c.l.b16 %v2460
    %v2653 = vunpack.c.l.b16 %v2461
    %v2654 = vunpack.c.l.b16 %v2462
    %v2655 = vunpack.c.l.b16 %v2463
    %v2656 = vunpack.c.l.b16 %v2464
    %v2657 = vunpack.c.l.b16 %v2465
    %v2658 = vunpack.c.l.b16 %v2466
    %v2659 = vunpack.c.l.b16 %v2467
    %v2660 = vunpack.c.l.b16 %v2468
    %v2661 = vunpack.c.l.b16 %v2469
    %v2662 = vunpack.c.l.b16 %v2470
    %v2663 = vunpack.c.l.b16 %v2471
    %v2664 = vunpack.c.l.b16 %v2472
    %v2665 = vunpack.c.l.b16 %v2473
    %v2666 = vunpack.c.l.b16 %v2474
    %v2667 = vunpack.c.l.b16 %v2475
    %v2668 = vunpack.c.l.b16 %v2476
    %v2669 = vunpack.c.l.b16 %v2477
    %v2670 = vunpack.c.l.b16 %v2478
    %v2671 = vunpack.c.l.b16 %v2479
    %v2672 = vunpack.c.l.b16 %v2480
    %v2673 = vunpack.c.l.b16 %v2481
    %v2674 = vunpack.c.l.b16 %v2482
    %v2675 = vunpack.c.l.b16 %v2483
    %v2676 = vunpack.c.l.b16 %v2484
    %v2677 = vunpack.c.l.b16 %v2485
    %v2678 = vpack.c.b16 %v2583, %v2582
    %v2679 = vpack.c.b16 %v2585, %v2584
    %v2680 = vpack.c.b16 %v2587, %v2586
    %v2681 = vpack.c.b16 %v2589, %v2588
    %v2682 = vpack.c.b16 %v2591, %v2590
    %v2683 = vpack.c.b16 %v2593, %v2592
    %v2684 = vpack.c.b16 %v2595, %v2594
    %v2685 = vpack.c.b16 %v2597, %v2596
    %v2686 = vpack.c.b16 %v2599, %v2598
    %v2687 = vpack.c.b16 %v2601, %v2600
    %v2688 = vpack.c.b16 %v2603, %v2602
    %v2689 = vpack.c.b16 %v2605, %v2604
    %v2690 = vpack.c.b16 %v2607, %v2606
    %v2691 = vpack.c.b16 %v2609, %v2608
    %v2692 = vpack.c.b16 %v2611, %v2610
    %v2693 = vpack.c.b16 %v2613, %v2612
    %v2694 = vpack.c.b16 %v2615, %v2614
    %v2695 = vpack.c.b16 %v2617, %v2616
    %v2696 = vpack.c.b16 %v2619, %v2618
    %v2697 = vpack.c.b16 %v2621, %v2620
    %v2698 = vpack.c.b16 %v2623, %v2622
    %v2699 = vpack.c.b16 %v2625, %v2624
    %v2700 = vpack.c.b16 %v2627, %v2626
    %v2701 = vpack.c.b16 %v2629, %v2628
    %v2702 = vpack.c.b16 %v2631, %v2630
    %v2703 = vpack.c.b16 %v2633, %v2632
    %v2704 = vpack.c.b16 %v2635, %v2634
    %v2705 = vpack.c.b16 %v2637, %v2636
    %v2706 = vpack.c.b16 %v2639, %v2638
    %v2707 = vpack.c.b16 %v2641, %v2640
    %v2708 = vpack.c.b16 %v2643, %v2642
    %v2709 = vpack.c.b16 %v2645, %v2644
    %v2710 = vpack.c.b16 %v2647, %v2646
    %v2711 = vpack.c.b16 %v2649, %v2648
    %v2712 = vpack.c.b16 %v2651, %v2650
    %v2713 = vpack.c.b16 %v2653, %v2652
    %v2714 = vpack.c.b16 %v2655, %v2654
    %v2715 = vpack.c.b16 %v2657, %v2656
    %v2716 = vpack.c.b16 %v2659, %v2658
    %v2717 = vpack.c.b16 %v2661, %v2660
    %v2718 = vpack.c.b16 %v2663, %v2662
    %v2719 = vpack.c.b16 %v2665, %v2664
    %v2720 = vpack.c.b16 %v2667, %v2666
    %v2721 = vpack.c.b16 %v2669, %v2668
    %v2722 = vpack.c.b16 %v2671, %v2670
    %v2723 = vpack.c.b16 %v2673, %v2672
    %v2724 = vpack.c.b16 %v2675, %v2674
    %v2725 = vpack.c.b16 %v2677, %v2676
    %2774 = vmatpush.bf16.msra.mxu0 %v2685
    %2775 = vmatpush.bf16.msra.mxu0 %v2684
    %2776 = vmatpush.bf16.msra.mxu0 %v2683
    %2777 = vmatpush.bf16.msra.mxu0 %v2682
    %2778 = vmatpush.bf16.msra.mxu0 %v2681
    %2779 = vmatpush.bf16.msra.mxu0 %v2680
    %2780 = vmatpush.bf16.msra.mxu0 %v2679
    %2781 = vmatpush.bf16.msra.mxu0 %v2678
    %2782 = vmatmul.bf16.gmra.mxu0 %v637
    %v2783 = vpop.f32.mrf.mxu0
    %v2784 = vadd.f32 0.0, %v2783
    %v2785 = vpop.f32.mrf.mxu0
    %2786 = vdwg.mxu0
    %2787 = vmatpush.bf16.msra.mxu0 %v2693
    %2788 = vmatpush.bf16.msra.mxu0 %v2692
    %2789 = vmatpush.bf16.msra.mxu0 %v2691
    %2790 = vmatpush.bf16.msra.mxu0 %v2690
    %2791 = vmatpush.bf16.msra.mxu0 %v2689
    %2792 = vmatpush.bf16.msra.mxu0 %v2688
    %2793 = vmatpush.bf16.msra.mxu0 %v2687
    %2794 = vmatpush.bf16.msra.mxu0 %v2686
    %2795 = vmatmul.bf16.gmra.mxu0 %v638
    %v2796 = vpop.f32.mrf.mxu0
    %v2797 = vadd.f32 %v2784, %v2796
    %v2798 = vpop.f32.mrf.mxu0
    %2799 = vdwg.mxu0
    %2800 = vmatpush.bf16.msra.mxu0 %v2701
    %2801 = vmatpush.bf16.msra.mxu0 %v2700
    %2802 = vmatpush.bf16.msra.mxu0 %v2699
    %2803 = vmatpush.bf16.msra.mxu0 %v2698
    %2804 = vmatpush.bf16.msra.mxu0 %v2697
    %2805 = vmatpush.bf16.msra.mxu0 %v2696
    %2806 = vmatpush.bf16.msra.mxu0 %v2695
    %2807 = vmatpush.bf16.msra.mxu0 %v2694
    %2808 = vmatmul.bf16.gmra.mxu0 %v639
    %v2809 = vpop.f32.mrf.mxu0
    %v2810 = vadd.f32 %v2797, %v2809
    %v2811 = vpop.f32.mrf.mxu0
    %2812 = vdwg.mxu0
    %2813 = vmatpush.bf16.msra.mxu0 %v2709
    %2814 = vmatpush.bf16.msra.mxu0 %v2708
    %2815 = vmatpush.bf16.msra.mxu0 %v2707
    %2816 = vmatpush.bf16.msra.mxu0 %v2706
    %2817 = vmatpush.bf16.msra.mxu0 %v2705
    %2818 = vmatpush.bf16.msra.mxu0 %v2704
    %2819 = vmatpush.bf16.msra.mxu0 %v2703
    %2820 = vmatpush.bf16.msra.mxu0 %v2702
    %2821 = vmatmul.bf16.gmra.mxu0 %v640
    %v2822 = vpop.f32.mrf.mxu0
    %v2823 = vadd.f32 %v2810, %v2822
    %v2824 = vpop.f32.mrf.mxu0
    %2825 = vdwg.mxu0
    %2826 = vmatpush.bf16.msra.mxu0 %v2717
    %2827 = vmatpush.bf16.msra.mxu0 %v2716
    %2828 = vmatpush.bf16.msra.mxu0 %v2715
    %2829 = vmatpush.bf16.msra.mxu0 %v2714
    %2830 = vmatpush.bf16.msra.mxu0 %v2713
    %2831 = vmatpush.bf16.msra.mxu0 %v2712
    %2832 = vmatpush.bf16.msra.mxu0 %v2711
    %2833 = vmatpush.bf16.msra.mxu0 %v2710
    %2834 = vmatmul.bf16.gmra.mxu0 %v641
    %v2835 = vpop.f32.mrf.mxu0
    %v2836 = vadd.f32 %v2823, %v2835
    %v2837 = vpop.f32.mrf.mxu0
    %2838 = vdwg.mxu0
    %2839 = vmatpush.bf16.msra.mxu0 %v2725
    %2840 = vmatpush.bf16.msra.mxu0 %v2724
    %2841 = vmatpush.bf16.msra.mxu0 %v2723
    %2842 = vmatpush.bf16.msra.mxu0 %v2722
    %2843 = vmatpush.bf16.msra.mxu0 %v2721
    %2844 = vmatpush.bf16.msra.mxu0 %v2720
    %2845 = vmatpush.bf16.msra.mxu0 %v2719
    %2846 = vmatpush.bf16.msra.mxu0 %v2718
    %2847 = vmatmul.bf16.gmra.mxu0 %v642
    %v2848 = vpop.f32.mrf.mxu0
    %v2849 = vadd.f32 %v2836, %v2848
    %v2850 = vpop.f32.mrf.mxu0
    %2851 = vdwg.mxu0
    %v2852 = vadd.f32 %v2389, %v2849
    %v2853 = vld [vmem:[%s6 + $0x300] sm:$0xf]
    %v2854 = vld [vmem:[%s6 + $0x304] sm:$0xf]
    %v2855 = vld [vmem:[%s6 + $0x308] sm:$0xf]
    %v2856 = vld [vmem:[%s6 + $0x30c] sm:$0xf]
    %v2857 = vld [vmem:[%s6 + $0x310] sm:$0xf]
    %v2858 = vld [vmem:[%s6 + $0x314] sm:$0xf]
    %v2859 = vld [vmem:[%s6 + $0x318] sm:$0xf]
    %v2860 = vld [vmem:[%s6 + $0x31c] sm:$0xf]
    %v2861 = vld [vmem:[%s6 + $0x320] sm:$0xf]
    %v2862 = vld [vmem:[%s6 + $0x324] sm:$0xf]
    %v2863 = vld [vmem:[%s6 + $0x328] sm:$0xf]
    %v2864 = vld [vmem:[%s6 + $0x32c] sm:$0xf]
    %v2865 = vld [vmem:[%s6 + $0x330] sm:$0xf]
    %v2866 = vld [vmem:[%s6 + $0x334] sm:$0xf]
    %v2867 = vld [vmem:[%s6 + $0x338] sm:$0xf]
    %v2868 = vld [vmem:[%s6 + $0x33c] sm:$0xf]
    %v2869 = vld [vmem:[%s6 + $0x340] sm:$0xf]
    %v2870 = vld [vmem:[%s6 + $0x344] sm:$0xf]
    %v2871 = vld [vmem:[%s6 + $0x348] sm:$0xf]
    %v2872 = vld [vmem:[%s6 + $0x34c] sm:$0xf]
    %v2873 = vld [vmem:[%s6 + $0x350] sm:$0xf]
    %v2874 = vld [vmem:[%s6 + $0x354] sm:$0xf]
    %v2875 = vld [vmem:[%s6 + $0x358] sm:$0xf]
    %v2876 = vld [vmem:[%s6 + $0x35c] sm:$0xf]
    %v2877 = vld [vmem:[%s6 + $0x360] sm:$0xf]
    %v2878 = vld [vmem:[%s6 + $0x364] sm:$0xf]
    %v2879 = vld [vmem:[%s6 + $0x368] sm:$0xf]
    %v2880 = vld [vmem:[%s6 + $0x36c] sm:$0xf]
    %v2881 = vld [vmem:[%s6 + $0x370] sm:$0xf]
    %v2882 = vld [vmem:[%s6 + $0x374] sm:$0xf]
    %v2883 = vld [vmem:[%s6 + $0x378] sm:$0xf]
    %v2884 = vld [vmem:[%s6 + $0x37c] sm:$0xf]
    %v2885 = vld [vmem:[%s6 + $0x380] sm:$0xf]
    %v2886 = vld [vmem:[%s6 + $0x384] sm:$0xf]
    %v2887 = vld [vmem:[%s6 + $0x388] sm:$0xf]
    %v2888 = vld [vmem:[%s6 + $0x38c] sm:$0xf]
    %v2889 = vld [vmem:[%s6 + $0x390] sm:$0xf]
    %v2890 = vld [vmem:[%s6 + $0x394] sm:$0xf]
    %v2891 = vld [vmem:[%s6 + $0x398] sm:$0xf]
    %v2892 = vld [vmem:[%s6 + $0x39c] sm:$0xf]
    %v2893 = vld [vmem:[%s6 + $0x3a0] sm:$0xf]
    %v2894 = vld [vmem:[%s6 + $0x3a4] sm:$0xf]
    %v2895 = vld [vmem:[%s6 + $0x3a8] sm:$0xf]
    %v2896 = vld [vmem:[%s6 + $0x3ac] sm:$0xf]
    %v2897 = vld [vmem:[%s6 + $0x3b0] sm:$0xf]
    %v2898 = vld [vmem:[%s6 + $0x3b4] sm:$0xf]
    %v2899 = vld [vmem:[%s6 + $0x3b8] sm:$0xf]
    %v2900 = vld [vmem:[%s6 + $0x3bc] sm:$0xf]
    %v2901 = vld [vmem:[%s6 + $0x3c0] sm:$0xf]
    %v2902 = vld [vmem:[%s6 + $0x3c4] sm:$0xf]
    %v2903 = vld [vmem:[%s6 + $0x3c8] sm:$0xf]
    %v2904 = vld [vmem:[%s6 + $0x3cc] sm:$0xf]
    %v2905 = vld [vmem:[%s6 + $0x3d0] sm:$0xf]
    %v2906 = vld [vmem:[%s6 + $0x3d4] sm:$0xf]
    %v2907 = vld [vmem:[%s6 + $0x3d8] sm:$0xf]
    %v2908 = vld [vmem:[%s6 + $0x3dc] sm:$0xf]
    %v2909 = vld [vmem:[%s6 + $0x3e0] sm:$0xf]
    %v2910 = vld [vmem:[%s6 + $0x3e4] sm:$0xf]
    %v2911 = vld [vmem:[%s6 + $0x3e8] sm:$0xf]
    %v2912 = vld [vmem:[%s6 + $0x3ec] sm:$0xf]
    %v2913 = vld [vmem:[%s6 + $0x3f0] sm:$0xf]
    %v2914 = vld [vmem:[%s6 + $0x3f4] sm:$0xf]
    %v2915 = vld [vmem:[%s6 + $0x3f8] sm:$0xf]
    %v2916 = vld [vmem:[%s6 + $0x3fc] sm:$0xf]
    %v2917 = vld [vmem:[%s6 + $0x400] sm:$0xf]
    %v2918 = vld [vmem:[%s6 + $0x404] sm:$0xf]
    %v2919 = vld [vmem:[%s6 + $0x408] sm:$0xf]
    %v2920 = vld [vmem:[%s6 + $0x40c] sm:$0xf]
    %v2921 = vld [vmem:[%s6 + $0x410] sm:$0xf]
    %v2922 = vld [vmem:[%s6 + $0x414] sm:$0xf]
    %v2923 = vld [vmem:[%s6 + $0x418] sm:$0xf]
    %v2924 = vld [vmem:[%s6 + $0x41c] sm:$0xf]
    %v2925 = vld [vmem:[%s6 + $0x420] sm:$0xf]
    %v2926 = vld [vmem:[%s6 + $0x424] sm:$0xf]
    %v2927 = vld [vmem:[%s6 + $0x428] sm:$0xf]
    %v2928 = vld [vmem:[%s6 + $0x42c] sm:$0xf]
    %v2929 = vld [vmem:[%s6 + $0x430] sm:$0xf]
    %v2930 = vld [vmem:[%s6 + $0x434] sm:$0xf]
    %v2931 = vld [vmem:[%s6 + $0x438] sm:$0xf]
    %v2932 = vld [vmem:[%s6 + $0x43c] sm:$0xf]
    %v2933 = vld [vmem:[%s6 + $0x440] sm:$0xf]
    %v2934 = vld [vmem:[%s6 + $0x444] sm:$0xf]
    %v2935 = vld [vmem:[%s6 + $0x448] sm:$0xf]
    %v2936 = vld [vmem:[%s6 + $0x44c] sm:$0xf]
    %v2937 = vld [vmem:[%s6 + $0x450] sm:$0xf]
    %v2938 = vld [vmem:[%s6 + $0x454] sm:$0xf]
    %v2939 = vld [vmem:[%s6 + $0x458] sm:$0xf]
    %v2940 = vld [vmem:[%s6 + $0x45c] sm:$0xf]
    %v2941 = vld [vmem:[%s6 + $0x460] sm:$0xf]
    %v2942 = vld [vmem:[%s6 + $0x464] sm:$0xf]
    %v2943 = vld [vmem:[%s6 + $0x468] sm:$0xf]
    %v2944 = vld [vmem:[%s6 + $0x46c] sm:$0xf]
    %v2945 = vld [vmem:[%s6 + $0x470] sm:$0xf]
    %v2946 = vld [vmem:[%s6 + $0x474] sm:$0xf]
    %v2947 = vld [vmem:[%s6 + $0x478] sm:$0xf]
    %v2948 = vld [vmem:[%s6 + $0x47c] sm:$0xf]
    %v3045 = vunpack.c.l.b16 %v2853
    %v3046 = vunpack.c.l.b16 %v2854
    %v3047 = vunpack.c.l.b16 %v2855
    %v3048 = vunpack.c.l.b16 %v2856
    %v3049 = vunpack.c.l.b16 %v2857
    %v3050 = vunpack.c.l.b16 %v2858
    %v3051 = vunpack.c.l.b16 %v2859
    %v3052 = vunpack.c.l.b16 %v2860
    %v3053 = vunpack.c.l.b16 %v2861
    %v3054 = vunpack.c.l.b16 %v2862
    %v3055 = vunpack.c.l.b16 %v2863
    %v3056 = vunpack.c.l.b16 %v2864
    %v3057 = vunpack.c.l.b16 %v2865
    %v3058 = vunpack.c.l.b16 %v2866
    %v3059 = vunpack.c.l.b16 %v2867
    %v3060 = vunpack.c.l.b16 %v2868
    %v3061 = vunpack.c.l.b16 %v2869
    %v3062 = vunpack.c.l.b16 %v2870
    %v3063 = vunpack.c.l.b16 %v2871
    %v3064 = vunpack.c.l.b16 %v2872
    %v3065 = vunpack.c.l.b16 %v2873
    %v3066 = vunpack.c.l.b16 %v2874
    %v3067 = vunpack.c.l.b16 %v2875
    %v3068 = vunpack.c.l.b16 %v2876
    %v3069 = vunpack.c.l.b16 %v2877
    %v3070 = vunpack.c.l.b16 %v2878
    %v3071 = vunpack.c.l.b16 %v2879
    %v3072 = vunpack.c.l.b16 %v2880
    %v3073 = vunpack.c.l.b16 %v2881
    %v3074 = vunpack.c.l.b16 %v2882
    %v3075 = vunpack.c.l.b16 %v2883
    %v3076 = vunpack.c.l.b16 %v2884
    %v3077 = vunpack.c.l.b16 %v2885
    %v3078 = vunpack.c.l.b16 %v2886
    %v3079 = vunpack.c.l.b16 %v2887
    %v3080 = vunpack.c.l.b16 %v2888
    %v3081 = vunpack.c.l.b16 %v2889
    %v3082 = vunpack.c.l.b16 %v2890
    %v3083 = vunpack.c.l.b16 %v2891
    %v3084 = vunpack.c.l.b16 %v2892
    %v3085 = vunpack.c.l.b16 %v2893
    %v3086 = vunpack.c.l.b16 %v2894
    %v3087 = vunpack.c.l.b16 %v2895
    %v3088 = vunpack.c.l.b16 %v2896
    %v3089 = vunpack.c.l.b16 %v2897
    %v3090 = vunpack.c.l.b16 %v2898
    %v3091 = vunpack.c.l.b16 %v2899
    %v3092 = vunpack.c.l.b16 %v2900
    %v3093 = vunpack.c.l.b16 %v2901
    %v3094 = vunpack.c.l.b16 %v2902
    %v3095 = vunpack.c.l.b16 %v2903
    %v3096 = vunpack.c.l.b16 %v2904
    %v3097 = vunpack.c.l.b16 %v2905
    %v3098 = vunpack.c.l.b16 %v2906
    %v3099 = vunpack.c.l.b16 %v2907
    %v3100 = vunpack.c.l.b16 %v2908
    %v3101 = vunpack.c.l.b16 %v2909
    %v3102 = vunpack.c.l.b16 %v2910
    %v3103 = vunpack.c.l.b16 %v2911
    %v3104 = vunpack.c.l.b16 %v2912
    %v3105 = vunpack.c.l.b16 %v2913
    %v3106 = vunpack.c.l.b16 %v2914
    %v3107 = vunpack.c.l.b16 %v2915
    %v3108 = vunpack.c.l.b16 %v2916
    %v3109 = vunpack.c.l.b16 %v2917
    %v3110 = vunpack.c.l.b16 %v2918
    %v3111 = vunpack.c.l.b16 %v2919
    %v3112 = vunpack.c.l.b16 %v2920
    %v3113 = vunpack.c.l.b16 %v2921
    %v3114 = vunpack.c.l.b16 %v2922
    %v3115 = vunpack.c.l.b16 %v2923
    %v3116 = vunpack.c.l.b16 %v2924
    %v3117 = vunpack.c.l.b16 %v2925
    %v3118 = vunpack.c.l.b16 %v2926
    %v3119 = vunpack.c.l.b16 %v2927
    %v3120 = vunpack.c.l.b16 %v2928
    %v3121 = vunpack.c.l.b16 %v2929
    %v3122 = vunpack.c.l.b16 %v2930
    %v3123 = vunpack.c.l.b16 %v2931
    %v3124 = vunpack.c.l.b16 %v2932
    %v3125 = vunpack.c.l.b16 %v2933
    %v3126 = vunpack.c.l.b16 %v2934
    %v3127 = vunpack.c.l.b16 %v2935
    %v3128 = vunpack.c.l.b16 %v2936
    %v3129 = vunpack.c.l.b16 %v2937
    %v3130 = vunpack.c.l.b16 %v2938
    %v3131 = vunpack.c.l.b16 %v2939
    %v3132 = vunpack.c.l.b16 %v2940
    %v3133 = vunpack.c.l.b16 %v2941
    %v3134 = vunpack.c.l.b16 %v2942
    %v3135 = vunpack.c.l.b16 %v2943
    %v3136 = vunpack.c.l.b16 %v2944
    %v3137 = vunpack.c.l.b16 %v2945
    %v3138 = vunpack.c.l.b16 %v2946
    %v3139 = vunpack.c.l.b16 %v2947
    %v3140 = vunpack.c.l.b16 %v2948
    %v3141 = vpack.c.b16 %v3046, %v3045
    %v3142 = vpack.c.b16 %v3048, %v3047
    %v3143 = vpack.c.b16 %v3050, %v3049
    %v3144 = vpack.c.b16 %v3052, %v3051
    %v3145 = vpack.c.b16 %v3054, %v3053
    %v3146 = vpack.c.b16 %v3056, %v3055
    %v3147 = vpack.c.b16 %v3058, %v3057
    %v3148 = vpack.c.b16 %v3060, %v3059
    %v3149 = vpack.c.b16 %v3062, %v3061
    %v3150 = vpack.c.b16 %v3064, %v3063
    %v3151 = vpack.c.b16 %v3066, %v3065
    %v3152 = vpack.c.b16 %v3068, %v3067
    %v3153 = vpack.c.b16 %v3070, %v3069
    %v3154 = vpack.c.b16 %v3072, %v3071
    %v3155 = vpack.c.b16 %v3074, %v3073
    %v3156 = vpack.c.b16 %v3076, %v3075
    %v3157 = vpack.c.b16 %v3078, %v3077
    %v3158 = vpack.c.b16 %v3080, %v3079
    %v3159 = vpack.c.b16 %v3082, %v3081
    %v3160 = vpack.c.b16 %v3084, %v3083
    %v3161 = vpack.c.b16 %v3086, %v3085
    %v3162 = vpack.c.b16 %v3088, %v3087
    %v3163 = vpack.c.b16 %v3090, %v3089
    %v3164 = vpack.c.b16 %v3092, %v3091
    %v3165 = vpack.c.b16 %v3094, %v3093
    %v3166 = vpack.c.b16 %v3096, %v3095
    %v3167 = vpack.c.b16 %v3098, %v3097
    %v3168 = vpack.c.b16 %v3100, %v3099
    %v3169 = vpack.c.b16 %v3102, %v3101
    %v3170 = vpack.c.b16 %v3104, %v3103
    %v3171 = vpack.c.b16 %v3106, %v3105
    %v3172 = vpack.c.b16 %v3108, %v3107
    %v3173 = vpack.c.b16 %v3110, %v3109
    %v3174 = vpack.c.b16 %v3112, %v3111
    %v3175 = vpack.c.b16 %v3114, %v3113
    %v3176 = vpack.c.b16 %v3116, %v3115
    %v3177 = vpack.c.b16 %v3118, %v3117
    %v3178 = vpack.c.b16 %v3120, %v3119
    %v3179 = vpack.c.b16 %v3122, %v3121
    %v3180 = vpack.c.b16 %v3124, %v3123
    %v3181 = vpack.c.b16 %v3126, %v3125
    %v3182 = vpack.c.b16 %v3128, %v3127
    %v3183 = vpack.c.b16 %v3130, %v3129
    %v3184 = vpack.c.b16 %v3132, %v3131
    %v3185 = vpack.c.b16 %v3134, %v3133
    %v3186 = vpack.c.b16 %v3136, %v3135
    %v3187 = vpack.c.b16 %v3138, %v3137
    %v3188 = vpack.c.b16 %v3140, %v3139
    %3237 = vmatpush.bf16.msra.mxu0 %v3148
    %3238 = vmatpush.bf16.msra.mxu0 %v3147
    %3239 = vmatpush.bf16.msra.mxu0 %v3146
    %3240 = vmatpush.bf16.msra.mxu0 %v3145
    %3241 = vmatpush.bf16.msra.mxu0 %v3144
    %3242 = vmatpush.bf16.msra.mxu0 %v3143
    %3243 = vmatpush.bf16.msra.mxu0 %v3142
    %3244 = vmatpush.bf16.msra.mxu0 %v3141
    %3245 = vmatmul.bf16.gmra.mxu0 %v739
    %v3246 = vpop.f32.mrf.mxu0
    %v3247 = vadd.f32 0.0, %v3246
    %v3248 = vpop.f32.mrf.mxu0
    %3249 = vdwg.mxu0
    %3250 = vmatpush.bf16.msra.mxu0 %v3156
    %3251 = vmatpush.bf16.msra.mxu0 %v3155
    %3252 = vmatpush.bf16.msra.mxu0 %v3154
    %3253 = vmatpush.bf16.msra.mxu0 %v3153
    %3254 = vmatpush.bf16.msra.mxu0 %v3152
    %3255 = vmatpush.bf16.msra.mxu0 %v3151
    %3256 = vmatpush.bf16.msra.mxu0 %v3150
    %3257 = vmatpush.bf16.msra.mxu0 %v3149
    %3258 = vmatmul.bf16.gmra.mxu0 %v740
    %v3259 = vpop.f32.mrf.mxu0
    %v3260 = vadd.f32 %v3247, %v3259
    %v3261 = vpop.f32.mrf.mxu0
    %3262 = vdwg.mxu0
    %3263 = vmatpush.bf16.msra.mxu0 %v3164
    %3264 = vmatpush.bf16.msra.mxu0 %v3163
    %3265 = vmatpush.bf16.msra.mxu0 %v3162
    %3266 = vmatpush.bf16.msra.mxu0 %v3161
    %3267 = vmatpush.bf16.msra.mxu0 %v3160
    %3268 = vmatpush.bf16.msra.mxu0 %v3159
    %3269 = vmatpush.bf16.msra.mxu0 %v3158
    %3270 = vmatpush.bf16.msra.mxu0 %v3157
    %3271 = vmatmul.bf16.gmra.mxu0 %v741
    %v3272 = vpop.f32.mrf.mxu0
    %v3273 = vadd.f32 %v3260, %v3272
    %v3274 = vpop.f32.mrf.mxu0
    %3275 = vdwg.mxu0
    %3276 = vmatpush.bf16.msra.mxu0 %v3172
    %3277 = vmatpush.bf16.msra.mxu0 %v3171
    %3278 = vmatpush.bf16.msra.mxu0 %v3170
    %3279 = vmatpush.bf16.msra.mxu0 %v3169
    %3280 = vmatpush.bf16.msra.mxu0 %v3168
    %3281 = vmatpush.bf16.msra.mxu0 %v3167
    %3282 = vmatpush.bf16.msra.mxu0 %v3166
    %3283 = vmatpush.bf16.msra.mxu0 %v3165
    %3284 = vmatmul.bf16.gmra.mxu0 %v742
    %v3285 = vpop.f32.mrf.mxu0
    %v3286 = vadd.f32 %v3273, %v3285
    %v3287 = vpop.f32.mrf.mxu0
    %3288 = vdwg.mxu0
    %3289 = vmatpush.bf16.msra.mxu0 %v3180
    %3290 = vmatpush.bf16.msra.mxu0 %v3179
    %3291 = vmatpush.bf16.msra.mxu0 %v3178
    %3292 = vmatpush.bf16.msra.mxu0 %v3177
    %3293 = vmatpush.bf16.msra.mxu0 %v3176
    %3294 = vmatpush.bf16.msra.mxu0 %v3175
    %3295 = vmatpush.bf16.msra.mxu0 %v3174
    %3296 = vmatpush.bf16.msra.mxu0 %v3173
    %3297 = vmatmul.bf16.gmra.mxu0 %v743
    %v3298 = vpop.f32.mrf.mxu0
    %v3299 = vadd.f32 %v3286, %v3298
    %v3300 = vpop.f32.mrf.mxu0
    %3301 = vdwg.mxu0
    %3302 = vmatpush.bf16.msra.mxu0 %v3188
    %3303 = vmatpush.bf16.msra.mxu0 %v3187
    %3304 = vmatpush.bf16.msra.mxu0 %v3186
    %3305 = vmatpush.bf16.msra.mxu0 %v3185
    %3306 = vmatpush.bf16.msra.mxu0 %v3184
    %3307 = vmatpush.bf16.msra.mxu0 %v3183
    %3308 = vmatpush.bf16.msra.mxu0 %v3182
    %3309 = vmatpush.bf16.msra.mxu0 %v3181
    %3310 = vmatmul.bf16.gmra.mxu0 %v744
    %v3311 = vpop.f32.mrf.mxu0
    %v3312 = vadd.f32 %v3299, %v3311
    %v3313 = vpop.f32.mrf.mxu0
    %3314 = vdwg.mxu0
    %v3315 = vadd.f32 %v2852, %v3312
    %v3316 = vmax.f32 %v3315, 0.0
    %v3317 = vld [vmem:[%s9] sm:$0x1]
    %v3318 = vld [vmem:[%s8] sm:$0xff]
    %vm3319 = vcmask 64512
    %v3321 = vsel %vm3319, %v831, 0
    %3323 = vmatpush.msra.mxu0 0.0
    %3324 = vmatpush.msra.mxu0 0.0
    %3325 = vmatpush.msra.mxu0 0.0
    %3326 = vmatpush.msra.mxu0 0.0
    %3327 = vmatpush.msra.mxu0 0.0
    %3328 = vmatpush.msra.mxu0 0.0
    %3329 = vmatpush.msra.mxu0 0.0
    %3330 = vmatpush.msra.mxu0 0.0
    %3331 = vmatpush.msra.mxu0 0.0
    %3332 = vmatpush.msra.mxu0 0.0
    %3333 = vmatpush.msra.mxu0 0.0
    %3334 = vmatpush.msra.mxu0 0.0
    %3335 = vmatpush.msra.mxu0 0.0
    %3336 = vmatpush.msra.mxu0 0.0
    %3337 = vmatpush.msra.mxu0 0.0
    %3338 = vmatpush.msra.mxu0 %v3318
    %3339 = vmatmul.f32.gmra.mxu0 %v3321
    %v3340 = vpop.f32.mrf.mxu0
    %v3341 = vadd.f32 0.0, %v3340
    %3342 = vdwg.mxu0
    %v3344 = vperm.slane %v3317, 0
    %v3346 = vadd.f32 %v3344, %v3341
    %v3347 = vld [vmem:[%s8 + $0x8] sm:$0xff]
    %v3349 = vsel %vm3319, %v1922, 0
    %3351 = vmatpush.msra.mxu0 0.0
    %3352 = vmatpush.msra.mxu0 0.0
    %3353 = vmatpush.msra.mxu0 0.0
    %3354 = vmatpush.msra.mxu0 0.0
    %3355 = vmatpush.msra.mxu0 0.0
    %3356 = vmatpush.msra.mxu0 0.0
    %3357 = vmatpush.msra.mxu0 0.0
    %3358 = vmatpush.msra.mxu0 0.0
    %3359 = vmatpush.msra.mxu0 0.0
    %3360 = vmatpush.msra.mxu0 0.0
    %3361 = vmatpush.msra.mxu0 0.0
    %3362 = vmatpush.msra.mxu0 0.0
    %3363 = vmatpush.msra.mxu0 0.0
    %3364 = vmatpush.msra.mxu0 0.0
    %3365 = vmatpush.msra.mxu0 0.0
    %3366 = vmatpush.msra.mxu0 %v3347
    %3367 = vmatmul.f32.gmra.mxu0 %v3349
    %v3368 = vpop.f32.mrf.mxu0
    %v3369 = vadd.f32 0.0, %v3368
    %3370 = vdwg.mxu0
    %v3371 = vadd.f32 %v3346, %v3369
    %v3372 = vld [vmem:[%s8 + $0x10] sm:$0xff]
    %v3374 = vsel %vm3319, %v3316, 0
    %3376 = vmatpush.msra.mxu0 0.0
    %3377 = vmatpush.msra.mxu0 0.0
    %3378 = vmatpush.msra.mxu0 0.0
    %3379 = vmatpush.msra.mxu0 0.0
    %3380 = vmatpush.msra.mxu0 0.0
    %3381 = vmatpush.msra.mxu0 0.0
    %3382 = vmatpush.msra.mxu0 0.0
    %3383 = vmatpush.msra.mxu0 0.0
    %3384 = vmatpush.msra.mxu0 0.0
    %3385 = vmatpush.msra.mxu0 0.0
    %3386 = vmatpush.msra.mxu0 0.0
    %3387 = vmatpush.msra.mxu0 0.0
    %3388 = vmatpush.msra.mxu0 0.0
    %3389 = vmatpush.msra.mxu0 0.0
    %3390 = vmatpush.msra.mxu0 0.0
    %3391 = vmatpush.msra.mxu0 %v3372
    %3392 = vmatmul.f32.gmra.mxu0 %v3374
    %v3393 = vpop.f32.mrf.mxu0
    %v3394 = vadd.f32 0.0, %v3393
    %3395 = vdwg.mxu0
    %v3396 = vadd.f32 %v3371, %v3394
    %v3397 = vld [vmem:[%s11] sm:$0x1]
    %v3398 = vld [vmem:[%s10] sm:$0xf]
    %v3399 = vld [vmem:[%s10 + $0x4] sm:$0xf]
    %v3400 = vld [vmem:[%s10 + $0x8] sm:$0xf]
    %v3401 = vld [vmem:[%s10 + $0xc] sm:$0xf]
    %v3402 = vld [vmem:[%s10 + $0x10] sm:$0xf]
    %v3403 = vld [vmem:[%s10 + $0x14] sm:$0xf]
    %v3404 = vld [vmem:[%s10 + $0x18] sm:$0xf]
    %v3405 = vld [vmem:[%s10 + $0x1c] sm:$0xf]
    %v3406 = vld [vmem:[%s10 + $0x20] sm:$0xf]
    %v3407 = vld [vmem:[%s10 + $0x24] sm:$0xf]
    %v3408 = vld [vmem:[%s10 + $0x28] sm:$0xf]
    %v3409 = vld [vmem:[%s10 + $0x2c] sm:$0xf]
    %v3410 = vld [vmem:[%s10 + $0x30] sm:$0xf]
    %v3411 = vld [vmem:[%s10 + $0x34] sm:$0xf]
    %v3412 = vld [vmem:[%s10 + $0x38] sm:$0xf]
    %v3413 = vld [vmem:[%s10 + $0x3c] sm:$0xf]
    %v3414 = vld [vmem:[%s10 + $0x40] sm:$0xf]
    %v3415 = vld [vmem:[%s10 + $0x44] sm:$0xf]
    %v3416 = vld [vmem:[%s10 + $0x48] sm:$0xf]
    %v3417 = vld [vmem:[%s10 + $0x4c] sm:$0xf]
    %v3418 = vld [vmem:[%s10 + $0x50] sm:$0xf]
    %v3419 = vld [vmem:[%s10 + $0x54] sm:$0xf]
    %v3420 = vld [vmem:[%s10 + $0x58] sm:$0xf]
    %v3421 = vld [vmem:[%s10 + $0x5c] sm:$0xf]
    %v3422 = vld [vmem:[%s10 + $0x60] sm:$0xf]
    %v3423 = vld [vmem:[%s10 + $0x64] sm:$0xf]
    %v3424 = vld [vmem:[%s10 + $0x68] sm:$0xf]
    %v3425 = vld [vmem:[%s10 + $0x6c] sm:$0xf]
    %v3426 = vld [vmem:[%s10 + $0x70] sm:$0xf]
    %v3427 = vld [vmem:[%s10 + $0x74] sm:$0xf]
    %v3428 = vld [vmem:[%s10 + $0x78] sm:$0xf]
    %v3429 = vld [vmem:[%s10 + $0x7c] sm:$0xf]
    %v3430 = vld [vmem:[%s10 + $0x80] sm:$0xf]
    %v3431 = vld [vmem:[%s10 + $0x84] sm:$0xf]
    %v3432 = vld [vmem:[%s10 + $0x88] sm:$0xf]
    %v3433 = vld [vmem:[%s10 + $0x8c] sm:$0xf]
    %v3434 = vld [vmem:[%s10 + $0x90] sm:$0xf]
    %v3435 = vld [vmem:[%s10 + $0x94] sm:$0xf]
    %v3436 = vld [vmem:[%s10 + $0x98] sm:$0xf]
    %v3437 = vld [vmem:[%s10 + $0x9c] sm:$0xf]
    %v3438 = vld [vmem:[%s10 + $0xa0] sm:$0xf]
    %v3439 = vld [vmem:[%s10 + $0xa4] sm:$0xf]
    %v3440 = vld [vmem:[%s10 + $0xa8] sm:$0xf]
    %v3441 = vld [vmem:[%s10 + $0xac] sm:$0xf]
    %v3442 = vld [vmem:[%s10 + $0xb0] sm:$0xf]
    %v3443 = vld [vmem:[%s10 + $0xb4] sm:$0xf]
    %v3444 = vld [vmem:[%s10 + $0xb8] sm:$0xf]
    %v3445 = vld [vmem:[%s10 + $0xbc] sm:$0xf]
    %v3446 = vld [vmem:[%s10 + $0xc0] sm:$0xf]
    %v3447 = vld [vmem:[%s10 + $0xc4] sm:$0xf]
    %v3448 = vld [vmem:[%s10 + $0xc8] sm:$0xf]
    %v3449 = vld [vmem:[%s10 + $0xcc] sm:$0xf]
    %v3450 = vld [vmem:[%s10 + $0xd0] sm:$0xf]
    %v3451 = vld [vmem:[%s10 + $0xd4] sm:$0xf]
    %v3452 = vld [vmem:[%s10 + $0xd8] sm:$0xf]
    %v3453 = vld [vmem:[%s10 + $0xdc] sm:$0xf]
    %v3454 = vld [vmem:[%s10 + $0xe0] sm:$0xf]
    %v3455 = vld [vmem:[%s10 + $0xe4] sm:$0xf]
    %v3456 = vld [vmem:[%s10 + $0xe8] sm:$0xf]
    %v3457 = vld [vmem:[%s10 + $0xec] sm:$0xf]
    %v3458 = vld [vmem:[%s10 + $0xf0] sm:$0xf]
    %v3459 = vld [vmem:[%s10 + $0xf4] sm:$0xf]
    %v3460 = vld [vmem:[%s10 + $0xf8] sm:$0xf]
    %v3461 = vld [vmem:[%s10 + $0xfc] sm:$0xf]
    %v3462 = vld [vmem:[%s10 + $0x100] sm:$0xf]
    %v3463 = vld [vmem:[%s10 + $0x104] sm:$0xf]
    %v3464 = vld [vmem:[%s10 + $0x108] sm:$0xf]
    %v3465 = vld [vmem:[%s10 + $0x10c] sm:$0xf]
    %v3466 = vld [vmem:[%s10 + $0x110] sm:$0xf]
    %v3467 = vld [vmem:[%s10 + $0x114] sm:$0xf]
    %v3468 = vld [vmem:[%s10 + $0x118] sm:$0xf]
    %v3469 = vld [vmem:[%s10 + $0x11c] sm:$0xf]
    %v3470 = vld [vmem:[%s10 + $0x120] sm:$0xf]
    %v3471 = vld [vmem:[%s10 + $0x124] sm:$0xf]
    %v3472 = vld [vmem:[%s10 + $0x128] sm:$0xf]
    %v3473 = vld [vmem:[%s10 + $0x12c] sm:$0xf]
    %v3474 = vld [vmem:[%s10 + $0x130] sm:$0xf]
    %v3475 = vld [vmem:[%s10 + $0x134] sm:$0xf]
    %v3476 = vld [vmem:[%s10 + $0x138] sm:$0xf]
    %v3477 = vld [vmem:[%s10 + $0x13c] sm:$0xf]
    %v3478 = vld [vmem:[%s10 + $0x140] sm:$0xf]
    %v3479 = vld [vmem:[%s10 + $0x144] sm:$0xf]
    %v3480 = vld [vmem:[%s10 + $0x148] sm:$0xf]
    %v3481 = vld [vmem:[%s10 + $0x14c] sm:$0xf]
    %v3482 = vld [vmem:[%s10 + $0x150] sm:$0xf]
    %v3483 = vld [vmem:[%s10 + $0x154] sm:$0xf]
    %v3484 = vld [vmem:[%s10 + $0x158] sm:$0xf]
    %v3485 = vld [vmem:[%s10 + $0x15c] sm:$0xf]
    %v3486 = vld [vmem:[%s10 + $0x160] sm:$0xf]
    %v3487 = vld [vmem:[%s10 + $0x164] sm:$0xf]
    %v3488 = vld [vmem:[%s10 + $0x168] sm:$0xf]
    %v3489 = vld [vmem:[%s10 + $0x16c] sm:$0xf]
    %v3490 = vld [vmem:[%s10 + $0x170] sm:$0xf]
    %v3491 = vld [vmem:[%s10 + $0x174] sm:$0xf]
    %v3492 = vld [vmem:[%s10 + $0x178] sm:$0xf]
    %v3493 = vld [vmem:[%s10 + $0x17c] sm:$0xf]
    %v3590 = vunpack.c.l.b16 %v3398
    %v3591 = vunpack.c.l.b16 %v3399
    %v3592 = vunpack.c.l.b16 %v3400
    %v3593 = vunpack.c.l.b16 %v3401
    %v3594 = vunpack.c.l.b16 %v3402
    %v3595 = vunpack.c.l.b16 %v3403
    %v3596 = vunpack.c.l.b16 %v3404
    %v3597 = vunpack.c.l.b16 %v3405
    %v3598 = vunpack.c.l.b16 %v3406
    %v3599 = vunpack.c.l.b16 %v3407
    %v3600 = vunpack.c.l.b16 %v3408
    %v3601 = vunpack.c.l.b16 %v3409
    %v3602 = vunpack.c.l.b16 %v3410
    %v3603 = vunpack.c.l.b16 %v3411
    %v3604 = vunpack.c.l.b16 %v3412
    %v3605 = vunpack.c.l.b16 %v3413
    %v3606 = vunpack.c.l.b16 %v3414
    %v3607 = vunpack.c.l.b16 %v3415
    %v3608 = vunpack.c.l.b16 %v3416
    %v3609 = vunpack.c.l.b16 %v3417
    %v3610 = vunpack.c.l.b16 %v3418
    %v3611 = vunpack.c.l.b16 %v3419
    %v3612 = vunpack.c.l.b16 %v3420
    %v3613 = vunpack.c.l.b16 %v3421
    %v3614 = vunpack.c.l.b16 %v3422
    %v3615 = vunpack.c.l.b16 %v3423
    %v3616 = vunpack.c.l.b16 %v3424
    %v3617 = vunpack.c.l.b16 %v3425
    %v3618 = vunpack.c.l.b16 %v3426
    %v3619 = vunpack.c.l.b16 %v3427
    %v3620 = vunpack.c.l.b16 %v3428
    %v3621 = vunpack.c.l.b16 %v3429
    %v3622 = vunpack.c.l.b16 %v3430
    %v3623 = vunpack.c.l.b16 %v3431
    %v3624 = vunpack.c.l.b16 %v3432
    %v3625 = vunpack.c.l.b16 %v3433
    %v3626 = vunpack.c.l.b16 %v3434
    %v3627 = vunpack.c.l.b16 %v3435
    %v3628 = vunpack.c.l.b16 %v3436
    %v3629 = vunpack.c.l.b16 %v3437
    %v3630 = vunpack.c.l.b16 %v3438
    %v3631 = vunpack.c.l.b16 %v3439
    %v3632 = vunpack.c.l.b16 %v3440
    %v3633 = vunpack.c.l.b16 %v3441
    %v3634 = vunpack.c.l.b16 %v3442
    %v3635 = vunpack.c.l.b16 %v3443
    %v3636 = vunpack.c.l.b16 %v3444
    %v3637 = vunpack.c.l.b16 %v3445
    %v3638 = vunpack.c.l.b16 %v3446
    %v3639 = vunpack.c.l.b16 %v3447
    %v3640 = vunpack.c.l.b16 %v3448
    %v3641 = vunpack.c.l.b16 %v3449
    %v3642 = vunpack.c.l.b16 %v3450
    %v3643 = vunpack.c.l.b16 %v3451
    %v3644 = vunpack.c.l.b16 %v3452
    %v3645 = vunpack.c.l.b16 %v3453
    %v3646 = vunpack.c.l.b16 %v3454
    %v3647 = vunpack.c.l.b16 %v3455
    %v3648 = vunpack.c.l.b16 %v3456
    %v3649 = vunpack.c.l.b16 %v3457
    %v3650 = vunpack.c.l.b16 %v3458
    %v3651 = vunpack.c.l.b16 %v3459
    %v3652 = vunpack.c.l.b16 %v3460
    %v3653 = vunpack.c.l.b16 %v3461
    %v3654 = vunpack.c.l.b16 %v3462
    %v3655 = vunpack.c.l.b16 %v3463
    %v3656 = vunpack.c.l.b16 %v3464
    %v3657 = vunpack.c.l.b16 %v3465
    %v3658 = vunpack.c.l.b16 %v3466
    %v3659 = vunpack.c.l.b16 %v3467
    %v3660 = vunpack.c.l.b16 %v3468
    %v3661 = vunpack.c.l.b16 %v3469
    %v3662 = vunpack.c.l.b16 %v3470
    %v3663 = vunpack.c.l.b16 %v3471
    %v3664 = vunpack.c.l.b16 %v3472
    %v3665 = vunpack.c.l.b16 %v3473
    %v3666 = vunpack.c.l.b16 %v3474
    %v3667 = vunpack.c.l.b16 %v3475
    %v3668 = vunpack.c.l.b16 %v3476
    %v3669 = vunpack.c.l.b16 %v3477
    %v3670 = vunpack.c.l.b16 %v3478
    %v3671 = vunpack.c.l.b16 %v3479
    %v3672 = vunpack.c.l.b16 %v3480
    %v3673 = vunpack.c.l.b16 %v3481
    %v3674 = vunpack.c.l.b16 %v3482
    %v3675 = vunpack.c.l.b16 %v3483
    %v3676 = vunpack.c.l.b16 %v3484
    %v3677 = vunpack.c.l.b16 %v3485
    %v3678 = vunpack.c.l.b16 %v3486
    %v3679 = vunpack.c.l.b16 %v3487
    %v3680 = vunpack.c.l.b16 %v3488
    %v3681 = vunpack.c.l.b16 %v3489
    %v3682 = vunpack.c.l.b16 %v3490
    %v3683 = vunpack.c.l.b16 %v3491
    %v3684 = vunpack.c.l.b16 %v3492
    %v3685 = vunpack.c.l.b16 %v3493
    %v3686 = vpack.c.b16 %v3591, %v3590
    %v3687 = vpack.c.b16 %v3593, %v3592
    %v3688 = vpack.c.b16 %v3595, %v3594
    %v3689 = vpack.c.b16 %v3597, %v3596
    %v3690 = vpack.c.b16 %v3599, %v3598
    %v3691 = vpack.c.b16 %v3601, %v3600
    %v3692 = vpack.c.b16 %v3603, %v3602
    %v3693 = vpack.c.b16 %v3605, %v3604
    %v3694 = vpack.c.b16 %v3607, %v3606
    %v3695 = vpack.c.b16 %v3609, %v3608
    %v3696 = vpack.c.b16 %v3611, %v3610
    %v3697 = vpack.c.b16 %v3613, %v3612
    %v3698 = vpack.c.b16 %v3615, %v3614
    %v3699 = vpack.c.b16 %v3617, %v3616
    %v3700 = vpack.c.b16 %v3619, %v3618
    %v3701 = vpack.c.b16 %v3621, %v3620
    %v3702 = vpack.c.b16 %v3623, %v3622
    %v3703 = vpack.c.b16 %v3625, %v3624
    %v3704 = vpack.c.b16 %v3627, %v3626
    %v3705 = vpack.c.b16 %v3629, %v3628
    %v3706 = vpack.c.b16 %v3631, %v3630
    %v3707 = vpack.c.b16 %v3633, %v3632
    %v3708 = vpack.c.b16 %v3635, %v3634
    %v3709 = vpack.c.b16 %v3637, %v3636
    %v3710 = vpack.c.b16 %v3639, %v3638
    %v3711 = vpack.c.b16 %v3641, %v3640
    %v3712 = vpack.c.b16 %v3643, %v3642
    %v3713 = vpack.c.b16 %v3645, %v3644
    %v3714 = vpack.c.b16 %v3647, %v3646
    %v3715 = vpack.c.b16 %v3649, %v3648
    %v3716 = vpack.c.b16 %v3651, %v3650
    %v3717 = vpack.c.b16 %v3653, %v3652
    %v3718 = vpack.c.b16 %v3655, %v3654
    %v3719 = vpack.c.b16 %v3657, %v3656
    %v3720 = vpack.c.b16 %v3659, %v3658
    %v3721 = vpack.c.b16 %v3661, %v3660
    %v3722 = vpack.c.b16 %v3663, %v3662
    %v3723 = vpack.c.b16 %v3665, %v3664
    %v3724 = vpack.c.b16 %v3667, %v3666
    %v3725 = vpack.c.b16 %v3669, %v3668
    %v3726 = vpack.c.b16 %v3671, %v3670
    %v3727 = vpack.c.b16 %v3673, %v3672
    %v3728 = vpack.c.b16 %v3675, %v3674
    %v3729 = vpack.c.b16 %v3677, %v3676
    %v3730 = vpack.c.b16 %v3679, %v3678
    %v3731 = vpack.c.b16 %v3681, %v3680
    %v3732 = vpack.c.b16 %v3683, %v3682
    %v3733 = vpack.c.b16 %v3685, %v3684
    %3782 = vmatpush.bf16.msra.mxu0 %v3693
    %3783 = vmatpush.bf16.msra.mxu0 %v3692
    %3784 = vmatpush.bf16.msra.mxu0 %v3691
    %3785 = vmatpush.bf16.msra.mxu0 %v3690
    %3786 = vmatpush.bf16.msra.mxu0 %v3689
    %3787 = vmatpush.bf16.msra.mxu0 %v3688
    %3788 = vmatpush.bf16.msra.mxu0 %v3687
    %3789 = vmatpush.bf16.msra.mxu0 %v3686
    %3790 = vmatmul.bf16.gmra.mxu0 %v245
    %v3791 = vpop.f32.mrf.mxu0
    %v3792 = vadd.f32 0.0, %v3791
    %v3793 = vpop.f32.mrf.mxu0
    %3794 = vdwg.mxu0
    %3795 = vmatpush.bf16.msra.mxu0 %v3701
    %3796 = vmatpush.bf16.msra.mxu0 %v3700
    %3797 = vmatpush.bf16.msra.mxu0 %v3699
    %3798 = vmatpush.bf16.msra.mxu0 %v3698
    %3799 = vmatpush.bf16.msra.mxu0 %v3697
    %3800 = vmatpush.bf16.msra.mxu0 %v3696
    %3801 = vmatpush.bf16.msra.mxu0 %v3695
    %3802 = vmatpush.bf16.msra.mxu0 %v3694
    %3803 = vmatmul.bf16.gmra.mxu0 %v246
    %v3804 = vpop.f32.mrf.mxu0
    %v3805 = vadd.f32 %v3792, %v3804
    %v3806 = vpop.f32.mrf.mxu0
    %3807 = vdwg.mxu0
    %3808 = vmatpush.bf16.msra.mxu0 %v3709
    %3809 = vmatpush.bf16.msra.mxu0 %v3708
    %3810 = vmatpush.bf16.msra.mxu0 %v3707
    %3811 = vmatpush.bf16.msra.mxu0 %v3706
    %3812 = vmatpush.bf16.msra.mxu0 %v3705
    %3813 = vmatpush.bf16.msra.mxu0 %v3704
    %3814 = vmatpush.bf16.msra.mxu0 %v3703
    %3815 = vmatpush.bf16.msra.mxu0 %v3702
    %3816 = vmatmul.bf16.gmra.mxu0 %v247
    %v3817 = vpop.f32.mrf.mxu0
    %v3818 = vadd.f32 %v3805, %v3817
    %v3819 = vpop.f32.mrf.mxu0
    %3820 = vdwg.mxu0
    %3821 = vmatpush.bf16.msra.mxu0 %v3717
    %3822 = vmatpush.bf16.msra.mxu0 %v3716
    %3823 = vmatpush.bf16.msra.mxu0 %v3715
    %3824 = vmatpush.bf16.msra.mxu0 %v3714
    %3825 = vmatpush.bf16.msra.mxu0 %v3713
    %3826 = vmatpush.bf16.msra.mxu0 %v3712
    %3827 = vmatpush.bf16.msra.mxu0 %v3711
    %3828 = vmatpush.bf16.msra.mxu0 %v3710
    %3829 = vmatmul.bf16.gmra.mxu0 %v248
    %v3830 = vpop.f32.mrf.mxu0
    %v3831 = vadd.f32 %v3818, %v3830
    %v3832 = vpop.f32.mrf.mxu0
    %3833 = vdwg.mxu0
    %3834 = vmatpush.bf16.msra.mxu0 %v3725
    %3835 = vmatpush.bf16.msra.mxu0 %v3724
    %3836 = vmatpush.bf16.msra.mxu0 %v3723
    %3837 = vmatpush.bf16.msra.mxu0 %v3722
    %3838 = vmatpush.bf16.msra.mxu0 %v3721
    %3839 = vmatpush.bf16.msra.mxu0 %v3720
    %3840 = vmatpush.bf16.msra.mxu0 %v3719
    %3841 = vmatpush.bf16.msra.mxu0 %v3718
    %3842 = vmatmul.bf16.gmra.mxu0 %v249
    %v3843 = vpop.f32.mrf.mxu0
    %v3844 = vadd.f32 %v3831, %v3843
    %v3845 = vpop.f32.mrf.mxu0
    %3846 = vdwg.mxu0
    %3847 = vmatpush.bf16.msra.mxu0 %v3733
    %3848 = vmatpush.bf16.msra.mxu0 %v3732
    %3849 = vmatpush.bf16.msra.mxu0 %v3731
    %3850 = vmatpush.bf16.msra.mxu0 %v3730
    %3851 = vmatpush.bf16.msra.mxu0 %v3729
    %3852 = vmatpush.bf16.msra.mxu0 %v3728
    %3853 = vmatpush.bf16.msra.mxu0 %v3727
    %3854 = vmatpush.bf16.msra.mxu0 %v3726
    %3855 = vmatmul.bf16.gmra.mxu0 %v250
    %v3856 = vpop.f32.mrf.mxu0
    %v3857 = vadd.f32 %v3844, %v3856
    %v3858 = vpop.f32.mrf.mxu0
    %3859 = vdwg.mxu0
    %v3861 = vperm.slane %v3397, 0
    %v3863 = vadd.f32 %v3861, %v3857
    %v3864 = vld [vmem:[%s10 + $0x180] sm:$0xf]
    %v3865 = vld [vmem:[%s10 + $0x184] sm:$0xf]
    %v3866 = vld [vmem:[%s10 + $0x188] sm:$0xf]
    %v3867 = vld [vmem:[%s10 + $0x18c] sm:$0xf]
    %v3868 = vld [vmem:[%s10 + $0x190] sm:$0xf]
    %v3869 = vld [vmem:[%s10 + $0x194] sm:$0xf]
    %v3870 = vld [vmem:[%s10 + $0x198] sm:$0xf]
    %v3871 = vld [vmem:[%s10 + $0x19c] sm:$0xf]
    %v3872 = vld [vmem:[%s10 + $0x1a0] sm:$0xf]
    %v3873 = vld [vmem:[%s10 + $0x1a4] sm:$0xf]
    %v3874 = vld [vmem:[%s10 + $0x1a8] sm:$0xf]
    %v3875 = vld [vmem:[%s10 + $0x1ac] sm:$0xf]
    %v3876 = vld [vmem:[%s10 + $0x1b0] sm:$0xf]
    %v3877 = vld [vmem:[%s10 + $0x1b4] sm:$0xf]
    %v3878 = vld [vmem:[%s10 + $0x1b8] sm:$0xf]
    %v3879 = vld [vmem:[%s10 + $0x1bc] sm:$0xf]
    %v3880 = vld [vmem:[%s10 + $0x1c0] sm:$0xf]
    %v3881 = vld [vmem:[%s10 + $0x1c4] sm:$0xf]
    %v3882 = vld [vmem:[%s10 + $0x1c8] sm:$0xf]
    %v3883 = vld [vmem:[%s10 + $0x1cc] sm:$0xf]
    %v3884 = vld [vmem:[%s10 + $0x1d0] sm:$0xf]
    %v3885 = vld [vmem:[%s10 + $0x1d4] sm:$0xf]
    %v3886 = vld [vmem:[%s10 + $0x1d8] sm:$0xf]
    %v3887 = vld [vmem:[%s10 + $0x1dc] sm:$0xf]
    %v3888 = vld [vmem:[%s10 + $0x1e0] sm:$0xf]
    %v3889 = vld [vmem:[%s10 + $0x1e4] sm:$0xf]
    %v3890 = vld [vmem:[%s10 + $0x1e8] sm:$0xf]
    %v3891 = vld [vmem:[%s10 + $0x1ec] sm:$0xf]
    %v3892 = vld [vmem:[%s10 + $0x1f0] sm:$0xf]
    %v3893 = vld [vmem:[%s10 + $0x1f4] sm:$0xf]
    %v3894 = vld [vmem:[%s10 + $0x1f8] sm:$0xf]
    %v3895 = vld [vmem:[%s10 + $0x1fc] sm:$0xf]
    %v3896 = vld [vmem:[%s10 + $0x200] sm:$0xf]
    %v3897 = vld [vmem:[%s10 + $0x204] sm:$0xf]
    %v3898 = vld [vmem:[%s10 + $0x208] sm:$0xf]
    %v3899 = vld [vmem:[%s10 + $0x20c] sm:$0xf]
    %v3900 = vld [vmem:[%s10 + $0x210] sm:$0xf]
    %v3901 = vld [vmem:[%s10 + $0x214] sm:$0xf]
    %v3902 = vld [vmem:[%s10 + $0x218] sm:$0xf]
    %v3903 = vld [vmem:[%s10 + $0x21c] sm:$0xf]
    %v3904 = vld [vmem:[%s10 + $0x220] sm:$0xf]
    %v3905 = vld [vmem:[%s10 + $0x224] sm:$0xf]
    %v3906 = vld [vmem:[%s10 + $0x228] sm:$0xf]
    %v3907 = vld [vmem:[%s10 + $0x22c] sm:$0xf]
    %v3908 = vld [vmem:[%s10 + $0x230] sm:$0xf]
    %v3909 = vld [vmem:[%s10 + $0x234] sm:$0xf]
    %v3910 = vld [vmem:[%s10 + $0x238] sm:$0xf]
    %v3911 = vld [vmem:[%s10 + $0x23c] sm:$0xf]
    %v3912 = vld [vmem:[%s10 + $0x240] sm:$0xf]
    %v3913 = vld [vmem:[%s10 + $0x244] sm:$0xf]
    %v3914 = vld [vmem:[%s10 + $0x248] sm:$0xf]
    %v3915 = vld [vmem:[%s10 + $0x24c] sm:$0xf]
    %v3916 = vld [vmem:[%s10 + $0x250] sm:$0xf]
    %v3917 = vld [vmem:[%s10 + $0x254] sm:$0xf]
    %v3918 = vld [vmem:[%s10 + $0x258] sm:$0xf]
    %v3919 = vld [vmem:[%s10 + $0x25c] sm:$0xf]
    %v3920 = vld [vmem:[%s10 + $0x260] sm:$0xf]
    %v3921 = vld [vmem:[%s10 + $0x264] sm:$0xf]
    %v3922 = vld [vmem:[%s10 + $0x268] sm:$0xf]
    %v3923 = vld [vmem:[%s10 + $0x26c] sm:$0xf]
    %v3924 = vld [vmem:[%s10 + $0x270] sm:$0xf]
    %v3925 = vld [vmem:[%s10 + $0x274] sm:$0xf]
    %v3926 = vld [vmem:[%s10 + $0x278] sm:$0xf]
    %v3927 = vld [vmem:[%s10 + $0x27c] sm:$0xf]
    %v3928 = vld [vmem:[%s10 + $0x280] sm:$0xf]
    %v3929 = vld [vmem:[%s10 + $0x284] sm:$0xf]
    %v3930 = vld [vmem:[%s10 + $0x288] sm:$0xf]
    %v3931 = vld [vmem:[%s10 + $0x28c] sm:$0xf]
    %v3932 = vld [vmem:[%s10 + $0x290] sm:$0xf]
    %v3933 = vld [vmem:[%s10 + $0x294] sm:$0xf]
    %v3934 = vld [vmem:[%s10 + $0x298] sm:$0xf]
    %v3935 = vld [vmem:[%s10 + $0x29c] sm:$0xf]
    %v3936 = vld [vmem:[%s10 + $0x2a0] sm:$0xf]
    %v3937 = vld [vmem:[%s10 + $0x2a4] sm:$0xf]
    %v3938 = vld [vmem:[%s10 + $0x2a8] sm:$0xf]
    %v3939 = vld [vmem:[%s10 + $0x2ac] sm:$0xf]
    %v3940 = vld [vmem:[%s10 + $0x2b0] sm:$0xf]
    %v3941 = vld [vmem:[%s10 + $0x2b4] sm:$0xf]
    %v3942 = vld [vmem:[%s10 + $0x2b8] sm:$0xf]
    %v3943 = vld [vmem:[%s10 + $0x2bc] sm:$0xf]
    %v3944 = vld [vmem:[%s10 + $0x2c0] sm:$0xf]
    %v3945 = vld [vmem:[%s10 + $0x2c4] sm:$0xf]
    %v3946 = vld [vmem:[%s10 + $0x2c8] sm:$0xf]
    %v3947 = vld [vmem:[%s10 + $0x2cc] sm:$0xf]
    %v3948 = vld [vmem:[%s10 + $0x2d0] sm:$0xf]
    %v3949 = vld [vmem:[%s10 + $0x2d4] sm:$0xf]
    %v3950 = vld [vmem:[%s10 + $0x2d8] sm:$0xf]
    %v3951 = vld [vmem:[%s10 + $0x2dc] sm:$0xf]
    %v3952 = vld [vmem:[%s10 + $0x2e0] sm:$0xf]
    %v3953 = vld [vmem:[%s10 + $0x2e4] sm:$0xf]
    %v3954 = vld [vmem:[%s10 + $0x2e8] sm:$0xf]
    %v3955 = vld [vmem:[%s10 + $0x2ec] sm:$0xf]
    %v3956 = vld [vmem:[%s10 + $0x2f0] sm:$0xf]
    %v3957 = vld [vmem:[%s10 + $0x2f4] sm:$0xf]
    %v3958 = vld [vmem:[%s10 + $0x2f8] sm:$0xf]
    %v3959 = vld [vmem:[%s10 + $0x2fc] sm:$0xf]
    %v4056 = vunpack.c.l.b16 %v3864
    %v4057 = vunpack.c.l.b16 %v3865
    %v4058 = vunpack.c.l.b16 %v3866
    %v4059 = vunpack.c.l.b16 %v3867
    %v4060 = vunpack.c.l.b16 %v3868
    %v4061 = vunpack.c.l.b16 %v3869
    %v4062 = vunpack.c.l.b16 %v3870
    %v4063 = vunpack.c.l.b16 %v3871
    %v4064 = vunpack.c.l.b16 %v3872
    %v4065 = vunpack.c.l.b16 %v3873
    %v4066 = vunpack.c.l.b16 %v3874
    %v4067 = vunpack.c.l.b16 %v3875
    %v4068 = vunpack.c.l.b16 %v3876
    %v4069 = vunpack.c.l.b16 %v3877
    %v4070 = vunpack.c.l.b16 %v3878
    %v4071 = vunpack.c.l.b16 %v3879
    %v4072 = vunpack.c.l.b16 %v3880
    %v4073 = vunpack.c.l.b16 %v3881
    %v4074 = vunpack.c.l.b16 %v3882
    %v4075 = vunpack.c.l.b16 %v3883
    %v4076 = vunpack.c.l.b16 %v3884
    %v4077 = vunpack.c.l.b16 %v3885
    %v4078 = vunpack.c.l.b16 %v3886
    %v4079 = vunpack.c.l.b16 %v3887
    %v4080 = vunpack.c.l.b16 %v3888
    %v4081 = vunpack.c.l.b16 %v3889
    %v4082 = vunpack.c.l.b16 %v3890
    %v4083 = vunpack.c.l.b16 %v3891
    %v4084 = vunpack.c.l.b16 %v3892
    %v4085 = vunpack.c.l.b16 %v3893
    %v4086 = vunpack.c.l.b16 %v3894
    %v4087 = vunpack.c.l.b16 %v3895
    %v4088 = vunpack.c.l.b16 %v3896
    %v4089 = vunpack.c.l.b16 %v3897
    %v4090 = vunpack.c.l.b16 %v3898
    %v4091 = vunpack.c.l.b16 %v3899
    %v4092 = vunpack.c.l.b16 %v3900
    %v4093 = vunpack.c.l.b16 %v3901
    %v4094 = vunpack.c.l.b16 %v3902
    %v4095 = vunpack.c.l.b16 %v3903
    %v4096 = vunpack.c.l.b16 %v3904
    %v4097 = vunpack.c.l.b16 %v3905
    %v4098 = vunpack.c.l.b16 %v3906
    %v4099 = vunpack.c.l.b16 %v3907
    %v4100 = vunpack.c.l.b16 %v3908
    %v4101 = vunpack.c.l.b16 %v3909
    %v4102 = vunpack.c.l.b16 %v3910
    %v4103 = vunpack.c.l.b16 %v3911
    %v4104 = vunpack.c.l.b16 %v3912
    %v4105 = vunpack.c.l.b16 %v3913
    %v4106 = vunpack.c.l.b16 %v3914
    %v4107 = vunpack.c.l.b16 %v3915
    %v4108 = vunpack.c.l.b16 %v3916
    %v4109 = vunpack.c.l.b16 %v3917
    %v4110 = vunpack.c.l.b16 %v3918
    %v4111 = vunpack.c.l.b16 %v3919
    %v4112 = vunpack.c.l.b16 %v3920
    %v4113 = vunpack.c.l.b16 %v3921
    %v4114 = vunpack.c.l.b16 %v3922
    %v4115 = vunpack.c.l.b16 %v3923
    %v4116 = vunpack.c.l.b16 %v3924
    %v4117 = vunpack.c.l.b16 %v3925
    %v4118 = vunpack.c.l.b16 %v3926
    %v4119 = vunpack.c.l.b16 %v3927
    %v4120 = vunpack.c.l.b16 %v3928
    %v4121 = vunpack.c.l.b16 %v3929
    %v4122 = vunpack.c.l.b16 %v3930
    %v4123 = vunpack.c.l.b16 %v3931
    %v4124 = vunpack.c.l.b16 %v3932
    %v4125 = vunpack.c.l.b16 %v3933
    %v4126 = vunpack.c.l.b16 %v3934
    %v4127 = vunpack.c.l.b16 %v3935
    %v4128 = vunpack.c.l.b16 %v3936
    %v4129 = vunpack.c.l.b16 %v3937
    %v4130 = vunpack.c.l.b16 %v3938
    %v4131 = vunpack.c.l.b16 %v3939
    %v4132 = vunpack.c.l.b16 %v3940
    %v4133 = vunpack.c.l.b16 %v3941
    %v4134 = vunpack.c.l.b16 %v3942
    %v4135 = vunpack.c.l.b16 %v3943
    %v4136 = vunpack.c.l.b16 %v3944
    %v4137 = vunpack.c.l.b16 %v3945
    %v4138 = vunpack.c.l.b16 %v3946
    %v4139 = vunpack.c.l.b16 %v3947
    %v4140 = vunpack.c.l.b16 %v3948
    %v4141 = vunpack.c.l.b16 %v3949
    %v4142 = vunpack.c.l.b16 %v3950
    %v4143 = vunpack.c.l.b16 %v3951
    %v4144 = vunpack.c.l.b16 %v3952
    %v4145 = vunpack.c.l.b16 %v3953
    %v4146 = vunpack.c.l.b16 %v3954
    %v4147 = vunpack.c.l.b16 %v3955
    %v4148 = vunpack.c.l.b16 %v3956
    %v4149 = vunpack.c.l.b16 %v3957
    %v4150 = vunpack.c.l.b16 %v3958
    %v4151 = vunpack.c.l.b16 %v3959
    %v4152 = vpack.c.b16 %v4057, %v4056
    %v4153 = vpack.c.b16 %v4059, %v4058
    %v4154 = vpack.c.b16 %v4061, %v4060
    %v4155 = vpack.c.b16 %v4063, %v4062
    %v4156 = vpack.c.b16 %v4065, %v4064
    %v4157 = vpack.c.b16 %v4067, %v4066
    %v4158 = vpack.c.b16 %v4069, %v4068
    %v4159 = vpack.c.b16 %v4071, %v4070
    %v4160 = vpack.c.b16 %v4073, %v4072
    %v4161 = vpack.c.b16 %v4075, %v4074
    %v4162 = vpack.c.b16 %v4077, %v4076
    %v4163 = vpack.c.b16 %v4079, %v4078
    %v4164 = vpack.c.b16 %v4081, %v4080
    %v4165 = vpack.c.b16 %v4083, %v4082
    %v4166 = vpack.c.b16 %v4085, %v4084
    %v4167 = vpack.c.b16 %v4087, %v4086
    %v4168 = vpack.c.b16 %v4089, %v4088
    %v4169 = vpack.c.b16 %v4091, %v4090
    %v4170 = vpack.c.b16 %v4093, %v4092
    %v4171 = vpack.c.b16 %v4095, %v4094
    %v4172 = vpack.c.b16 %v4097, %v4096
    %v4173 = vpack.c.b16 %v4099, %v4098
    %v4174 = vpack.c.b16 %v4101, %v4100
    %v4175 = vpack.c.b16 %v4103, %v4102
    %v4176 = vpack.c.b16 %v4105, %v4104
    %v4177 = vpack.c.b16 %v4107, %v4106
    %v4178 = vpack.c.b16 %v4109, %v4108
    %v4179 = vpack.c.b16 %v4111, %v4110
    %v4180 = vpack.c.b16 %v4113, %v4112
    %v4181 = vpack.c.b16 %v4115, %v4114
    %v4182 = vpack.c.b16 %v4117, %v4116
    %v4183 = vpack.c.b16 %v4119, %v4118
    %v4184 = vpack.c.b16 %v4121, %v4120
    %v4185 = vpack.c.b16 %v4123, %v4122
    %v4186 = vpack.c.b16 %v4125, %v4124
    %v4187 = vpack.c.b16 %v4127, %v4126
    %v4188 = vpack.c.b16 %v4129, %v4128
    %v4189 = vpack.c.b16 %v4131, %v4130
    %v4190 = vpack.c.b16 %v4133, %v4132
    %v4191 = vpack.c.b16 %v4135, %v4134
    %v4192 = vpack.c.b16 %v4137, %v4136
    %v4193 = vpack.c.b16 %v4139, %v4138
    %v4194 = vpack.c.b16 %v4141, %v4140
    %v4195 = vpack.c.b16 %v4143, %v4142
    %v4196 = vpack.c.b16 %v4145, %v4144
    %v4197 = vpack.c.b16 %v4147, %v4146
    %v4198 = vpack.c.b16 %v4149, %v4148
    %v4199 = vpack.c.b16 %v4151, %v4150
    %4248 = vmatpush.bf16.msra.mxu0 %v4159
    %4249 = vmatpush.bf16.msra.mxu0 %v4158
    %4250 = vmatpush.bf16.msra.mxu0 %v4157
    %4251 = vmatpush.bf16.msra.mxu0 %v4156
    %4252 = vmatpush.bf16.msra.mxu0 %v4155
    %4253 = vmatpush.bf16.msra.mxu0 %v4154
    %4254 = vmatpush.bf16.msra.mxu0 %v4153
    %4255 = vmatpush.bf16.msra.mxu0 %v4152
    %4256 = vmatmul.bf16.gmra.mxu0 %v637
    %v4257 = vpop.f32.mrf.mxu0
    %v4258 = vadd.f32 0.0, %v4257
    %v4259 = vpop.f32.mrf.mxu0
    %4260 = vdwg.mxu0
    %4261 = vmatpush.bf16.msra.mxu0 %v4167
    %4262 = vmatpush.bf16.msra.mxu0 %v4166
    %4263 = vmatpush.bf16.msra.mxu0 %v4165
    %4264 = vmatpush.bf16.msra.mxu0 %v4164
    %4265 = vmatpush.bf16.msra.mxu0 %v4163
    %4266 = vmatpush.bf16.msra.mxu0 %v4162
    %4267 = vmatpush.bf16.msra.mxu0 %v4161
    %4268 = vmatpush.bf16.msra.mxu0 %v4160
    %4269 = vmatmul.bf16.gmra.mxu0 %v638
    %v4270 = vpop.f32.mrf.mxu0
    %v4271 = vadd.f32 %v4258, %v4270
    %v4272 = vpop.f32.mrf.mxu0
    %4273 = vdwg.mxu0
    %4274 = vmatpush.bf16.msra.mxu0 %v4175
    %4275 = vmatpush.bf16.msra.mxu0 %v4174
    %4276 = vmatpush.bf16.msra.mxu0 %v4173
    %4277 = vmatpush.bf16.msra.mxu0 %v4172
    %4278 = vmatpush.bf16.msra.mxu0 %v4171
    %4279 = vmatpush.bf16.msra.mxu0 %v4170
    %4280 = vmatpush.bf16.msra.mxu0 %v4169
    %4281 = vmatpush.bf16.msra.mxu0 %v4168
    %4282 = vmatmul.bf16.gmra.mxu0 %v639
    %v4283 = vpop.f32.mrf.mxu0
    %v4284 = vadd.f32 %v4271, %v4283
    %v4285 = vpop.f32.mrf.mxu0
    %4286 = vdwg.mxu0
    %4287 = vmatpush.bf16.msra.mxu0 %v4183
    %4288 = vmatpush.bf16.msra.mxu0 %v4182
    %4289 = vmatpush.bf16.msra.mxu0 %v4181
    %4290 = vmatpush.bf16.msra.mxu0 %v4180
    %4291 = vmatpush.bf16.msra.mxu0 %v4179
    %4292 = vmatpush.bf16.msra.mxu0 %v4178
    %4293 = vmatpush.bf16.msra.mxu0 %v4177
    %4294 = vmatpush.bf16.msra.mxu0 %v4176
    %4295 = vmatmul.bf16.gmra.mxu0 %v640
    %v4296 = vpop.f32.mrf.mxu0
    %v4297 = vadd.f32 %v4284, %v4296
    %v4298 = vpop.f32.mrf.mxu0
    %4299 = vdwg.mxu0
    %4300 = vmatpush.bf16.msra.mxu0 %v4191
    %4301 = vmatpush.bf16.msra.mxu0 %v4190
    %4302 = vmatpush.bf16.msra.mxu0 %v4189
    %4303 = vmatpush.bf16.msra.mxu0 %v4188
    %4304 = vmatpush.bf16.msra.mxu0 %v4187
    %4305 = vmatpush.bf16.msra.mxu0 %v4186
    %4306 = vmatpush.bf16.msra.mxu0 %v4185
    %4307 = vmatpush.bf16.msra.mxu0 %v4184
    %4308 = vmatmul.bf16.gmra.mxu0 %v641
    %v4309 = vpop.f32.mrf.mxu0
    %v4310 = vadd.f32 %v4297, %v4309
    %v4311 = vpop.f32.mrf.mxu0
    %4312 = vdwg.mxu0
    %4313 = vmatpush.bf16.msra.mxu0 %v4199
    %4314 = vmatpush.bf16.msra.mxu0 %v4198
    %4315 = vmatpush.bf16.msra.mxu0 %v4197
    %4316 = vmatpush.bf16.msra.mxu0 %v4196
    %4317 = vmatpush.bf16.msra.mxu0 %v4195
    %4318 = vmatpush.bf16.msra.mxu0 %v4194
    %4319 = vmatpush.bf16.msra.mxu0 %v4193
    %4320 = vmatpush.bf16.msra.mxu0 %v4192
    %4321 = vmatmul.bf16.gmra.mxu0 %v642
    %v4322 = vpop.f32.mrf.mxu0
    %v4323 = vadd.f32 %v4310, %v4322
    %v4324 = vpop.f32.mrf.mxu0
    %4325 = vdwg.mxu0
    %v4326 = vadd.f32 %v3863, %v4323
    %v4327 = vld [vmem:[%s10 + $0x300] sm:$0xf]
    %v4328 = vld [vmem:[%s10 + $0x304] sm:$0xf]
    %v4329 = vld [vmem:[%s10 + $0x308] sm:$0xf]
    %v4330 = vld [vmem:[%s10 + $0x30c] sm:$0xf]
    %v4331 = vld [vmem:[%s10 + $0x310] sm:$0xf]
    %v4332 = vld [vmem:[%s10 + $0x314] sm:$0xf]
    %v4333 = vld [vmem:[%s10 + $0x318] sm:$0xf]
    %v4334 = vld [vmem:[%s10 + $0x31c] sm:$0xf]
    %v4335 = vld [vmem:[%s10 + $0x320] sm:$0xf]
    %v4336 = vld [vmem:[%s10 + $0x324] sm:$0xf]
    %v4337 = vld [vmem:[%s10 + $0x328] sm:$0xf]
    %v4338 = vld [vmem:[%s10 + $0x32c] sm:$0xf]
    %v4339 = vld [vmem:[%s10 + $0x330] sm:$0xf]
    %v4340 = vld [vmem:[%s10 + $0x334] sm:$0xf]
    %v4341 = vld [vmem:[%s10 + $0x338] sm:$0xf]
    %v4342 = vld [vmem:[%s10 + $0x33c] sm:$0xf]
    %v4343 = vld [vmem:[%s10 + $0x340] sm:$0xf]
    %v4344 = vld [vmem:[%s10 + $0x344] sm:$0xf]
    %v4345 = vld [vmem:[%s10 + $0x348] sm:$0xf]
    %v4346 = vld [vmem:[%s10 + $0x34c] sm:$0xf]
    %v4347 = vld [vmem:[%s10 + $0x350] sm:$0xf]
    %v4348 = vld [vmem:[%s10 + $0x354] sm:$0xf]
    %v4349 = vld [vmem:[%s10 + $0x358] sm:$0xf]
    %v4350 = vld [vmem:[%s10 + $0x35c] sm:$0xf]
    %v4351 = vld [vmem:[%s10 + $0x360] sm:$0xf]
    %v4352 = vld [vmem:[%s10 + $0x364] sm:$0xf]
    %v4353 = vld [vmem:[%s10 + $0x368] sm:$0xf]
    %v4354 = vld [vmem:[%s10 + $0x36c] sm:$0xf]
    %v4355 = vld [vmem:[%s10 + $0x370] sm:$0xf]
    %v4356 = vld [vmem:[%s10 + $0x374] sm:$0xf]
    %v4357 = vld [vmem:[%s10 + $0x378] sm:$0xf]
    %v4358 = vld [vmem:[%s10 + $0x37c] sm:$0xf]
    %v4359 = vld [vmem:[%s10 + $0x380] sm:$0xf]
    %v4360 = vld [vmem:[%s10 + $0x384] sm:$0xf]
    %v4361 = vld [vmem:[%s10 + $0x388] sm:$0xf]
    %v4362 = vld [vmem:[%s10 + $0x38c] sm:$0xf]
    %v4363 = vld [vmem:[%s10 + $0x390] sm:$0xf]
    %v4364 = vld [vmem:[%s10 + $0x394] sm:$0xf]
    %v4365 = vld [vmem:[%s10 + $0x398] sm:$0xf]
    %v4366 = vld [vmem:[%s10 + $0x39c] sm:$0xf]
    %v4367 = vld [vmem:[%s10 + $0x3a0] sm:$0xf]
    %v4368 = vld [vmem:[%s10 + $0x3a4] sm:$0xf]
    %v4369 = vld [vmem:[%s10 + $0x3a8] sm:$0xf]
    %v4370 = vld [vmem:[%s10 + $0x3ac] sm:$0xf]
    %v4371 = vld [vmem:[%s10 + $0x3b0] sm:$0xf]
    %v4372 = vld [vmem:[%s10 + $0x3b4] sm:$0xf]
    %v4373 = vld [vmem:[%s10 + $0x3b8] sm:$0xf]
    %v4374 = vld [vmem:[%s10 + $0x3bc] sm:$0xf]
    %v4375 = vld [vmem:[%s10 + $0x3c0] sm:$0xf]
    %v4376 = vld [vmem:[%s10 + $0x3c4] sm:$0xf]
    %v4377 = vld [vmem:[%s10 + $0x3c8] sm:$0xf]
    %v4378 = vld [vmem:[%s10 + $0x3cc] sm:$0xf]
    %v4379 = vld [vmem:[%s10 + $0x3d0] sm:$0xf]
    %v4380 = vld [vmem:[%s10 + $0x3d4] sm:$0xf]
    %v4381 = vld [vmem:[%s10 + $0x3d8] sm:$0xf]
    %v4382 = vld [vmem:[%s10 + $0x3dc] sm:$0xf]
    %v4383 = vld [vmem:[%s10 + $0x3e0] sm:$0xf]
    %v4384 = vld [vmem:[%s10 + $0x3e4] sm:$0xf]
    %v4385 = vld [vmem:[%s10 + $0x3e8] sm:$0xf]
    %v4386 = vld [vmem:[%s10 + $0x3ec] sm:$0xf]
    %v4387 = vld [vmem:[%s10 + $0x3f0] sm:$0xf]
    %v4388 = vld [vmem:[%s10 + $0x3f4] sm:$0xf]
    %v4389 = vld [vmem:[%s10 + $0x3f8] sm:$0xf]
    %v4390 = vld [vmem:[%s10 + $0x3fc] sm:$0xf]
    %v4391 = vld [vmem:[%s10 + $0x400] sm:$0xf]
    %v4392 = vld [vmem:[%s10 + $0x404] sm:$0xf]
    %v4393 = vld [vmem:[%s10 + $0x408] sm:$0xf]
    %v4394 = vld [vmem:[%s10 + $0x40c] sm:$0xf]
    %v4395 = vld [vmem:[%s10 + $0x410] sm:$0xf]
    %v4396 = vld [vmem:[%s10 + $0x414] sm:$0xf]
    %v4397 = vld [vmem:[%s10 + $0x418] sm:$0xf]
    %v4398 = vld [vmem:[%s10 + $0x41c] sm:$0xf]
    %v4399 = vld [vmem:[%s10 + $0x420] sm:$0xf]
    %v4400 = vld [vmem:[%s10 + $0x424] sm:$0xf]
    %v4401 = vld [vmem:[%s10 + $0x428] sm:$0xf]
    %v4402 = vld [vmem:[%s10 + $0x42c] sm:$0xf]
    %v4403 = vld [vmem:[%s10 + $0x430] sm:$0xf]
    %v4404 = vld [vmem:[%s10 + $0x434] sm:$0xf]
    %v4405 = vld [vmem:[%s10 + $0x438] sm:$0xf]
    %v4406 = vld [vmem:[%s10 + $0x43c] sm:$0xf]
    %v4407 = vld [vmem:[%s10 + $0x440] sm:$0xf]
    %v4408 = vld [vmem:[%s10 + $0x444] sm:$0xf]
    %v4409 = vld [vmem:[%s10 + $0x448] sm:$0xf]
    %v4410 = vld [vmem:[%s10 + $0x44c] sm:$0xf]
    %v4411 = vld [vmem:[%s10 + $0x450] sm:$0xf]
    %v4412 = vld [vmem:[%s10 + $0x454] sm:$0xf]
    %v4413 = vld [vmem:[%s10 + $0x458] sm:$0xf]
    %v4414 = vld [vmem:[%s10 + $0x45c] sm:$0xf]
    %v4415 = vld [vmem:[%s10 + $0x460] sm:$0xf]
    %v4416 = vld [vmem:[%s10 + $0x464] sm:$0xf]
    %v4417 = vld [vmem:[%s10 + $0x468] sm:$0xf]
    %v4418 = vld [vmem:[%s10 + $0x46c] sm:$0xf]
    %v4419 = vld [vmem:[%s10 + $0x470] sm:$0xf]
    %v4420 = vld [vmem:[%s10 + $0x474] sm:$0xf]
    %v4421 = vld [vmem:[%s10 + $0x478] sm:$0xf]
    %v4422 = vld [vmem:[%s10 + $0x47c] sm:$0xf]
    %v4519 = vunpack.c.l.b16 %v4327
    %v4520 = vunpack.c.l.b16 %v4328
    %v4521 = vunpack.c.l.b16 %v4329
    %v4522 = vunpack.c.l.b16 %v4330
    %v4523 = vunpack.c.l.b16 %v4331
    %v4524 = vunpack.c.l.b16 %v4332
    %v4525 = vunpack.c.l.b16 %v4333
    %v4526 = vunpack.c.l.b16 %v4334
    %v4527 = vunpack.c.l.b16 %v4335
    %v4528 = vunpack.c.l.b16 %v4336
    %v4529 = vunpack.c.l.b16 %v4337
    %v4530 = vunpack.c.l.b16 %v4338
    %v4531 = vunpack.c.l.b16 %v4339
    %v4532 = vunpack.c.l.b16 %v4340
    %v4533 = vunpack.c.l.b16 %v4341
    %v4534 = vunpack.c.l.b16 %v4342
    %v4535 = vunpack.c.l.b16 %v4343
    %v4536 = vunpack.c.l.b16 %v4344
    %v4537 = vunpack.c.l.b16 %v4345
    %v4538 = vunpack.c.l.b16 %v4346
    %v4539 = vunpack.c.l.b16 %v4347
    %v4540 = vunpack.c.l.b16 %v4348
    %v4541 = vunpack.c.l.b16 %v4349
    %v4542 = vunpack.c.l.b16 %v4350
    %v4543 = vunpack.c.l.b16 %v4351
    %v4544 = vunpack.c.l.b16 %v4352
    %v4545 = vunpack.c.l.b16 %v4353
    %v4546 = vunpack.c.l.b16 %v4354
    %v4547 = vunpack.c.l.b16 %v4355
    %v4548 = vunpack.c.l.b16 %v4356
    %v4549 = vunpack.c.l.b16 %v4357
    %v4550 = vunpack.c.l.b16 %v4358
    %v4551 = vunpack.c.l.b16 %v4359
    %v4552 = vunpack.c.l.b16 %v4360
    %v4553 = vunpack.c.l.b16 %v4361
    %v4554 = vunpack.c.l.b16 %v4362
    %v4555 = vunpack.c.l.b16 %v4363
    %v4556 = vunpack.c.l.b16 %v4364
    %v4557 = vunpack.c.l.b16 %v4365
    %v4558 = vunpack.c.l.b16 %v4366
    %v4559 = vunpack.c.l.b16 %v4367
    %v4560 = vunpack.c.l.b16 %v4368
    %v4561 = vunpack.c.l.b16 %v4369
    %v4562 = vunpack.c.l.b16 %v4370
    %v4563 = vunpack.c.l.b16 %v4371
    %v4564 = vunpack.c.l.b16 %v4372
    %v4565 = vunpack.c.l.b16 %v4373
    %v4566 = vunpack.c.l.b16 %v4374
    %v4567 = vunpack.c.l.b16 %v4375
    %v4568 = vunpack.c.l.b16 %v4376
    %v4569 = vunpack.c.l.b16 %v4377
    %v4570 = vunpack.c.l.b16 %v4378
    %v4571 = vunpack.c.l.b16 %v4379
    %v4572 = vunpack.c.l.b16 %v4380
    %v4573 = vunpack.c.l.b16 %v4381
    %v4574 = vunpack.c.l.b16 %v4382
    %v4575 = vunpack.c.l.b16 %v4383
    %v4576 = vunpack.c.l.b16 %v4384
    %v4577 = vunpack.c.l.b16 %v4385
    %v4578 = vunpack.c.l.b16 %v4386
    %v4579 = vunpack.c.l.b16 %v4387
    %v4580 = vunpack.c.l.b16 %v4388
    %v4581 = vunpack.c.l.b16 %v4389
    %v4582 = vunpack.c.l.b16 %v4390
    %v4583 = vunpack.c.l.b16 %v4391
    %v4584 = vunpack.c.l.b16 %v4392
    %v4585 = vunpack.c.l.b16 %v4393
    %v4586 = vunpack.c.l.b16 %v4394
    %v4587 = vunpack.c.l.b16 %v4395
    %v4588 = vunpack.c.l.b16 %v4396
    %v4589 = vunpack.c.l.b16 %v4397
    %v4590 = vunpack.c.l.b16 %v4398
    %v4591 = vunpack.c.l.b16 %v4399
    %v4592 = vunpack.c.l.b16 %v4400
    %v4593 = vunpack.c.l.b16 %v4401
    %v4594 = vunpack.c.l.b16 %v4402
    %v4595 = vunpack.c.l.b16 %v4403
    %v4596 = vunpack.c.l.b16 %v4404
    %v4597 = vunpack.c.l.b16 %v4405
    %v4598 = vunpack.c.l.b16 %v4406
    %v4599 = vunpack.c.l.b16 %v4407
    %v4600 = vunpack.c.l.b16 %v4408
    %v4601 = vunpack.c.l.b16 %v4409
    %v4602 = vunpack.c.l.b16 %v4410
    %v4603 = vunpack.c.l.b16 %v4411
    %v4604 = vunpack.c.l.b16 %v4412
    %v4605 = vunpack.c.l.b16 %v4413
    %v4606 = vunpack.c.l.b16 %v4414
    %v4607 = vunpack.c.l.b16 %v4415
    %v4608 = vunpack.c.l.b16 %v4416
    %v4609 = vunpack.c.l.b16 %v4417
    %v4610 = vunpack.c.l.b16 %v4418
    %v4611 = vunpack.c.l.b16 %v4419
    %v4612 = vunpack.c.l.b16 %v4420
    %v4613 = vunpack.c.l.b16 %v4421
    %v4614 = vunpack.c.l.b16 %v4422
    %v4615 = vpack.c.b16 %v4520, %v4519
    %v4616 = vpack.c.b16 %v4522, %v4521
    %v4617 = vpack.c.b16 %v4524, %v4523
    %v4618 = vpack.c.b16 %v4526, %v4525
    %v4619 = vpack.c.b16 %v4528, %v4527
    %v4620 = vpack.c.b16 %v4530, %v4529
    %v4621 = vpack.c.b16 %v4532, %v4531
    %v4622 = vpack.c.b16 %v4534, %v4533
    %v4623 = vpack.c.b16 %v4536, %v4535
    %v4624 = vpack.c.b16 %v4538, %v4537
    %v4625 = vpack.c.b16 %v4540, %v4539
    %v4626 = vpack.c.b16 %v4542, %v4541
    %v4627 = vpack.c.b16 %v4544, %v4543
    %v4628 = vpack.c.b16 %v4546, %v4545
    %v4629 = vpack.c.b16 %v4548, %v4547
    %v4630 = vpack.c.b16 %v4550, %v4549
    %v4631 = vpack.c.b16 %v4552, %v4551
    %v4632 = vpack.c.b16 %v4554, %v4553
    %v4633 = vpack.c.b16 %v4556, %v4555
    %v4634 = vpack.c.b16 %v4558, %v4557
    %v4635 = vpack.c.b16 %v4560, %v4559
    %v4636 = vpack.c.b16 %v4562, %v4561
    %v4637 = vpack.c.b16 %v4564, %v4563
    %v4638 = vpack.c.b16 %v4566, %v4565
    %v4639 = vpack.c.b16 %v4568, %v4567
    %v4640 = vpack.c.b16 %v4570, %v4569
    %v4641 = vpack.c.b16 %v4572, %v4571
    %v4642 = vpack.c.b16 %v4574, %v4573
    %v4643 = vpack.c.b16 %v4576, %v4575
    %v4644 = vpack.c.b16 %v4578, %v4577
    %v4645 = vpack.c.b16 %v4580, %v4579
    %v4646 = vpack.c.b16 %v4582, %v4581
    %v4647 = vpack.c.b16 %v4584, %v4583
    %v4648 = vpack.c.b16 %v4586, %v4585
    %v4649 = vpack.c.b16 %v4588, %v4587
    %v4650 = vpack.c.b16 %v4590, %v4589
    %v4651 = vpack.c.b16 %v4592, %v4591
    %v4652 = vpack.c.b16 %v4594, %v4593
    %v4653 = vpack.c.b16 %v4596, %v4595
    %v4654 = vpack.c.b16 %v4598, %v4597
    %v4655 = vpack.c.b16 %v4600, %v4599
    %v4656 = vpack.c.b16 %v4602, %v4601
    %v4657 = vpack.c.b16 %v4604, %v4603
    %v4658 = vpack.c.b16 %v4606, %v4605
    %v4659 = vpack.c.b16 %v4608, %v4607
    %v4660 = vpack.c.b16 %v4610, %v4609
    %v4661 = vpack.c.b16 %v4612, %v4611
    %v4662 = vpack.c.b16 %v4614, %v4613
    %4711 = vmatpush.bf16.msra.mxu0 %v4622
    %4712 = vmatpush.bf16.msra.mxu0 %v4621
    %4713 = vmatpush.bf16.msra.mxu0 %v4620
    %4714 = vmatpush.bf16.msra.mxu0 %v4619
    %4715 = vmatpush.bf16.msra.mxu0 %v4618
    %4716 = vmatpush.bf16.msra.mxu0 %v4617
    %4717 = vmatpush.bf16.msra.mxu0 %v4616
    %4718 = vmatpush.bf16.msra.mxu0 %v4615
    %4719 = vmatmul.bf16.gmra.mxu0 %v739
    %v4720 = vpop.f32.mrf.mxu0
    %v4721 = vadd.f32 0.0, %v4720
    %v4722 = vpop.f32.mrf.mxu0
    %4723 = vdwg.mxu0
    %4724 = vmatpush.bf16.msra.mxu0 %v4630
    %4725 = vmatpush.bf16.msra.mxu0 %v4629
    %4726 = vmatpush.bf16.msra.mxu0 %v4628
    %4727 = vmatpush.bf16.msra.mxu0 %v4627
    %4728 = vmatpush.bf16.msra.mxu0 %v4626
    %4729 = vmatpush.bf16.msra.mxu0 %v4625
    %4730 = vmatpush.bf16.msra.mxu0 %v4624
    %4731 = vmatpush.bf16.msra.mxu0 %v4623
    %4732 = vmatmul.bf16.gmra.mxu0 %v740
    %v4733 = vpop.f32.mrf.mxu0
    %v4734 = vadd.f32 %v4721, %v4733
    %v4735 = vpop.f32.mrf.mxu0
    %4736 = vdwg.mxu0
    %4737 = vmatpush.bf16.msra.mxu0 %v4638
    %4738 = vmatpush.bf16.msra.mxu0 %v4637
    %4739 = vmatpush.bf16.msra.mxu0 %v4636
    %4740 = vmatpush.bf16.msra.mxu0 %v4635
    %4741 = vmatpush.bf16.msra.mxu0 %v4634
    %4742 = vmatpush.bf16.msra.mxu0 %v4633
    %4743 = vmatpush.bf16.msra.mxu0 %v4632
    %4744 = vmatpush.bf16.msra.mxu0 %v4631
    %4745 = vmatmul.bf16.gmra.mxu0 %v741
    %v4746 = vpop.f32.mrf.mxu0
    %v4747 = vadd.f32 %v4734, %v4746
    %v4748 = vpop.f32.mrf.mxu0
    %4749 = vdwg.mxu0
    %4750 = vmatpush.bf16.msra.mxu0 %v4646
    %4751 = vmatpush.bf16.msra.mxu0 %v4645
    %4752 = vmatpush.bf16.msra.mxu0 %v4644
    %4753 = vmatpush.bf16.msra.mxu0 %v4643
    %4754 = vmatpush.bf16.msra.mxu0 %v4642
    %4755 = vmatpush.bf16.msra.mxu0 %v4641
    %4756 = vmatpush.bf16.msra.mxu0 %v4640
    %4757 = vmatpush.bf16.msra.mxu0 %v4639
    %4758 = vmatmul.bf16.gmra.mxu0 %v742
    %v4759 = vpop.f32.mrf.mxu0
    %v4760 = vadd.f32 %v4747, %v4759
    %v4761 = vpop.f32.mrf.mxu0
    %4762 = vdwg.mxu0
    %4763 = vmatpush.bf16.msra.mxu0 %v4654
    %4764 = vmatpush.bf16.msra.mxu0 %v4653
    %4765 = vmatpush.bf16.msra.mxu0 %v4652
    %4766 = vmatpush.bf16.msra.mxu0 %v4651
    %4767 = vmatpush.bf16.msra.mxu0 %v4650
    %4768 = vmatpush.bf16.msra.mxu0 %v4649
    %4769 = vmatpush.bf16.msra.mxu0 %v4648
    %4770 = vmatpush.bf16.msra.mxu0 %v4647
    %4771 = vmatmul.bf16.gmra.mxu0 %v743
    %v4772 = vpop.f32.mrf.mxu0
    %v4773 = vadd.f32 %v4760, %v4772
    %v4774 = vpop.f32.mrf.mxu0
    %4775 = vdwg.mxu0
    %4776 = vmatpush.bf16.msra.mxu0 %v4662
    %4777 = vmatpush.bf16.msra.mxu0 %v4661
    %4778 = vmatpush.bf16.msra.mxu0 %v4660
    %4779 = vmatpush.bf16.msra.mxu0 %v4659
    %4780 = vmatpush.bf16.msra.mxu0 %v4658
    %4781 = vmatpush.bf16.msra.mxu0 %v4657
    %4782 = vmatpush.bf16.msra.mxu0 %v4656
    %4783 = vmatpush.bf16.msra.mxu0 %v4655
    %4784 = vmatmul.bf16.gmra.mxu0 %v744
    %v4785 = vpop.f32.mrf.mxu0
    %v4786 = vadd.f32 %v4773, %v4785
    %v4787 = vpop.f32.mrf.mxu0
    %4788 = vdwg.mxu0
    %v4789 = vadd.f32 %v4326, %v4786
    %v4790 = vld [vmem:[%s13] sm:$0x3f]
    %v4791 = vpack.c.bf16 %v3396, %v3396
    %v4792 = vld [vmem:[%s12] sm:$0xff]
    %v4793 = vld [vmem:[%s12 + $0x8] sm:$0xff]
    %v4794 = vld [vmem:[%s12 + $0x10] sm:$0xff]
    %v4795 = vld [vmem:[%s12 + $0x18] sm:$0xff]
    %v4796 = vld [vmem:[%s12 + $0x20] sm:$0xff]
    %v4797 = vld [vmem:[%s12 + $0x28] sm:$0xff]
    %v4804 = vunpack.c.l.b16 %v4792
    %v4805 = vunpack.c.h.b16 %v4792
    %v4806 = vunpack.c.l.b16 %v4793
    %v4807 = vunpack.c.h.b16 %v4793
    %v4808 = vunpack.c.l.b16 %v4794
    %v4809 = vunpack.c.h.b16 %v4794
    %v4810 = vunpack.c.l.b16 %v4795
    %v4811 = vunpack.c.h.b16 %v4795
    %v4812 = vunpack.c.l.b16 %v4796
    %v4813 = vunpack.c.h.b16 %v4796
    %v4814 = vunpack.c.l.b16 %v4797
    %v4815 = vunpack.c.h.b16 %v4797
    %v4816 = vpack.c.b16 %v4810, %v4804
    %v4817 = vpack.c.b16 %v4811, %v4805
    %v4818 = vpack.c.b16 %v4812, %v4806
    %v4819 = vpack.c.b16 %v4813, %v4807
    %v4820 = vpack.c.b16 %v4814, %v4808
    %v4821 = vpack.c.b16 %v4815, %v4809
    %vm4828 = vcmask 130048
    %v4830 = vsel %vm4828, %v4791, 0
    %4832 = vmatpush.bf16.msra.mxu0 0
    %4833 = vmatpush.bf16.msra.mxu0 0
    %4834 = vmatpush.bf16.msra.mxu0 0
    %4835 = vmatpush.bf16.msra.mxu0 0
    %4836 = vmatpush.bf16.msra.mxu0 0
    %4837 = vmatpush.bf16.msra.mxu0 0
    %4838 = vmatpush.bf16.msra.mxu0 0
    %4839 = vmatpush.bf16.msra.mxu0 %v4816
    %4840 = vmatmul.bf16.gmra.mxu0 %v4830
    %v4841 = vpop.f32.mrf.mxu0
    %v4842 = vadd.f32 0.0, %v4841
    %v4843 = vpop.f32.mrf.mxu0
    %4844 = vdwg.mxu0
    %4845 = vmatpush.bf16.msra.mxu0 0
    %4846 = vmatpush.bf16.msra.mxu0 0
    %4847 = vmatpush.bf16.msra.mxu0 0
    %4848 = vmatpush.bf16.msra.mxu0 0
    %4849 = vmatpush.bf16.msra.mxu0 0
    %4850 = vmatpush.bf16.msra.mxu0 0
    %4851 = vmatpush.bf16.msra.mxu0 0
    %4852 = vmatpush.bf16.msra.mxu0 %v4817
    %4853 = vmatmul.bf16.gmra.mxu0 %v4830
    %v4854 = vpop.f32.mrf.mxu0
    %v4855 = vadd.f32 0.0, %v4854
    %v4856 = vpop.f32.mrf.mxu0
    %4857 = vdwg.mxu0
    %4858 = vmatpush.bf16.msra.mxu0 0
    %4859 = vmatpush.bf16.msra.mxu0 0
    %4860 = vmatpush.bf16.msra.mxu0 0
    %4861 = vmatpush.bf16.msra.mxu0 0
    %4862 = vmatpush.bf16.msra.mxu0 0
    %4863 = vmatpush.bf16.msra.mxu0 0
    %4864 = vmatpush.bf16.msra.mxu0 0
    %4865 = vmatpush.bf16.msra.mxu0 %v4818
    %4866 = vmatmul.bf16.gmra.mxu0 %v4830
    %v4867 = vpop.f32.mrf.mxu0
    %v4868 = vadd.f32 0.0, %v4867
    %v4869 = vpop.f32.mrf.mxu0
    %4870 = vdwg.mxu0
    %4871 = vmatpush.bf16.msra.mxu0 0
    %4872 = vmatpush.bf16.msra.mxu0 0
    %4873 = vmatpush.bf16.msra.mxu0 0
    %4874 = vmatpush.bf16.msra.mxu0 0
    %4875 = vmatpush.bf16.msra.mxu0 0
    %4876 = vmatpush.bf16.msra.mxu0 0
    %4877 = vmatpush.bf16.msra.mxu0 0
    %4878 = vmatpush.bf16.msra.mxu0 %v4819
    %4879 = vmatmul.bf16.gmra.mxu0 %v4830
    %v4880 = vpop.f32.mrf.mxu0
    %v4881 = vadd.f32 0.0, %v4880
    %v4882 = vpop.f32.mrf.mxu0
    %4883 = vdwg.mxu0
    %4884 = vmatpush.bf16.msra.mxu0 0
    %4885 = vmatpush.bf16.msra.mxu0 0
    %4886 = vmatpush.bf16.msra.mxu0 0
    %4887 = vmatpush.bf16.msra.mxu0 0
    %4888 = vmatpush.bf16.msra.mxu0 0
    %4889 = vmatpush.bf16.msra.mxu0 0
    %4890 = vmatpush.bf16.msra.mxu0 0
    %4891 = vmatpush.bf16.msra.mxu0 %v4820
    %4892 = vmatmul.bf16.gmra.mxu0 %v4830
    %v4893 = vpop.f32.mrf.mxu0
    %v4894 = vadd.f32 0.0, %v4893
    %v4895 = vpop.f32.mrf.mxu0
    %4896 = vdwg.mxu0
    %4897 = vmatpush.bf16.msra.mxu0 0
    %4898 = vmatpush.bf16.msra.mxu0 0
    %4899 = vmatpush.bf16.msra.mxu0 0
    %4900 = vmatpush.bf16.msra.mxu0 0
    %4901 = vmatpush.bf16.msra.mxu0 0
    %4902 = vmatpush.bf16.msra.mxu0 0
    %4903 = vmatpush.bf16.msra.mxu0 0
    %4904 = vmatpush.bf16.msra.mxu0 %v4821
    %4905 = vmatmul.bf16.gmra.mxu0 %v4830
    %v4906 = vpop.f32.mrf.mxu0
    %v4907 = vadd.f32 0.0, %v4906
    %v4908 = vpop.f32.mrf.mxu0
    %4909 = vdwg.mxu0
    %v4911 = vperm.slane %v4790, 0
    %v4912 = vperm.slane %v4790, 1
    %v4913 = vperm.slane %v4790, 2
    %v4914 = vperm.slane %v4790, 3
    %v4915 = vperm.slane %v4790, 4
    %v4916 = vperm.slane %v4790, 5
    %v4923 = vadd.f32 %v4911, %v4842
    %v4924 = vadd.f32 %v4912, %v4855
    %v4925 = vadd.f32 %v4913, %v4868
    %v4926 = vadd.f32 %v4914, %v4881
    %v4927 = vadd.f32 %v4915, %v4894
    %v4928 = vadd.f32 %v4916, %v4907
    %v4929 = vpack.c.bf16 %v4789, %v4789
    %v4930 = vld [vmem:[%s12 + $0x30] sm:$0xff]
    %v4931 = vld [vmem:[%s12 + $0x38] sm:$0xff]
    %v4932 = vld [vmem:[%s12 + $0x40] sm:$0xff]
    %v4933 = vld [vmem:[%s12 + $0x48] sm:$0xff]
    %v4934 = vld [vmem:[%s12 + $0x50] sm:$0xff]
    %v4935 = vld [vmem:[%s12 + $0x58] sm:$0xff]
    %v4942 = vunpack.c.l.b16 %v4930
    %v4943 = vunpack.c.h.b16 %v4930
    %v4944 = vunpack.c.l.b16 %v4931
    %v4945 = vunpack.c.h.b16 %v4931
    %v4946 = vunpack.c.l.b16 %v4932
    %v4947 = vunpack.c.h.b16 %v4932
    %v4948 = vunpack.c.l.b16 %v4933
    %v4949 = vunpack.c.h.b16 %v4933
    %v4950 = vunpack.c.l.b16 %v4934
    %v4951 = vunpack.c.h.b16 %v4934
    %v4952 = vunpack.c.l.b16 %v4935
    %v4953 = vunpack.c.h.b16 %v4935
    %v4954 = vpack.c.b16 %v4948, %v4942
    %v4955 = vpack.c.b16 %v4949, %v4943
    %v4956 = vpack.c.b16 %v4950, %v4944
    %v4957 = vpack.c.b16 %v4951, %v4945
    %v4958 = vpack.c.b16 %v4952, %v4946
    %v4959 = vpack.c.b16 %v4953, %v4947
    %v4967 = vsel %vm4828, %v4929, 0
    %4969 = vmatpush.bf16.msra.mxu0 0
    %4970 = vmatpush.bf16.msra.mxu0 0
    %4971 = vmatpush.bf16.msra.mxu0 0
    %4972 = vmatpush.bf16.msra.mxu0 0
    %4973 = vmatpush.bf16.msra.mxu0 0
    %4974 = vmatpush.bf16.msra.mxu0 0
    %4975 = vmatpush.bf16.msra.mxu0 0
    %4976 = vmatpush.bf16.msra.mxu0 %v4954
    %4977 = vmatmul.bf16.gmra.mxu0 %v4967
    %v4978 = vpop.f32.mrf.mxu0
    %v4979 = vadd.f32 0.0, %v4978
    %v4980 = vpop.f32.mrf.mxu0
    %4981 = vdwg.mxu0
    %4982 = vmatpush.bf16.msra.mxu0 0
    %4983 = vmatpush.bf16.msra.mxu0 0
    %4984 = vmatpush.bf16.msra.mxu0 0
    %4985 = vmatpush.bf16.msra.mxu0 0
    %4986 = vmatpush.bf16.msra.mxu0 0
    %4987 = vmatpush.bf16.msra.mxu0 0
    %4988 = vmatpush.bf16.msra.mxu0 0
    %4989 = vmatpush.bf16.msra.mxu0 %v4955
    %4990 = vmatmul.bf16.gmra.mxu0 %v4967
    %v4991 = vpop.f32.mrf.mxu0
    %v4992 = vadd.f32 0.0, %v4991
    %v4993 = vpop.f32.mrf.mxu0
    %4994 = vdwg.mxu0
    %4995 = vmatpush.bf16.msra.mxu0 0
    %4996 = vmatpush.bf16.msra.mxu0 0
    %4997 = vmatpush.bf16.msra.mxu0 0
    %4998 = vmatpush.bf16.msra.mxu0 0
    %4999 = vmatpush.bf16.msra.mxu0 0
    %5000 = vmatpush.bf16.msra.mxu0 0
    %5001 = vmatpush.bf16.msra.mxu0 0
    %5002 = vmatpush.bf16.msra.mxu0 %v4956
    %5003 = vmatmul.bf16.gmra.mxu0 %v4967
    %v5004 = vpop.f32.mrf.mxu0
    %v5005 = vadd.f32 0.0, %v5004
    %v5006 = vpop.f32.mrf.mxu0
    %5007 = vdwg.mxu0
    %5008 = vmatpush.bf16.msra.mxu0 0
    %5009 = vmatpush.bf16.msra.mxu0 0
    %5010 = vmatpush.bf16.msra.mxu0 0
    %5011 = vmatpush.bf16.msra.mxu0 0
    %5012 = vmatpush.bf16.msra.mxu0 0
    %5013 = vmatpush.bf16.msra.mxu0 0
    %5014 = vmatpush.bf16.msra.mxu0 0
    %5015 = vmatpush.bf16.msra.mxu0 %v4957
    %5016 = vmatmul.bf16.gmra.mxu0 %v4967
    %v5017 = vpop.f32.mrf.mxu0
    %v5018 = vadd.f32 0.0, %v5017
    %v5019 = vpop.f32.mrf.mxu0
    %5020 = vdwg.mxu0
    %5021 = vmatpush.bf16.msra.mxu0 0
    %5022 = vmatpush.bf16.msra.mxu0 0
    %5023 = vmatpush.bf16.msra.mxu0 0
    %5024 = vmatpush.bf16.msra.mxu0 0
    %5025 = vmatpush.bf16.msra.mxu0 0
    %5026 = vmatpush.bf16.msra.mxu0 0
    %5027 = vmatpush.bf16.msra.mxu0 0
    %5028 = vmatpush.bf16.msra.mxu0 %v4958
    %5029 = vmatmul.bf16.gmra.mxu0 %v4967
    %v5030 = vpop.f32.mrf.mxu0
    %v5031 = vadd.f32 0.0, %v5030
    %v5032 = vpop.f32.mrf.mxu0
    %5033 = vdwg.mxu0
    %5034 = vmatpush.bf16.msra.mxu0 0
    %5035 = vmatpush.bf16.msra.mxu0 0
    %5036 = vmatpush.bf16.msra.mxu0 0
    %5037 = vmatpush.bf16.msra.mxu0 0
    %5038 = vmatpush.bf16.msra.mxu0 0
    %5039 = vmatpush.bf16.msra.mxu0 0
    %5040 = vmatpush.bf16.msra.mxu0 0
    %5041 = vmatpush.bf16.msra.mxu0 %v4959
    %5042 = vmatmul.bf16.gmra.mxu0 %v4967
    %v5043 = vpop.f32.mrf.mxu0
    %v5044 = vadd.f32 0.0, %v5043
    %v5045 = vpop.f32.mrf.mxu0
    %5046 = vdwg.mxu0
    %v5047 = vadd.f32 %v4923, %v4979
    %v5048 = vadd.f32 %v4924, %v4992
    %v5049 = vadd.f32 %v4925, %v5005
    %v5050 = vadd.f32 %v4926, %v5018
    %v5051 = vadd.f32 %v4927, %v5031
    %v5052 = vadd.f32 %v4928, %v5044
    %v5053 = vld [vmem:[%s15] sm:$0x3f]
    %v5054 = vpack.c.bf16 %v5047, %v5047
    %v5055 = vpack.c.bf16 %v5048, %v5048
    %v5056 = vpack.c.bf16 %v5049, %v5049
    %v5057 = vpack.c.bf16 %v5050, %v5050
    %v5058 = vpack.c.bf16 %v5051, %v5051
    %v5059 = vpack.c.bf16 %v5052, %v5052
    %v5060 = vld [vmem:[%s14] sm:$0xff]
    %v5061 = vld [vmem:[%s14 + $0x8] sm:$0xff]
    %v5062 = vld [vmem:[%s14 + $0x10] sm:$0xff]
    %v5063 = vld [vmem:[%s14 + $0x18] sm:$0xff]
    %v5064 = vld [vmem:[%s14 + $0x20] sm:$0xff]
    %v5065 = vld [vmem:[%s14 + $0x28] sm:$0xff]
    %v5066 = vld [vmem:[%s14 + $0x30] sm:$0xff]
    %v5067 = vld [vmem:[%s14 + $0x38] sm:$0xff]
    %v5068 = vld [vmem:[%s14 + $0x40] sm:$0xff]
    %v5069 = vld [vmem:[%s14 + $0x48] sm:$0xff]
    %v5070 = vld [vmem:[%s14 + $0x50] sm:$0xff]
    %v5071 = vld [vmem:[%s14 + $0x58] sm:$0xff]
    %v5072 = vld [vmem:[%s14 + $0x60] sm:$0xff]
    %v5073 = vld [vmem:[%s14 + $0x68] sm:$0xff]
    %v5074 = vld [vmem:[%s14 + $0x70] sm:$0xff]
    %v5075 = vld [vmem:[%s14 + $0x78] sm:$0xff]
    %v5076 = vld [vmem:[%s14 + $0x80] sm:$0xff]
    %v5077 = vld [vmem:[%s14 + $0x88] sm:$0xff]
    %v5078 = vld [vmem:[%s14 + $0x90] sm:$0xff]
    %v5079 = vld [vmem:[%s14 + $0x98] sm:$0xff]
    %v5080 = vld [vmem:[%s14 + $0xa0] sm:$0xff]
    %v5081 = vld [vmem:[%s14 + $0xa8] sm:$0xff]
    %v5082 = vld [vmem:[%s14 + $0xb0] sm:$0xff]
    %v5083 = vld [vmem:[%s14 + $0xb8] sm:$0xff]
    %v5084 = vld [vmem:[%s14 + $0xc0] sm:$0xff]
    %v5085 = vld [vmem:[%s14 + $0xc8] sm:$0xff]
    %v5086 = vld [vmem:[%s14 + $0xd0] sm:$0xff]
    %v5087 = vld [vmem:[%s14 + $0xd8] sm:$0xff]
    %v5088 = vld [vmem:[%s14 + $0xe0] sm:$0xff]
    %v5089 = vld [vmem:[%s14 + $0xe8] sm:$0xff]
    %v5090 = vld [vmem:[%s14 + $0xf0] sm:$0xff]
    %v5091 = vld [vmem:[%s14 + $0xf8] sm:$0xff]
    %v5092 = vld [vmem:[%s14 + $0x100] sm:$0xff]
    %v5093 = vld [vmem:[%s14 + $0x108] sm:$0xff]
    %v5094 = vld [vmem:[%s14 + $0x110] sm:$0xff]
    %v5095 = vld [vmem:[%s14 + $0x118] sm:$0xff]
    %v5096 = vld [vmem:[%s14 + $0x120] sm:$0xff]
    %v5097 = vld [vmem:[%s14 + $0x128] sm:$0xff]
    %v5098 = vld [vmem:[%s14 + $0x130] sm:$0xff]
    %v5099 = vld [vmem:[%s14 + $0x138] sm:$0xff]
    %v5100 = vld [vmem:[%s14 + $0x140] sm:$0xff]
    %v5101 = vld [vmem:[%s14 + $0x148] sm:$0xff]
    %v5102 = vld [vmem:[%s14 + $0x150] sm:$0xff]
    %v5103 = vld [vmem:[%s14 + $0x158] sm:$0xff]
    %v5104 = vld [vmem:[%s14 + $0x160] sm:$0xff]
    %v5105 = vld [vmem:[%s14 + $0x168] sm:$0xff]
    %v5106 = vld [vmem:[%s14 + $0x170] sm:$0xff]
    %v5107 = vld [vmem:[%s14 + $0x178] sm:$0xff]
    %v5108 = vld [vmem:[%s14 + $0x180] sm:$0xff]
    %v5109 = vld [vmem:[%s14 + $0x188] sm:$0xff]
    %v5110 = vld [vmem:[%s14 + $0x190] sm:$0xff]
    %v5111 = vld [vmem:[%s14 + $0x198] sm:$0xff]
    %v5112 = vld [vmem:[%s14 + $0x1a0] sm:$0xff]
    %v5113 = vld [vmem:[%s14 + $0x1a8] sm:$0xff]
    %v5114 = vld [vmem:[%s14 + $0x1b0] sm:$0xff]
    %v5115 = vld [vmem:[%s14 + $0x1b8] sm:$0xff]
    %v5116 = vld [vmem:[%s14 + $0x1c0] sm:$0xff]
    %v5117 = vld [vmem:[%s14 + $0x1c8] sm:$0xff]
    %v5118 = vld [vmem:[%s14 + $0x1d0] sm:$0xff]
    %v5119 = vld [vmem:[%s14 + $0x1d8] sm:$0xff]
    %v5120 = vld [vmem:[%s14 + $0x1e0] sm:$0xff]
    %v5121 = vld [vmem:[%s14 + $0x1e8] sm:$0xff]
    %v5122 = vld [vmem:[%s14 + $0x1f0] sm:$0xff]
    %v5123 = vld [vmem:[%s14 + $0x1f8] sm:$0xff]
    %v5124 = vld [vmem:[%s14 + $0x200] sm:$0xff]
    %v5125 = vld [vmem:[%s14 + $0x208] sm:$0xff]
    %v5126 = vld [vmem:[%s14 + $0x210] sm:$0xff]
    %v5127 = vld [vmem:[%s14 + $0x218] sm:$0xff]
    %v5128 = vld [vmem:[%s14 + $0x220] sm:$0xff]
    %v5129 = vld [vmem:[%s14 + $0x228] sm:$0xff]
    %v5130 = vld [vmem:[%s14 + $0x230] sm:$0xff]
    %v5131 = vld [vmem:[%s14 + $0x238] sm:$0xff]
    %v5132 = vld [vmem:[%s14 + $0x240] sm:$0xff]
    %v5133 = vld [vmem:[%s14 + $0x248] sm:$0xff]
    %v5134 = vld [vmem:[%s14 + $0x250] sm:$0xff]
    %v5135 = vld [vmem:[%s14 + $0x258] sm:$0xff]
    %v5136 = vld [vmem:[%s14 + $0x260] sm:$0xff]
    %v5137 = vld [vmem:[%s14 + $0x268] sm:$0xff]
    %v5138 = vld [vmem:[%s14 + $0x270] sm:$0xff]
    %v5139 = vld [vmem:[%s14 + $0x278] sm:$0xff]
    %v5140 = vld [vmem:[%s14 + $0x280] sm:$0xff]
    %v5141 = vld [vmem:[%s14 + $0x288] sm:$0xff]
    %v5142 = vld [vmem:[%s14 + $0x290] sm:$0xff]
    %v5143 = vld [vmem:[%s14 + $0x298] sm:$0xff]
    %v5144 = vld [vmem:[%s14 + $0x2a0] sm:$0xff]
    %v5145 = vld [vmem:[%s14 + $0x2a8] sm:$0xff]
    %v5146 = vld [vmem:[%s14 + $0x2b0] sm:$0xff]
    %v5147 = vld [vmem:[%s14 + $0x2b8] sm:$0xff]
    %v5148 = vld [vmem:[%s14 + $0x2c0] sm:$0xff]
    %v5149 = vld [vmem:[%s14 + $0x2c8] sm:$0xff]
    %v5150 = vld [vmem:[%s14 + $0x2d0] sm:$0xff]
    %v5151 = vld [vmem:[%s14 + $0x2d8] sm:$0xff]
    %v5152 = vld [vmem:[%s14 + $0x2e0] sm:$0xff]
    %v5153 = vld [vmem:[%s14 + $0x2e8] sm:$0xff]
    %v5154 = vld [vmem:[%s14 + $0x2f0] sm:$0xff]
    %v5155 = vld [vmem:[%s14 + $0x2f8] sm:$0xff]
    %v5156 = vld [vmem:[%s14 + $0x300] sm:$0xff]
    %v5157 = vld [vmem:[%s14 + $0x308] sm:$0xff]
    %v5158 = vld [vmem:[%s14 + $0x310] sm:$0xff]
    %v5159 = vld [vmem:[%s14 + $0x318] sm:$0xff]
    %v5160 = vld [vmem:[%s14 + $0x320] sm:$0xff]
    %v5161 = vld [vmem:[%s14 + $0x328] sm:$0xff]
    %v5162 = vld [vmem:[%s14 + $0x330] sm:$0xff]
    %v5163 = vld [vmem:[%s14 + $0x338] sm:$0xff]
    %v5164 = vld [vmem:[%s14 + $0x340] sm:$0xff]
    %v5165 = vld [vmem:[%s14 + $0x348] sm:$0xff]
    %v5166 = vld [vmem:[%s14 + $0x350] sm:$0xff]
    %v5167 = vld [vmem:[%s14 + $0x358] sm:$0xff]
    %v5168 = vld [vmem:[%s14 + $0x360] sm:$0xff]
    %v5169 = vld [vmem:[%s14 + $0x368] sm:$0xff]
    %v5170 = vld [vmem:[%s14 + $0x370] sm:$0xff]
    %v5171 = vld [vmem:[%s14 + $0x378] sm:$0xff]
    %v5172 = vld [vmem:[%s14 + $0x380] sm:$0xff]
    %v5173 = vld [vmem:[%s14 + $0x388] sm:$0xff]
    %v5174 = vld [vmem:[%s14 + $0x390] sm:$0xff]
    %v5175 = vld [vmem:[%s14 + $0x398] sm:$0xff]
    %v5176 = vld [vmem:[%s14 + $0x3a0] sm:$0xff]
    %v5177 = vld [vmem:[%s14 + $0x3a8] sm:$0xff]
    %v5178 = vld [vmem:[%s14 + $0x3b0] sm:$0xff]
    %v5179 = vld [vmem:[%s14 + $0x3b8] sm:$0xff]
    %v5180 = vld [vmem:[%s14 + $0x3c0] sm:$0xff]
    %v5181 = vld [vmem:[%s14 + $0x3c8] sm:$0xff]
    %v5182 = vld [vmem:[%s14 + $0x3d0] sm:$0xff]
    %v5183 = vld [vmem:[%s14 + $0x3d8] sm:$0xff]
    %v5184 = vld [vmem:[%s14 + $0x3e0] sm:$0xff]
    %v5185 = vld [vmem:[%s14 + $0x3e8] sm:$0xff]
    %v5186 = vld [vmem:[%s14 + $0x3f0] sm:$0xff]
    %v5187 = vld [vmem:[%s14 + $0x3f8] sm:$0xff]
    %v5188 = vld [vmem:[%s14 + $0x400] sm:$0xff]
    %v5189 = vld [vmem:[%s14 + $0x408] sm:$0xff]
    %v5190 = vld [vmem:[%s14 + $0x410] sm:$0xff]
    %v5191 = vld [vmem:[%s14 + $0x418] sm:$0xff]
    %v5192 = vld [vmem:[%s14 + $0x420] sm:$0xff]
    %v5193 = vld [vmem:[%s14 + $0x428] sm:$0xff]
    %v5194 = vld [vmem:[%s14 + $0x430] sm:$0xff]
    %v5195 = vld [vmem:[%s14 + $0x438] sm:$0xff]
    %v5196 = vld [vmem:[%s14 + $0x440] sm:$0xff]
    %v5197 = vld [vmem:[%s14 + $0x448] sm:$0xff]
    %v5198 = vld [vmem:[%s14 + $0x450] sm:$0xff]
    %v5199 = vld [vmem:[%s14 + $0x458] sm:$0xff]
    %v5200 = vld [vmem:[%s14 + $0x460] sm:$0xff]
    %v5201 = vld [vmem:[%s14 + $0x468] sm:$0xff]
    %v5202 = vld [vmem:[%s14 + $0x470] sm:$0xff]
    %v5203 = vld [vmem:[%s14 + $0x478] sm:$0xff]
    %v5204 = vld [vmem:[%s14 + $0x480] sm:$0xff]
    %v5205 = vld [vmem:[%s14 + $0x488] sm:$0xff]
    %v5206 = vld [vmem:[%s14 + $0x490] sm:$0xff]
    %v5207 = vld [vmem:[%s14 + $0x498] sm:$0xff]
    %v5208 = vld [vmem:[%s14 + $0x4a0] sm:$0xff]
    %v5209 = vld [vmem:[%s14 + $0x4a8] sm:$0xff]
    %v5210 = vld [vmem:[%s14 + $0x4b0] sm:$0xff]
    %v5211 = vld [vmem:[%s14 + $0x4b8] sm:$0xff]
    %v5212 = vld [vmem:[%s14 + $0x4c0] sm:$0xff]
    %v5213 = vld [vmem:[%s14 + $0x4c8] sm:$0xff]
    %v5214 = vld [vmem:[%s14 + $0x4d0] sm:$0xff]
    %v5215 = vld [vmem:[%s14 + $0x4d8] sm:$0xff]
    %v5216 = vld [vmem:[%s14 + $0x4e0] sm:$0xff]
    %v5217 = vld [vmem:[%s14 + $0x4e8] sm:$0xff]
    %v5218 = vld [vmem:[%s14 + $0x4f0] sm:$0xff]
    %v5219 = vld [vmem:[%s14 + $0x4f8] sm:$0xff]
    %v5220 = vld [vmem:[%s14 + $0x500] sm:$0xff]
    %v5221 = vld [vmem:[%s14 + $0x508] sm:$0xff]
    %v5222 = vld [vmem:[%s14 + $0x510] sm:$0xff]
    %v5223 = vld [vmem:[%s14 + $0x518] sm:$0xff]
    %v5224 = vld [vmem:[%s14 + $0x520] sm:$0xff]
    %v5225 = vld [vmem:[%s14 + $0x528] sm:$0xff]
    %v5226 = vld [vmem:[%s14 + $0x530] sm:$0xff]
    %v5227 = vld [vmem:[%s14 + $0x538] sm:$0xff]
    %v5228 = vld [vmem:[%s14 + $0x540] sm:$0xff]
    %v5229 = vld [vmem:[%s14 + $0x548] sm:$0xff]
    %v5230 = vld [vmem:[%s14 + $0x550] sm:$0xff]
    %v5231 = vld [vmem:[%s14 + $0x558] sm:$0xff]
    %v5232 = vld [vmem:[%s14 + $0x560] sm:$0xff]
    %v5233 = vld [vmem:[%s14 + $0x568] sm:$0xff]
    %v5234 = vld [vmem:[%s14 + $0x570] sm:$0xff]
    %v5235 = vld [vmem:[%s14 + $0x578] sm:$0xff]
    %v5236 = vld [vmem:[%s14 + $0x580] sm:$0xff]
    %v5237 = vld [vmem:[%s14 + $0x588] sm:$0xff]
    %v5238 = vld [vmem:[%s14 + $0x590] sm:$0xff]
    %v5239 = vld [vmem:[%s14 + $0x598] sm:$0xff]
    %v5240 = vld [vmem:[%s14 + $0x5a0] sm:$0xff]
    %v5241 = vld [vmem:[%s14 + $0x5a8] sm:$0xff]
    %v5242 = vld [vmem:[%s14 + $0x5b0] sm:$0xff]
    %v5243 = vld [vmem:[%s14 + $0x5b8] sm:$0xff]
    %v5244 = vld [vmem:[%s14 + $0x5c0] sm:$0xff]
    %v5245 = vld [vmem:[%s14 + $0x5c8] sm:$0xff]
    %v5246 = vld [vmem:[%s14 + $0x5d0] sm:$0xff]
    %v5247 = vld [vmem:[%s14 + $0x5d8] sm:$0xff]
    %v5248 = vld [vmem:[%s14 + $0x5e0] sm:$0xff]
    %v5249 = vld [vmem:[%s14 + $0x5e8] sm:$0xff]
    %v5250 = vld [vmem:[%s14 + $0x5f0] sm:$0xff]
    %v5251 = vld [vmem:[%s14 + $0x5f8] sm:$0xff]
    %v5252 = vld [vmem:[%s14 + $0x600] sm:$0xff]
    %v5253 = vld [vmem:[%s14 + $0x608] sm:$0xff]
    %v5254 = vld [vmem:[%s14 + $0x610] sm:$0xff]
    %v5255 = vld [vmem:[%s14 + $0x618] sm:$0xff]
    %v5256 = vld [vmem:[%s14 + $0x620] sm:$0xff]
    %v5257 = vld [vmem:[%s14 + $0x628] sm:$0xff]
    %v5258 = vld [vmem:[%s14 + $0x630] sm:$0xff]
    %v5259 = vld [vmem:[%s14 + $0x638] sm:$0xff]
    %v5260 = vld [vmem:[%s14 + $0x640] sm:$0xff]
    %v5261 = vld [vmem:[%s14 + $0x648] sm:$0xff]
    %v5262 = vld [vmem:[%s14 + $0x650] sm:$0xff]
    %v5263 = vld [vmem:[%s14 + $0x658] sm:$0xff]
    %v5264 = vld [vmem:[%s14 + $0x660] sm:$0xff]
    %v5265 = vld [vmem:[%s14 + $0x668] sm:$0xff]
    %v5266 = vld [vmem:[%s14 + $0x670] sm:$0xff]
    %v5267 = vld [vmem:[%s14 + $0x678] sm:$0xff]
    %v5268 = vld [vmem:[%s14 + $0x680] sm:$0xff]
    %v5269 = vld [vmem:[%s14 + $0x688] sm:$0xff]
    %v5270 = vld [vmem:[%s14 + $0x690] sm:$0xff]
    %v5271 = vld [vmem:[%s14 + $0x698] sm:$0xff]
    %v5272 = vld [vmem:[%s14 + $0x6a0] sm:$0xff]
    %v5273 = vld [vmem:[%s14 + $0x6a8] sm:$0xff]
    %v5274 = vld [vmem:[%s14 + $0x6b0] sm:$0xff]
    %v5275 = vld [vmem:[%s14 + $0x6b8] sm:$0xff]
    %v5276 = vld [vmem:[%s14 + $0x6c0] sm:$0xff]
    %v5277 = vld [vmem:[%s14 + $0x6c8] sm:$0xff]
    %v5278 = vld [vmem:[%s14 + $0x6d0] sm:$0xff]
    %v5279 = vld [vmem:[%s14 + $0x6d8] sm:$0xff]
    %v5280 = vld [vmem:[%s14 + $0x6e0] sm:$0xff]
    %v5281 = vld [vmem:[%s14 + $0x6e8] sm:$0xff]
    %v5282 = vld [vmem:[%s14 + $0x6f0] sm:$0xff]
    %v5283 = vld [vmem:[%s14 + $0x6f8] sm:$0xff]
    %v5284 = vld [vmem:[%s14 + $0x700] sm:$0xff]
    %v5285 = vld [vmem:[%s14 + $0x708] sm:$0xff]
    %v5286 = vld [vmem:[%s14 + $0x710] sm:$0xff]
    %v5287 = vld [vmem:[%s14 + $0x718] sm:$0xff]
    %v5288 = vld [vmem:[%s14 + $0x720] sm:$0xff]
    %v5289 = vld [vmem:[%s14 + $0x728] sm:$0xff]
    %v5290 = vld [vmem:[%s14 + $0x730] sm:$0xff]
    %v5291 = vld [vmem:[%s14 + $0x738] sm:$0xff]
    %v5292 = vld [vmem:[%s14 + $0x740] sm:$0xff]
    %v5293 = vld [vmem:[%s14 + $0x748] sm:$0xff]
    %v5294 = vld [vmem:[%s14 + $0x750] sm:$0xff]
    %v5295 = vld [vmem:[%s14 + $0x758] sm:$0xff]
    %v5296 = vld [vmem:[%s14 + $0x760] sm:$0xff]
    %v5297 = vld [vmem:[%s14 + $0x768] sm:$0xff]
    %v5298 = vld [vmem:[%s14 + $0x770] sm:$0xff]
    %v5299 = vld [vmem:[%s14 + $0x778] sm:$0xff]
    %v5300 = vld [vmem:[%s14 + $0x780] sm:$0xff]
    %v5301 = vld [vmem:[%s14 + $0x788] sm:$0xff]
    %v5302 = vld [vmem:[%s14 + $0x790] sm:$0xff]
    %v5303 = vld [vmem:[%s14 + $0x798] sm:$0xff]
    %v5304 = vld [vmem:[%s14 + $0x7a0] sm:$0xff]
    %v5305 = vld [vmem:[%s14 + $0x7a8] sm:$0xff]
    %v5306 = vld [vmem:[%s14 + $0x7b0] sm:$0xff]
    %v5307 = vld [vmem:[%s14 + $0x7b8] sm:$0xff]
    %v5308 = vld [vmem:[%s14 + $0x7c0] sm:$0xff]
    %v5309 = vld [vmem:[%s14 + $0x7c8] sm:$0xff]
    %v5310 = vld [vmem:[%s14 + $0x7d0] sm:$0xff]
    %v5311 = vld [vmem:[%s14 + $0x7d8] sm:$0xff]
    %v5312 = vld [vmem:[%s14 + $0x7e0] sm:$0xff]
    %v5313 = vld [vmem:[%s14 + $0x7e8] sm:$0xff]
    %v5314 = vld [vmem:[%s14 + $0x7f0] sm:$0xff]
    %v5315 = vld [vmem:[%s14 + $0x7f8] sm:$0xff]
    %v5316 = vld [vmem:[%s14 + $0x800] sm:$0xff]
    %v5317 = vld [vmem:[%s14 + $0x808] sm:$0xff]
    %v5318 = vld [vmem:[%s14 + $0x810] sm:$0xff]
    %v5319 = vld [vmem:[%s14 + $0x818] sm:$0xff]
    %v5320 = vld [vmem:[%s14 + $0x820] sm:$0xff]
    %v5321 = vld [vmem:[%s14 + $0x828] sm:$0xff]
    %v5322 = vld [vmem:[%s14 + $0x830] sm:$0xff]
    %v5323 = vld [vmem:[%s14 + $0x838] sm:$0xff]
    %v5324 = vld [vmem:[%s14 + $0x840] sm:$0xff]
    %v5325 = vld [vmem:[%s14 + $0x848] sm:$0xff]
    %v5326 = vld [vmem:[%s14 + $0x850] sm:$0xff]
    %v5327 = vld [vmem:[%s14 + $0x858] sm:$0xff]
    %v5328 = vld [vmem:[%s14 + $0x860] sm:$0xff]
    %v5329 = vld [vmem:[%s14 + $0x868] sm:$0xff]
    %v5330 = vld [vmem:[%s14 + $0x870] sm:$0xff]
    %v5331 = vld [vmem:[%s14 + $0x878] sm:$0xff]
    %v5332 = vld [vmem:[%s14 + $0x880] sm:$0xff]
    %v5333 = vld [vmem:[%s14 + $0x888] sm:$0xff]
    %v5334 = vld [vmem:[%s14 + $0x890] sm:$0xff]
    %v5335 = vld [vmem:[%s14 + $0x898] sm:$0xff]
    %v5336 = vld [vmem:[%s14 + $0x8a0] sm:$0xff]
    %v5337 = vld [vmem:[%s14 + $0x8a8] sm:$0xff]
    %v5338 = vld [vmem:[%s14 + $0x8b0] sm:$0xff]
    %v5339 = vld [vmem:[%s14 + $0x8b8] sm:$0xff]
    %v5340 = vld [vmem:[%s14 + $0x8c0] sm:$0xff]
    %v5341 = vld [vmem:[%s14 + $0x8c8] sm:$0xff]
    %v5342 = vld [vmem:[%s14 + $0x8d0] sm:$0xff]
    %v5343 = vld [vmem:[%s14 + $0x8d8] sm:$0xff]
    %v5344 = vld [vmem:[%s14 + $0x8e0] sm:$0xff]
    %v5345 = vld [vmem:[%s14 + $0x8e8] sm:$0xff]
    %v5346 = vld [vmem:[%s14 + $0x8f0] sm:$0xff]
    %v5347 = vld [vmem:[%s14 + $0x8f8] sm:$0xff]
    %v5636 = vunpack.c.l.b16 %v5060
    %v5637 = vunpack.c.h.b16 %v5060
    %v5638 = vunpack.c.l.b16 %v5061
    %v5639 = vunpack.c.h.b16 %v5061
    %v5640 = vunpack.c.l.b16 %v5062
    %v5641 = vunpack.c.h.b16 %v5062
    %v5642 = vunpack.c.l.b16 %v5063
    %v5643 = vunpack.c.h.b16 %v5063
    %v5644 = vunpack.c.l.b16 %v5064
    %v5645 = vunpack.c.h.b16 %v5064
    %v5646 = vunpack.c.l.b16 %v5065
    %v5647 = vunpack.c.h.b16 %v5065
    %v5648 = vunpack.c.l.b16 %v5066
    %v5649 = vunpack.c.h.b16 %v5066
    %v5650 = vunpack.c.l.b16 %v5067
    %v5651 = vunpack.c.h.b16 %v5067
    %v5652 = vunpack.c.l.b16 %v5068
    %v5653 = vunpack.c.h.b16 %v5068
    %v5654 = vunpack.c.l.b16 %v5069
    %v5655 = vunpack.c.h.b16 %v5069
    %v5656 = vunpack.c.l.b16 %v5070
    %v5657 = vunpack.c.h.b16 %v5070
    %v5658 = vunpack.c.l.b16 %v5071
    %v5659 = vunpack.c.h.b16 %v5071
    %v5660 = vunpack.c.l.b16 %v5072
    %v5661 = vunpack.c.h.b16 %v5072
    %v5662 = vunpack.c.l.b16 %v5073
    %v5663 = vunpack.c.h.b16 %v5073
    %v5664 = vunpack.c.l.b16 %v5074
    %v5665 = vunpack.c.h.b16 %v5074
    %v5666 = vunpack.c.l.b16 %v5075
    %v5667 = vunpack.c.h.b16 %v5075
    %v5668 = vunpack.c.l.b16 %v5076
    %v5669 = vunpack.c.h.b16 %v5076
    %v5670 = vunpack.c.l.b16 %v5077
    %v5671 = vunpack.c.h.b16 %v5077
    %v5672 = vunpack.c.l.b16 %v5078
    %v5673 = vunpack.c.h.b16 %v5078
    %v5674 = vunpack.c.l.b16 %v5079
    %v5675 = vunpack.c.h.b16 %v5079
    %v5676 = vunpack.c.l.b16 %v5080
    %v5677 = vunpack.c.h.b16 %v5080
    %v5678 = vunpack.c.l.b16 %v5081
    %v5679 = vunpack.c.h.b16 %v5081
    %v5680 = vunpack.c.l.b16 %v5082
    %v5681 = vunpack.c.h.b16 %v5082
    %v5682 = vunpack.c.l.b16 %v5083
    %v5683 = vunpack.c.h.b16 %v5083
    %v5684 = vunpack.c.l.b16 %v5084
    %v5685 = vunpack.c.h.b16 %v5084
    %v5686 = vunpack.c.l.b16 %v5085
    %v5687 = vunpack.c.h.b16 %v5085
    %v5688 = vunpack.c.l.b16 %v5086
    %v5689 = vunpack.c.h.b16 %v5086
    %v5690 = vunpack.c.l.b16 %v5087
    %v5691 = vunpack.c.h.b16 %v5087
    %v5692 = vunpack.c.l.b16 %v5088
    %v5693 = vunpack.c.h.b16 %v5088
    %v5694 = vunpack.c.l.b16 %v5089
    %v5695 = vunpack.c.h.b16 %v5089
    %v5696 = vunpack.c.l.b16 %v5090
    %v5697 = vunpack.c.h.b16 %v5090
    %v5698 = vunpack.c.l.b16 %v5091
    %v5699 = vunpack.c.h.b16 %v5091
    %v5700 = vunpack.c.l.b16 %v5092
    %v5701 = vunpack.c.h.b16 %v5092
    %v5702 = vunpack.c.l.b16 %v5093
    %v5703 = vunpack.c.h.b16 %v5093
    %v5704 = vunpack.c.l.b16 %v5094
    %v5705 = vunpack.c.h.b16 %v5094
    %v5706 = vunpack.c.l.b16 %v5095
    %v5707 = vunpack.c.h.b16 %v5095
    %v5708 = vunpack.c.l.b16 %v5096
    %v5709 = vunpack.c.h.b16 %v5096
    %v5710 = vunpack.c.l.b16 %v5097
    %v5711 = vunpack.c.h.b16 %v5097
    %v5712 = vunpack.c.l.b16 %v5098
    %v5713 = vunpack.c.h.b16 %v5098
    %v5714 = vunpack.c.l.b16 %v5099
    %v5715 = vunpack.c.h.b16 %v5099
    %v5716 = vunpack.c.l.b16 %v5100
    %v5717 = vunpack.c.h.b16 %v5100
    %v5718 = vunpack.c.l.b16 %v5101
    %v5719 = vunpack.c.h.b16 %v5101
    %v5720 = vunpack.c.l.b16 %v5102
    %v5721 = vunpack.c.h.b16 %v5102
    %v5722 = vunpack.c.l.b16 %v5103
    %v5723 = vunpack.c.h.b16 %v5103
    %v5724 = vunpack.c.l.b16 %v5104
    %v5725 = vunpack.c.h.b16 %v5104
    %v5726 = vunpack.c.l.b16 %v5105
    %v5727 = vunpack.c.h.b16 %v5105
    %v5728 = vunpack.c.l.b16 %v5106
    %v5729 = vunpack.c.h.b16 %v5106
    %v5730 = vunpack.c.l.b16 %v5107
    %v5731 = vunpack.c.h.b16 %v5107
    %v5732 = vunpack.c.l.b16 %v5108
    %v5733 = vunpack.c.h.b16 %v5108
    %v5734 = vunpack.c.l.b16 %v5109
    %v5735 = vunpack.c.h.b16 %v5109
    %v5736 = vunpack.c.l.b16 %v5110
    %v5737 = vunpack.c.h.b16 %v5110
    %v5738 = vunpack.c.l.b16 %v5111
    %v5739 = vunpack.c.h.b16 %v5111
    %v5740 = vunpack.c.l.b16 %v5112
    %v5741 = vunpack.c.h.b16 %v5112
    %v5742 = vunpack.c.l.b16 %v5113
    %v5743 = vunpack.c.h.b16 %v5113
    %v5744 = vunpack.c.l.b16 %v5114
    %v5745 = vunpack.c.h.b16 %v5114
    %v5746 = vunpack.c.l.b16 %v5115
    %v5747 = vunpack.c.h.b16 %v5115
    %v5748 = vunpack.c.l.b16 %v5116
    %v5749 = vunpack.c.h.b16 %v5116
    %v5750 = vunpack.c.l.b16 %v5117
    %v5751 = vunpack.c.h.b16 %v5117
    %v5752 = vunpack.c.l.b16 %v5118
    %v5753 = vunpack.c.h.b16 %v5118
    %v5754 = vunpack.c.l.b16 %v5119
    %v5755 = vunpack.c.h.b16 %v5119
    %v5756 = vunpack.c.l.b16 %v5120
    %v5757 = vunpack.c.h.b16 %v5120
    %v5758 = vunpack.c.l.b16 %v5121
    %v5759 = vunpack.c.h.b16 %v5121
    %v5760 = vunpack.c.l.b16 %v5122
    %v5761 = vunpack.c.h.b16 %v5122
    %v5762 = vunpack.c.l.b16 %v5123
    %v5763 = vunpack.c.h.b16 %v5123
    %v5764 = vunpack.c.l.b16 %v5124
    %v5765 = vunpack.c.h.b16 %v5124
    %v5766 = vunpack.c.l.b16 %v5125
    %v5767 = vunpack.c.h.b16 %v5125
    %v5768 = vunpack.c.l.b16 %v5126
    %v5769 = vunpack.c.h.b16 %v5126
    %v5770 = vunpack.c.l.b16 %v5127
    %v5771 = vunpack.c.h.b16 %v5127
    %v5772 = vunpack.c.l.b16 %v5128
    %v5773 = vunpack.c.h.b16 %v5128
    %v5774 = vunpack.c.l.b16 %v5129
    %v5775 = vunpack.c.h.b16 %v5129
    %v5776 = vunpack.c.l.b16 %v5130
    %v5777 = vunpack.c.h.b16 %v5130
    %v5778 = vunpack.c.l.b16 %v5131
    %v5779 = vunpack.c.h.b16 %v5131
    %v5780 = vunpack.c.l.b16 %v5132
    %v5781 = vunpack.c.h.b16 %v5132
    %v5782 = vunpack.c.l.b16 %v5133
    %v5783 = vunpack.c.h.b16 %v5133
    %v5784 = vunpack.c.l.b16 %v5134
    %v5785 = vunpack.c.h.b16 %v5134
    %v5786 = vunpack.c.l.b16 %v5135
    %v5787 = vunpack.c.h.b16 %v5135
    %v5788 = vunpack.c.l.b16 %v5136
    %v5789 = vunpack.c.h.b16 %v5136
    %v5790 = vunpack.c.l.b16 %v5137
    %v5791 = vunpack.c.h.b16 %v5137
    %v5792 = vunpack.c.l.b16 %v5138
    %v5793 = vunpack.c.h.b16 %v5138
    %v5794 = vunpack.c.l.b16 %v5139
    %v5795 = vunpack.c.h.b16 %v5139
    %v5796 = vunpack.c.l.b16 %v5140
    %v5797 = vunpack.c.h.b16 %v5140
    %v5798 = vunpack.c.l.b16 %v5141
    %v5799 = vunpack.c.h.b16 %v5141
    %v5800 = vunpack.c.l.b16 %v5142
    %v5801 = vunpack.c.h.b16 %v5142
    %v5802 = vunpack.c.l.b16 %v5143
    %v5803 = vunpack.c.h.b16 %v5143
    %v5804 = vunpack.c.l.b16 %v5144
    %v5805 = vunpack.c.h.b16 %v5144
    %v5806 = vunpack.c.l.b16 %v5145
    %v5807 = vunpack.c.h.b16 %v5145
    %v5808 = vunpack.c.l.b16 %v5146
    %v5809 = vunpack.c.h.b16 %v5146
    %v5810 = vunpack.c.l.b16 %v5147
    %v5811 = vunpack.c.h.b16 %v5147
    %v5812 = vunpack.c.l.b16 %v5148
    %v5813 = vunpack.c.h.b16 %v5148
    %v5814 = vunpack.c.l.b16 %v5149
    %v5815 = vunpack.c.h.b16 %v5149
    %v5816 = vunpack.c.l.b16 %v5150
    %v5817 = vunpack.c.h.b16 %v5150
    %v5818 = vunpack.c.l.b16 %v5151
    %v5819 = vunpack.c.h.b16 %v5151
    %v5820 = vunpack.c.l.b16 %v5152
    %v5821 = vunpack.c.h.b16 %v5152
    %v5822 = vunpack.c.l.b16 %v5153
    %v5823 = vunpack.c.h.b16 %v5153
    %v5824 = vunpack.c.l.b16 %v5154
    %v5825 = vunpack.c.h.b16 %v5154
    %v5826 = vunpack.c.l.b16 %v5155
    %v5827 = vunpack.c.h.b16 %v5155
    %v5828 = vunpack.c.l.b16 %v5156
    %v5829 = vunpack.c.h.b16 %v5156
    %v5830 = vunpack.c.l.b16 %v5157
    %v5831 = vunpack.c.h.b16 %v5157
    %v5832 = vunpack.c.l.b16 %v5158
    %v5833 = vunpack.c.h.b16 %v5158
    %v5834 = vunpack.c.l.b16 %v5159
    %v5835 = vunpack.c.h.b16 %v5159
    %v5836 = vunpack.c.l.b16 %v5160
    %v5837 = vunpack.c.h.b16 %v5160
    %v5838 = vunpack.c.l.b16 %v5161
    %v5839 = vunpack.c.h.b16 %v5161
    %v5840 = vunpack.c.l.b16 %v5162
    %v5841 = vunpack.c.h.b16 %v5162
    %v5842 = vunpack.c.l.b16 %v5163
    %v5843 = vunpack.c.h.b16 %v5163
    %v5844 = vunpack.c.l.b16 %v5164
    %v5845 = vunpack.c.h.b16 %v5164
    %v5846 = vunpack.c.l.b16 %v5165
    %v5847 = vunpack.c.h.b16 %v5165
    %v5848 = vunpack.c.l.b16 %v5166
    %v5849 = vunpack.c.h.b16 %v5166
    %v5850 = vunpack.c.l.b16 %v5167
    %v5851 = vunpack.c.h.b16 %v5167
    %v5852 = vunpack.c.l.b16 %v5168
    %v5853 = vunpack.c.h.b16 %v5168
    %v5854 = vunpack.c.l.b16 %v5169
    %v5855 = vunpack.c.h.b16 %v5169
    %v5856 = vunpack.c.l.b16 %v5170
    %v5857 = vunpack.c.h.b16 %v5170
    %v5858 = vunpack.c.l.b16 %v5171
    %v5859 = vunpack.c.h.b16 %v5171
    %v5860 = vunpack.c.l.b16 %v5172
    %v5861 = vunpack.c.h.b16 %v5172
    %v5862 = vunpack.c.l.b16 %v5173
    %v5863 = vunpack.c.h.b16 %v5173
    %v5864 = vunpack.c.l.b16 %v5174
    %v5865 = vunpack.c.h.b16 %v5174
    %v5866 = vunpack.c.l.b16 %v5175
    %v5867 = vunpack.c.h.b16 %v5175
    %v5868 = vunpack.c.l.b16 %v5176
    %v5869 = vunpack.c.h.b16 %v5176
    %v5870 = vunpack.c.l.b16 %v5177
    %v5871 = vunpack.c.h.b16 %v5177
    %v5872 = vunpack.c.l.b16 %v5178
    %v5873 = vunpack.c.h.b16 %v5178
    %v5874 = vunpack.c.l.b16 %v5179
    %v5875 = vunpack.c.h.b16 %v5179
    %v5876 = vunpack.c.l.b16 %v5180
    %v5877 = vunpack.c.h.b16 %v5180
    %v5878 = vunpack.c.l.b16 %v5181
    %v5879 = vunpack.c.h.b16 %v5181
    %v5880 = vunpack.c.l.b16 %v5182
    %v5881 = vunpack.c.h.b16 %v5182
    %v5882 = vunpack.c.l.b16 %v5183
    %v5883 = vunpack.c.h.b16 %v5183
    %v5884 = vunpack.c.l.b16 %v5184
    %v5885 = vunpack.c.h.b16 %v5184
    %v5886 = vunpack.c.l.b16 %v5185
    %v5887 = vunpack.c.h.b16 %v5185
    %v5888 = vunpack.c.l.b16 %v5186
    %v5889 = vunpack.c.h.b16 %v5186
    %v5890 = vunpack.c.l.b16 %v5187
    %v5891 = vunpack.c.h.b16 %v5187
    %v5892 = vunpack.c.l.b16 %v5188
    %v5893 = vunpack.c.h.b16 %v5188
    %v5894 = vunpack.c.l.b16 %v5189
    %v5895 = vunpack.c.h.b16 %v5189
    %v5896 = vunpack.c.l.b16 %v5190
    %v5897 = vunpack.c.h.b16 %v5190
    %v5898 = vunpack.c.l.b16 %v5191
    %v5899 = vunpack.c.h.b16 %v5191
    %v5900 = vunpack.c.l.b16 %v5192
    %v5901 = vunpack.c.h.b16 %v5192
    %v5902 = vunpack.c.l.b16 %v5193
    %v5903 = vunpack.c.h.b16 %v5193
    %v5904 = vunpack.c.l.b16 %v5194
    %v5905 = vunpack.c.h.b16 %v5194
    %v5906 = vunpack.c.l.b16 %v5195
    %v5907 = vunpack.c.h.b16 %v5195
    %v5908 = vunpack.c.l.b16 %v5196
    %v5909 = vunpack.c.h.b16 %v5196
    %v5910 = vunpack.c.l.b16 %v5197
    %v5911 = vunpack.c.h.b16 %v5197
    %v5912 = vunpack.c.l.b16 %v5198
    %v5913 = vunpack.c.h.b16 %v5198
    %v5914 = vunpack.c.l.b16 %v5199
    %v5915 = vunpack.c.h.b16 %v5199
    %v5916 = vunpack.c.l.b16 %v5200
    %v5917 = vunpack.c.h.b16 %v5200
    %v5918 = vunpack.c.l.b16 %v5201
    %v5919 = vunpack.c.h.b16 %v5201
    %v5920 = vunpack.c.l.b16 %v5202
    %v5921 = vunpack.c.h.b16 %v5202
    %v5922 = vunpack.c.l.b16 %v5203
    %v5923 = vunpack.c.h.b16 %v5203
    %v5924 = vunpack.c.l.b16 %v5204
    %v5925 = vunpack.c.h.b16 %v5204
    %v5926 = vunpack.c.l.b16 %v5205
    %v5927 = vunpack.c.h.b16 %v5205
    %v5928 = vunpack.c.l.b16 %v5206
    %v5929 = vunpack.c.h.b16 %v5206
    %v5930 = vunpack.c.l.b16 %v5207
    %v5931 = vunpack.c.h.b16 %v5207
    %v5932 = vunpack.c.l.b16 %v5208
    %v5933 = vunpack.c.h.b16 %v5208
    %v5934 = vunpack.c.l.b16 %v5209
    %v5935 = vunpack.c.h.b16 %v5209
    %v5936 = vunpack.c.l.b16 %v5210
    %v5937 = vunpack.c.h.b16 %v5210
    %v5938 = vunpack.c.l.b16 %v5211
    %v5939 = vunpack.c.h.b16 %v5211
    %v5940 = vunpack.c.l.b16 %v5212
    %v5941 = vunpack.c.h.b16 %v5212
    %v5942 = vunpack.c.l.b16 %v5213
    %v5943 = vunpack.c.h.b16 %v5213
    %v5944 = vunpack.c.l.b16 %v5214
    %v5945 = vunpack.c.h.b16 %v5214
    %v5946 = vunpack.c.l.b16 %v5215
    %v5947 = vunpack.c.h.b16 %v5215
    %v5948 = vunpack.c.l.b16 %v5216
    %v5949 = vunpack.c.h.b16 %v5216
    %v5950 = vunpack.c.l.b16 %v5217
    %v5951 = vunpack.c.h.b16 %v5217
    %v5952 = vunpack.c.l.b16 %v5218
    %v5953 = vunpack.c.h.b16 %v5218
    %v5954 = vunpack.c.l.b16 %v5219
    %v5955 = vunpack.c.h.b16 %v5219
    %v5956 = vunpack.c.l.b16 %v5220
    %v5957 = vunpack.c.h.b16 %v5220
    %v5958 = vunpack.c.l.b16 %v5221
    %v5959 = vunpack.c.h.b16 %v5221
    %v5960 = vunpack.c.l.b16 %v5222
    %v5961 = vunpack.c.h.b16 %v5222
    %v5962 = vunpack.c.l.b16 %v5223
    %v5963 = vunpack.c.h.b16 %v5223
    %v5964 = vunpack.c.l.b16 %v5224
    %v5965 = vunpack.c.h.b16 %v5224
    %v5966 = vunpack.c.l.b16 %v5225
    %v5967 = vunpack.c.h.b16 %v5225
    %v5968 = vunpack.c.l.b16 %v5226
    %v5969 = vunpack.c.h.b16 %v5226
    %v5970 = vunpack.c.l.b16 %v5227
    %v5971 = vunpack.c.h.b16 %v5227
    %v5972 = vunpack.c.l.b16 %v5228
    %v5973 = vunpack.c.h.b16 %v5228
    %v5974 = vunpack.c.l.b16 %v5229
    %v5975 = vunpack.c.h.b16 %v5229
    %v5976 = vunpack.c.l.b16 %v5230
    %v5977 = vunpack.c.h.b16 %v5230
    %v5978 = vunpack.c.l.b16 %v5231
    %v5979 = vunpack.c.h.b16 %v5231
    %v5980 = vunpack.c.l.b16 %v5232
    %v5981 = vunpack.c.h.b16 %v5232
    %v5982 = vunpack.c.l.b16 %v5233
    %v5983 = vunpack.c.h.b16 %v5233
    %v5984 = vunpack.c.l.b16 %v5234
    %v5985 = vunpack.c.h.b16 %v5234
    %v5986 = vunpack.c.l.b16 %v5235
    %v5987 = vunpack.c.h.b16 %v5235
    %v5988 = vunpack.c.l.b16 %v5236
    %v5989 = vunpack.c.h.b16 %v5236
    %v5990 = vunpack.c.l.b16 %v5237
    %v5991 = vunpack.c.h.b16 %v5237
    %v5992 = vunpack.c.l.b16 %v5238
    %v5993 = vunpack.c.h.b16 %v5238
    %v5994 = vunpack.c.l.b16 %v5239
    %v5995 = vunpack.c.h.b16 %v5239
    %v5996 = vunpack.c.l.b16 %v5240
    %v5997 = vunpack.c.h.b16 %v5240
    %v5998 = vunpack.c.l.b16 %v5241
    %v5999 = vunpack.c.h.b16 %v5241
    %v6000 = vunpack.c.l.b16 %v5242
    %v6001 = vunpack.c.h.b16 %v5242
    %v6002 = vunpack.c.l.b16 %v5243
    %v6003 = vunpack.c.h.b16 %v5243
    %v6004 = vunpack.c.l.b16 %v5244
    %v6005 = vunpack.c.h.b16 %v5244
    %v6006 = vunpack.c.l.b16 %v5245
    %v6007 = vunpack.c.h.b16 %v5245
    %v6008 = vunpack.c.l.b16 %v5246
    %v6009 = vunpack.c.h.b16 %v5246
    %v6010 = vunpack.c.l.b16 %v5247
    %v6011 = vunpack.c.h.b16 %v5247
    %v6012 = vunpack.c.l.b16 %v5248
    %v6013 = vunpack.c.h.b16 %v5248
    %v6014 = vunpack.c.l.b16 %v5249
    %v6015 = vunpack.c.h.b16 %v5249
    %v6016 = vunpack.c.l.b16 %v5250
    %v6017 = vunpack.c.h.b16 %v5250
    %v6018 = vunpack.c.l.b16 %v5251
    %v6019 = vunpack.c.h.b16 %v5251
    %v6020 = vunpack.c.l.b16 %v5252
    %v6021 = vunpack.c.h.b16 %v5252
    %v6022 = vunpack.c.l.b16 %v5253
    %v6023 = vunpack.c.h.b16 %v5253
    %v6024 = vunpack.c.l.b16 %v5254
    %v6025 = vunpack.c.h.b16 %v5254
    %v6026 = vunpack.c.l.b16 %v5255
    %v6027 = vunpack.c.h.b16 %v5255
    %v6028 = vunpack.c.l.b16 %v5256
    %v6029 = vunpack.c.h.b16 %v5256
    %v6030 = vunpack.c.l.b16 %v5257
    %v6031 = vunpack.c.h.b16 %v5257
    %v6032 = vunpack.c.l.b16 %v5258
    %v6033 = vunpack.c.h.b16 %v5258
    %v6034 = vunpack.c.l.b16 %v5259
    %v6035 = vunpack.c.h.b16 %v5259
    %v6036 = vunpack.c.l.b16 %v5260
    %v6037 = vunpack.c.h.b16 %v5260
    %v6038 = vunpack.c.l.b16 %v5261
    %v6039 = vunpack.c.h.b16 %v5261
    %v6040 = vunpack.c.l.b16 %v5262
    %v6041 = vunpack.c.h.b16 %v5262
    %v6042 = vunpack.c.l.b16 %v5263
    %v6043 = vunpack.c.h.b16 %v5263
    %v6044 = vunpack.c.l.b16 %v5264
    %v6045 = vunpack.c.h.b16 %v5264
    %v6046 = vunpack.c.l.b16 %v5265
    %v6047 = vunpack.c.h.b16 %v5265
    %v6048 = vunpack.c.l.b16 %v5266
    %v6049 = vunpack.c.h.b16 %v5266
    %v6050 = vunpack.c.l.b16 %v5267
    %v6051 = vunpack.c.h.b16 %v5267
    %v6052 = vunpack.c.l.b16 %v5268
    %v6053 = vunpack.c.h.b16 %v5268
    %v6054 = vunpack.c.l.b16 %v5269
    %v6055 = vunpack.c.h.b16 %v5269
    %v6056 = vunpack.c.l.b16 %v5270
    %v6057 = vunpack.c.h.b16 %v5270
    %v6058 = vunpack.c.l.b16 %v5271
    %v6059 = vunpack.c.h.b16 %v5271
    %v6060 = vunpack.c.l.b16 %v5272
    %v6061 = vunpack.c.h.b16 %v5272
    %v6062 = vunpack.c.l.b16 %v5273
    %v6063 = vunpack.c.h.b16 %v5273
    %v6064 = vunpack.c.l.b16 %v5274
    %v6065 = vunpack.c.h.b16 %v5274
    %v6066 = vunpack.c.l.b16 %v5275
    %v6067 = vunpack.c.h.b16 %v5275
    %v6068 = vunpack.c.l.b16 %v5276
    %v6069 = vunpack.c.h.b16 %v5276
    %v6070 = vunpack.c.l.b16 %v5277
    %v6071 = vunpack.c.h.b16 %v5277
    %v6072 = vunpack.c.l.b16 %v5278
    %v6073 = vunpack.c.h.b16 %v5278
    %v6074 = vunpack.c.l.b16 %v5279
    %v6075 = vunpack.c.h.b16 %v5279
    %v6076 = vunpack.c.l.b16 %v5280
    %v6077 = vunpack.c.h.b16 %v5280
    %v6078 = vunpack.c.l.b16 %v5281
    %v6079 = vunpack.c.h.b16 %v5281
    %v6080 = vunpack.c.l.b16 %v5282
    %v6081 = vunpack.c.h.b16 %v5282
    %v6082 = vunpack.c.l.b16 %v5283
    %v6083 = vunpack.c.h.b16 %v5283
    %v6084 = vunpack.c.l.b16 %v5284
    %v6085 = vunpack.c.h.b16 %v5284
    %v6086 = vunpack.c.l.b16 %v5285
    %v6087 = vunpack.c.h.b16 %v5285
    %v6088 = vunpack.c.l.b16 %v5286
    %v6089 = vunpack.c.h.b16 %v5286
    %v6090 = vunpack.c.l.b16 %v5287
    %v6091 = vunpack.c.h.b16 %v5287
    %v6092 = vunpack.c.l.b16 %v5288
    %v6093 = vunpack.c.h.b16 %v5288
    %v6094 = vunpack.c.l.b16 %v5289
    %v6095 = vunpack.c.h.b16 %v5289
    %v6096 = vunpack.c.l.b16 %v5290
    %v6097 = vunpack.c.h.b16 %v5290
    %v6098 = vunpack.c.l.b16 %v5291
    %v6099 = vunpack.c.h.b16 %v5291
    %v6100 = vunpack.c.l.b16 %v5292
    %v6101 = vunpack.c.h.b16 %v5292
    %v6102 = vunpack.c.l.b16 %v5293
    %v6103 = vunpack.c.h.b16 %v5293
    %v6104 = vunpack.c.l.b16 %v5294
    %v6105 = vunpack.c.h.b16 %v5294
    %v6106 = vunpack.c.l.b16 %v5295
    %v6107 = vunpack.c.h.b16 %v5295
    %v6108 = vunpack.c.l.b16 %v5296
    %v6109 = vunpack.c.h.b16 %v5296
    %v6110 = vunpack.c.l.b16 %v5297
    %v6111 = vunpack.c.h.b16 %v5297
    %v6112 = vunpack.c.l.b16 %v5298
    %v6113 = vunpack.c.h.b16 %v5298
    %v6114 = vunpack.c.l.b16 %v5299
    %v6115 = vunpack.c.h.b16 %v5299
    %v6116 = vunpack.c.l.b16 %v5300
    %v6117 = vunpack.c.h.b16 %v5300
    %v6118 = vunpack.c.l.b16 %v5301
    %v6119 = vunpack.c.h.b16 %v5301
    %v6120 = vunpack.c.l.b16 %v5302
    %v6121 = vunpack.c.h.b16 %v5302
    %v6122 = vunpack.c.l.b16 %v5303
    %v6123 = vunpack.c.h.b16 %v5303
    %v6124 = vunpack.c.l.b16 %v5304
    %v6125 = vunpack.c.h.b16 %v5304
    %v6126 = vunpack.c.l.b16 %v5305
    %v6127 = vunpack.c.h.b16 %v5305
    %v6128 = vunpack.c.l.b16 %v5306
    %v6129 = vunpack.c.h.b16 %v5306
    %v6130 = vunpack.c.l.b16 %v5307
    %v6131 = vunpack.c.h.b16 %v5307
    %v6132 = vunpack.c.l.b16 %v5308
    %v6133 = vunpack.c.h.b16 %v5308
    %v6134 = vunpack.c.l.b16 %v5309
    %v6135 = vunpack.c.h.b16 %v5309
    %v6136 = vunpack.c.l.b16 %v5310
    %v6137 = vunpack.c.h.b16 %v5310
    %v6138 = vunpack.c.l.b16 %v5311
    %v6139 = vunpack.c.h.b16 %v5311
    %v6140 = vunpack.c.l.b16 %v5312
    %v6141 = vunpack.c.h.b16 %v5312
    %v6142 = vunpack.c.l.b16 %v5313
    %v6143 = vunpack.c.h.b16 %v5313
    %v6144 = vunpack.c.l.b16 %v5314
    %v6145 = vunpack.c.h.b16 %v5314
    %v6146 = vunpack.c.l.b16 %v5315
    %v6147 = vunpack.c.h.b16 %v5315
    %v6148 = vunpack.c.l.b16 %v5316
    %v6149 = vunpack.c.h.b16 %v5316
    %v6150 = vunpack.c.l.b16 %v5317
    %v6151 = vunpack.c.h.b16 %v5317
    %v6152 = vunpack.c.l.b16 %v5318
    %v6153 = vunpack.c.h.b16 %v5318
    %v6154 = vunpack.c.l.b16 %v5319
    %v6155 = vunpack.c.h.b16 %v5319
    %v6156 = vunpack.c.l.b16 %v5320
    %v6157 = vunpack.c.h.b16 %v5320
    %v6158 = vunpack.c.l.b16 %v5321
    %v6159 = vunpack.c.h.b16 %v5321
    %v6160 = vunpack.c.l.b16 %v5322
    %v6161 = vunpack.c.h.b16 %v5322
    %v6162 = vunpack.c.l.b16 %v5323
    %v6163 = vunpack.c.h.b16 %v5323
    %v6164 = vunpack.c.l.b16 %v5324
    %v6165 = vunpack.c.h.b16 %v5324
    %v6166 = vunpack.c.l.b16 %v5325
    %v6167 = vunpack.c.h.b16 %v5325
    %v6168 = vunpack.c.l.b16 %v5326
    %v6169 = vunpack.c.h.b16 %v5326
    %v6170 = vunpack.c.l.b16 %v5327
    %v6171 = vunpack.c.h.b16 %v5327
    %v6172 = vunpack.c.l.b16 %v5328
    %v6173 = vunpack.c.h.b16 %v5328
    %v6174 = vunpack.c.l.b16 %v5329
    %v6175 = vunpack.c.h.b16 %v5329
    %v6176 = vunpack.c.l.b16 %v5330
    %v6177 = vunpack.c.h.b16 %v5330
    %v6178 = vunpack.c.l.b16 %v5331
    %v6179 = vunpack.c.h.b16 %v5331
    %v6180 = vunpack.c.l.b16 %v5332
    %v6181 = vunpack.c.h.b16 %v5332
    %v6182 = vunpack.c.l.b16 %v5333
    %v6183 = vunpack.c.h.b16 %v5333
    %v6184 = vunpack.c.l.b16 %v5334
    %v6185 = vunpack.c.h.b16 %v5334
    %v6186 = vunpack.c.l.b16 %v5335
    %v6187 = vunpack.c.h.b16 %v5335
    %v6188 = vunpack.c.l.b16 %v5336
    %v6189 = vunpack.c.h.b16 %v5336
    %v6190 = vunpack.c.l.b16 %v5337
    %v6191 = vunpack.c.h.b16 %v5337
    %v6192 = vunpack.c.l.b16 %v5338
    %v6193 = vunpack.c.h.b16 %v5338
    %v6194 = vunpack.c.l.b16 %v5339
    %v6195 = vunpack.c.h.b16 %v5339
    %v6196 = vunpack.c.l.b16 %v5340
    %v6197 = vunpack.c.h.b16 %v5340
    %v6198 = vunpack.c.l.b16 %v5341
    %v6199 = vunpack.c.h.b16 %v5341
    %v6200 = vunpack.c.l.b16 %v5342
    %v6201 = vunpack.c.h.b16 %v5342
    %v6202 = vunpack.c.l.b16 %v5343
    %v6203 = vunpack.c.h.b16 %v5343
    %v6204 = vunpack.c.l.b16 %v5344
    %v6205 = vunpack.c.h.b16 %v5344
    %v6206 = vunpack.c.l.b16 %v5345
    %v6207 = vunpack.c.h.b16 %v5345
    %v6208 = vunpack.c.l.b16 %v5346
    %v6209 = vunpack.c.h.b16 %v5346
    %v6210 = vunpack.c.l.b16 %v5347
    %v6211 = vunpack.c.h.b16 %v5347
    %v6212 = vpack.c.b16 %v5642, %v5636
    %v6213 = vpack.c.b16 %v5643, %v5637
    %v6214 = vpack.c.b16 %v5644, %v5638
    %v6215 = vpack.c.b16 %v5645, %v5639
    %v6216 = vpack.c.b16 %v5646, %v5640
    %v6217 = vpack.c.b16 %v5647, %v5641
    %v6218 = vpack.c.b16 %v5654, %v5648
    %v6219 = vpack.c.b16 %v5655, %v5649
    %v6220 = vpack.c.b16 %v5656, %v5650
    %v6221 = vpack.c.b16 %v5657, %v5651
    %v6222 = vpack.c.b16 %v5658, %v5652
    %v6223 = vpack.c.b16 %v5659, %v5653
    %v6224 = vpack.c.b16 %v5666, %v5660
    %v6225 = vpack.c.b16 %v5667, %v5661
    %v6226 = vpack.c.b16 %v5668, %v5662
    %v6227 = vpack.c.b16 %v5669, %v5663
    %v6228 = vpack.c.b16 %v5670, %v5664
    %v6229 = vpack.c.b16 %v5671, %v5665
    %v6230 = vpack.c.b16 %v5678, %v5672
    %v6231 = vpack.c.b16 %v5679, %v5673
    %v6232 = vpack.c.b16 %v5680, %v5674
    %v6233 = vpack.c.b16 %v5681, %v5675
    %v6234 = vpack.c.b16 %v5682, %v5676
    %v6235 = vpack.c.b16 %v5683, %v5677
    %v6236 = vpack.c.b16 %v5690, %v5684
    %v6237 = vpack.c.b16 %v5691, %v5685
    %v6238 = vpack.c.b16 %v5692, %v5686
    %v6239 = vpack.c.b16 %v5693, %v5687
    %v6240 = vpack.c.b16 %v5694, %v5688
    %v6241 = vpack.c.b16 %v5695, %v5689
    %v6242 = vpack.c.b16 %v5702, %v5696
    %v6243 = vpack.c.b16 %v5703, %v5697
    %v6244 = vpack.c.b16 %v5704, %v5698
    %v6245 = vpack.c.b16 %v5705, %v5699
    %v6246 = vpack.c.b16 %v5706, %v5700
    %v6247 = vpack.c.b16 %v5707, %v5701
    %v6248 = vpack.c.b16 %v5714, %v5708
    %v6249 = vpack.c.b16 %v5715, %v5709
    %v6250 = vpack.c.b16 %v5716, %v5710
    %v6251 = vpack.c.b16 %v5717, %v5711
    %v6252 = vpack.c.b16 %v5718, %v5712
    %v6253 = vpack.c.b16 %v5719, %v5713
    %v6254 = vpack.c.b16 %v5726, %v5720
    %v6255 = vpack.c.b16 %v5727, %v5721
    %v6256 = vpack.c.b16 %v5728, %v5722
    %v6257 = vpack.c.b16 %v5729, %v5723
    %v6258 = vpack.c.b16 %v5730, %v5724
    %v6259 = vpack.c.b16 %v5731, %v5725
    %v6260 = vpack.c.b16 %v5738, %v5732
    %v6261 = vpack.c.b16 %v5739, %v5733
    %v6262 = vpack.c.b16 %v5740, %v5734
    %v6263 = vpack.c.b16 %v5741, %v5735
    %v6264 = vpack.c.b16 %v5742, %v5736
    %v6265 = vpack.c.b16 %v5743, %v5737
    %v6266 = vpack.c.b16 %v5750, %v5744
    %v6267 = vpack.c.b16 %v5751, %v5745
    %v6268 = vpack.c.b16 %v5752, %v5746
    %v6269 = vpack.c.b16 %v5753, %v5747
    %v6270 = vpack.c.b16 %v5754, %v5748
    %v6271 = vpack.c.b16 %v5755, %v5749
    %v6272 = vpack.c.b16 %v5762, %v5756
    %v6273 = vpack.c.b16 %v5763, %v5757
    %v6274 = vpack.c.b16 %v5764, %v5758
    %v6275 = vpack.c.b16 %v5765, %v5759
    %v6276 = vpack.c.b16 %v5766, %v5760
    %v6277 = vpack.c.b16 %v5767, %v5761
    %v6278 = vpack.c.b16 %v5774, %v5768
    %v6279 = vpack.c.b16 %v5775, %v5769
    %v6280 = vpack.c.b16 %v5776, %v5770
    %v6281 = vpack.c.b16 %v5777, %v5771
    %v6282 = vpack.c.b16 %v5778, %v5772
    %v6283 = vpack.c.b16 %v5779, %v5773
    %v6284 = vpack.c.b16 %v5786, %v5780
    %v6285 = vpack.c.b16 %v5787, %v5781
    %v6286 = vpack.c.b16 %v5788, %v5782
    %v6287 = vpack.c.b16 %v5789, %v5783
    %v6288 = vpack.c.b16 %v5790, %v5784
    %v6289 = vpack.c.b16 %v5791, %v5785
    %v6290 = vpack.c.b16 %v5798, %v5792
    %v6291 = vpack.c.b16 %v5799, %v5793
    %v6292 = vpack.c.b16 %v5800, %v5794
    %v6293 = vpack.c.b16 %v5801, %v5795
    %v6294 = vpack.c.b16 %v5802, %v5796
    %v6295 = vpack.c.b16 %v5803, %v5797
    %v6296 = vpack.c.b16 %v5810, %v5804
    %v6297 = vpack.c.b16 %v5811, %v5805
    %v6298 = vpack.c.b16 %v5812, %v5806
    %v6299 = vpack.c.b16 %v5813, %v5807
    %v6300 = vpack.c.b16 %v5814, %v5808
    %v6301 = vpack.c.b16 %v5815, %v5809
    %v6302 = vpack.c.b16 %v5822, %v5816
    %v6303 = vpack.c.b16 %v5823, %v5817
    %v6304 = vpack.c.b16 %v5824, %v5818
    %v6305 = vpack.c.b16 %v5825, %v5819
    %v6306 = vpack.c.b16 %v5826, %v5820
    %v6307 = vpack.c.b16 %v5827, %v5821
    %v6308 = vpack.c.b16 %v5834, %v5828
    %v6309 = vpack.c.b16 %v5835, %v5829
    %v6310 = vpack.c.b16 %v5836, %v5830
    %v6311 = vpack.c.b16 %v5837, %v5831
    %v6312 = vpack.c.b16 %v5838, %v5832
    %v6313 = vpack.c.b16 %v5839, %v5833
    %v6314 = vpack.c.b16 %v5846, %v5840
    %v6315 = vpack.c.b16 %v5847, %v5841
    %v6316 = vpack.c.b16 %v5848, %v5842
    %v6317 = vpack.c.b16 %v5849, %v5843
    %v6318 = vpack.c.b16 %v5850, %v5844
    %v6319 = vpack.c.b16 %v5851, %v5845
    %v6320 = vpack.c.b16 %v5858, %v5852
    %v6321 = vpack.c.b16 %v5859, %v5853
    %v6322 = vpack.c.b16 %v5860, %v5854
    %v6323 = vpack.c.b16 %v5861, %v5855
    %v6324 = vpack.c.b16 %v5862, %v5856
    %v6325 = vpack.c.b16 %v5863, %v5857
    %v6326 = vpack.c.b16 %v5870, %v5864
    %v6327 = vpack.c.b16 %v5871, %v5865
    %v6328 = vpack.c.b16 %v5872, %v5866
    %v6329 = vpack.c.b16 %v5873, %v5867
    %v6330 = vpack.c.b16 %v5874, %v5868
    %v6331 = vpack.c.b16 %v5875, %v5869
    %v6332 = vpack.c.b16 %v5882, %v5876
    %v6333 = vpack.c.b16 %v5883, %v5877
    %v6334 = vpack.c.b16 %v5884, %v5878
    %v6335 = vpack.c.b16 %v5885, %v5879
    %v6336 = vpack.c.b16 %v5886, %v5880
    %v6337 = vpack.c.b16 %v5887, %v5881
    %v6338 = vpack.c.b16 %v5894, %v5888
    %v6339 = vpack.c.b16 %v5895, %v5889
    %v6340 = vpack.c.b16 %v5896, %v5890
    %v6341 = vpack.c.b16 %v5897, %v5891
    %v6342 = vpack.c.b16 %v5898, %v5892
    %v6343 = vpack.c.b16 %v5899, %v5893
    %v6344 = vpack.c.b16 %v5906, %v5900
    %v6345 = vpack.c.b16 %v5907, %v5901
    %v6346 = vpack.c.b16 %v5908, %v5902
    %v6347 = vpack.c.b16 %v5909, %v5903
    %v6348 = vpack.c.b16 %v5910, %v5904
    %v6349 = vpack.c.b16 %v5911, %v5905
    %v6350 = vpack.c.b16 %v5918, %v5912
    %v6351 = vpack.c.b16 %v5919, %v5913
    %v6352 = vpack.c.b16 %v5920, %v5914
    %v6353 = vpack.c.b16 %v5921, %v5915
    %v6354 = vpack.c.b16 %v5922, %v5916
    %v6355 = vpack.c.b16 %v5923, %v5917
    %v6356 = vpack.c.b16 %v5930, %v5924
    %v6357 = vpack.c.b16 %v5931, %v5925
    %v6358 = vpack.c.b16 %v5932, %v5926
    %v6359 = vpack.c.b16 %v5933, %v5927
    %v6360 = vpack.c.b16 %v5934, %v5928
    %v6361 = vpack.c.b16 %v5935, %v5929
    %v6362 = vpack.c.b16 %v5942, %v5936
    %v6363 = vpack.c.b16 %v5943, %v5937
    %v6364 = vpack.c.b16 %v5944, %v5938
    %v6365 = vpack.c.b16 %v5945, %v5939
    %v6366 = vpack.c.b16 %v5946, %v5940
    %v6367 = vpack.c.b16 %v5947, %v5941
    %v6368 = vpack.c.b16 %v5954, %v5948
    %v6369 = vpack.c.b16 %v5955, %v5949
    %v6370 = vpack.c.b16 %v5956, %v5950
    %v6371 = vpack.c.b16 %v5957, %v5951
    %v6372 = vpack.c.b16 %v5958, %v5952
    %v6373 = vpack.c.b16 %v5959, %v5953
    %v6374 = vpack.c.b16 %v5966, %v5960
    %v6375 = vpack.c.b16 %v5967, %v5961
    %v6376 = vpack.c.b16 %v5968, %v5962
    %v6377 = vpack.c.b16 %v5969, %v5963
    %v6378 = vpack.c.b16 %v5970, %v5964
    %v6379 = vpack.c.b16 %v5971, %v5965
    %v6380 = vpack.c.b16 %v5978, %v5972
    %v6381 = vpack.c.b16 %v5979, %v5973
    %v6382 = vpack.c.b16 %v5980, %v5974
    %v6383 = vpack.c.b16 %v5981, %v5975
    %v6384 = vpack.c.b16 %v5982, %v5976
    %v6385 = vpack.c.b16 %v5983, %v5977
    %v6386 = vpack.c.b16 %v5990, %v5984
    %v6387 = vpack.c.b16 %v5991, %v5985
    %v6388 = vpack.c.b16 %v5992, %v5986
    %v6389 = vpack.c.b16 %v5993, %v5987
    %v6390 = vpack.c.b16 %v5994, %v5988
    %v6391 = vpack.c.b16 %v5995, %v5989
    %v6392 = vpack.c.b16 %v6002, %v5996
    %v6393 = vpack.c.b16 %v6003, %v5997
    %v6394 = vpack.c.b16 %v6004, %v5998
    %v6395 = vpack.c.b16 %v6005, %v5999
    %v6396 = vpack.c.b16 %v6006, %v6000
    %v6397 = vpack.c.b16 %v6007, %v6001
    %v6398 = vpack.c.b16 %v6014, %v6008
    %v6399 = vpack.c.b16 %v6015, %v6009
    %v6400 = vpack.c.b16 %v6016, %v6010
    %v6401 = vpack.c.b16 %v6017, %v6011
    %v6402 = vpack.c.b16 %v6018, %v6012
    %v6403 = vpack.c.b16 %v6019, %v6013
    %v6404 = vpack.c.b16 %v6026, %v6020
    %v6405 = vpack.c.b16 %v6027, %v6021
    %v6406 = vpack.c.b16 %v6028, %v6022
    %v6407 = vpack.c.b16 %v6029, %v6023
    %v6408 = vpack.c.b16 %v6030, %v6024
    %v6409 = vpack.c.b16 %v6031, %v6025
    %v6410 = vpack.c.b16 %v6038, %v6032
    %v6411 = vpack.c.b16 %v6039, %v6033
    %v6412 = vpack.c.b16 %v6040, %v6034
    %v6413 = vpack.c.b16 %v6041, %v6035
    %v6414 = vpack.c.b16 %v6042, %v6036
    %v6415 = vpack.c.b16 %v6043, %v6037
    %v6416 = vpack.c.b16 %v6050, %v6044
    %v6417 = vpack.c.b16 %v6051, %v6045
    %v6418 = vpack.c.b16 %v6052, %v6046
    %v6419 = vpack.c.b16 %v6053, %v6047
    %v6420 = vpack.c.b16 %v6054, %v6048
    %v6421 = vpack.c.b16 %v6055, %v6049
    %v6422 = vpack.c.b16 %v6062, %v6056
    %v6423 = vpack.c.b16 %v6063, %v6057
    %v6424 = vpack.c.b16 %v6064, %v6058
    %v6425 = vpack.c.b16 %v6065, %v6059
    %v6426 = vpack.c.b16 %v6066, %v6060
    %v6427 = vpack.c.b16 %v6067, %v6061
    %v6428 = vpack.c.b16 %v6074, %v6068
    %v6429 = vpack.c.b16 %v6075, %v6069
    %v6430 = vpack.c.b16 %v6076, %v6070
    %v6431 = vpack.c.b16 %v6077, %v6071
    %v6432 = vpack.c.b16 %v6078, %v6072
    %v6433 = vpack.c.b16 %v6079, %v6073
    %v6434 = vpack.c.b16 %v6086, %v6080
    %v6435 = vpack.c.b16 %v6087, %v6081
    %v6436 = vpack.c.b16 %v6088, %v6082
    %v6437 = vpack.c.b16 %v6089, %v6083
    %v6438 = vpack.c.b16 %v6090, %v6084
    %v6439 = vpack.c.b16 %v6091, %v6085
    %v6440 = vpack.c.b16 %v6098, %v6092
    %v6441 = vpack.c.b16 %v6099, %v6093
    %v6442 = vpack.c.b16 %v6100, %v6094
    %v6443 = vpack.c.b16 %v6101, %v6095
    %v6444 = vpack.c.b16 %v6102, %v6096
    %v6445 = vpack.c.b16 %v6103, %v6097
    %v6446 = vpack.c.b16 %v6110, %v6104
    %v6447 = vpack.c.b16 %v6111, %v6105
    %v6448 = vpack.c.b16 %v6112, %v6106
    %v6449 = vpack.c.b16 %v6113, %v6107
    %v6450 = vpack.c.b16 %v6114, %v6108
    %v6451 = vpack.c.b16 %v6115, %v6109
    %v6452 = vpack.c.b16 %v6122, %v6116
    %v6453 = vpack.c.b16 %v6123, %v6117
    %v6454 = vpack.c.b16 %v6124, %v6118
    %v6455 = vpack.c.b16 %v6125, %v6119
    %v6456 = vpack.c.b16 %v6126, %v6120
    %v6457 = vpack.c.b16 %v6127, %v6121
    %v6458 = vpack.c.b16 %v6134, %v6128
    %v6459 = vpack.c.b16 %v6135, %v6129
    %v6460 = vpack.c.b16 %v6136, %v6130
    %v6461 = vpack.c.b16 %v6137, %v6131
    %v6462 = vpack.c.b16 %v6138, %v6132
    %v6463 = vpack.c.b16 %v6139, %v6133
    %v6464 = vpack.c.b16 %v6146, %v6140
    %v6465 = vpack.c.b16 %v6147, %v6141
    %v6466 = vpack.c.b16 %v6148, %v6142
    %v6467 = vpack.c.b16 %v6149, %v6143
    %v6468 = vpack.c.b16 %v6150, %v6144
    %v6469 = vpack.c.b16 %v6151, %v6145
    %v6470 = vpack.c.b16 %v6158, %v6152
    %v6471 = vpack.c.b16 %v6159, %v6153
    %v6472 = vpack.c.b16 %v6160, %v6154
    %v6473 = vpack.c.b16 %v6161, %v6155
    %v6474 = vpack.c.b16 %v6162, %v6156
    %v6475 = vpack.c.b16 %v6163, %v6157
    %v6476 = vpack.c.b16 %v6170, %v6164
    %v6477 = vpack.c.b16 %v6171, %v6165
    %v6478 = vpack.c.b16 %v6172, %v6166
    %v6479 = vpack.c.b16 %v6173, %v6167
    %v6480 = vpack.c.b16 %v6174, %v6168
    %v6481 = vpack.c.b16 %v6175, %v6169
    %v6482 = vpack.c.b16 %v6182, %v6176
    %v6483 = vpack.c.b16 %v6183, %v6177
    %v6484 = vpack.c.b16 %v6184, %v6178
    %v6485 = vpack.c.b16 %v6185, %v6179
    %v6486 = vpack.c.b16 %v6186, %v6180
    %v6487 = vpack.c.b16 %v6187, %v6181
    %v6488 = vpack.c.b16 %v6194, %v6188
    %v6489 = vpack.c.b16 %v6195, %v6189
    %v6490 = vpack.c.b16 %v6196, %v6190
    %v6491 = vpack.c.b16 %v6197, %v6191
    %v6492 = vpack.c.b16 %v6198, %v6192
    %v6493 = vpack.c.b16 %v6199, %v6193
    %v6494 = vpack.c.b16 %v6206, %v6200
    %v6495 = vpack.c.b16 %v6207, %v6201
    %v6496 = vpack.c.b16 %v6208, %v6202
    %v6497 = vpack.c.b16 %v6209, %v6203
    %v6498 = vpack.c.b16 %v6210, %v6204
    %v6499 = vpack.c.b16 %v6211, %v6205
    %6788 = vmatpush.bf16.msra.mxu0 %v6254
    %6789 = vmatpush.bf16.msra.mxu0 %v6248
    %6790 = vmatpush.bf16.msra.mxu0 %v6242
    %6791 = vmatpush.bf16.msra.mxu0 %v6236
    %6792 = vmatpush.bf16.msra.mxu0 %v6230
    %6793 = vmatpush.bf16.msra.mxu0 %v6224
    %6794 = vmatpush.bf16.msra.mxu0 %v6218
    %6795 = vmatpush.bf16.msra.mxu0 %v6212
    %6796 = vmatmul.bf16.gmra.mxu0 %v5054
    %v6797 = vpop.f32.mrf.mxu0
    %v6798 = vadd.f32 0.0, %v6797
    %v6799 = vpop.f32.mrf.mxu0
    %6800 = vdwg.mxu0
    %6801 = vmatpush.bf16.msra.mxu0 %v6302
    %6802 = vmatpush.bf16.msra.mxu0 %v6296
    %6803 = vmatpush.bf16.msra.mxu0 %v6290
    %6804 = vmatpush.bf16.msra.mxu0 %v6284
    %6805 = vmatpush.bf16.msra.mxu0 %v6278
    %6806 = vmatpush.bf16.msra.mxu0 %v6272
    %6807 = vmatpush.bf16.msra.mxu0 %v6266
    %6808 = vmatpush.bf16.msra.mxu0 %v6260
    %6809 = vmatmul.bf16.gmra.mxu0 %v5055
    %v6810 = vpop.f32.mrf.mxu0
    %v6811 = vadd.f32 %v6798, %v6810
    %v6812 = vpop.f32.mrf.mxu0
    %6813 = vdwg.mxu0
    %6814 = vmatpush.bf16.msra.mxu0 %v6350
    %6815 = vmatpush.bf16.msra.mxu0 %v6344
    %6816 = vmatpush.bf16.msra.mxu0 %v6338
    %6817 = vmatpush.bf16.msra.mxu0 %v6332
    %6818 = vmatpush.bf16.msra.mxu0 %v6326
    %6819 = vmatpush.bf16.msra.mxu0 %v6320
    %6820 = vmatpush.bf16.msra.mxu0 %v6314
    %6821 = vmatpush.bf16.msra.mxu0 %v6308
    %6822 = vmatmul.bf16.gmra.mxu0 %v5056
    %v6823 = vpop.f32.mrf.mxu0
    %v6824 = vadd.f32 %v6811, %v6823
    %v6825 = vpop.f32.mrf.mxu0
    %6826 = vdwg.mxu0
    %6827 = vmatpush.bf16.msra.mxu0 %v6398
    %6828 = vmatpush.bf16.msra.mxu0 %v6392
    %6829 = vmatpush.bf16.msra.mxu0 %v6386
    %6830 = vmatpush.bf16.msra.mxu0 %v6380
    %6831 = vmatpush.bf16.msra.mxu0 %v6374
    %6832 = vmatpush.bf16.msra.mxu0 %v6368
    %6833 = vmatpush.bf16.msra.mxu0 %v6362
    %6834 = vmatpush.bf16.msra.mxu0 %v6356
    %6835 = vmatmul.bf16.gmra.mxu0 %v5057
    %v6836 = vpop.f32.mrf.mxu0
    %v6837 = vadd.f32 %v6824, %v6836
    %v6838 = vpop.f32.mrf.mxu0
    %6839 = vdwg.mxu0
    %6840 = vmatpush.bf16.msra.mxu0 %v6446
    %6841 = vmatpush.bf16.msra.mxu0 %v6440
    %6842 = vmatpush.bf16.msra.mxu0 %v6434
    %6843 = vmatpush.bf16.msra.mxu0 %v6428
    %6844 = vmatpush.bf16.msra.mxu0 %v6422
    %6845 = vmatpush.bf16.msra.mxu0 %v6416
    %6846 = vmatpush.bf16.msra.mxu0 %v6410
    %6847 = vmatpush.bf16.msra.mxu0 %v6404
    %6848 = vmatmul.bf16.gmra.mxu0 %v5058
    %v6849 = vpop.f32.mrf.mxu0
    %v6850 = vadd.f32 %v6837, %v6849
    %v6851 = vpop.f32.mrf.mxu0
    %6852 = vdwg.mxu0
    %6853 = vmatpush.bf16.msra.mxu0 %v6494
    %6854 = vmatpush.bf16.msra.mxu0 %v6488
    %6855 = vmatpush.bf16.msra.mxu0 %v6482
    %6856 = vmatpush.bf16.msra.mxu0 %v6476
    %6857 = vmatpush.bf16.msra.mxu0 %v6470
    %6858 = vmatpush.bf16.msra.mxu0 %v6464
    %6859 = vmatpush.bf16.msra.mxu0 %v6458
    %6860 = vmatpush.bf16.msra.mxu0 %v6452
    %6861 = vmatmul.bf16.gmra.mxu0 %v5059
    %v6862 = vpop.f32.mrf.mxu0
    %v6863 = vadd.f32 %v6850, %v6862
    %v6864 = vpop.f32.mrf.mxu0
    %6865 = vdwg.mxu0
    %6866 = vmatpush.bf16.msra.mxu0 %v6255
    %6867 = vmatpush.bf16.msra.mxu0 %v6249
    %6868 = vmatpush.bf16.msra.mxu0 %v6243
    %6869 = vmatpush.bf16.msra.mxu0 %v6237
    %6870 = vmatpush.bf16.msra.mxu0 %v6231
    %6871 = vmatpush.bf16.msra.mxu0 %v6225
    %6872 = vmatpush.bf16.msra.mxu0 %v6219
    %6873 = vmatpush.bf16.msra.mxu0 %v6213
    %6874 = vmatmul.bf16.gmra.mxu0 %v5054
    %v6875 = vpop.f32.mrf.mxu0
    %v6876 = vadd.f32 0.0, %v6875
    %v6877 = vpop.f32.mrf.mxu0
    %6878 = vdwg.mxu0
    %6879 = vmatpush.bf16.msra.mxu0 %v6303
    %6880 = vmatpush.bf16.msra.mxu0 %v6297
    %6881 = vmatpush.bf16.msra.mxu0 %v6291
    %6882 = vmatpush.bf16.msra.mxu0 %v6285
    %6883 = vmatpush.bf16.msra.mxu0 %v6279
    %6884 = vmatpush.bf16.msra.mxu0 %v6273
    %6885 = vmatpush.bf16.msra.mxu0 %v6267
    %6886 = vmatpush.bf16.msra.mxu0 %v6261
    %6887 = vmatmul.bf16.gmra.mxu0 %v5055
    %v6888 = vpop.f32.mrf.mxu0
    %v6889 = vadd.f32 %v6876, %v6888
    %v6890 = vpop.f32.mrf.mxu0
    %6891 = vdwg.mxu0
    %6892 = vmatpush.bf16.msra.mxu0 %v6351
    %6893 = vmatpush.bf16.msra.mxu0 %v6345
    %6894 = vmatpush.bf16.msra.mxu0 %v6339
    %6895 = vmatpush.bf16.msra.mxu0 %v6333
    %6896 = vmatpush.bf16.msra.mxu0 %v6327
    %6897 = vmatpush.bf16.msra.mxu0 %v6321
    %6898 = vmatpush.bf16.msra.mxu0 %v6315
    %6899 = vmatpush.bf16.msra.mxu0 %v6309
    %6900 = vmatmul.bf16.gmra.mxu0 %v5056
    %v6901 = vpop.f32.mrf.mxu0
    %v6902 = vadd.f32 %v6889, %v6901
    %v6903 = vpop.f32.mrf.mxu0
    %6904 = vdwg.mxu0
    %6905 = vmatpush.bf16.msra.mxu0 %v6399
    %6906 = vmatpush.bf16.msra.mxu0 %v6393
    %6907 = vmatpush.bf16.msra.mxu0 %v6387
    %6908 = vmatpush.bf16.msra.mxu0 %v6381
    %6909 = vmatpush.bf16.msra.mxu0 %v6375
    %6910 = vmatpush.bf16.msra.mxu0 %v6369
    %6911 = vmatpush.bf16.msra.mxu0 %v6363
    %6912 = vmatpush.bf16.msra.mxu0 %v6357
    %6913 = vmatmul.bf16.gmra.mxu0 %v5057
    %v6914 = vpop.f32.mrf.mxu0
    %v6915 = vadd.f32 %v6902, %v6914
    %v6916 = vpop.f32.mrf.mxu0
    %6917 = vdwg.mxu0
    %6918 = vmatpush.bf16.msra.mxu0 %v6447
    %6919 = vmatpush.bf16.msra.mxu0 %v6441
    %6920 = vmatpush.bf16.msra.mxu0 %v6435
    %6921 = vmatpush.bf16.msra.mxu0 %v6429
    %6922 = vmatpush.bf16.msra.mxu0 %v6423
    %6923 = vmatpush.bf16.msra.mxu0 %v6417
    %6924 = vmatpush.bf16.msra.mxu0 %v6411
    %6925 = vmatpush.bf16.msra.mxu0 %v6405
    %6926 = vmatmul.bf16.gmra.mxu0 %v5058
    %v6927 = vpop.f32.mrf.mxu0
    %v6928 = vadd.f32 %v6915, %v6927
    %v6929 = vpop.f32.mrf.mxu0
    %6930 = vdwg.mxu0
    %6931 = vmatpush.bf16.msra.mxu0 %v6495
    %6932 = vmatpush.bf16.msra.mxu0 %v6489
    %6933 = vmatpush.bf16.msra.mxu0 %v6483
    %6934 = vmatpush.bf16.msra.mxu0 %v6477
    %6935 = vmatpush.bf16.msra.mxu0 %v6471
    %6936 = vmatpush.bf16.msra.mxu0 %v6465
    %6937 = vmatpush.bf16.msra.mxu0 %v6459
    %6938 = vmatpush.bf16.msra.mxu0 %v6453
    %6939 = vmatmul.bf16.gmra.mxu0 %v5059
    %v6940 = vpop.f32.mrf.mxu0
    %v6941 = vadd.f32 %v6928, %v6940
    %v6942 = vpop.f32.mrf.mxu0
    %6943 = vdwg.mxu0
    %6944 = vmatpush.bf16.msra.mxu0 %v6256
    %6945 = vmatpush.bf16.msra.mxu0 %v6250
    %6946 = vmatpush.bf16.msra.mxu0 %v6244
    %6947 = vmatpush.bf16.msra.mxu0 %v6238
    %6948 = vmatpush.bf16.msra.mxu0 %v6232
    %6949 = vmatpush.bf16.msra.mxu0 %v6226
    %6950 = vmatpush.bf16.msra.mxu0 %v6220
    %6951 = vmatpush.bf16.msra.mxu0 %v6214
    %6952 = vmatmul.bf16.gmra.mxu0 %v5054
    %v6953 = vpop.f32.mrf.mxu0
    %v6954 = vadd.f32 0.0, %v6953
    %v6955 = vpop.f32.mrf.mxu0
    %6956 = vdwg.mxu0
    %6957 = vmatpush.bf16.msra.mxu0 %v6304
    %6958 = vmatpush.bf16.msra.mxu0 %v6298
    %6959 = vmatpush.bf16.msra.mxu0 %v6292
    %6960 = vmatpush.bf16.msra.mxu0 %v6286
    %6961 = vmatpush.bf16.msra.mxu0 %v6280
    %6962 = vmatpush.bf16.msra.mxu0 %v6274
    %6963 = vmatpush.bf16.msra.mxu0 %v6268
    %6964 = vmatpush.bf16.msra.mxu0 %v6262
    %6965 = vmatmul.bf16.gmra.mxu0 %v5055
    %v6966 = vpop.f32.mrf.mxu0
    %v6967 = vadd.f32 %v6954, %v6966
    %v6968 = vpop.f32.mrf.mxu0
    %6969 = vdwg.mxu0
    %6970 = vmatpush.bf16.msra.mxu0 %v6352
    %6971 = vmatpush.bf16.msra.mxu0 %v6346
    %6972 = vmatpush.bf16.msra.mxu0 %v6340
    %6973 = vmatpush.bf16.msra.mxu0 %v6334
    %6974 = vmatpush.bf16.msra.mxu0 %v6328
    %6975 = vmatpush.bf16.msra.mxu0 %v6322
    %6976 = vmatpush.bf16.msra.mxu0 %v6316
    %6977 = vmatpush.bf16.msra.mxu0 %v6310
    %6978 = vmatmul.bf16.gmra.mxu0 %v5056
    %v6979 = vpop.f32.mrf.mxu0
    %v6980 = vadd.f32 %v6967, %v6979
    %v6981 = vpop.f32.mrf.mxu0
    %6982 = vdwg.mxu0
    %6983 = vmatpush.bf16.msra.mxu0 %v6400
    %6984 = vmatpush.bf16.msra.mxu0 %v6394
    %6985 = vmatpush.bf16.msra.mxu0 %v6388
    %6986 = vmatpush.bf16.msra.mxu0 %v6382
    %6987 = vmatpush.bf16.msra.mxu0 %v6376
    %6988 = vmatpush.bf16.msra.mxu0 %v6370
    %6989 = vmatpush.bf16.msra.mxu0 %v6364
    %6990 = vmatpush.bf16.msra.mxu0 %v6358
    %6991 = vmatmul.bf16.gmra.mxu0 %v5057
    %v6992 = vpop.f32.mrf.mxu0
    %v6993 = vadd.f32 %v6980, %v6992
    %v6994 = vpop.f32.mrf.mxu0
    %6995 = vdwg.mxu0
    %6996 = vmatpush.bf16.msra.mxu0 %v6448
    %6997 = vmatpush.bf16.msra.mxu0 %v6442
    %6998 = vmatpush.bf16.msra.mxu0 %v6436
    %6999 = vmatpush.bf16.msra.mxu0 %v6430
    %7000 = vmatpush.bf16.msra.mxu0 %v6424
    %7001 = vmatpush.bf16.msra.mxu0 %v6418
    %7002 = vmatpush.bf16.msra.mxu0 %v6412
    %7003 = vmatpush.bf16.msra.mxu0 %v6406
    %7004 = vmatmul.bf16.gmra.mxu0 %v5058
    %v7005 = vpop.f32.mrf.mxu0
    %v7006 = vadd.f32 %v6993, %v7005
    %v7007 = vpop.f32.mrf.mxu0
    %7008 = vdwg.mxu0
    %7009 = vmatpush.bf16.msra.mxu0 %v6496
    %7010 = vmatpush.bf16.msra.mxu0 %v6490
    %7011 = vmatpush.bf16.msra.mxu0 %v6484
    %7012 = vmatpush.bf16.msra.mxu0 %v6478
    %7013 = vmatpush.bf16.msra.mxu0 %v6472
    %7014 = vmatpush.bf16.msra.mxu0 %v6466
    %7015 = vmatpush.bf16.msra.mxu0 %v6460
    %7016 = vmatpush.bf16.msra.mxu0 %v6454
    %7017 = vmatmul.bf16.gmra.mxu0 %v5059
    %v7018 = vpop.f32.mrf.mxu0
    %v7019 = vadd.f32 %v7006, %v7018
    %v7020 = vpop.f32.mrf.mxu0
    %7021 = vdwg.mxu0
    %7022 = vmatpush.bf16.msra.mxu0 %v6257
    %7023 = vmatpush.bf16.msra.mxu0 %v6251
    %7024 = vmatpush.bf16.msra.mxu0 %v6245
    %7025 = vmatpush.bf16.msra.mxu0 %v6239
    %7026 = vmatpush.bf16.msra.mxu0 %v6233
    %7027 = vmatpush.bf16.msra.mxu0 %v6227
    %7028 = vmatpush.bf16.msra.mxu0 %v6221
    %7029 = vmatpush.bf16.msra.mxu0 %v6215
    %7030 = vmatmul.bf16.gmra.mxu0 %v5054
    %v7031 = vpop.f32.mrf.mxu0
    %v7032 = vadd.f32 0.0, %v7031
    %v7033 = vpop.f32.mrf.mxu0
    %7034 = vdwg.mxu0
    %7035 = vmatpush.bf16.msra.mxu0 %v6305
    %7036 = vmatpush.bf16.msra.mxu0 %v6299
    %7037 = vmatpush.bf16.msra.mxu0 %v6293
    %7038 = vmatpush.bf16.msra.mxu0 %v6287
    %7039 = vmatpush.bf16.msra.mxu0 %v6281
    %7040 = vmatpush.bf16.msra.mxu0 %v6275
    %7041 = vmatpush.bf16.msra.mxu0 %v6269
    %7042 = vmatpush.bf16.msra.mxu0 %v6263
    %7043 = vmatmul.bf16.gmra.mxu0 %v5055
    %v7044 = vpop.f32.mrf.mxu0
    %v7045 = vadd.f32 %v7032, %v7044
    %v7046 = vpop.f32.mrf.mxu0
    %7047 = vdwg.mxu0
    %7048 = vmatpush.bf16.msra.mxu0 %v6353
    %7049 = vmatpush.bf16.msra.mxu0 %v6347
    %7050 = vmatpush.bf16.msra.mxu0 %v6341
    %7051 = vmatpush.bf16.msra.mxu0 %v6335
    %7052 = vmatpush.bf16.msra.mxu0 %v6329
    %7053 = vmatpush.bf16.msra.mxu0 %v6323
    %7054 = vmatpush.bf16.msra.mxu0 %v6317
    %7055 = vmatpush.bf16.msra.mxu0 %v6311
    %7056 = vmatmul.bf16.gmra.mxu0 %v5056
    %v7057 = vpop.f32.mrf.mxu0
    %v7058 = vadd.f32 %v7045, %v7057
    %v7059 = vpop.f32.mrf.mxu0
    %7060 = vdwg.mxu0
    %7061 = vmatpush.bf16.msra.mxu0 %v6401
    %7062 = vmatpush.bf16.msra.mxu0 %v6395
    %7063 = vmatpush.bf16.msra.mxu0 %v6389
    %7064 = vmatpush.bf16.msra.mxu0 %v6383
    %7065 = vmatpush.bf16.msra.mxu0 %v6377
    %7066 = vmatpush.bf16.msra.mxu0 %v6371
    %7067 = vmatpush.bf16.msra.mxu0 %v6365
    %7068 = vmatpush.bf16.msra.mxu0 %v6359
    %7069 = vmatmul.bf16.gmra.mxu0 %v5057
    %v7070 = vpop.f32.mrf.mxu0
    %v7071 = vadd.f32 %v7058, %v7070
    %v7072 = vpop.f32.mrf.mxu0
    %7073 = vdwg.mxu0
    %7074 = vmatpush.bf16.msra.mxu0 %v6449
    %7075 = vmatpush.bf16.msra.mxu0 %v6443
    %7076 = vmatpush.bf16.msra.mxu0 %v6437
    %7077 = vmatpush.bf16.msra.mxu0 %v6431
    %7078 = vmatpush.bf16.msra.mxu0 %v6425
    %7079 = vmatpush.bf16.msra.mxu0 %v6419
    %7080 = vmatpush.bf16.msra.mxu0 %v6413
    %7081 = vmatpush.bf16.msra.mxu0 %v6407
    %7082 = vmatmul.bf16.gmra.mxu0 %v5058
    %v7083 = vpop.f32.mrf.mxu0
    %v7084 = vadd.f32 %v7071, %v7083
    %v7085 = vpop.f32.mrf.mxu0
    %7086 = vdwg.mxu0
    %7087 = vmatpush.bf16.msra.mxu0 %v6497
    %7088 = vmatpush.bf16.msra.mxu0 %v6491
    %7089 = vmatpush.bf16.msra.mxu0 %v6485
    %7090 = vmatpush.bf16.msra.mxu0 %v6479
    %7091 = vmatpush.bf16.msra.mxu0 %v6473
    %7092 = vmatpush.bf16.msra.mxu0 %v6467
    %7093 = vmatpush.bf16.msra.mxu0 %v6461
    %7094 = vmatpush.bf16.msra.mxu0 %v6455
    %7095 = vmatmul.bf16.gmra.mxu0 %v5059
    %v7096 = vpop.f32.mrf.mxu0
    %v7097 = vadd.f32 %v7084, %v7096
    %v7098 = vpop.f32.mrf.mxu0
    %7099 = vdwg.mxu0
    %7100 = vmatpush.bf16.msra.mxu0 %v6258
    %7101 = vmatpush.bf16.msra.mxu0 %v6252
    %7102 = vmatpush.bf16.msra.mxu0 %v6246
    %7103 = vmatpush.bf16.msra.mxu0 %v6240
    %7104 = vmatpush.bf16.msra.mxu0 %v6234
    %7105 = vmatpush.bf16.msra.mxu0 %v6228
    %7106 = vmatpush.bf16.msra.mxu0 %v6222
    %7107 = vmatpush.bf16.msra.mxu0 %v6216
    %7108 = vmatmul.bf16.gmra.mxu0 %v5054
    %v7109 = vpop.f32.mrf.mxu0
    %v7110 = vadd.f32 0.0, %v7109
    %v7111 = vpop.f32.mrf.mxu0
    %7112 = vdwg.mxu0
    %7113 = vmatpush.bf16.msra.mxu0 %v6306
    %7114 = vmatpush.bf16.msra.mxu0 %v6300
    %7115 = vmatpush.bf16.msra.mxu0 %v6294
    %7116 = vmatpush.bf16.msra.mxu0 %v6288
    %7117 = vmatpush.bf16.msra.mxu0 %v6282
    %7118 = vmatpush.bf16.msra.mxu0 %v6276
    %7119 = vmatpush.bf16.msra.mxu0 %v6270
    %7120 = vmatpush.bf16.msra.mxu0 %v6264
    %7121 = vmatmul.bf16.gmra.mxu0 %v5055
    %v7122 = vpop.f32.mrf.mxu0
    %v7123 = vadd.f32 %v7110, %v7122
    %v7124 = vpop.f32.mrf.mxu0
    %7125 = vdwg.mxu0
    %7126 = vmatpush.bf16.msra.mxu0 %v6354
    %7127 = vmatpush.bf16.msra.mxu0 %v6348
    %7128 = vmatpush.bf16.msra.mxu0 %v6342
    %7129 = vmatpush.bf16.msra.mxu0 %v6336
    %7130 = vmatpush.bf16.msra.mxu0 %v6330
    %7131 = vmatpush.bf16.msra.mxu0 %v6324
    %7132 = vmatpush.bf16.msra.mxu0 %v6318
    %7133 = vmatpush.bf16.msra.mxu0 %v6312
    %7134 = vmatmul.bf16.gmra.mxu0 %v5056
    %v7135 = vpop.f32.mrf.mxu0
    %v7136 = vadd.f32 %v7123, %v7135
    %v7137 = vpop.f32.mrf.mxu0
    %7138 = vdwg.mxu0
    %7139 = vmatpush.bf16.msra.mxu0 %v6402
    %7140 = vmatpush.bf16.msra.mxu0 %v6396
    %7141 = vmatpush.bf16.msra.mxu0 %v6390
    %7142 = vmatpush.bf16.msra.mxu0 %v6384
    %7143 = vmatpush.bf16.msra.mxu0 %v6378
    %7144 = vmatpush.bf16.msra.mxu0 %v6372
    %7145 = vmatpush.bf16.msra.mxu0 %v6366
    %7146 = vmatpush.bf16.msra.mxu0 %v6360
    %7147 = vmatmul.bf16.gmra.mxu0 %v5057
    %v7148 = vpop.f32.mrf.mxu0
    %v7149 = vadd.f32 %v7136, %v7148
    %v7150 = vpop.f32.mrf.mxu0
    %7151 = vdwg.mxu0
    %7152 = vmatpush.bf16.msra.mxu0 %v6450
    %7153 = vmatpush.bf16.msra.mxu0 %v6444
    %7154 = vmatpush.bf16.msra.mxu0 %v6438
    %7155 = vmatpush.bf16.msra.mxu0 %v6432
    %7156 = vmatpush.bf16.msra.mxu0 %v6426
    %7157 = vmatpush.bf16.msra.mxu0 %v6420
    %7158 = vmatpush.bf16.msra.mxu0 %v6414
    %7159 = vmatpush.bf16.msra.mxu0 %v6408
    %7160 = vmatmul.bf16.gmra.mxu0 %v5058
    %v7161 = vpop.f32.mrf.mxu0
    %v7162 = vadd.f32 %v7149, %v7161
    %v7163 = vpop.f32.mrf.mxu0
    %7164 = vdwg.mxu0
    %7165 = vmatpush.bf16.msra.mxu0 %v6498
    %7166 = vmatpush.bf16.msra.mxu0 %v6492
    %7167 = vmatpush.bf16.msra.mxu0 %v6486
    %7168 = vmatpush.bf16.msra.mxu0 %v6480
    %7169 = vmatpush.bf16.msra.mxu0 %v6474
    %7170 = vmatpush.bf16.msra.mxu0 %v6468
    %7171 = vmatpush.bf16.msra.mxu0 %v6462
    %7172 = vmatpush.bf16.msra.mxu0 %v6456
    %7173 = vmatmul.bf16.gmra.mxu0 %v5059
    %v7174 = vpop.f32.mrf.mxu0
    %v7175 = vadd.f32 %v7162, %v7174
    %v7176 = vpop.f32.mrf.mxu0
    %7177 = vdwg.mxu0
    %7178 = vmatpush.bf16.msra.mxu0 %v6259
    %7179 = vmatpush.bf16.msra.mxu0 %v6253
    %7180 = vmatpush.bf16.msra.mxu0 %v6247
    %7181 = vmatpush.bf16.msra.mxu0 %v6241
    %7182 = vmatpush.bf16.msra.mxu0 %v6235
    %7183 = vmatpush.bf16.msra.mxu0 %v6229
    %7184 = vmatpush.bf16.msra.mxu0 %v6223
    %7185 = vmatpush.bf16.msra.mxu0 %v6217
    %7186 = vmatmul.bf16.gmra.mxu0 %v5054
    %v7187 = vpop.f32.mrf.mxu0
    %v7188 = vadd.f32 0.0, %v7187
    %v7189 = vpop.f32.mrf.mxu0
    %7190 = vdwg.mxu0
    %7191 = vmatpush.bf16.msra.mxu0 %v6307
    %7192 = vmatpush.bf16.msra.mxu0 %v6301
    %7193 = vmatpush.bf16.msra.mxu0 %v6295
    %7194 = vmatpush.bf16.msra.mxu0 %v6289
    %7195 = vmatpush.bf16.msra.mxu0 %v6283
    %7196 = vmatpush.bf16.msra.mxu0 %v6277
    %7197 = vmatpush.bf16.msra.mxu0 %v6271
    %7198 = vmatpush.bf16.msra.mxu0 %v6265
    %7199 = vmatmul.bf16.gmra.mxu0 %v5055
    %v7200 = vpop.f32.mrf.mxu0
    %v7201 = vadd.f32 %v7188, %v7200
    %v7202 = vpop.f32.mrf.mxu0
    %7203 = vdwg.mxu0
    %7204 = vmatpush.bf16.msra.mxu0 %v6355
    %7205 = vmatpush.bf16.msra.mxu0 %v6349
    %7206 = vmatpush.bf16.msra.mxu0 %v6343
    %7207 = vmatpush.bf16.msra.mxu0 %v6337
    %7208 = vmatpush.bf16.msra.mxu0 %v6331
    %7209 = vmatpush.bf16.msra.mxu0 %v6325
    %7210 = vmatpush.bf16.msra.mxu0 %v6319
    %7211 = vmatpush.bf16.msra.mxu0 %v6313
    %7212 = vmatmul.bf16.gmra.mxu0 %v5056
    %v7213 = vpop.f32.mrf.mxu0
    %v7214 = vadd.f32 %v7201, %v7213
    %v7215 = vpop.f32.mrf.mxu0
    %7216 = vdwg.mxu0
    %7217 = vmatpush.bf16.msra.mxu0 %v6403
    %7218 = vmatpush.bf16.msra.mxu0 %v6397
    %7219 = vmatpush.bf16.msra.mxu0 %v6391
    %7220 = vmatpush.bf16.msra.mxu0 %v6385
    %7221 = vmatpush.bf16.msra.mxu0 %v6379
    %7222 = vmatpush.bf16.msra.mxu0 %v6373
    %7223 = vmatpush.bf16.msra.mxu0 %v6367
    %7224 = vmatpush.bf16.msra.mxu0 %v6361
    %7225 = vmatmul.bf16.gmra.mxu0 %v5057
    %v7226 = vpop.f32.mrf.mxu0
    %v7227 = vadd.f32 %v7214, %v7226
    %v7228 = vpop.f32.mrf.mxu0
    %7229 = vdwg.mxu0
    %7230 = vmatpush.bf16.msra.mxu0 %v6451
    %7231 = vmatpush.bf16.msra.mxu0 %v6445
    %7232 = vmatpush.bf16.msra.mxu0 %v6439
    %7233 = vmatpush.bf16.msra.mxu0 %v6433
    %7234 = vmatpush.bf16.msra.mxu0 %v6427
    %7235 = vmatpush.bf16.msra.mxu0 %v6421
    %7236 = vmatpush.bf16.msra.mxu0 %v6415
    %7237 = vmatpush.bf16.msra.mxu0 %v6409
    %7238 = vmatmul.bf16.gmra.mxu0 %v5058
    %v7239 = vpop.f32.mrf.mxu0
    %v7240 = vadd.f32 %v7227, %v7239
    %v7241 = vpop.f32.mrf.mxu0
    %7242 = vdwg.mxu0
    %7243 = vmatpush.bf16.msra.mxu0 %v6499
    %7244 = vmatpush.bf16.msra.mxu0 %v6493
    %7245 = vmatpush.bf16.msra.mxu0 %v6487
    %7246 = vmatpush.bf16.msra.mxu0 %v6481
    %7247 = vmatpush.bf16.msra.mxu0 %v6475
    %7248 = vmatpush.bf16.msra.mxu0 %v6469
    %7249 = vmatpush.bf16.msra.mxu0 %v6463
    %7250 = vmatpush.bf16.msra.mxu0 %v6457
    %7251 = vmatmul.bf16.gmra.mxu0 %v5059
    %v7252 = vpop.f32.mrf.mxu0
    %v7253 = vadd.f32 %v7240, %v7252
    %v7254 = vpop.f32.mrf.mxu0
    %7255 = vdwg.mxu0
    %v7257 = vperm.slane %v5053, 0
    %v7258 = vperm.slane %v5053, 1
    %v7259 = vperm.slane %v5053, 2
    %v7260 = vperm.slane %v5053, 3
    %v7261 = vperm.slane %v5053, 4
    %v7262 = vperm.slane %v5053, 5
    %v7269 = vadd.f32 %v7257, %v6863
    %v7270 = vadd.f32 %v7258, %v6941
    %v7271 = vadd.f32 %v7259, %v7019
    %v7272 = vadd.f32 %v7260, %v7097
    %v7273 = vadd.f32 %v7261, %v7175
    %v7274 = vadd.f32 %v7262, %v7253
    %v7275 = vld [vmem:[%s14 + $0x900] sm:$0xff]
    %v7276 = vld [vmem:[%s14 + $0x908] sm:$0xff]
    %v7277 = vld [vmem:[%s14 + $0x910] sm:$0xff]
    %v7278 = vld [vmem:[%s14 + $0x918] sm:$0xff]
    %v7279 = vld [vmem:[%s14 + $0x920] sm:$0xff]
    %v7280 = vld [vmem:[%s14 + $0x928] sm:$0xff]
    %v7281 = vld [vmem:[%s14 + $0x930] sm:$0xff]
    %v7282 = vld [vmem:[%s14 + $0x938] sm:$0xff]
    %v7283 = vld [vmem:[%s14 + $0x940] sm:$0xff]
    %v7284 = vld [vmem:[%s14 + $0x948] sm:$0xff]
    %v7285 = vld [vmem:[%s14 + $0x950] sm:$0xff]
    %v7286 = vld [vmem:[%s14 + $0x958] sm:$0xff]
    %v7287 = vld [vmem:[%s14 + $0x960] sm:$0xff]
    %v7288 = vld [vmem:[%s14 + $0x968] sm:$0xff]
    %v7289 = vld [vmem:[%s14 + $0x970] sm:$0xff]
    %v7290 = vld [vmem:[%s14 + $0x978] sm:$0xff]
    %v7291 = vld [vmem:[%s14 + $0x980] sm:$0xff]
    %v7292 = vld [vmem:[%s14 + $0x988] sm:$0xff]
    %v7293 = vld [vmem:[%s14 + $0x990] sm:$0xff]
    %v7294 = vld [vmem:[%s14 + $0x998] sm:$0xff]
    %v7295 = vld [vmem:[%s14 + $0x9a0] sm:$0xff]
    %v7296 = vld [vmem:[%s14 + $0x9a8] sm:$0xff]
    %v7297 = vld [vmem:[%s14 + $0x9b0] sm:$0xff]
    %v7298 = vld [vmem:[%s14 + $0x9b8] sm:$0xff]
    %v7299 = vld [vmem:[%s14 + $0x9c0] sm:$0xff]
    %v7300 = vld [vmem:[%s14 + $0x9c8] sm:$0xff]
    %v7301 = vld [vmem:[%s14 + $0x9d0] sm:$0xff]
    %v7302 = vld [vmem:[%s14 + $0x9d8] sm:$0xff]
    %v7303 = vld [vmem:[%s14 + $0x9e0] sm:$0xff]
    %v7304 = vld [vmem:[%s14 + $0x9e8] sm:$0xff]
    %v7305 = vld [vmem:[%s14 + $0x9f0] sm:$0xff]
    %v7306 = vld [vmem:[%s14 + $0x9f8] sm:$0xff]
    %v7307 = vld [vmem:[%s14 + $0xa00] sm:$0xff]
    %v7308 = vld [vmem:[%s14 + $0xa08] sm:$0xff]
    %v7309 = vld [vmem:[%s14 + $0xa10] sm:$0xff]
    %v7310 = vld [vmem:[%s14 + $0xa18] sm:$0xff]
    %v7311 = vld [vmem:[%s14 + $0xa20] sm:$0xff]
    %v7312 = vld [vmem:[%s14 + $0xa28] sm:$0xff]
    %v7313 = vld [vmem:[%s14 + $0xa30] sm:$0xff]
    %v7314 = vld [vmem:[%s14 + $0xa38] sm:$0xff]
    %v7315 = vld [vmem:[%s14 + $0xa40] sm:$0xff]
    %v7316 = vld [vmem:[%s14 + $0xa48] sm:$0xff]
    %v7317 = vld [vmem:[%s14 + $0xa50] sm:$0xff]
    %v7318 = vld [vmem:[%s14 + $0xa58] sm:$0xff]
    %v7319 = vld [vmem:[%s14 + $0xa60] sm:$0xff]
    %v7320 = vld [vmem:[%s14 + $0xa68] sm:$0xff]
    %v7321 = vld [vmem:[%s14 + $0xa70] sm:$0xff]
    %v7322 = vld [vmem:[%s14 + $0xa78] sm:$0xff]
    %v7323 = vld [vmem:[%s14 + $0xa80] sm:$0xff]
    %v7324 = vld [vmem:[%s14 + $0xa88] sm:$0xff]
    %v7325 = vld [vmem:[%s14 + $0xa90] sm:$0xff]
    %v7326 = vld [vmem:[%s14 + $0xa98] sm:$0xff]
    %v7327 = vld [vmem:[%s14 + $0xaa0] sm:$0xff]
    %v7328 = vld [vmem:[%s14 + $0xaa8] sm:$0xff]
    %v7329 = vld [vmem:[%s14 + $0xab0] sm:$0xff]
    %v7330 = vld [vmem:[%s14 + $0xab8] sm:$0xff]
    %v7331 = vld [vmem:[%s14 + $0xac0] sm:$0xff]
    %v7332 = vld [vmem:[%s14 + $0xac8] sm:$0xff]
    %v7333 = vld [vmem:[%s14 + $0xad0] sm:$0xff]
    %v7334 = vld [vmem:[%s14 + $0xad8] sm:$0xff]
    %v7335 = vld [vmem:[%s14 + $0xae0] sm:$0xff]
    %v7336 = vld [vmem:[%s14 + $0xae8] sm:$0xff]
    %v7337 = vld [vmem:[%s14 + $0xaf0] sm:$0xff]
    %v7338 = vld [vmem:[%s14 + $0xaf8] sm:$0xff]
    %v7339 = vld [vmem:[%s14 + $0xb00] sm:$0xff]
    %v7340 = vld [vmem:[%s14 + $0xb08] sm:$0xff]
    %v7341 = vld [vmem:[%s14 + $0xb10] sm:$0xff]
    %v7342 = vld [vmem:[%s14 + $0xb18] sm:$0xff]
    %v7343 = vld [vmem:[%s14 + $0xb20] sm:$0xff]
    %v7344 = vld [vmem:[%s14 + $0xb28] sm:$0xff]
    %v7345 = vld [vmem:[%s14 + $0xb30] sm:$0xff]
    %v7346 = vld [vmem:[%s14 + $0xb38] sm:$0xff]
    %v7347 = vld [vmem:[%s14 + $0xb40] sm:$0xff]
    %v7348 = vld [vmem:[%s14 + $0xb48] sm:$0xff]
    %v7349 = vld [vmem:[%s14 + $0xb50] sm:$0xff]
    %v7350 = vld [vmem:[%s14 + $0xb58] sm:$0xff]
    %v7351 = vld [vmem:[%s14 + $0xb60] sm:$0xff]
    %v7352 = vld [vmem:[%s14 + $0xb68] sm:$0xff]
    %v7353 = vld [vmem:[%s14 + $0xb70] sm:$0xff]
    %v7354 = vld [vmem:[%s14 + $0xb78] sm:$0xff]
    %v7355 = vld [vmem:[%s14 + $0xb80] sm:$0xff]
    %v7356 = vld [vmem:[%s14 + $0xb88] sm:$0xff]
    %v7357 = vld [vmem:[%s14 + $0xb90] sm:$0xff]
    %v7358 = vld [vmem:[%s14 + $0xb98] sm:$0xff]
    %v7359 = vld [vmem:[%s14 + $0xba0] sm:$0xff]
    %v7360 = vld [vmem:[%s14 + $0xba8] sm:$0xff]
    %v7361 = vld [vmem:[%s14 + $0xbb0] sm:$0xff]
    %v7362 = vld [vmem:[%s14 + $0xbb8] sm:$0xff]
    %v7363 = vld [vmem:[%s14 + $0xbc0] sm:$0xff]
    %v7364 = vld [vmem:[%s14 + $0xbc8] sm:$0xff]
    %v7365 = vld [vmem:[%s14 + $0xbd0] sm:$0xff]
    %v7366 = vld [vmem:[%s14 + $0xbd8] sm:$0xff]
    %v7367 = vld [vmem:[%s14 + $0xbe0] sm:$0xff]
    %v7368 = vld [vmem:[%s14 + $0xbe8] sm:$0xff]
    %v7369 = vld [vmem:[%s14 + $0xbf0] sm:$0xff]
    %v7370 = vld [vmem:[%s14 + $0xbf8] sm:$0xff]
    %v7371 = vld [vmem:[%s14 + $0xc00] sm:$0xff]
    %v7372 = vld [vmem:[%s14 + $0xc08] sm:$0xff]
    %v7373 = vld [vmem:[%s14 + $0xc10] sm:$0xff]
    %v7374 = vld [vmem:[%s14 + $0xc18] sm:$0xff]
    %v7375 = vld [vmem:[%s14 + $0xc20] sm:$0xff]
    %v7376 = vld [vmem:[%s14 + $0xc28] sm:$0xff]
    %v7377 = vld [vmem:[%s14 + $0xc30] sm:$0xff]
    %v7378 = vld [vmem:[%s14 + $0xc38] sm:$0xff]
    %v7379 = vld [vmem:[%s14 + $0xc40] sm:$0xff]
    %v7380 = vld [vmem:[%s14 + $0xc48] sm:$0xff]
    %v7381 = vld [vmem:[%s14 + $0xc50] sm:$0xff]
    %v7382 = vld [vmem:[%s14 + $0xc58] sm:$0xff]
    %v7383 = vld [vmem:[%s14 + $0xc60] sm:$0xff]
    %v7384 = vld [vmem:[%s14 + $0xc68] sm:$0xff]
    %v7385 = vld [vmem:[%s14 + $0xc70] sm:$0xff]
    %v7386 = vld [vmem:[%s14 + $0xc78] sm:$0xff]
    %v7387 = vld [vmem:[%s14 + $0xc80] sm:$0xff]
    %v7388 = vld [vmem:[%s14 + $0xc88] sm:$0xff]
    %v7389 = vld [vmem:[%s14 + $0xc90] sm:$0xff]
    %v7390 = vld [vmem:[%s14 + $0xc98] sm:$0xff]
    %v7391 = vld [vmem:[%s14 + $0xca0] sm:$0xff]
    %v7392 = vld [vmem:[%s14 + $0xca8] sm:$0xff]
    %v7393 = vld [vmem:[%s14 + $0xcb0] sm:$0xff]
    %v7394 = vld [vmem:[%s14 + $0xcb8] sm:$0xff]
    %v7395 = vld [vmem:[%s14 + $0xcc0] sm:$0xff]
    %v7396 = vld [vmem:[%s14 + $0xcc8] sm:$0xff]
    %v7397 = vld [vmem:[%s14 + $0xcd0] sm:$0xff]
    %v7398 = vld [vmem:[%s14 + $0xcd8] sm:$0xff]
    %v7399 = vld [vmem:[%s14 + $0xce0] sm:$0xff]
    %v7400 = vld [vmem:[%s14 + $0xce8] sm:$0xff]
    %v7401 = vld [vmem:[%s14 + $0xcf0] sm:$0xff]
    %v7402 = vld [vmem:[%s14 + $0xcf8] sm:$0xff]
    %v7403 = vld [vmem:[%s14 + $0xd00] sm:$0xff]
    %v7404 = vld [vmem:[%s14 + $0xd08] sm:$0xff]
    %v7405 = vld [vmem:[%s14 + $0xd10] sm:$0xff]
    %v7406 = vld [vmem:[%s14 + $0xd18] sm:$0xff]
    %v7407 = vld [vmem:[%s14 + $0xd20] sm:$0xff]
    %v7408 = vld [vmem:[%s14 + $0xd28] sm:$0xff]
    %v7409 = vld [vmem:[%s14 + $0xd30] sm:$0xff]
    %v7410 = vld [vmem:[%s14 + $0xd38] sm:$0xff]
    %v7411 = vld [vmem:[%s14 + $0xd40] sm:$0xff]
    %v7412 = vld [vmem:[%s14 + $0xd48] sm:$0xff]
    %v7413 = vld [vmem:[%s14 + $0xd50] sm:$0xff]
    %v7414 = vld [vmem:[%s14 + $0xd58] sm:$0xff]
    %v7415 = vld [vmem:[%s14 + $0xd60] sm:$0xff]
    %v7416 = vld [vmem:[%s14 + $0xd68] sm:$0xff]
    %v7417 = vld [vmem:[%s14 + $0xd70] sm:$0xff]
    %v7418 = vld [vmem:[%s14 + $0xd78] sm:$0xff]
    %v7419 = vld [vmem:[%s14 + $0xd80] sm:$0xff]
    %v7420 = vld [vmem:[%s14 + $0xd88] sm:$0xff]
    %v7421 = vld [vmem:[%s14 + $0xd90] sm:$0xff]
    %v7422 = vld [vmem:[%s14 + $0xd98] sm:$0xff]
    %v7423 = vld [vmem:[%s14 + $0xda0] sm:$0xff]
    %v7424 = vld [vmem:[%s14 + $0xda8] sm:$0xff]
    %v7425 = vld [vmem:[%s14 + $0xdb0] sm:$0xff]
    %v7426 = vld [vmem:[%s14 + $0xdb8] sm:$0xff]
    %v7427 = vld [vmem:[%s14 + $0xdc0] sm:$0xff]
    %v7428 = vld [vmem:[%s14 + $0xdc8] sm:$0xff]
    %v7429 = vld [vmem:[%s14 + $0xdd0] sm:$0xff]
    %v7430 = vld [vmem:[%s14 + $0xdd8] sm:$0xff]
    %v7431 = vld [vmem:[%s14 + $0xde0] sm:$0xff]
    %v7432 = vld [vmem:[%s14 + $0xde8] sm:$0xff]
    %v7433 = vld [vmem:[%s14 + $0xdf0] sm:$0xff]
    %v7434 = vld [vmem:[%s14 + $0xdf8] sm:$0xff]
    %v7435 = vld [vmem:[%s14 + $0xe00] sm:$0xff]
    %v7436 = vld [vmem:[%s14 + $0xe08] sm:$0xff]
    %v7437 = vld [vmem:[%s14 + $0xe10] sm:$0xff]
    %v7438 = vld [vmem:[%s14 + $0xe18] sm:$0xff]
    %v7439 = vld [vmem:[%s14 + $0xe20] sm:$0xff]
    %v7440 = vld [vmem:[%s14 + $0xe28] sm:$0xff]
    %v7441 = vld [vmem:[%s14 + $0xe30] sm:$0xff]
    %v7442 = vld [vmem:[%s14 + $0xe38] sm:$0xff]
    %v7443 = vld [vmem:[%s14 + $0xe40] sm:$0xff]
    %v7444 = vld [vmem:[%s14 + $0xe48] sm:$0xff]
    %v7445 = vld [vmem:[%s14 + $0xe50] sm:$0xff]
    %v7446 = vld [vmem:[%s14 + $0xe58] sm:$0xff]
    %v7447 = vld [vmem:[%s14 + $0xe60] sm:$0xff]
    %v7448 = vld [vmem:[%s14 + $0xe68] sm:$0xff]
    %v7449 = vld [vmem:[%s14 + $0xe70] sm:$0xff]
    %v7450 = vld [vmem:[%s14 + $0xe78] sm:$0xff]
    %v7451 = vld [vmem:[%s14 + $0xe80] sm:$0xff]
    %v7452 = vld [vmem:[%s14 + $0xe88] sm:$0xff]
    %v7453 = vld [vmem:[%s14 + $0xe90] sm:$0xff]
    %v7454 = vld [vmem:[%s14 + $0xe98] sm:$0xff]
    %v7455 = vld [vmem:[%s14 + $0xea0] sm:$0xff]
    %v7456 = vld [vmem:[%s14 + $0xea8] sm:$0xff]
    %v7457 = vld [vmem:[%s14 + $0xeb0] sm:$0xff]
    %v7458 = vld [vmem:[%s14 + $0xeb8] sm:$0xff]
    %v7459 = vld [vmem:[%s14 + $0xec0] sm:$0xff]
    %v7460 = vld [vmem:[%s14 + $0xec8] sm:$0xff]
    %v7461 = vld [vmem:[%s14 + $0xed0] sm:$0xff]
    %v7462 = vld [vmem:[%s14 + $0xed8] sm:$0xff]
    %v7463 = vld [vmem:[%s14 + $0xee0] sm:$0xff]
    %v7464 = vld [vmem:[%s14 + $0xee8] sm:$0xff]
    %v7465 = vld [vmem:[%s14 + $0xef0] sm:$0xff]
    %v7466 = vld [vmem:[%s14 + $0xef8] sm:$0xff]
    %v7467 = vld [vmem:[%s14 + $0xf00] sm:$0xff]
    %v7468 = vld [vmem:[%s14 + $0xf08] sm:$0xff]
    %v7469 = vld [vmem:[%s14 + $0xf10] sm:$0xff]
    %v7470 = vld [vmem:[%s14 + $0xf18] sm:$0xff]
    %v7471 = vld [vmem:[%s14 + $0xf20] sm:$0xff]
    %v7472 = vld [vmem:[%s14 + $0xf28] sm:$0xff]
    %v7473 = vld [vmem:[%s14 + $0xf30] sm:$0xff]
    %v7474 = vld [vmem:[%s14 + $0xf38] sm:$0xff]
    %v7475 = vld [vmem:[%s14 + $0xf40] sm:$0xff]
    %v7476 = vld [vmem:[%s14 + $0xf48] sm:$0xff]
    %v7477 = vld [vmem:[%s14 + $0xf50] sm:$0xff]
    %v7478 = vld [vmem:[%s14 + $0xf58] sm:$0xff]
    %v7479 = vld [vmem:[%s14 + $0xf60] sm:$0xff]
    %v7480 = vld [vmem:[%s14 + $0xf68] sm:$0xff]
    %v7481 = vld [vmem:[%s14 + $0xf70] sm:$0xff]
    %v7482 = vld [vmem:[%s14 + $0xf78] sm:$0xff]
    %v7483 = vld [vmem:[%s14 + $0xf80] sm:$0xff]
    %v7484 = vld [vmem:[%s14 + $0xf88] sm:$0xff]
    %v7485 = vld [vmem:[%s14 + $0xf90] sm:$0xff]
    %v7486 = vld [vmem:[%s14 + $0xf98] sm:$0xff]
    %v7487 = vld [vmem:[%s14 + $0xfa0] sm:$0xff]
    %v7488 = vld [vmem:[%s14 + $0xfa8] sm:$0xff]
    %v7489 = vld [vmem:[%s14 + $0xfb0] sm:$0xff]
    %v7490 = vld [vmem:[%s14 + $0xfb8] sm:$0xff]
    %v7491 = vld [vmem:[%s14 + $0xfc0] sm:$0xff]
    %v7492 = vld [vmem:[%s14 + $0xfc8] sm:$0xff]
    %v7493 = vld [vmem:[%s14 + $0xfd0] sm:$0xff]
    %v7494 = vld [vmem:[%s14 + $0xfd8] sm:$0xff]
    %v7495 = vld [vmem:[%s14 + $0xfe0] sm:$0xff]
    %v7496 = vld [vmem:[%s14 + $0xfe8] sm:$0xff]
    %v7497 = vld [vmem:[%s14 + $0xff0] sm:$0xff]
    %v7498 = vld [vmem:[%s14 + $0xff8] sm:$0xff]
    %v7499 = vld [vmem:[%s14 + $0x1000] sm:$0xff]
    %v7500 = vld [vmem:[%s14 + $0x1008] sm:$0xff]
    %v7501 = vld [vmem:[%s14 + $0x1010] sm:$0xff]
    %v7502 = vld [vmem:[%s14 + $0x1018] sm:$0xff]
    %v7503 = vld [vmem:[%s14 + $0x1020] sm:$0xff]
    %v7504 = vld [vmem:[%s14 + $0x1028] sm:$0xff]
    %v7505 = vld [vmem:[%s14 + $0x1030] sm:$0xff]
    %v7506 = vld [vmem:[%s14 + $0x1038] sm:$0xff]
    %v7507 = vld [vmem:[%s14 + $0x1040] sm:$0xff]
    %v7508 = vld [vmem:[%s14 + $0x1048] sm:$0xff]
    %v7509 = vld [vmem:[%s14 + $0x1050] sm:$0xff]
    %v7510 = vld [vmem:[%s14 + $0x1058] sm:$0xff]
    %v7511 = vld [vmem:[%s14 + $0x1060] sm:$0xff]
    %v7512 = vld [vmem:[%s14 + $0x1068] sm:$0xff]
    %v7513 = vld [vmem:[%s14 + $0x1070] sm:$0xff]
    %v7514 = vld [vmem:[%s14 + $0x1078] sm:$0xff]
    %v7515 = vld [vmem:[%s14 + $0x1080] sm:$0xff]
    %v7516 = vld [vmem:[%s14 + $0x1088] sm:$0xff]
    %v7517 = vld [vmem:[%s14 + $0x1090] sm:$0xff]
    %v7518 = vld [vmem:[%s14 + $0x1098] sm:$0xff]
    %v7519 = vld [vmem:[%s14 + $0x10a0] sm:$0xff]
    %v7520 = vld [vmem:[%s14 + $0x10a8] sm:$0xff]
    %v7521 = vld [vmem:[%s14 + $0x10b0] sm:$0xff]
    %v7522 = vld [vmem:[%s14 + $0x10b8] sm:$0xff]
    %v7523 = vld [vmem:[%s14 + $0x10c0] sm:$0xff]
    %v7524 = vld [vmem:[%s14 + $0x10c8] sm:$0xff]
    %v7525 = vld [vmem:[%s14 + $0x10d0] sm:$0xff]
    %v7526 = vld [vmem:[%s14 + $0x10d8] sm:$0xff]
    %v7527 = vld [vmem:[%s14 + $0x10e0] sm:$0xff]
    %v7528 = vld [vmem:[%s14 + $0x10e8] sm:$0xff]
    %v7529 = vld [vmem:[%s14 + $0x10f0] sm:$0xff]
    %v7530 = vld [vmem:[%s14 + $0x10f8] sm:$0xff]
    %v7531 = vld [vmem:[%s14 + $0x1100] sm:$0xff]
    %v7532 = vld [vmem:[%s14 + $0x1108] sm:$0xff]
    %v7533 = vld [vmem:[%s14 + $0x1110] sm:$0xff]
    %v7534 = vld [vmem:[%s14 + $0x1118] sm:$0xff]
    %v7535 = vld [vmem:[%s14 + $0x1120] sm:$0xff]
    %v7536 = vld [vmem:[%s14 + $0x1128] sm:$0xff]
    %v7537 = vld [vmem:[%s14 + $0x1130] sm:$0xff]
    %v7538 = vld [vmem:[%s14 + $0x1138] sm:$0xff]
    %v7539 = vld [vmem:[%s14 + $0x1140] sm:$0xff]
    %v7540 = vld [vmem:[%s14 + $0x1148] sm:$0xff]
    %v7541 = vld [vmem:[%s14 + $0x1150] sm:$0xff]
    %v7542 = vld [vmem:[%s14 + $0x1158] sm:$0xff]
    %v7543 = vld [vmem:[%s14 + $0x1160] sm:$0xff]
    %v7544 = vld [vmem:[%s14 + $0x1168] sm:$0xff]
    %v7545 = vld [vmem:[%s14 + $0x1170] sm:$0xff]
    %v7546 = vld [vmem:[%s14 + $0x1178] sm:$0xff]
    %v7547 = vld [vmem:[%s14 + $0x1180] sm:$0xff]
    %v7548 = vld [vmem:[%s14 + $0x1188] sm:$0xff]
    %v7549 = vld [vmem:[%s14 + $0x1190] sm:$0xff]
    %v7550 = vld [vmem:[%s14 + $0x1198] sm:$0xff]
    %v7551 = vld [vmem:[%s14 + $0x11a0] sm:$0xff]
    %v7552 = vld [vmem:[%s14 + $0x11a8] sm:$0xff]
    %v7553 = vld [vmem:[%s14 + $0x11b0] sm:$0xff]
    %v7554 = vld [vmem:[%s14 + $0x11b8] sm:$0xff]
    %v7555 = vld [vmem:[%s14 + $0x11c0] sm:$0xff]
    %v7556 = vld [vmem:[%s14 + $0x11c8] sm:$0xff]
    %v7557 = vld [vmem:[%s14 + $0x11d0] sm:$0xff]
    %v7558 = vld [vmem:[%s14 + $0x11d8] sm:$0xff]
    %v7559 = vld [vmem:[%s14 + $0x11e0] sm:$0xff]
    %v7560 = vld [vmem:[%s14 + $0x11e8] sm:$0xff]
    %v7561 = vld [vmem:[%s14 + $0x11f0] sm:$0xff]
    %v7562 = vld [vmem:[%s14 + $0x11f8] sm:$0xff]
    %v7569 = vrot.slane %v5054, 1
    %v7570 = vrot.slane %v5055, 1
    %v7571 = vrot.slane %v5056, 1
    %v7572 = vrot.slane %v5057, 1
    %v7573 = vrot.slane %v5058, 1
    %v7574 = vrot.slane %v5059, 1
    %v7869 = vunpack.c.l.b16 %v7275
    %v7870 = vunpack.c.h.b16 %v7275
    %v7871 = vunpack.c.l.b16 %v7276
    %v7872 = vunpack.c.h.b16 %v7276
    %v7873 = vunpack.c.l.b16 %v7277
    %v7874 = vunpack.c.h.b16 %v7277
    %v7875 = vunpack.c.l.b16 %v7278
    %v7876 = vunpack.c.h.b16 %v7278
    %v7877 = vunpack.c.l.b16 %v7279
    %v7878 = vunpack.c.h.b16 %v7279
    %v7879 = vunpack.c.l.b16 %v7280
    %v7880 = vunpack.c.h.b16 %v7280
    %v7881 = vunpack.c.l.b16 %v7281
    %v7882 = vunpack.c.h.b16 %v7281
    %v7883 = vunpack.c.l.b16 %v7282
    %v7884 = vunpack.c.h.b16 %v7282
    %v7885 = vunpack.c.l.b16 %v7283
    %v7886 = vunpack.c.h.b16 %v7283
    %v7887 = vunpack.c.l.b16 %v7284
    %v7888 = vunpack.c.h.b16 %v7284
    %v7889 = vunpack.c.l.b16 %v7285
    %v7890 = vunpack.c.h.b16 %v7285
    %v7891 = vunpack.c.l.b16 %v7286
    %v7892 = vunpack.c.h.b16 %v7286
    %v7893 = vunpack.c.l.b16 %v7287
    %v7894 = vunpack.c.h.b16 %v7287
    %v7895 = vunpack.c.l.b16 %v7288
    %v7896 = vunpack.c.h.b16 %v7288
    %v7897 = vunpack.c.l.b16 %v7289
    %v7898 = vunpack.c.h.b16 %v7289
    %v7899 = vunpack.c.l.b16 %v7290
    %v7900 = vunpack.c.h.b16 %v7290
    %v7901 = vunpack.c.l.b16 %v7291
    %v7902 = vunpack.c.h.b16 %v7291
    %v7903 = vunpack.c.l.b16 %v7292
    %v7904 = vunpack.c.h.b16 %v7292
    %v7905 = vunpack.c.l.b16 %v7293
    %v7906 = vunpack.c.h.b16 %v7293
    %v7907 = vunpack.c.l.b16 %v7294
    %v7908 = vunpack.c.h.b16 %v7294
    %v7909 = vunpack.c.l.b16 %v7295
    %v7910 = vunpack.c.h.b16 %v7295
    %v7911 = vunpack.c.l.b16 %v7296
    %v7912 = vunpack.c.h.b16 %v7296
    %v7913 = vunpack.c.l.b16 %v7297
    %v7914 = vunpack.c.h.b16 %v7297
    %v7915 = vunpack.c.l.b16 %v7298
    %v7916 = vunpack.c.h.b16 %v7298
    %v7917 = vunpack.c.l.b16 %v7299
    %v7918 = vunpack.c.h.b16 %v7299
    %v7919 = vunpack.c.l.b16 %v7300
    %v7920 = vunpack.c.h.b16 %v7300
    %v7921 = vunpack.c.l.b16 %v7301
    %v7922 = vunpack.c.h.b16 %v7301
    %v7923 = vunpack.c.l.b16 %v7302
    %v7924 = vunpack.c.h.b16 %v7302
    %v7925 = vunpack.c.l.b16 %v7303
    %v7926 = vunpack.c.h.b16 %v7303
    %v7927 = vunpack.c.l.b16 %v7304
    %v7928 = vunpack.c.h.b16 %v7304
    %v7929 = vunpack.c.l.b16 %v7305
    %v7930 = vunpack.c.h.b16 %v7305
    %v7931 = vunpack.c.l.b16 %v7306
    %v7932 = vunpack.c.h.b16 %v7306
    %v7933 = vunpack.c.l.b16 %v7307
    %v7934 = vunpack.c.h.b16 %v7307
    %v7935 = vunpack.c.l.b16 %v7308
    %v7936 = vunpack.c.h.b16 %v7308
    %v7937 = vunpack.c.l.b16 %v7309
    %v7938 = vunpack.c.h.b16 %v7309
    %v7939 = vunpack.c.l.b16 %v7310
    %v7940 = vunpack.c.h.b16 %v7310
    %v7941 = vunpack.c.l.b16 %v7311
    %v7942 = vunpack.c.h.b16 %v7311
    %v7943 = vunpack.c.l.b16 %v7312
    %v7944 = vunpack.c.h.b16 %v7312
    %v7945 = vunpack.c.l.b16 %v7313
    %v7946 = vunpack.c.h.b16 %v7313
    %v7947 = vunpack.c.l.b16 %v7314
    %v7948 = vunpack.c.h.b16 %v7314
    %v7949 = vunpack.c.l.b16 %v7315
    %v7950 = vunpack.c.h.b16 %v7315
    %v7951 = vunpack.c.l.b16 %v7316
    %v7952 = vunpack.c.h.b16 %v7316
    %v7953 = vunpack.c.l.b16 %v7317
    %v7954 = vunpack.c.h.b16 %v7317
    %v7955 = vunpack.c.l.b16 %v7318
    %v7956 = vunpack.c.h.b16 %v7318
    %v7957 = vunpack.c.l.b16 %v7319
    %v7958 = vunpack.c.h.b16 %v7319
    %v7959 = vunpack.c.l.b16 %v7320
    %v7960 = vunpack.c.h.b16 %v7320
    %v7961 = vunpack.c.l.b16 %v7321
    %v7962 = vunpack.c.h.b16 %v7321
    %v7963 = vunpack.c.l.b16 %v7322
    %v7964 = vunpack.c.h.b16 %v7322
    %v7965 = vunpack.c.l.b16 %v7323
    %v7966 = vunpack.c.h.b16 %v7323
    %v7967 = vunpack.c.l.b16 %v7324
    %v7968 = vunpack.c.h.b16 %v7324
    %v7969 = vunpack.c.l.b16 %v7325
    %v7970 = vunpack.c.h.b16 %v7325
    %v7971 = vunpack.c.l.b16 %v7326
    %v7972 = vunpack.c.h.b16 %v7326
    %v7973 = vunpack.c.l.b16 %v7327
    %v7974 = vunpack.c.h.b16 %v7327
    %v7975 = vunpack.c.l.b16 %v7328
    %v7976 = vunpack.c.h.b16 %v7328
    %v7977 = vunpack.c.l.b16 %v7329
    %v7978 = vunpack.c.h.b16 %v7329
    %v7979 = vunpack.c.l.b16 %v7330
    %v7980 = vunpack.c.h.b16 %v7330
    %v7981 = vunpack.c.l.b16 %v7331
    %v7982 = vunpack.c.h.b16 %v7331
    %v7983 = vunpack.c.l.b16 %v7332
    %v7984 = vunpack.c.h.b16 %v7332
    %v7985 = vunpack.c.l.b16 %v7333
    %v7986 = vunpack.c.h.b16 %v7333
    %v7987 = vunpack.c.l.b16 %v7334
    %v7988 = vunpack.c.h.b16 %v7334
    %v7989 = vunpack.c.l.b16 %v7335
    %v7990 = vunpack.c.h.b16 %v7335
    %v7991 = vunpack.c.l.b16 %v7336
    %v7992 = vunpack.c.h.b16 %v7336
    %v7993 = vunpack.c.l.b16 %v7337
    %v7994 = vunpack.c.h.b16 %v7337
    %v7995 = vunpack.c.l.b16 %v7338
    %v7996 = vunpack.c.h.b16 %v7338
    %v7997 = vunpack.c.l.b16 %v7339
    %v7998 = vunpack.c.h.b16 %v7339
    %v7999 = vunpack.c.l.b16 %v7340
    %v8000 = vunpack.c.h.b16 %v7340
    %v8001 = vunpack.c.l.b16 %v7341
    %v8002 = vunpack.c.h.b16 %v7341
    %v8003 = vunpack.c.l.b16 %v7342
    %v8004 = vunpack.c.h.b16 %v7342
    %v8005 = vunpack.c.l.b16 %v7343
    %v8006 = vunpack.c.h.b16 %v7343
    %v8007 = vunpack.c.l.b16 %v7344
    %v8008 = vunpack.c.h.b16 %v7344
    %v8009 = vunpack.c.l.b16 %v7345
    %v8010 = vunpack.c.h.b16 %v7345
    %v8011 = vunpack.c.l.b16 %v7346
    %v8012 = vunpack.c.h.b16 %v7346
    %v8013 = vunpack.c.l.b16 %v7347
    %v8014 = vunpack.c.h.b16 %v7347
    %v8015 = vunpack.c.l.b16 %v7348
    %v8016 = vunpack.c.h.b16 %v7348
    %v8017 = vunpack.c.l.b16 %v7349
    %v8018 = vunpack.c.h.b16 %v7349
    %v8019 = vunpack.c.l.b16 %v7350
    %v8020 = vunpack.c.h.b16 %v7350
    %v8021 = vunpack.c.l.b16 %v7351
    %v8022 = vunpack.c.h.b16 %v7351
    %v8023 = vunpack.c.l.b16 %v7352
    %v8024 = vunpack.c.h.b16 %v7352
    %v8025 = vunpack.c.l.b16 %v7353
    %v8026 = vunpack.c.h.b16 %v7353
    %v8027 = vunpack.c.l.b16 %v7354
    %v8028 = vunpack.c.h.b16 %v7354
    %v8029 = vunpack.c.l.b16 %v7355
    %v8030 = vunpack.c.h.b16 %v7355
    %v8031 = vunpack.c.l.b16 %v7356
    %v8032 = vunpack.c.h.b16 %v7356
    %v8033 = vunpack.c.l.b16 %v7357
    %v8034 = vunpack.c.h.b16 %v7357
    %v8035 = vunpack.c.l.b16 %v7358
    %v8036 = vunpack.c.h.b16 %v7358
    %v8037 = vunpack.c.l.b16 %v7359
    %v8038 = vunpack.c.h.b16 %v7359
    %v8039 = vunpack.c.l.b16 %v7360
    %v8040 = vunpack.c.h.b16 %v7360
    %v8041 = vunpack.c.l.b16 %v7361
    %v8042 = vunpack.c.h.b16 %v7361
    %v8043 = vunpack.c.l.b16 %v7362
    %v8044 = vunpack.c.h.b16 %v7362
    %v8045 = vunpack.c.l.b16 %v7363
    %v8046 = vunpack.c.h.b16 %v7363
    %v8047 = vunpack.c.l.b16 %v7364
    %v8048 = vunpack.c.h.b16 %v7364
    %v8049 = vunpack.c.l.b16 %v7365
    %v8050 = vunpack.c.h.b16 %v7365
    %v8051 = vunpack.c.l.b16 %v7366
    %v8052 = vunpack.c.h.b16 %v7366
    %v8053 = vunpack.c.l.b16 %v7367
    %v8054 = vunpack.c.h.b16 %v7367
    %v8055 = vunpack.c.l.b16 %v7368
    %v8056 = vunpack.c.h.b16 %v7368
    %v8057 = vunpack.c.l.b16 %v7369
    %v8058 = vunpack.c.h.b16 %v7369
    %v8059 = vunpack.c.l.b16 %v7370
    %v8060 = vunpack.c.h.b16 %v7370
    %v8061 = vunpack.c.l.b16 %v7371
    %v8062 = vunpack.c.h.b16 %v7371
    %v8063 = vunpack.c.l.b16 %v7372
    %v8064 = vunpack.c.h.b16 %v7372
    %v8065 = vunpack.c.l.b16 %v7373
    %v8066 = vunpack.c.h.b16 %v7373
    %v8067 = vunpack.c.l.b16 %v7374
    %v8068 = vunpack.c.h.b16 %v7374
    %v8069 = vunpack.c.l.b16 %v7375
    %v8070 = vunpack.c.h.b16 %v7375
    %v8071 = vunpack.c.l.b16 %v7376
    %v8072 = vunpack.c.h.b16 %v7376
    %v8073 = vunpack.c.l.b16 %v7377
    %v8074 = vunpack.c.h.b16 %v7377
    %v8075 = vunpack.c.l.b16 %v7378
    %v8076 = vunpack.c.h.b16 %v7378
    %v8077 = vunpack.c.l.b16 %v7379
    %v8078 = vunpack.c.h.b16 %v7379
    %v8079 = vunpack.c.l.b16 %v7380
    %v8080 = vunpack.c.h.b16 %v7380
    %v8081 = vunpack.c.l.b16 %v7381
    %v8082 = vunpack.c.h.b16 %v7381
    %v8083 = vunpack.c.l.b16 %v7382
    %v8084 = vunpack.c.h.b16 %v7382
    %v8085 = vunpack.c.l.b16 %v7383
    %v8086 = vunpack.c.h.b16 %v7383
    %v8087 = vunpack.c.l.b16 %v7384
    %v8088 = vunpack.c.h.b16 %v7384
    %v8089 = vunpack.c.l.b16 %v7385
    %v8090 = vunpack.c.h.b16 %v7385
    %v8091 = vunpack.c.l.b16 %v7386
    %v8092 = vunpack.c.h.b16 %v7386
    %v8093 = vunpack.c.l.b16 %v7387
    %v8094 = vunpack.c.h.b16 %v7387
    %v8095 = vunpack.c.l.b16 %v7388
    %v8096 = vunpack.c.h.b16 %v7388
    %v8097 = vunpack.c.l.b16 %v7389
    %v8098 = vunpack.c.h.b16 %v7389
    %v8099 = vunpack.c.l.b16 %v7390
    %v8100 = vunpack.c.h.b16 %v7390
    %v8101 = vunpack.c.l.b16 %v7391
    %v8102 = vunpack.c.h.b16 %v7391
    %v8103 = vunpack.c.l.b16 %v7392
    %v8104 = vunpack.c.h.b16 %v7392
    %v8105 = vunpack.c.l.b16 %v7393
    %v8106 = vunpack.c.h.b16 %v7393
    %v8107 = vunpack.c.l.b16 %v7394
    %v8108 = vunpack.c.h.b16 %v7394
    %v8109 = vunpack.c.l.b16 %v7395
    %v8110 = vunpack.c.h.b16 %v7395
    %v8111 = vunpack.c.l.b16 %v7396
    %v8112 = vunpack.c.h.b16 %v7396
    %v8113 = vunpack.c.l.b16 %v7397
    %v8114 = vunpack.c.h.b16 %v7397
    %v8115 = vunpack.c.l.b16 %v7398
    %v8116 = vunpack.c.h.b16 %v7398
    %v8117 = vunpack.c.l.b16 %v7399
    %v8118 = vunpack.c.h.b16 %v7399
    %v8119 = vunpack.c.l.b16 %v7400
    %v8120 = vunpack.c.h.b16 %v7400
    %v8121 = vunpack.c.l.b16 %v7401
    %v8122 = vunpack.c.h.b16 %v7401
    %v8123 = vunpack.c.l.b16 %v7402
    %v8124 = vunpack.c.h.b16 %v7402
    %v8125 = vunpack.c.l.b16 %v7403
    %v8126 = vunpack.c.h.b16 %v7403
    %v8127 = vunpack.c.l.b16 %v7404
    %v8128 = vunpack.c.h.b16 %v7404
    %v8129 = vunpack.c.l.b16 %v7405
    %v8130 = vunpack.c.h.b16 %v7405
    %v8131 = vunpack.c.l.b16 %v7406
    %v8132 = vunpack.c.h.b16 %v7406
    %v8133 = vunpack.c.l.b16 %v7407
    %v8134 = vunpack.c.h.b16 %v7407
    %v8135 = vunpack.c.l.b16 %v7408
    %v8136 = vunpack.c.h.b16 %v7408
    %v8137 = vunpack.c.l.b16 %v7409
    %v8138 = vunpack.c.h.b16 %v7409
    %v8139 = vunpack.c.l.b16 %v7410
    %v8140 = vunpack.c.h.b16 %v7410
    %v8141 = vunpack.c.l.b16 %v7411
    %v8142 = vunpack.c.h.b16 %v7411
    %v8143 = vunpack.c.l.b16 %v7412
    %v8144 = vunpack.c.h.b16 %v7412
    %v8145 = vunpack.c.l.b16 %v7413
    %v8146 = vunpack.c.h.b16 %v7413
    %v8147 = vunpack.c.l.b16 %v7414
    %v8148 = vunpack.c.h.b16 %v7414
    %v8149 = vunpack.c.l.b16 %v7415
    %v8150 = vunpack.c.h.b16 %v7415
    %v8151 = vunpack.c.l.b16 %v7416
    %v8152 = vunpack.c.h.b16 %v7416
    %v8153 = vunpack.c.l.b16 %v7417
    %v8154 = vunpack.c.h.b16 %v7417
    %v8155 = vunpack.c.l.b16 %v7418
    %v8156 = vunpack.c.h.b16 %v7418
    %v8157 = vunpack.c.l.b16 %v7419
    %v8158 = vunpack.c.h.b16 %v7419
    %v8159 = vunpack.c.l.b16 %v7420
    %v8160 = vunpack.c.h.b16 %v7420
    %v8161 = vunpack.c.l.b16 %v7421
    %v8162 = vunpack.c.h.b16 %v7421
    %v8163 = vunpack.c.l.b16 %v7422
    %v8164 = vunpack.c.h.b16 %v7422
    %v8165 = vunpack.c.l.b16 %v7423
    %v8166 = vunpack.c.h.b16 %v7423
    %v8167 = vunpack.c.l.b16 %v7424
    %v8168 = vunpack.c.h.b16 %v7424
    %v8169 = vunpack.c.l.b16 %v7425
    %v8170 = vunpack.c.h.b16 %v7425
    %v8171 = vunpack.c.l.b16 %v7426
    %v8172 = vunpack.c.h.b16 %v7426
    %v8173 = vunpack.c.l.b16 %v7427
    %v8174 = vunpack.c.h.b16 %v7427
    %v8175 = vunpack.c.l.b16 %v7428
    %v8176 = vunpack.c.h.b16 %v7428
    %v8177 = vunpack.c.l.b16 %v7429
    %v8178 = vunpack.c.h.b16 %v7429
    %v8179 = vunpack.c.l.b16 %v7430
    %v8180 = vunpack.c.h.b16 %v7430
    %v8181 = vunpack.c.l.b16 %v7431
    %v8182 = vunpack.c.h.b16 %v7431
    %v8183 = vunpack.c.l.b16 %v7432
    %v8184 = vunpack.c.h.b16 %v7432
    %v8185 = vunpack.c.l.b16 %v7433
    %v8186 = vunpack.c.h.b16 %v7433
    %v8187 = vunpack.c.l.b16 %v7434
    %v8188 = vunpack.c.h.b16 %v7434
    %v8189 = vunpack.c.l.b16 %v7435
    %v8190 = vunpack.c.h.b16 %v7435
    %v8191 = vunpack.c.l.b16 %v7436
    %v8192 = vunpack.c.h.b16 %v7436
    %v8193 = vunpack.c.l.b16 %v7437
    %v8194 = vunpack.c.h.b16 %v7437
    %v8195 = vunpack.c.l.b16 %v7438
    %v8196 = vunpack.c.h.b16 %v7438
    %v8197 = vunpack.c.l.b16 %v7439
    %v8198 = vunpack.c.h.b16 %v7439
    %v8199 = vunpack.c.l.b16 %v7440
    %v8200 = vunpack.c.h.b16 %v7440
    %v8201 = vunpack.c.l.b16 %v7441
    %v8202 = vunpack.c.h.b16 %v7441
    %v8203 = vunpack.c.l.b16 %v7442
    %v8204 = vunpack.c.h.b16 %v7442
    %v8205 = vunpack.c.l.b16 %v7443
    %v8206 = vunpack.c.h.b16 %v7443
    %v8207 = vunpack.c.l.b16 %v7444
    %v8208 = vunpack.c.h.b16 %v7444
    %v8209 = vunpack.c.l.b16 %v7445
    %v8210 = vunpack.c.h.b16 %v7445
    %v8211 = vunpack.c.l.b16 %v7446
    %v8212 = vunpack.c.h.b16 %v7446
    %v8213 = vunpack.c.l.b16 %v7447
    %v8214 = vunpack.c.h.b16 %v7447
    %v8215 = vunpack.c.l.b16 %v7448
    %v8216 = vunpack.c.h.b16 %v7448
    %v8217 = vunpack.c.l.b16 %v7449
    %v8218 = vunpack.c.h.b16 %v7449
    %v8219 = vunpack.c.l.b16 %v7450
    %v8220 = vunpack.c.h.b16 %v7450
    %v8221 = vunpack.c.l.b16 %v7451
    %v8222 = vunpack.c.h.b16 %v7451
    %v8223 = vunpack.c.l.b16 %v7452
    %v8224 = vunpack.c.h.b16 %v7452
    %v8225 = vunpack.c.l.b16 %v7453
    %v8226 = vunpack.c.h.b16 %v7453
    %v8227 = vunpack.c.l.b16 %v7454
    %v8228 = vunpack.c.h.b16 %v7454
    %v8229 = vunpack.c.l.b16 %v7455
    %v8230 = vunpack.c.h.b16 %v7455
    %v8231 = vunpack.c.l.b16 %v7456
    %v8232 = vunpack.c.h.b16 %v7456
    %v8233 = vunpack.c.l.b16 %v7457
    %v8234 = vunpack.c.h.b16 %v7457
    %v8235 = vunpack.c.l.b16 %v7458
    %v8236 = vunpack.c.h.b16 %v7458
    %v8237 = vunpack.c.l.b16 %v7459
    %v8238 = vunpack.c.h.b16 %v7459
    %v8239 = vunpack.c.l.b16 %v7460
    %v8240 = vunpack.c.h.b16 %v7460
    %v8241 = vunpack.c.l.b16 %v7461
    %v8242 = vunpack.c.h.b16 %v7461
    %v8243 = vunpack.c.l.b16 %v7462
    %v8244 = vunpack.c.h.b16 %v7462
    %v8245 = vunpack.c.l.b16 %v7463
    %v8246 = vunpack.c.h.b16 %v7463
    %v8247 = vunpack.c.l.b16 %v7464
    %v8248 = vunpack.c.h.b16 %v7464
    %v8249 = vunpack.c.l.b16 %v7465
    %v8250 = vunpack.c.h.b16 %v7465
    %v8251 = vunpack.c.l.b16 %v7466
    %v8252 = vunpack.c.h.b16 %v7466
    %v8253 = vunpack.c.l.b16 %v7467
    %v8254 = vunpack.c.h.b16 %v7467
    %v8255 = vunpack.c.l.b16 %v7468
    %v8256 = vunpack.c.h.b16 %v7468
    %v8257 = vunpack.c.l.b16 %v7469
    %v8258 = vunpack.c.h.b16 %v7469
    %v8259 = vunpack.c.l.b16 %v7470
    %v8260 = vunpack.c.h.b16 %v7470
    %v8261 = vunpack.c.l.b16 %v7471
    %v8262 = vunpack.c.h.b16 %v7471
    %v8263 = vunpack.c.l.b16 %v7472
    %v8264 = vunpack.c.h.b16 %v7472
    %v8265 = vunpack.c.l.b16 %v7473
    %v8266 = vunpack.c.h.b16 %v7473
    %v8267 = vunpack.c.l.b16 %v7474
    %v8268 = vunpack.c.h.b16 %v7474
    %v8269 = vunpack.c.l.b16 %v7475
    %v8270 = vunpack.c.h.b16 %v7475
    %v8271 = vunpack.c.l.b16 %v7476
    %v8272 = vunpack.c.h.b16 %v7476
    %v8273 = vunpack.c.l.b16 %v7477
    %v8274 = vunpack.c.h.b16 %v7477
    %v8275 = vunpack.c.l.b16 %v7478
    %v8276 = vunpack.c.h.b16 %v7478
    %v8277 = vunpack.c.l.b16 %v7479
    %v8278 = vunpack.c.h.b16 %v7479
    %v8279 = vunpack.c.l.b16 %v7480
    %v8280 = vunpack.c.h.b16 %v7480
    %v8281 = vunpack.c.l.b16 %v7481
    %v8282 = vunpack.c.h.b16 %v7481
    %v8283 = vunpack.c.l.b16 %v7482
    %v8284 = vunpack.c.h.b16 %v7482
    %v8285 = vunpack.c.l.b16 %v7483
    %v8286 = vunpack.c.h.b16 %v7483
    %v8287 = vunpack.c.l.b16 %v7484
    %v8288 = vunpack.c.h.b16 %v7484
    %v8289 = vunpack.c.l.b16 %v7485
    %v8290 = vunpack.c.h.b16 %v7485
    %v8291 = vunpack.c.l.b16 %v7486
    %v8292 = vunpack.c.h.b16 %v7486
    %v8293 = vunpack.c.l.b16 %v7487
    %v8294 = vunpack.c.h.b16 %v7487
    %v8295 = vunpack.c.l.b16 %v7488
    %v8296 = vunpack.c.h.b16 %v7488
    %v8297 = vunpack.c.l.b16 %v7489
    %v8298 = vunpack.c.h.b16 %v7489
    %v8299 = vunpack.c.l.b16 %v7490
    %v8300 = vunpack.c.h.b16 %v7490
    %v8301 = vunpack.c.l.b16 %v7491
    %v8302 = vunpack.c.h.b16 %v7491
    %v8303 = vunpack.c.l.b16 %v7492
    %v8304 = vunpack.c.h.b16 %v7492
    %v8305 = vunpack.c.l.b16 %v7493
    %v8306 = vunpack.c.h.b16 %v7493
    %v8307 = vunpack.c.l.b16 %v7494
    %v8308 = vunpack.c.h.b16 %v7494
    %v8309 = vunpack.c.l.b16 %v7495
    %v8310 = vunpack.c.h.b16 %v7495
    %v8311 = vunpack.c.l.b16 %v7496
    %v8312 = vunpack.c.h.b16 %v7496
    %v8313 = vunpack.c.l.b16 %v7497
    %v8314 = vunpack.c.h.b16 %v7497
    %v8315 = vunpack.c.l.b16 %v7498
    %v8316 = vunpack.c.h.b16 %v7498
    %v8317 = vunpack.c.l.b16 %v7499
    %v8318 = vunpack.c.h.b16 %v7499
    %v8319 = vunpack.c.l.b16 %v7500
    %v8320 = vunpack.c.h.b16 %v7500
    %v8321 = vunpack.c.l.b16 %v7501
    %v8322 = vunpack.c.h.b16 %v7501
    %v8323 = vunpack.c.l.b16 %v7502
    %v8324 = vunpack.c.h.b16 %v7502
    %v8325 = vunpack.c.l.b16 %v7503
    %v8326 = vunpack.c.h.b16 %v7503
    %v8327 = vunpack.c.l.b16 %v7504
    %v8328 = vunpack.c.h.b16 %v7504
    %v8329 = vunpack.c.l.b16 %v7505
    %v8330 = vunpack.c.h.b16 %v7505
    %v8331 = vunpack.c.l.b16 %v7506
    %v8332 = vunpack.c.h.b16 %v7506
    %v8333 = vunpack.c.l.b16 %v7507
    %v8334 = vunpack.c.h.b16 %v7507
    %v8335 = vunpack.c.l.b16 %v7508
    %v8336 = vunpack.c.h.b16 %v7508
    %v8337 = vunpack.c.l.b16 %v7509
    %v8338 = vunpack.c.h.b16 %v7509
    %v8339 = vunpack.c.l.b16 %v7510
    %v8340 = vunpack.c.h.b16 %v7510
    %v8341 = vunpack.c.l.b16 %v7511
    %v8342 = vunpack.c.h.b16 %v7511
    %v8343 = vunpack.c.l.b16 %v7512
    %v8344 = vunpack.c.h.b16 %v7512
    %v8345 = vunpack.c.l.b16 %v7513
    %v8346 = vunpack.c.h.b16 %v7513
    %v8347 = vunpack.c.l.b16 %v7514
    %v8348 = vunpack.c.h.b16 %v7514
    %v8349 = vunpack.c.l.b16 %v7515
    %v8350 = vunpack.c.h.b16 %v7515
    %v8351 = vunpack.c.l.b16 %v7516
    %v8352 = vunpack.c.h.b16 %v7516
    %v8353 = vunpack.c.l.b16 %v7517
    %v8354 = vunpack.c.h.b16 %v7517
    %v8355 = vunpack.c.l.b16 %v7518
    %v8356 = vunpack.c.h.b16 %v7518
    %v8357 = vunpack.c.l.b16 %v7519
    %v8358 = vunpack.c.h.b16 %v7519
    %v8359 = vunpack.c.l.b16 %v7520
    %v8360 = vunpack.c.h.b16 %v7520
    %v8361 = vunpack.c.l.b16 %v7521
    %v8362 = vunpack.c.h.b16 %v7521
    %v8363 = vunpack.c.l.b16 %v7522
    %v8364 = vunpack.c.h.b16 %v7522
    %v8365 = vunpack.c.l.b16 %v7523
    %v8366 = vunpack.c.h.b16 %v7523
    %v8367 = vunpack.c.l.b16 %v7524
    %v8368 = vunpack.c.h.b16 %v7524
    %v8369 = vunpack.c.l.b16 %v7525
    %v8370 = vunpack.c.h.b16 %v7525
    %v8371 = vunpack.c.l.b16 %v7526
    %v8372 = vunpack.c.h.b16 %v7526
    %v8373 = vunpack.c.l.b16 %v7527
    %v8374 = vunpack.c.h.b16 %v7527
    %v8375 = vunpack.c.l.b16 %v7528
    %v8376 = vunpack.c.h.b16 %v7528
    %v8377 = vunpack.c.l.b16 %v7529
    %v8378 = vunpack.c.h.b16 %v7529
    %v8379 = vunpack.c.l.b16 %v7530
    %v8380 = vunpack.c.h.b16 %v7530
    %v8381 = vunpack.c.l.b16 %v7531
    %v8382 = vunpack.c.h.b16 %v7531
    %v8383 = vunpack.c.l.b16 %v7532
    %v8384 = vunpack.c.h.b16 %v7532
    %v8385 = vunpack.c.l.b16 %v7533
    %v8386 = vunpack.c.h.b16 %v7533
    %v8387 = vunpack.c.l.b16 %v7534
    %v8388 = vunpack.c.h.b16 %v7534
    %v8389 = vunpack.c.l.b16 %v7535
    %v8390 = vunpack.c.h.b16 %v7535
    %v8391 = vunpack.c.l.b16 %v7536
    %v8392 = vunpack.c.h.b16 %v7536
    %v8393 = vunpack.c.l.b16 %v7537
    %v8394 = vunpack.c.h.b16 %v7537
    %v8395 = vunpack.c.l.b16 %v7538
    %v8396 = vunpack.c.h.b16 %v7538
    %v8397 = vunpack.c.l.b16 %v7539
    %v8398 = vunpack.c.h.b16 %v7539
    %v8399 = vunpack.c.l.b16 %v7540
    %v8400 = vunpack.c.h.b16 %v7540
    %v8401 = vunpack.c.l.b16 %v7541
    %v8402 = vunpack.c.h.b16 %v7541
    %v8403 = vunpack.c.l.b16 %v7542
    %v8404 = vunpack.c.h.b16 %v7542
    %v8405 = vunpack.c.l.b16 %v7543
    %v8406 = vunpack.c.h.b16 %v7543
    %v8407 = vunpack.c.l.b16 %v7544
    %v8408 = vunpack.c.h.b16 %v7544
    %v8409 = vunpack.c.l.b16 %v7545
    %v8410 = vunpack.c.h.b16 %v7545
    %v8411 = vunpack.c.l.b16 %v7546
    %v8412 = vunpack.c.h.b16 %v7546
    %v8413 = vunpack.c.l.b16 %v7547
    %v8414 = vunpack.c.h.b16 %v7547
    %v8415 = vunpack.c.l.b16 %v7548
    %v8416 = vunpack.c.h.b16 %v7548
    %v8417 = vunpack.c.l.b16 %v7549
    %v8418 = vunpack.c.h.b16 %v7549
    %v8419 = vunpack.c.l.b16 %v7550
    %v8420 = vunpack.c.h.b16 %v7550
    %v8421 = vunpack.c.l.b16 %v7551
    %v8422 = vunpack.c.h.b16 %v7551
    %v8423 = vunpack.c.l.b16 %v7552
    %v8424 = vunpack.c.h.b16 %v7552
    %v8425 = vunpack.c.l.b16 %v7553
    %v8426 = vunpack.c.h.b16 %v7553
    %v8427 = vunpack.c.l.b16 %v7554
    %v8428 = vunpack.c.h.b16 %v7554
    %v8429 = vunpack.c.l.b16 %v7555
    %v8430 = vunpack.c.h.b16 %v7555
    %v8431 = vunpack.c.l.b16 %v7556
    %v8432 = vunpack.c.h.b16 %v7556
    %v8433 = vunpack.c.l.b16 %v7557
    %v8434 = vunpack.c.h.b16 %v7557
    %v8435 = vunpack.c.l.b16 %v7558
    %v8436 = vunpack.c.h.b16 %v7558
    %v8437 = vunpack.c.l.b16 %v7559
    %v8438 = vunpack.c.h.b16 %v7559
    %v8439 = vunpack.c.l.b16 %v7560
    %v8440 = vunpack.c.h.b16 %v7560
    %v8441 = vunpack.c.l.b16 %v7561
    %v8442 = vunpack.c.h.b16 %v7561
    %v8443 = vunpack.c.l.b16 %v7562
    %v8444 = vunpack.c.h.b16 %v7562
    %v8445 = vpack.c.b16 %v7875, %v7869
    %v8446 = vpack.c.b16 %v7876, %v7870
    %v8447 = vpack.c.b16 %v7877, %v7871
    %v8448 = vpack.c.b16 %v7878, %v7872
    %v8449 = vpack.c.b16 %v7879, %v7873
    %v8450 = vpack.c.b16 %v7880, %v7874
    %v8451 = vpack.c.b16 %v7887, %v7881
    %v8452 = vpack.c.b16 %v7888, %v7882
    %v8453 = vpack.c.b16 %v7889, %v7883
    %v8454 = vpack.c.b16 %v7890, %v7884
    %v8455 = vpack.c.b16 %v7891, %v7885
    %v8456 = vpack.c.b16 %v7892, %v7886
    %v8457 = vpack.c.b16 %v7899, %v7893
    %v8458 = vpack.c.b16 %v7900, %v7894
    %v8459 = vpack.c.b16 %v7901, %v7895
    %v8460 = vpack.c.b16 %v7902, %v7896
    %v8461 = vpack.c.b16 %v7903, %v7897
    %v8462 = vpack.c.b16 %v7904, %v7898
    %v8463 = vpack.c.b16 %v7911, %v7905
    %v8464 = vpack.c.b16 %v7912, %v7906
    %v8465 = vpack.c.b16 %v7913, %v7907
    %v8466 = vpack.c.b16 %v7914, %v7908
    %v8467 = vpack.c.b16 %v7915, %v7909
    %v8468 = vpack.c.b16 %v7916, %v7910
    %v8469 = vpack.c.b16 %v7923, %v7917
    %v8470 = vpack.c.b16 %v7924, %v7918
    %v8471 = vpack.c.b16 %v7925, %v7919
    %v8472 = vpack.c.b16 %v7926, %v7920
    %v8473 = vpack.c.b16 %v7927, %v7921
    %v8474 = vpack.c.b16 %v7928, %v7922
    %v8475 = vpack.c.b16 %v7935, %v7929
    %v8476 = vpack.c.b16 %v7936, %v7930
    %v8477 = vpack.c.b16 %v7937, %v7931
    %v8478 = vpack.c.b16 %v7938, %v7932
    %v8479 = vpack.c.b16 %v7939, %v7933
    %v8480 = vpack.c.b16 %v7940, %v7934
    %v8481 = vpack.c.b16 %v7947, %v7941
    %v8482 = vpack.c.b16 %v7948, %v7942
    %v8483 = vpack.c.b16 %v7949, %v7943
    %v8484 = vpack.c.b16 %v7950, %v7944
    %v8485 = vpack.c.b16 %v7951, %v7945
    %v8486 = vpack.c.b16 %v7952, %v7946
    %v8487 = vpack.c.b16 %v7959, %v7953
    %v8488 = vpack.c.b16 %v7960, %v7954
    %v8489 = vpack.c.b16 %v7961, %v7955
    %v8490 = vpack.c.b16 %v7962, %v7956
    %v8491 = vpack.c.b16 %v7963, %v7957
    %v8492 = vpack.c.b16 %v7964, %v7958
    %v8493 = vpack.c.b16 %v7971, %v7965
    %v8494 = vpack.c.b16 %v7972, %v7966
    %v8495 = vpack.c.b16 %v7973, %v7967
    %v8496 = vpack.c.b16 %v7974, %v7968
    %v8497 = vpack.c.b16 %v7975, %v7969
    %v8498 = vpack.c.b16 %v7976, %v7970
    %v8499 = vpack.c.b16 %v7983, %v7977
    %v8500 = vpack.c.b16 %v7984, %v7978
    %v8501 = vpack.c.b16 %v7985, %v7979
    %v8502 = vpack.c.b16 %v7986, %v7980
    %v8503 = vpack.c.b16 %v7987, %v7981
    %v8504 = vpack.c.b16 %v7988, %v7982
    %v8505 = vpack.c.b16 %v7995, %v7989
    %v8506 = vpack.c.b16 %v7996, %v7990
    %v8507 = vpack.c.b16 %v7997, %v7991
    %v8508 = vpack.c.b16 %v7998, %v7992
    %v8509 = vpack.c.b16 %v7999, %v7993
    %v8510 = vpack.c.b16 %v8000, %v7994
    %v8511 = vpack.c.b16 %v8007, %v8001
    %v8512 = vpack.c.b16 %v8008, %v8002
    %v8513 = vpack.c.b16 %v8009, %v8003
    %v8514 = vpack.c.b16 %v8010, %v8004
    %v8515 = vpack.c.b16 %v8011, %v8005
    %v8516 = vpack.c.b16 %v8012, %v8006
    %v8517 = vpack.c.b16 %v8019, %v8013
    %v8518 = vpack.c.b16 %v8020, %v8014
    %v8519 = vpack.c.b16 %v8021, %v8015
    %v8520 = vpack.c.b16 %v8022, %v8016
    %v8521 = vpack.c.b16 %v8023, %v8017
    %v8522 = vpack.c.b16 %v8024, %v8018
    %v8523 = vpack.c.b16 %v8031, %v8025
    %v8524 = vpack.c.b16 %v8032, %v8026
    %v8525 = vpack.c.b16 %v8033, %v8027
    %v8526 = vpack.c.b16 %v8034, %v8028
    %v8527 = vpack.c.b16 %v8035, %v8029
    %v8528 = vpack.c.b16 %v8036, %v8030
    %v8529 = vpack.c.b16 %v8043, %v8037
    %v8530 = vpack.c.b16 %v8044, %v8038
    %v8531 = vpack.c.b16 %v8045, %v8039
    %v8532 = vpack.c.b16 %v8046, %v8040
    %v8533 = vpack.c.b16 %v8047, %v8041
    %v8534 = vpack.c.b16 %v8048, %v8042
    %v8535 = vpack.c.b16 %v8055, %v8049
    %v8536 = vpack.c.b16 %v8056, %v8050
    %v8537 = vpack.c.b16 %v8057, %v8051
    %v8538 = vpack.c.b16 %v8058, %v8052
    %v8539 = vpack.c.b16 %v8059, %v8053
    %v8540 = vpack.c.b16 %v8060, %v8054
    %v8541 = vpack.c.b16 %v8067, %v8061
    %v8542 = vpack.c.b16 %v8068, %v8062
    %v8543 = vpack.c.b16 %v8069, %v8063
    %v8544 = vpack.c.b16 %v8070, %v8064
    %v8545 = vpack.c.b16 %v8071, %v8065
    %v8546 = vpack.c.b16 %v8072, %v8066
    %v8547 = vpack.c.b16 %v8079, %v8073
    %v8548 = vpack.c.b16 %v8080, %v8074
    %v8549 = vpack.c.b16 %v8081, %v8075
    %v8550 = vpack.c.b16 %v8082, %v8076
    %v8551 = vpack.c.b16 %v8083, %v8077
    %v8552 = vpack.c.b16 %v8084, %v8078
    %v8553 = vpack.c.b16 %v8091, %v8085
    %v8554 = vpack.c.b16 %v8092, %v8086
    %v8555 = vpack.c.b16 %v8093, %v8087
    %v8556 = vpack.c.b16 %v8094, %v8088
    %v8557 = vpack.c.b16 %v8095, %v8089
    %v8558 = vpack.c.b16 %v8096, %v8090
    %v8559 = vpack.c.b16 %v8103, %v8097
    %v8560 = vpack.c.b16 %v8104, %v8098
    %v8561 = vpack.c.b16 %v8105, %v8099
    %v8562 = vpack.c.b16 %v8106, %v8100
    %v8563 = vpack.c.b16 %v8107, %v8101
    %v8564 = vpack.c.b16 %v8108, %v8102
    %v8565 = vpack.c.b16 %v8115, %v8109
    %v8566 = vpack.c.b16 %v8116, %v8110
    %v8567 = vpack.c.b16 %v8117, %v8111
    %v8568 = vpack.c.b16 %v8118, %v8112
    %v8569 = vpack.c.b16 %v8119, %v8113
    %v8570 = vpack.c.b16 %v8120, %v8114
    %v8571 = vpack.c.b16 %v8127, %v8121
    %v8572 = vpack.c.b16 %v8128, %v8122
    %v8573 = vpack.c.b16 %v8129, %v8123
    %v8574 = vpack.c.b16 %v8130, %v8124
    %v8575 = vpack.c.b16 %v8131, %v8125
    %v8576 = vpack.c.b16 %v8132, %v8126
    %v8577 = vpack.c.b16 %v8139, %v8133
    %v8578 = vpack.c.b16 %v8140, %v8134
    %v8579 = vpack.c.b16 %v8141, %v8135
    %v8580 = vpack.c.b16 %v8142, %v8136
    %v8581 = vpack.c.b16 %v8143, %v8137
    %v8582 = vpack.c.b16 %v8144, %v8138
    %v8583 = vpack.c.b16 %v8151, %v8145
    %v8584 = vpack.c.b16 %v8152, %v8146
    %v8585 = vpack.c.b16 %v8153, %v8147
    %v8586 = vpack.c.b16 %v8154, %v8148
    %v8587 = vpack.c.b16 %v8155, %v8149
    %v8588 = vpack.c.b16 %v8156, %v8150
    %v8589 = vpack.c.b16 %v8163, %v8157
    %v8590 = vpack.c.b16 %v8164, %v8158
    %v8591 = vpack.c.b16 %v8165, %v8159
    %v8592 = vpack.c.b16 %v8166, %v8160
    %v8593 = vpack.c.b16 %v8167, %v8161
    %v8594 = vpack.c.b16 %v8168, %v8162
    %v8595 = vpack.c.b16 %v8175, %v8169
    %v8596 = vpack.c.b16 %v8176, %v8170
    %v8597 = vpack.c.b16 %v8177, %v8171
    %v8598 = vpack.c.b16 %v8178, %v8172
    %v8599 = vpack.c.b16 %v8179, %v8173
    %v8600 = vpack.c.b16 %v8180, %v8174
    %v8601 = vpack.c.b16 %v8187, %v8181
    %v8602 = vpack.c.b16 %v8188, %v8182
    %v8603 = vpack.c.b16 %v8189, %v8183
    %v8604 = vpack.c.b16 %v8190, %v8184
    %v8605 = vpack.c.b16 %v8191, %v8185
    %v8606 = vpack.c.b16 %v8192, %v8186
    %v8607 = vpack.c.b16 %v8199, %v8193
    %v8608 = vpack.c.b16 %v8200, %v8194
    %v8609 = vpack.c.b16 %v8201, %v8195
    %v8610 = vpack.c.b16 %v8202, %v8196
    %v8611 = vpack.c.b16 %v8203, %v8197
    %v8612 = vpack.c.b16 %v8204, %v8198
    %v8613 = vpack.c.b16 %v8211, %v8205
    %v8614 = vpack.c.b16 %v8212, %v8206
    %v8615 = vpack.c.b16 %v8213, %v8207
    %v8616 = vpack.c.b16 %v8214, %v8208
    %v8617 = vpack.c.b16 %v8215, %v8209
    %v8618 = vpack.c.b16 %v8216, %v8210
    %v8619 = vpack.c.b16 %v8223, %v8217
    %v8620 = vpack.c.b16 %v8224, %v8218
    %v8621 = vpack.c.b16 %v8225, %v8219
    %v8622 = vpack.c.b16 %v8226, %v8220
    %v8623 = vpack.c.b16 %v8227, %v8221
    %v8624 = vpack.c.b16 %v8228, %v8222
    %v8625 = vpack.c.b16 %v8235, %v8229
    %v8626 = vpack.c.b16 %v8236, %v8230
    %v8627 = vpack.c.b16 %v8237, %v8231
    %v8628 = vpack.c.b16 %v8238, %v8232
    %v8629 = vpack.c.b16 %v8239, %v8233
    %v8630 = vpack.c.b16 %v8240, %v8234
    %v8631 = vpack.c.b16 %v8247, %v8241
    %v8632 = vpack.c.b16 %v8248, %v8242
    %v8633 = vpack.c.b16 %v8249, %v8243
    %v8634 = vpack.c.b16 %v8250, %v8244
    %v8635 = vpack.c.b16 %v8251, %v8245
    %v8636 = vpack.c.b16 %v8252, %v8246
    %v8637 = vpack.c.b16 %v8259, %v8253
    %v8638 = vpack.c.b16 %v8260, %v8254
    %v8639 = vpack.c.b16 %v8261, %v8255
    %v8640 = vpack.c.b16 %v8262, %v8256
    %v8641 = vpack.c.b16 %v8263, %v8257
    %v8642 = vpack.c.b16 %v8264, %v8258
    %v8643 = vpack.c.b16 %v8271, %v8265
    %v8644 = vpack.c.b16 %v8272, %v8266
    %v8645 = vpack.c.b16 %v8273, %v8267
    %v8646 = vpack.c.b16 %v8274, %v8268
    %v8647 = vpack.c.b16 %v8275, %v8269
    %v8648 = vpack.c.b16 %v8276, %v8270
    %v8649 = vpack.c.b16 %v8283, %v8277
    %v8650 = vpack.c.b16 %v8284, %v8278
    %v8651 = vpack.c.b16 %v8285, %v8279
    %v8652 = vpack.c.b16 %v8286, %v8280
    %v8653 = vpack.c.b16 %v8287, %v8281
    %v8654 = vpack.c.b16 %v8288, %v8282
    %v8655 = vpack.c.b16 %v8295, %v8289
    %v8656 = vpack.c.b16 %v8296, %v8290
    %v8657 = vpack.c.b16 %v8297, %v8291
    %v8658 = vpack.c.b16 %v8298, %v8292
    %v8659 = vpack.c.b16 %v8299, %v8293
    %v8660 = vpack.c.b16 %v8300, %v8294
    %v8661 = vpack.c.b16 %v8307, %v8301
    %v8662 = vpack.c.b16 %v8308, %v8302
    %v8663 = vpack.c.b16 %v8309, %v8303
    %v8664 = vpack.c.b16 %v8310, %v8304
    %v8665 = vpack.c.b16 %v8311, %v8305
    %v8666 = vpack.c.b16 %v8312, %v8306
    %v8667 = vpack.c.b16 %v8319, %v8313
    %v8668 = vpack.c.b16 %v8320, %v8314
    %v8669 = vpack.c.b16 %v8321, %v8315
    %v8670 = vpack.c.b16 %v8322, %v8316
    %v8671 = vpack.c.b16 %v8323, %v8317
    %v8672 = vpack.c.b16 %v8324, %v8318
    %v8673 = vpack.c.b16 %v8331, %v8325
    %v8674 = vpack.c.b16 %v8332, %v8326
    %v8675 = vpack.c.b16 %v8333, %v8327
    %v8676 = vpack.c.b16 %v8334, %v8328
    %v8677 = vpack.c.b16 %v8335, %v8329
    %v8678 = vpack.c.b16 %v8336, %v8330
    %v8679 = vpack.c.b16 %v8343, %v8337
    %v8680 = vpack.c.b16 %v8344, %v8338
    %v8681 = vpack.c.b16 %v8345, %v8339
    %v8682 = vpack.c.b16 %v8346, %v8340
    %v8683 = vpack.c.b16 %v8347, %v8341
    %v8684 = vpack.c.b16 %v8348, %v8342
    %v8685 = vpack.c.b16 %v8355, %v8349
    %v8686 = vpack.c.b16 %v8356, %v8350
    %v8687 = vpack.c.b16 %v8357, %v8351
    %v8688 = vpack.c.b16 %v8358, %v8352
    %v8689 = vpack.c.b16 %v8359, %v8353
    %v8690 = vpack.c.b16 %v8360, %v8354
    %v8691 = vpack.c.b16 %v8367, %v8361
    %v8692 = vpack.c.b16 %v8368, %v8362
    %v8693 = vpack.c.b16 %v8369, %v8363
    %v8694 = vpack.c.b16 %v8370, %v8364
    %v8695 = vpack.c.b16 %v8371, %v8365
    %v8696 = vpack.c.b16 %v8372, %v8366
    %v8697 = vpack.c.b16 %v8379, %v8373
    %v8698 = vpack.c.b16 %v8380, %v8374
    %v8699 = vpack.c.b16 %v8381, %v8375
    %v8700 = vpack.c.b16 %v8382, %v8376
    %v8701 = vpack.c.b16 %v8383, %v8377
    %v8702 = vpack.c.b16 %v8384, %v8378
    %v8703 = vpack.c.b16 %v8391, %v8385
    %v8704 = vpack.c.b16 %v8392, %v8386
    %v8705 = vpack.c.b16 %v8393, %v8387
    %v8706 = vpack.c.b16 %v8394, %v8388
    %v8707 = vpack.c.b16 %v8395, %v8389
    %v8708 = vpack.c.b16 %v8396, %v8390
    %v8709 = vpack.c.b16 %v8403, %v8397
    %v8710 = vpack.c.b16 %v8404, %v8398
    %v8711 = vpack.c.b16 %v8405, %v8399
    %v8712 = vpack.c.b16 %v8406, %v8400
    %v8713 = vpack.c.b16 %v8407, %v8401
    %v8714 = vpack.c.b16 %v8408, %v8402
    %v8715 = vpack.c.b16 %v8415, %v8409
    %v8716 = vpack.c.b16 %v8416, %v8410
    %v8717 = vpack.c.b16 %v8417, %v8411
    %v8718 = vpack.c.b16 %v8418, %v8412
    %v8719 = vpack.c.b16 %v8419, %v8413
    %v8720 = vpack.c.b16 %v8420, %v8414
    %v8721 = vpack.c.b16 %v8427, %v8421
    %v8722 = vpack.c.b16 %v8428, %v8422
    %v8723 = vpack.c.b16 %v8429, %v8423
    %v8724 = vpack.c.b16 %v8430, %v8424
    %v8725 = vpack.c.b16 %v8431, %v8425
    %v8726 = vpack.c.b16 %v8432, %v8426
    %v8727 = vpack.c.b16 %v8439, %v8433
    %v8728 = vpack.c.b16 %v8440, %v8434
    %v8729 = vpack.c.b16 %v8441, %v8435
    %v8730 = vpack.c.b16 %v8442, %v8436
    %v8731 = vpack.c.b16 %v8443, %v8437
    %v8732 = vpack.c.b16 %v8444, %v8438
    %9021 = vmatpush.bf16.msra.mxu0 %v8487
    %9022 = vmatpush.bf16.msra.mxu0 %v8481
    %9023 = vmatpush.bf16.msra.mxu0 %v8475
    %9024 = vmatpush.bf16.msra.mxu0 %v8469
    %9025 = vmatpush.bf16.msra.mxu0 %v8463
    %9026 = vmatpush.bf16.msra.mxu0 %v8457
    %9027 = vmatpush.bf16.msra.mxu0 %v8451
    %9028 = vmatpush.bf16.msra.mxu0 %v8445
    %9029 = vmatmul.bf16.gmra.mxu0 %v7569
    %v9030 = vpop.f32.mrf.mxu0
    %v9031 = vadd.f32 0.0, %v9030
    %v9032 = vpop.f32.mrf.mxu0
    %9033 = vdwg.mxu0
    %9034 = vmatpush.bf16.msra.mxu0 %v8535
    %9035 = vmatpush.bf16.msra.mxu0 %v8529
    %9036 = vmatpush.bf16.msra.mxu0 %v8523
    %9037 = vmatpush.bf16.msra.mxu0 %v8517
    %9038 = vmatpush.bf16.msra.mxu0 %v8511
    %9039 = vmatpush.bf16.msra.mxu0 %v8505
    %9040 = vmatpush.bf16.msra.mxu0 %v8499
    %9041 = vmatpush.bf16.msra.mxu0 %v8493
    %9042 = vmatmul.bf16.gmra.mxu0 %v7570
    %v9043 = vpop.f32.mrf.mxu0
    %v9044 = vadd.f32 %v9031, %v9043
    %v9045 = vpop.f32.mrf.mxu0
    %9046 = vdwg.mxu0
    %9047 = vmatpush.bf16.msra.mxu0 %v8583
    %9048 = vmatpush.bf16.msra.mxu0 %v8577
    %9049 = vmatpush.bf16.msra.mxu0 %v8571
    %9050 = vmatpush.bf16.msra.mxu0 %v8565
    %9051 = vmatpush.bf16.msra.mxu0 %v8559
    %9052 = vmatpush.bf16.msra.mxu0 %v8553
    %9053 = vmatpush.bf16.msra.mxu0 %v8547
    %9054 = vmatpush.bf16.msra.mxu0 %v8541
    %9055 = vmatmul.bf16.gmra.mxu0 %v7571
    %v9056 = vpop.f32.mrf.mxu0
    %v9057 = vadd.f32 %v9044, %v9056
    %v9058 = vpop.f32.mrf.mxu0
    %9059 = vdwg.mxu0
    %9060 = vmatpush.bf16.msra.mxu0 %v8631
    %9061 = vmatpush.bf16.msra.mxu0 %v8625
    %9062 = vmatpush.bf16.msra.mxu0 %v8619
    %9063 = vmatpush.bf16.msra.mxu0 %v8613
    %9064 = vmatpush.bf16.msra.mxu0 %v8607
    %9065 = vmatpush.bf16.msra.mxu0 %v8601
    %9066 = vmatpush.bf16.msra.mxu0 %v8595
    %9067 = vmatpush.bf16.msra.mxu0 %v8589
    %9068 = vmatmul.bf16.gmra.mxu0 %v7572
    %v9069 = vpop.f32.mrf.mxu0
    %v9070 = vadd.f32 %v9057, %v9069
    %v9071 = vpop.f32.mrf.mxu0
    %9072 = vdwg.mxu0
    %9073 = vmatpush.bf16.msra.mxu0 %v8679
    %9074 = vmatpush.bf16.msra.mxu0 %v8673
    %9075 = vmatpush.bf16.msra.mxu0 %v8667
    %9076 = vmatpush.bf16.msra.mxu0 %v8661
    %9077 = vmatpush.bf16.msra.mxu0 %v8655
    %9078 = vmatpush.bf16.msra.mxu0 %v8649
    %9079 = vmatpush.bf16.msra.mxu0 %v8643
    %9080 = vmatpush.bf16.msra.mxu0 %v8637
    %9081 = vmatmul.bf16.gmra.mxu0 %v7573
    %v9082 = vpop.f32.mrf.mxu0
    %v9083 = vadd.f32 %v9070, %v9082
    %v9084 = vpop.f32.mrf.mxu0
    %9085 = vdwg.mxu0
    %9086 = vmatpush.bf16.msra.mxu0 %v8727
    %9087 = vmatpush.bf16.msra.mxu0 %v8721
    %9088 = vmatpush.bf16.msra.mxu0 %v8715
    %9089 = vmatpush.bf16.msra.mxu0 %v8709
    %9090 = vmatpush.bf16.msra.mxu0 %v8703
    %9091 = vmatpush.bf16.msra.mxu0 %v8697
    %9092 = vmatpush.bf16.msra.mxu0 %v8691
    %9093 = vmatpush.bf16.msra.mxu0 %v8685
    %9094 = vmatmul.bf16.gmra.mxu0 %v7574
    %v9095 = vpop.f32.mrf.mxu0
    %v9096 = vadd.f32 %v9083, %v9095
    %v9097 = vpop.f32.mrf.mxu0
    %9098 = vdwg.mxu0
    %9099 = vmatpush.bf16.msra.mxu0 %v8488
    %9100 = vmatpush.bf16.msra.mxu0 %v8482
    %9101 = vmatpush.bf16.msra.mxu0 %v8476
    %9102 = vmatpush.bf16.msra.mxu0 %v8470
    %9103 = vmatpush.bf16.msra.mxu0 %v8464
    %9104 = vmatpush.bf16.msra.mxu0 %v8458
    %9105 = vmatpush.bf16.msra.mxu0 %v8452
    %9106 = vmatpush.bf16.msra.mxu0 %v8446
    %9107 = vmatmul.bf16.gmra.mxu0 %v7569
    %v9108 = vpop.f32.mrf.mxu0
    %v9109 = vadd.f32 0.0, %v9108
    %v9110 = vpop.f32.mrf.mxu0
    %9111 = vdwg.mxu0
    %9112 = vmatpush.bf16.msra.mxu0 %v8536
    %9113 = vmatpush.bf16.msra.mxu0 %v8530
    %9114 = vmatpush.bf16.msra.mxu0 %v8524
    %9115 = vmatpush.bf16.msra.mxu0 %v8518
    %9116 = vmatpush.bf16.msra.mxu0 %v8512
    %9117 = vmatpush.bf16.msra.mxu0 %v8506
    %9118 = vmatpush.bf16.msra.mxu0 %v8500
    %9119 = vmatpush.bf16.msra.mxu0 %v8494
    %9120 = vmatmul.bf16.gmra.mxu0 %v7570
    %v9121 = vpop.f32.mrf.mxu0
    %v9122 = vadd.f32 %v9109, %v9121
    %v9123 = vpop.f32.mrf.mxu0
    %9124 = vdwg.mxu0
    %9125 = vmatpush.bf16.msra.mxu0 %v8584
    %9126 = vmatpush.bf16.msra.mxu0 %v8578
    %9127 = vmatpush.bf16.msra.mxu0 %v8572
    %9128 = vmatpush.bf16.msra.mxu0 %v8566
    %9129 = vmatpush.bf16.msra.mxu0 %v8560
    %9130 = vmatpush.bf16.msra.mxu0 %v8554
    %9131 = vmatpush.bf16.msra.mxu0 %v8548
    %9132 = vmatpush.bf16.msra.mxu0 %v8542
    %9133 = vmatmul.bf16.gmra.mxu0 %v7571
    %v9134 = vpop.f32.mrf.mxu0
    %v9135 = vadd.f32 %v9122, %v9134
    %v9136 = vpop.f32.mrf.mxu0
    %9137 = vdwg.mxu0
    %9138 = vmatpush.bf16.msra.mxu0 %v8632
    %9139 = vmatpush.bf16.msra.mxu0 %v8626
    %9140 = vmatpush.bf16.msra.mxu0 %v8620
    %9141 = vmatpush.bf16.msra.mxu0 %v8614
    %9142 = vmatpush.bf16.msra.mxu0 %v8608
    %9143 = vmatpush.bf16.msra.mxu0 %v8602
    %9144 = vmatpush.bf16.msra.mxu0 %v8596
    %9145 = vmatpush.bf16.msra.mxu0 %v8590
    %9146 = vmatmul.bf16.gmra.mxu0 %v7572
    %v9147 = vpop.f32.mrf.mxu0
    %v9148 = vadd.f32 %v9135, %v9147
    %v9149 = vpop.f32.mrf.mxu0
    %9150 = vdwg.mxu0
    %9151 = vmatpush.bf16.msra.mxu0 %v8680
    %9152 = vmatpush.bf16.msra.mxu0 %v8674
    %9153 = vmatpush.bf16.msra.mxu0 %v8668
    %9154 = vmatpush.bf16.msra.mxu0 %v8662
    %9155 = vmatpush.bf16.msra.mxu0 %v8656
    %9156 = vmatpush.bf16.msra.mxu0 %v8650
    %9157 = vmatpush.bf16.msra.mxu0 %v8644
    %9158 = vmatpush.bf16.msra.mxu0 %v8638
    %9159 = vmatmul.bf16.gmra.mxu0 %v7573
    %v9160 = vpop.f32.mrf.mxu0
    %v9161 = vadd.f32 %v9148, %v9160
    %v9162 = vpop.f32.mrf.mxu0
    %9163 = vdwg.mxu0
    %9164 = vmatpush.bf16.msra.mxu0 %v8728
    %9165 = vmatpush.bf16.msra.mxu0 %v8722
    %9166 = vmatpush.bf16.msra.mxu0 %v8716
    %9167 = vmatpush.bf16.msra.mxu0 %v8710
    %9168 = vmatpush.bf16.msra.mxu0 %v8704
    %9169 = vmatpush.bf16.msra.mxu0 %v8698
    %9170 = vmatpush.bf16.msra.mxu0 %v8692
    %9171 = vmatpush.bf16.msra.mxu0 %v8686
    %9172 = vmatmul.bf16.gmra.mxu0 %v7574
    %v9173 = vpop.f32.mrf.mxu0
    %v9174 = vadd.f32 %v9161, %v9173
    %v9175 = vpop.f32.mrf.mxu0
    %9176 = vdwg.mxu0
    %9177 = vmatpush.bf16.msra.mxu0 %v8489
    %9178 = vmatpush.bf16.msra.mxu0 %v8483
    %9179 = vmatpush.bf16.msra.mxu0 %v8477
    %9180 = vmatpush.bf16.msra.mxu0 %v8471
    %9181 = vmatpush.bf16.msra.mxu0 %v8465
    %9182 = vmatpush.bf16.msra.mxu0 %v8459
    %9183 = vmatpush.bf16.msra.mxu0 %v8453
    %9184 = vmatpush.bf16.msra.mxu0 %v8447
    %9185 = vmatmul.bf16.gmra.mxu0 %v7569
    %v9186 = vpop.f32.mrf.mxu0
    %v9187 = vadd.f32 0.0, %v9186
    %v9188 = vpop.f32.mrf.mxu0
    %9189 = vdwg.mxu0
    %9190 = vmatpush.bf16.msra.mxu0 %v8537
    %9191 = vmatpush.bf16.msra.mxu0 %v8531
    %9192 = vmatpush.bf16.msra.mxu0 %v8525
    %9193 = vmatpush.bf16.msra.mxu0 %v8519
    %9194 = vmatpush.bf16.msra.mxu0 %v8513
    %9195 = vmatpush.bf16.msra.mxu0 %v8507
    %9196 = vmatpush.bf16.msra.mxu0 %v8501
    %9197 = vmatpush.bf16.msra.mxu0 %v8495
    %9198 = vmatmul.bf16.gmra.mxu0 %v7570
    %v9199 = vpop.f32.mrf.mxu0
    %v9200 = vadd.f32 %v9187, %v9199
    %v9201 = vpop.f32.mrf.mxu0
    %9202 = vdwg.mxu0
    %9203 = vmatpush.bf16.msra.mxu0 %v8585
    %9204 = vmatpush.bf16.msra.mxu0 %v8579
    %9205 = vmatpush.bf16.msra.mxu0 %v8573
    %9206 = vmatpush.bf16.msra.mxu0 %v8567
    %9207 = vmatpush.bf16.msra.mxu0 %v8561
    %9208 = vmatpush.bf16.msra.mxu0 %v8555
    %9209 = vmatpush.bf16.msra.mxu0 %v8549
    %9210 = vmatpush.bf16.msra.mxu0 %v8543
    %9211 = vmatmul.bf16.gmra.mxu0 %v7571
    %v9212 = vpop.f32.mrf.mxu0
    %v9213 = vadd.f32 %v9200, %v9212
    %v9214 = vpop.f32.mrf.mxu0
    %9215 = vdwg.mxu0
    %9216 = vmatpush.bf16.msra.mxu0 %v8633
    %9217 = vmatpush.bf16.msra.mxu0 %v8627
    %9218 = vmatpush.bf16.msra.mxu0 %v8621
    %9219 = vmatpush.bf16.msra.mxu0 %v8615
    %9220 = vmatpush.bf16.msra.mxu0 %v8609
    %9221 = vmatpush.bf16.msra.mxu0 %v8603
    %9222 = vmatpush.bf16.msra.mxu0 %v8597
    %9223 = vmatpush.bf16.msra.mxu0 %v8591
    %9224 = vmatmul.bf16.gmra.mxu0 %v7572
    %v9225 = vpop.f32.mrf.mxu0
    %v9226 = vadd.f32 %v9213, %v9225
    %v9227 = vpop.f32.mrf.mxu0
    %9228 = vdwg.mxu0
    %9229 = vmatpush.bf16.msra.mxu0 %v8681
    %9230 = vmatpush.bf16.msra.mxu0 %v8675
    %9231 = vmatpush.bf16.msra.mxu0 %v8669
    %9232 = vmatpush.bf16.msra.mxu0 %v8663
    %9233 = vmatpush.bf16.msra.mxu0 %v8657
    %9234 = vmatpush.bf16.msra.mxu0 %v8651
    %9235 = vmatpush.bf16.msra.mxu0 %v8645
    %9236 = vmatpush.bf16.msra.mxu0 %v8639
    %9237 = vmatmul.bf16.gmra.mxu0 %v7573
    %v9238 = vpop.f32.mrf.mxu0
    %v9239 = vadd.f32 %v9226, %v9238
    %v9240 = vpop.f32.mrf.mxu0
    %9241 = vdwg.mxu0
    %9242 = vmatpush.bf16.msra.mxu0 %v8729
    %9243 = vmatpush.bf16.msra.mxu0 %v8723
    %9244 = vmatpush.bf16.msra.mxu0 %v8717
    %9245 = vmatpush.bf16.msra.mxu0 %v8711
    %9246 = vmatpush.bf16.msra.mxu0 %v8705
    %9247 = vmatpush.bf16.msra.mxu0 %v8699
    %9248 = vmatpush.bf16.msra.mxu0 %v8693
    %9249 = vmatpush.bf16.msra.mxu0 %v8687
    %9250 = vmatmul.bf16.gmra.mxu0 %v7574
    %v9251 = vpop.f32.mrf.mxu0
    %v9252 = vadd.f32 %v9239, %v9251
    %v9253 = vpop.f32.mrf.mxu0
    %9254 = vdwg.mxu0
    %9255 = vmatpush.bf16.msra.mxu0 %v8490
    %9256 = vmatpush.bf16.msra.mxu0 %v8484
    %9257 = vmatpush.bf16.msra.mxu0 %v8478
    %9258 = vmatpush.bf16.msra.mxu0 %v8472
    %9259 = vmatpush.bf16.msra.mxu0 %v8466
    %9260 = vmatpush.bf16.msra.mxu0 %v8460
    %9261 = vmatpush.bf16.msra.mxu0 %v8454
    %9262 = vmatpush.bf16.msra.mxu0 %v8448
    %9263 = vmatmul.bf16.gmra.mxu0 %v7569
    %v9264 = vpop.f32.mrf.mxu0
    %v9265 = vadd.f32 0.0, %v9264
    %v9266 = vpop.f32.mrf.mxu0
    %9267 = vdwg.mxu0
    %9268 = vmatpush.bf16.msra.mxu0 %v8538
    %9269 = vmatpush.bf16.msra.mxu0 %v8532
    %9270 = vmatpush.bf16.msra.mxu0 %v8526
    %9271 = vmatpush.bf16.msra.mxu0 %v8520
    %9272 = vmatpush.bf16.msra.mxu0 %v8514
    %9273 = vmatpush.bf16.msra.mxu0 %v8508
    %9274 = vmatpush.bf16.msra.mxu0 %v8502
    %9275 = vmatpush.bf16.msra.mxu0 %v8496
    %9276 = vmatmul.bf16.gmra.mxu0 %v7570
    %v9277 = vpop.f32.mrf.mxu0
    %v9278 = vadd.f32 %v9265, %v9277
    %v9279 = vpop.f32.mrf.mxu0
    %9280 = vdwg.mxu0
    %9281 = vmatpush.bf16.msra.mxu0 %v8586
    %9282 = vmatpush.bf16.msra.mxu0 %v8580
    %9283 = vmatpush.bf16.msra.mxu0 %v8574
    %9284 = vmatpush.bf16.msra.mxu0 %v8568
    %9285 = vmatpush.bf16.msra.mxu0 %v8562
    %9286 = vmatpush.bf16.msra.mxu0 %v8556
    %9287 = vmatpush.bf16.msra.mxu0 %v8550
    %9288 = vmatpush.bf16.msra.mxu0 %v8544
    %9289 = vmatmul.bf16.gmra.mxu0 %v7571
    %v9290 = vpop.f32.mrf.mxu0
    %v9291 = vadd.f32 %v9278, %v9290
    %v9292 = vpop.f32.mrf.mxu0
    %9293 = vdwg.mxu0
    %9294 = vmatpush.bf16.msra.mxu0 %v8634
    %9295 = vmatpush.bf16.msra.mxu0 %v8628
    %9296 = vmatpush.bf16.msra.mxu0 %v8622
    %9297 = vmatpush.bf16.msra.mxu0 %v8616
    %9298 = vmatpush.bf16.msra.mxu0 %v8610
    %9299 = vmatpush.bf16.msra.mxu0 %v8604
    %9300 = vmatpush.bf16.msra.mxu0 %v8598
    %9301 = vmatpush.bf16.msra.mxu0 %v8592
    %9302 = vmatmul.bf16.gmra.mxu0 %v7572
    %v9303 = vpop.f32.mrf.mxu0
    %v9304 = vadd.f32 %v9291, %v9303
    %v9305 = vpop.f32.mrf.mxu0
    %9306 = vdwg.mxu0
    %9307 = vmatpush.bf16.msra.mxu0 %v8682
    %9308 = vmatpush.bf16.msra.mxu0 %v8676
    %9309 = vmatpush.bf16.msra.mxu0 %v8670
    %9310 = vmatpush.bf16.msra.mxu0 %v8664
    %9311 = vmatpush.bf16.msra.mxu0 %v8658
    %9312 = vmatpush.bf16.msra.mxu0 %v8652
    %9313 = vmatpush.bf16.msra.mxu0 %v8646
    %9314 = vmatpush.bf16.msra.mxu0 %v8640
    %9315 = vmatmul.bf16.gmra.mxu0 %v7573
    %v9316 = vpop.f32.mrf.mxu0
    %v9317 = vadd.f32 %v9304, %v9316
    %v9318 = vpop.f32.mrf.mxu0
    %9319 = vdwg.mxu0
    %9320 = vmatpush.bf16.msra.mxu0 %v8730
    %9321 = vmatpush.bf16.msra.mxu0 %v8724
    %9322 = vmatpush.bf16.msra.mxu0 %v8718
    %9323 = vmatpush.bf16.msra.mxu0 %v8712
    %9324 = vmatpush.bf16.msra.mxu0 %v8706
    %9325 = vmatpush.bf16.msra.mxu0 %v8700
    %9326 = vmatpush.bf16.msra.mxu0 %v8694
    %9327 = vmatpush.bf16.msra.mxu0 %v8688
    %9328 = vmatmul.bf16.gmra.mxu0 %v7574
    %v9329 = vpop.f32.mrf.mxu0
    %v9330 = vadd.f32 %v9317, %v9329
    %v9331 = vpop.f32.mrf.mxu0
    %9332 = vdwg.mxu0
    %9333 = vmatpush.bf16.msra.mxu0 %v8491
    %9334 = vmatpush.bf16.msra.mxu0 %v8485
    %9335 = vmatpush.bf16.msra.mxu0 %v8479
    %9336 = vmatpush.bf16.msra.mxu0 %v8473
    %9337 = vmatpush.bf16.msra.mxu0 %v8467
    %9338 = vmatpush.bf16.msra.mxu0 %v8461
    %9339 = vmatpush.bf16.msra.mxu0 %v8455
    %9340 = vmatpush.bf16.msra.mxu0 %v8449
    %9341 = vmatmul.bf16.gmra.mxu0 %v7569
    %v9342 = vpop.f32.mrf.mxu0
    %v9343 = vadd.f32 0.0, %v9342
    %v9344 = vpop.f32.mrf.mxu0
    %9345 = vdwg.mxu0
    %9346 = vmatpush.bf16.msra.mxu0 %v8539
    %9347 = vmatpush.bf16.msra.mxu0 %v8533
    %9348 = vmatpush.bf16.msra.mxu0 %v8527
    %9349 = vmatpush.bf16.msra.mxu0 %v8521
    %9350 = vmatpush.bf16.msra.mxu0 %v8515
    %9351 = vmatpush.bf16.msra.mxu0 %v8509
    %9352 = vmatpush.bf16.msra.mxu0 %v8503
    %9353 = vmatpush.bf16.msra.mxu0 %v8497
    %9354 = vmatmul.bf16.gmra.mxu0 %v7570
    %v9355 = vpop.f32.mrf.mxu0
    %v9356 = vadd.f32 %v9343, %v9355
    %v9357 = vpop.f32.mrf.mxu0
    %9358 = vdwg.mxu0
    %9359 = vmatpush.bf16.msra.mxu0 %v8587
    %9360 = vmatpush.bf16.msra.mxu0 %v8581
    %9361 = vmatpush.bf16.msra.mxu0 %v8575
    %9362 = vmatpush.bf16.msra.mxu0 %v8569
    %9363 = vmatpush.bf16.msra.mxu0 %v8563
    %9364 = vmatpush.bf16.msra.mxu0 %v8557
    %9365 = vmatpush.bf16.msra.mxu0 %v8551
    %9366 = vmatpush.bf16.msra.mxu0 %v8545
    %9367 = vmatmul.bf16.gmra.mxu0 %v7571
    %v9368 = vpop.f32.mrf.mxu0
    %v9369 = vadd.f32 %v9356, %v9368
    %v9370 = vpop.f32.mrf.mxu0
    %9371 = vdwg.mxu0
    %9372 = vmatpush.bf16.msra.mxu0 %v8635
    %9373 = vmatpush.bf16.msra.mxu0 %v8629
    %9374 = vmatpush.bf16.msra.mxu0 %v8623
    %9375 = vmatpush.bf16.msra.mxu0 %v8617
    %9376 = vmatpush.bf16.msra.mxu0 %v8611
    %9377 = vmatpush.bf16.msra.mxu0 %v8605
    %9378 = vmatpush.bf16.msra.mxu0 %v8599
    %9379 = vmatpush.bf16.msra.mxu0 %v8593
    %9380 = vmatmul.bf16.gmra.mxu0 %v7572
    %v9381 = vpop.f32.mrf.mxu0
    %v9382 = vadd.f32 %v9369, %v9381
    %v9383 = vpop.f32.mrf.mxu0
    %9384 = vdwg.mxu0
    %9385 = vmatpush.bf16.msra.mxu0 %v8683
    %9386 = vmatpush.bf16.msra.mxu0 %v8677
    %9387 = vmatpush.bf16.msra.mxu0 %v8671
    %9388 = vmatpush.bf16.msra.mxu0 %v8665
    %9389 = vmatpush.bf16.msra.mxu0 %v8659
    %9390 = vmatpush.bf16.msra.mxu0 %v8653
    %9391 = vmatpush.bf16.msra.mxu0 %v8647
    %9392 = vmatpush.bf16.msra.mxu0 %v8641
    %9393 = vmatmul.bf16.gmra.mxu0 %v7573
    %v9394 = vpop.f32.mrf.mxu0
    %v9395 = vadd.f32 %v9382, %v9394
    %v9396 = vpop.f32.mrf.mxu0
    %9397 = vdwg.mxu0
    %9398 = vmatpush.bf16.msra.mxu0 %v8731
    %9399 = vmatpush.bf16.msra.mxu0 %v8725
    %9400 = vmatpush.bf16.msra.mxu0 %v8719
    %9401 = vmatpush.bf16.msra.mxu0 %v8713
    %9402 = vmatpush.bf16.msra.mxu0 %v8707
    %9403 = vmatpush.bf16.msra.mxu0 %v8701
    %9404 = vmatpush.bf16.msra.mxu0 %v8695
    %9405 = vmatpush.bf16.msra.mxu0 %v8689
    %9406 = vmatmul.bf16.gmra.mxu0 %v7574
    %v9407 = vpop.f32.mrf.mxu0
    %v9408 = vadd.f32 %v9395, %v9407
    %v9409 = vpop.f32.mrf.mxu0
    %9410 = vdwg.mxu0
    %9411 = vmatpush.bf16.msra.mxu0 %v8492
    %9412 = vmatpush.bf16.msra.mxu0 %v8486
    %9413 = vmatpush.bf16.msra.mxu0 %v8480
    %9414 = vmatpush.bf16.msra.mxu0 %v8474
    %9415 = vmatpush.bf16.msra.mxu0 %v8468
    %9416 = vmatpush.bf16.msra.mxu0 %v8462
    %9417 = vmatpush.bf16.msra.mxu0 %v8456
    %9418 = vmatpush.bf16.msra.mxu0 %v8450
    %9419 = vmatmul.bf16.gmra.mxu0 %v7569
    %v9420 = vpop.f32.mrf.mxu0
    %v9421 = vadd.f32 0.0, %v9420
    %v9422 = vpop.f32.mrf.mxu0
    %9423 = vdwg.mxu0
    %9424 = vmatpush.bf16.msra.mxu0 %v8540
    %9425 = vmatpush.bf16.msra.mxu0 %v8534
    %9426 = vmatpush.bf16.msra.mxu0 %v8528
    %9427 = vmatpush.bf16.msra.mxu0 %v8522
    %9428 = vmatpush.bf16.msra.mxu0 %v8516
    %9429 = vmatpush.bf16.msra.mxu0 %v8510
    %9430 = vmatpush.bf16.msra.mxu0 %v8504
    %9431 = vmatpush.bf16.msra.mxu0 %v8498
    %9432 = vmatmul.bf16.gmra.mxu0 %v7570
    %v9433 = vpop.f32.mrf.mxu0
    %v9434 = vadd.f32 %v9421, %v9433
    %v9435 = vpop.f32.mrf.mxu0
    %9436 = vdwg.mxu0
    %9437 = vmatpush.bf16.msra.mxu0 %v8588
    %9438 = vmatpush.bf16.msra.mxu0 %v8582
    %9439 = vmatpush.bf16.msra.mxu0 %v8576
    %9440 = vmatpush.bf16.msra.mxu0 %v8570
    %9441 = vmatpush.bf16.msra.mxu0 %v8564
    %9442 = vmatpush.bf16.msra.mxu0 %v8558
    %9443 = vmatpush.bf16.msra.mxu0 %v8552
    %9444 = vmatpush.bf16.msra.mxu0 %v8546
    %9445 = vmatmul.bf16.gmra.mxu0 %v7571
    %v9446 = vpop.f32.mrf.mxu0
    %v9447 = vadd.f32 %v9434, %v9446
    %v9448 = vpop.f32.mrf.mxu0
    %9449 = vdwg.mxu0
    %9450 = vmatpush.bf16.msra.mxu0 %v8636
    %9451 = vmatpush.bf16.msra.mxu0 %v8630
    %9452 = vmatpush.bf16.msra.mxu0 %v8624
    %9453 = vmatpush.bf16.msra.mxu0 %v8618
    %9454 = vmatpush.bf16.msra.mxu0 %v8612
    %9455 = vmatpush.bf16.msra.mxu0 %v8606
    %9456 = vmatpush.bf16.msra.mxu0 %v8600
    %9457 = vmatpush.bf16.msra.mxu0 %v8594
    %9458 = vmatmul.bf16.gmra.mxu0 %v7572
    %v9459 = vpop.f32.mrf.mxu0
    %v9460 = vadd.f32 %v9447, %v9459
    %v9461 = vpop.f32.mrf.mxu0
    %9462 = vdwg.mxu0
    %9463 = vmatpush.bf16.msra.mxu0 %v8684
    %9464 = vmatpush.bf16.msra.mxu0 %v8678
    %9465 = vmatpush.bf16.msra.mxu0 %v8672
    %9466 = vmatpush.bf16.msra.mxu0 %v8666
    %9467 = vmatpush.bf16.msra.mxu0 %v8660
    %9468 = vmatpush.bf16.msra.mxu0 %v8654
    %9469 = vmatpush.bf16.msra.mxu0 %v8648
    %9470 = vmatpush.bf16.msra.mxu0 %v8642
    %9471 = vmatmul.bf16.gmra.mxu0 %v7573
    %v9472 = vpop.f32.mrf.mxu0
    %v9473 = vadd.f32 %v9460, %v9472
    %v9474 = vpop.f32.mrf.mxu0
    %9475 = vdwg.mxu0
    %9476 = vmatpush.bf16.msra.mxu0 %v8732
    %9477 = vmatpush.bf16.msra.mxu0 %v8726
    %9478 = vmatpush.bf16.msra.mxu0 %v8720
    %9479 = vmatpush.bf16.msra.mxu0 %v8714
    %9480 = vmatpush.bf16.msra.mxu0 %v8708
    %9481 = vmatpush.bf16.msra.mxu0 %v8702
    %9482 = vmatpush.bf16.msra.mxu0 %v8696
    %9483 = vmatpush.bf16.msra.mxu0 %v8690
    %9484 = vmatmul.bf16.gmra.mxu0 %v7574
    %v9485 = vpop.f32.mrf.mxu0
    %v9486 = vadd.f32 %v9473, %v9485
    %v9487 = vpop.f32.mrf.mxu0
    %9488 = vdwg.mxu0
    %v9489 = vadd.f32 %v7269, %v9096
    %v9490 = vadd.f32 %v7270, %v9174
    %v9491 = vadd.f32 %v7271, %v9252
    %v9492 = vadd.f32 %v7272, %v9330
    %v9493 = vadd.f32 %v7273, %v9408
    %v9494 = vadd.f32 %v7274, %v9486
    %v9495 = vtanh.pop %v9489
    %v9496 = vtanh.pop %v9490
    %v9497 = vtanh.pop %v9491
    %v9498 = vtanh.pop %v9492
    %v9499 = vtanh.pop %v9493
    %v9500 = vtanh.pop %v9494
    %v9501 = vld [vmem:[%s16] sm:$0xff]
    %v9502 = vld [vmem:[%s16 + $0x8] sm:$0xff]
    %v9503 = vld [vmem:[%s16 + $0x10] sm:$0xff]
    %v9504 = vld [vmem:[%s16 + $0x18] sm:$0xff]
    %v9505 = vld [vmem:[%s16 + $0x20] sm:$0xff]
    %v9506 = vld [vmem:[%s16 + $0x28] sm:$0xff]
    %v9507 = vld [vmem:[%s16 + $0x30] sm:$0xff]
    %v9508 = vld [vmem:[%s16 + $0x38] sm:$0xff]
    %v9509 = vld [vmem:[%s16 + $0x40] sm:$0xff]
    %v9510 = vld [vmem:[%s16 + $0x48] sm:$0xff]
    %v9511 = vld [vmem:[%s16 + $0x50] sm:$0xff]
    %v9512 = vld [vmem:[%s16 + $0x58] sm:$0xff]
    %v9513 = vld [vmem:[%s16 + $0x60] sm:$0xff]
    %v9514 = vld [vmem:[%s16 + $0x68] sm:$0xff]
    %v9515 = vld [vmem:[%s16 + $0x70] sm:$0xff]
    %v9516 = vld [vmem:[%s16 + $0x78] sm:$0xff]
    %v9517 = vld [vmem:[%s16 + $0x80] sm:$0xff]
    %v9518 = vld [vmem:[%s16 + $0x88] sm:$0xff]
    %v9519 = vld [vmem:[%s16 + $0x90] sm:$0xff]
    %v9520 = vld [vmem:[%s16 + $0x98] sm:$0xff]
    %v9521 = vld [vmem:[%s16 + $0xa0] sm:$0xff]
    %v9522 = vld [vmem:[%s16 + $0xa8] sm:$0xff]
    %v9523 = vld [vmem:[%s16 + $0xb0] sm:$0xff]
    %v9524 = vld [vmem:[%s16 + $0xb8] sm:$0xff]
    %v9525 = vld [vmem:[%s16 + $0xc0] sm:$0xff]
    %v9526 = vld [vmem:[%s16 + $0xc8] sm:$0xff]
    %v9527 = vld [vmem:[%s16 + $0xd0] sm:$0xff]
    %v9528 = vld [vmem:[%s16 + $0xd8] sm:$0xff]
    %v9529 = vld [vmem:[%s16 + $0xe0] sm:$0xff]
    %v9530 = vld [vmem:[%s16 + $0xe8] sm:$0xff]
    %v9531 = vld [vmem:[%s16 + $0xf0] sm:$0xff]
    %v9532 = vld [vmem:[%s16 + $0xf8] sm:$0xff]
    %v9533 = vld [vmem:[%s16 + $0x100] sm:$0xff]
    %v9534 = vld [vmem:[%s16 + $0x108] sm:$0xff]
    %v9535 = vld [vmem:[%s16 + $0x110] sm:$0xff]
    %v9536 = vld [vmem:[%s16 + $0x118] sm:$0xff]
    %v9537 = vld [vmem:[%s16 + $0x120] sm:$0xff]
    %v9538 = vld [vmem:[%s16 + $0x128] sm:$0xff]
    %v9539 = vld [vmem:[%s16 + $0x130] sm:$0xff]
    %v9540 = vld [vmem:[%s16 + $0x138] sm:$0xff]
    %v9541 = vld [vmem:[%s16 + $0x140] sm:$0xff]
    %v9542 = vld [vmem:[%s16 + $0x148] sm:$0xff]
    %v9543 = vld [vmem:[%s16 + $0x150] sm:$0xff]
    %v9544 = vld [vmem:[%s16 + $0x158] sm:$0xff]
    %v9545 = vld [vmem:[%s16 + $0x160] sm:$0xff]
    %v9546 = vld [vmem:[%s16 + $0x168] sm:$0xff]
    %v9547 = vld [vmem:[%s16 + $0x170] sm:$0xff]
    %v9548 = vld [vmem:[%s16 + $0x178] sm:$0xff]
    %v9549 = vld [vmem:[%s16 + $0x180] sm:$0xff]
    %v9550 = vld [vmem:[%s16 + $0x188] sm:$0xff]
    %v9551 = vld [vmem:[%s16 + $0x190] sm:$0xff]
    %v9552 = vld [vmem:[%s16 + $0x198] sm:$0xff]
    %v9553 = vld [vmem:[%s16 + $0x1a0] sm:$0xff]
    %v9554 = vld [vmem:[%s16 + $0x1a8] sm:$0xff]
    %v9555 = vld [vmem:[%s16 + $0x1b0] sm:$0xff]
    %v9556 = vld [vmem:[%s16 + $0x1b8] sm:$0xff]
    %v9557 = vld [vmem:[%s16 + $0x1c0] sm:$0xff]
    %v9558 = vld [vmem:[%s16 + $0x1c8] sm:$0xff]
    %v9559 = vld [vmem:[%s16 + $0x1d0] sm:$0xff]
    %v9560 = vld [vmem:[%s16 + $0x1d8] sm:$0xff]
    %v9561 = vld [vmem:[%s16 + $0x1e0] sm:$0xff]
    %v9562 = vld [vmem:[%s16 + $0x1e8] sm:$0xff]
    %v9563 = vld [vmem:[%s16 + $0x1f0] sm:$0xff]
    %v9564 = vld [vmem:[%s16 + $0x1f8] sm:$0xff]
    %v9565 = vld [vmem:[%s16 + $0x200] sm:$0xff]
    %v9566 = vld [vmem:[%s16 + $0x208] sm:$0xff]
    %v9567 = vld [vmem:[%s16 + $0x210] sm:$0xff]
    %v9568 = vld [vmem:[%s16 + $0x218] sm:$0xff]
    %v9569 = vld [vmem:[%s16 + $0x220] sm:$0xff]
    %v9570 = vld [vmem:[%s16 + $0x228] sm:$0xff]
    %v9571 = vld [vmem:[%s16 + $0x230] sm:$0xff]
    %v9572 = vld [vmem:[%s16 + $0x238] sm:$0xff]
    %v9573 = vld [vmem:[%s16 + $0x240] sm:$0xff]
    %v9574 = vld [vmem:[%s16 + $0x248] sm:$0xff]
    %v9575 = vld [vmem:[%s16 + $0x250] sm:$0xff]
    %v9576 = vld [vmem:[%s16 + $0x258] sm:$0xff]
    %v9577 = vld [vmem:[%s16 + $0x260] sm:$0xff]
    %v9578 = vld [vmem:[%s16 + $0x268] sm:$0xff]
    %v9579 = vld [vmem:[%s16 + $0x270] sm:$0xff]
    %v9580 = vld [vmem:[%s16 + $0x278] sm:$0xff]
    %v9581 = vld [vmem:[%s16 + $0x280] sm:$0xff]
    %v9582 = vld [vmem:[%s16 + $0x288] sm:$0xff]
    %v9583 = vld [vmem:[%s16 + $0x290] sm:$0xff]
    %v9584 = vld [vmem:[%s16 + $0x298] sm:$0xff]
    %v9585 = vld [vmem:[%s16 + $0x2a0] sm:$0xff]
    %v9586 = vld [vmem:[%s16 + $0x2a8] sm:$0xff]
    %v9587 = vld [vmem:[%s16 + $0x2b0] sm:$0xff]
    %v9588 = vld [vmem:[%s16 + $0x2b8] sm:$0xff]
    %v9589 = vld [vmem:[%s16 + $0x2c0] sm:$0xff]
    %v9590 = vld [vmem:[%s16 + $0x2c8] sm:$0xff]
    %v9591 = vld [vmem:[%s16 + $0x2d0] sm:$0xff]
    %v9592 = vld [vmem:[%s16 + $0x2d8] sm:$0xff]
    %v9593 = vld [vmem:[%s16 + $0x2e0] sm:$0xff]
    %v9594 = vld [vmem:[%s16 + $0x2e8] sm:$0xff]
    %v9595 = vld [vmem:[%s16 + $0x2f0] sm:$0xff]
    %v9596 = vld [vmem:[%s16 + $0x2f8] sm:$0xff]
    %v9597 = vld [vmem:[%s17] sm:$0x1]
    %v9599 = vperm.slane %v9597, 0
    %9601 = vmatpush.msra.mxu0 %v9516
    %9602 = vmatpush.msra.mxu0 %v9515
    %9603 = vmatpush.msra.mxu0 %v9514
    %9604 = vmatpush.msra.mxu0 %v9513
    %9605 = vmatpush.msra.mxu0 %v9512
    %9606 = vmatpush.msra.mxu0 %v9511
    %9607 = vmatpush.msra.mxu0 %v9510
    %9608 = vmatpush.msra.mxu0 %v9509
    %9609 = vmatpush.msra.mxu0 %v9508
    %9610 = vmatpush.msra.mxu0 %v9507
    %9611 = vmatpush.msra.mxu0 %v9506
    %9612 = vmatpush.msra.mxu0 %v9505
    %9613 = vmatpush.msra.mxu0 %v9504
    %9614 = vmatpush.msra.mxu0 %v9503
    %9615 = vmatpush.msra.mxu0 %v9502
    %9616 = vmatpush.msra.mxu0 %v9501
    %9617 = vmatmul.f32.gmra.mxu0 %v9495
    %v9618 = vpop.f32.mrf.mxu0
    %v9619 = vadd.f32 %v9599, %v9618
    %9620 = vdwg.mxu0
    %9621 = vmatpush.msra.mxu0 %v9532
    %9622 = vmatpush.msra.mxu0 %v9531
    %9623 = vmatpush.msra.mxu0 %v9530
    %9624 = vmatpush.msra.mxu0 %v9529
    %9625 = vmatpush.msra.mxu0 %v9528
    %9626 = vmatpush.msra.mxu0 %v9527
    %9627 = vmatpush.msra.mxu0 %v9526
    %9628 = vmatpush.msra.mxu0 %v9525
    %9629 = vmatpush.msra.mxu0 %v9524
    %9630 = vmatpush.msra.mxu0 %v9523
    %9631 = vmatpush.msra.mxu0 %v9522
    %9632 = vmatpush.msra.mxu0 %v9521
    %9633 = vmatpush.msra.mxu0 %v9520
    %9634 = vmatpush.msra.mxu0 %v9519
    %9635 = vmatpush.msra.mxu0 %v9518
    %9636 = vmatpush.msra.mxu0 %v9517
    %9637 = vmatmul.f32.gmra.mxu0 %v9496
    %v9638 = vpop.f32.mrf.mxu0
    %v9639 = vadd.f32 %v9619, %v9638
    %9640 = vdwg.mxu0
    %9641 = vmatpush.msra.mxu0 %v9548
    %9642 = vmatpush.msra.mxu0 %v9547
    %9643 = vmatpush.msra.mxu0 %v9546
    %9644 = vmatpush.msra.mxu0 %v9545
    %9645 = vmatpush.msra.mxu0 %v9544
    %9646 = vmatpush.msra.mxu0 %v9543
    %9647 = vmatpush.msra.mxu0 %v9542
    %9648 = vmatpush.msra.mxu0 %v9541
    %9649 = vmatpush.msra.mxu0 %v9540
    %9650 = vmatpush.msra.mxu0 %v9539
    %9651 = vmatpush.msra.mxu0 %v9538
    %9652 = vmatpush.msra.mxu0 %v9537
    %9653 = vmatpush.msra.mxu0 %v9536
    %9654 = vmatpush.msra.mxu0 %v9535
    %9655 = vmatpush.msra.mxu0 %v9534
    %9656 = vmatpush.msra.mxu0 %v9533
    %9657 = vmatmul.f32.gmra.mxu0 %v9497
    %v9658 = vpop.f32.mrf.mxu0
    %v9659 = vadd.f32 %v9639, %v9658
    %9660 = vdwg.mxu0
    %9661 = vmatpush.msra.mxu0 %v9564
    %9662 = vmatpush.msra.mxu0 %v9563
    %9663 = vmatpush.msra.mxu0 %v9562
    %9664 = vmatpush.msra.mxu0 %v9561
    %9665 = vmatpush.msra.mxu0 %v9560
    %9666 = vmatpush.msra.mxu0 %v9559
    %9667 = vmatpush.msra.mxu0 %v9558
    %9668 = vmatpush.msra.mxu0 %v9557
    %9669 = vmatpush.msra.mxu0 %v9556
    %9670 = vmatpush.msra.mxu0 %v9555
    %9671 = vmatpush.msra.mxu0 %v9554
    %9672 = vmatpush.msra.mxu0 %v9553
    %9673 = vmatpush.msra.mxu0 %v9552
    %9674 = vmatpush.msra.mxu0 %v9551
    %9675 = vmatpush.msra.mxu0 %v9550
    %9676 = vmatpush.msra.mxu0 %v9549
    %9677 = vmatmul.f32.gmra.mxu0 %v9498
    %v9678 = vpop.f32.mrf.mxu0
    %v9679 = vadd.f32 %v9659, %v9678
    %9680 = vdwg.mxu0
    %9681 = vmatpush.msra.mxu0 %v9580
    %9682 = vmatpush.msra.mxu0 %v9579
    %9683 = vmatpush.msra.mxu0 %v9578
    %9684 = vmatpush.msra.mxu0 %v9577
    %9685 = vmatpush.msra.mxu0 %v9576
    %9686 = vmatpush.msra.mxu0 %v9575
    %9687 = vmatpush.msra.mxu0 %v9574
    %9688 = vmatpush.msra.mxu0 %v9573
    %9689 = vmatpush.msra.mxu0 %v9572
    %9690 = vmatpush.msra.mxu0 %v9571
    %9691 = vmatpush.msra.mxu0 %v9570
    %9692 = vmatpush.msra.mxu0 %v9569
    %9693 = vmatpush.msra.mxu0 %v9568
    %9694 = vmatpush.msra.mxu0 %v9567
    %9695 = vmatpush.msra.mxu0 %v9566
    %9696 = vmatpush.msra.mxu0 %v9565
    %9697 = vmatmul.f32.gmra.mxu0 %v9499
    %v9698 = vpop.f32.mrf.mxu0
    %v9699 = vadd.f32 %v9679, %v9698
    %9700 = vdwg.mxu0
    %9701 = vmatpush.msra.mxu0 %v9596
    %9702 = vmatpush.msra.mxu0 %v9595
    %9703 = vmatpush.msra.mxu0 %v9594
    %9704 = vmatpush.msra.mxu0 %v9593
    %9705 = vmatpush.msra.mxu0 %v9592
    %9706 = vmatpush.msra.mxu0 %v9591
    %9707 = vmatpush.msra.mxu0 %v9590
    %9708 = vmatpush.msra.mxu0 %v9589
    %9709 = vmatpush.msra.mxu0 %v9588
    %9710 = vmatpush.msra.mxu0 %v9587
    %9711 = vmatpush.msra.mxu0 %v9586
    %9712 = vmatpush.msra.mxu0 %v9585
    %9713 = vmatpush.msra.mxu0 %v9584
    %9714 = vmatpush.msra.mxu0 %v9583
    %9715 = vmatpush.msra.mxu0 %v9582
    %9716 = vmatpush.msra.mxu0 %v9581
    %9717 = vmatmul.f32.gmra.mxu0 %v9500
    %v9718 = vpop.f32.mrf.mxu0
    %v9719 = vadd.f32 %v9699, %v9718
    %9720 = vdwg.mxu0
    %vm9721 = vcmask 9216
    %v9722 = vsel %vm9721, %v9719, -inf
    %9723 = vmax.xlane.f32.xlu0 %v9722
    %v9724 = vpop.xlane.xlu0 %9723
    %v9725 = vsub.f32 %v9719, %v9724
    %v9726 = vmul.f32 %v9725, 1.442695
    %v9727 = vpow.pop %v9726
    %v9728 = vsel %vm9721, %v9727, 0.0
    %9729 = vadd.xlane.f32.xlu0 %v9728
    %v9730 = vpop.xlane.xlu0 %9729
    %v9731 = vrcp.pop %v9730
    %v9732 = vmul.f32 %v9730, %v9731
    %v9733 = vsub.f32 1.0, %v9732
    %v9734 = vmul.f32 %v9731, %v9733
    %v9735 = vadd.f32 %v9731, %v9734
    %vm9736 = vweird.f32 %v9730
    %vm9737 = vweird.f32 %v9731
    %vm9738 = vmor %vm9736, %vm9737
    %v9739 = vsel %vm9738, %v9731, %v9735
    %v9740 = vand.u32 2147483647, %v9730
    %vm9741 = vcmp.eq.f32.partialorder %v9740, 8.507059e+37
    %v9742 = vand.u32 %v9730, 2147483648
    %v9743 = vor.u32 1.1754944e-38, %v9742
    %v9744 = vsel %vm9741, %v9743, %v9739
    %v9745 = vmul.f32 %v9727, %v9744
    %9746 = vst.msk [vmem:[#allocation2] sm:$0x3] %vm9721, %v9745
    %v9747 = vlog2.pop %v9730
    %v9748 = vmul.f32 %v9747, 0.6931472
    %v9749 = vadd.f32 %v9748, %v9724
    %v9750 = vld [vmem:[%s1] sm:$0x3]
    %v9751 = vmul.f32 %v9719, %v9750
    %v9752 = vsel %vm9721, %v9751, 0.0
    %9753 = vadd.xlane.f32.xlu0 %v9752
    %v9754 = vpop.xlane.xlu0 %9753
    %v9755 = vsub.f32 %v9749, %v9754
    %vm9756 = vcmask 1024
    %v9757 = vsel %vm9756, %v9755, 0.0
    %9758 = vadd.xlane.f32.xlu0 %v9757
    %v9759 = vpop.xlane.xlu0 %9758
    %v9760 = vrot.slane %v9759, 4
    %v9761 = vadd.f32 %v9759, %v9760
    %v9762 = vrot.slane %v9761, 2
    %v9763 = vadd.f32 %v9761, %v9762
    %v9764 = vrot.slane %v9763, 1
    %v9765 = vadd.f32 %v9763, %v9764
    %s9766 = vtos %v9765
    %v9767 = vrcp.pop 2.0
    %v9768 = vmul.f32 2.0, %v9767
    %v9769 = vsub.f32 1.0, %v9768
    %v9770 = vmul.f32 %v9767, %v9769
    %v9771 = vadd.f32 %v9767, %v9770
    %vm9772 = vweird.f32 %v9767
    %v9773 = vsel %vm9772, %v9767, %v9771
    %s9774 = vtos %v9773
    %s9775 = smul.f32 %s9766, %s9774
    %v9776 = vstv %s9775
    %vm9777 = vcmask 0
    %9778 = vst.msk [vmem:[#allocation4] sm:$0x1] %vm9777, %v9776
    // Predicated region
    $region74: #{model_forward.1} parent=1 // pred_check
      _
    $region75: #{model_forward.1} parent=1 // pred_check_branch
      %9780 = sbr.rel (0) target = $region77
    $region76: #{model_forward.1} parent=1 // pred_region
      %9782 = vsyncadd [#allocation3], 0
      %s9784 = sshll.u32 [#allocation2], 4
      %s9785 = int_to_ptr.vmem [resolvable:$true] %s9784
      %s9786 = sshll.u32 %s18, 4
      %s9787 = int_to_ptr.hbm [resolvable:$true] %s9786
      %9789 = dma.vmem_to_hbm [thread:$0]  %s9785, 32, %s9787, [#allocation3]
    $region77: #{model_forward.1} parent=1 // pred_fallthru
      _
    // Predicated region
    $region78: #{model_forward.1} parent=1 // pred_check
      _
    $region79: #{model_forward.1} parent=1 // pred_check_branch
      %9791 = sbr.rel (0) target = $region81
    $region80: #{model_forward.1} parent=1 // pred_region
      %9793 = vsyncadd [#allocation5], 0
      %s9795 = sshll.u32 [#allocation4], 4
      %s9796 = int_to_ptr.vmem [resolvable:$true] %s9795
      %s9797 = sshll.u32 %s19, 4
      %s9798 = int_to_ptr.hbm [resolvable:$true] %s9797
      %9800 = dma.vmem_to_hbm [thread:$0]  %s9796, 16, %s9798, [#allocation5]
    $region81: #{model_forward.1} parent=1 // pred_fallthru
      _
    // Predicated region
    $region82: #{model_forward.1} parent=1 // pred_check
      _
    $region83: #{model_forward.1} parent=1 // pred_check_branch
      %9802 = sbr.rel (0) target = $region85
    $region84: #{model_forward.1} parent=1 // pred_region
      %9804 = dma.done [#allocation3], 32
    $region85: #{model_forward.1} parent=1 // pred_fallthru
      _
    // Predicated region
    $region86: #{model_forward.1} parent=1 // pred_check
      _
    $region87: #{model_forward.1} parent=1 // pred_check_branch
      %9806 = sbr.rel (0) target = $region89
    $region88: #{model_forward.1} parent=1 // pred_region
      %9808 = dma.done [#allocation5], 16
    $region89: #{model_forward.1} parent=1 // pred_fallthru
      _
    %9809 = vsyncpa [#allocation3], 1
    %9810 = vsyncpa [#allocation5], 1

</llo_original>
